<compile_context>
chip_gen: v7x
topology: tpu7x:2x2x1
jax: 0.10.0
libtpu: 0.0.40
codegen_flags: <defaults>
</compile_context>

<pallas_src>
import functools
import math

import jax
import jax.numpy as jnp
from jax import lax
from jax.experimental import pallas as pl
from jax.experimental.pallas import tpu as pltpu


_NEG_BIG = -1e30          # large finite mask value (no NaN even if over-masked)
_LANE = 128               # lane width
_SUB = 16                 # bf16 packs 16 rows per vreg sublane group
_EPS = 1e-5               # nn.LayerNorm default eps
_MAX_FUSED_N = 2048       # fuse add+LN into the matmul epilogue when N <= this


def _round_up(x, m):
    return (x + m - 1) // m * m


def _vmem_limit_bytes():
    """v5e/v6e: raise the scoped limit toward the 128 MiB physical VMEM;
    v7x (64 MiB physical): stay under ~48 MiB."""
    try:
        cap = getattr(pltpu.get_tpu_info(), "vmem_capacity_bytes", None)
        if cap:
            return int(min(cap - (16 << 20), 96 << 20))
    except Exception:
        pass
    return 48 << 20


_VMEM_LIMIT = _vmem_limit_bytes()


# ------------------------------ tiled linear --------------------------------

def _linear_kernel(x_ref, w_ref, b_ref, o_ref, acc_ref, *, relu, nk):
    @pl.when(pl.program_id(2) == 0)
    def _():
        acc_ref[...] = jnp.zeros_like(acc_ref)

    acc_ref[...] += jnp.dot(x_ref[...].astype(w_ref.dtype), w_ref[...],
                            preferred_element_type=jnp.float32)

    @pl.when(pl.program_id(2) == nk - 1)
    def _():
        y = acc_ref[...] + b_ref[...]
        if relu:
            y = jnp.maximum(y, 0.0)
        o_ref[...] = y.astype(o_ref.dtype)


def _w_spec(tk, tn, nk):
    idx = lambda i, j, k: (k, j)
    if nk >= 3:
        # deeper weight-stream prefetch for skinny-M / memory-bound matmuls
        try:
            return pl.BlockSpec((tk, tn), idx, pipeline_mode=pl.Buffered(3))
        except Exception:   # older jax without pipeline_mode support
            pass
    return pl.BlockSpec((tk, tn), idx)


def linear(x2d, w, b, *, relu=False, out_dtype=jnp.bfloat16,
           tm=256, tn=512, tk=512):
    """x2d (M,K) bf16 activations, w (K,N) bf16 pre-padded, b (1,N) f32.

    Tiled, pipelined MXU matmul with an f32 VMEM accumulator; bias (+ReLU)
    fused into the last-K epilogue; activations stored as bf16 (f32 only for
    the final vocab head)."""
    M, K = x2d.shape
    N = w.shape[1]
    assert K % _LANE == 0 and N % _LANE == 0, "weights must be pre-padded"
    tm = min(tm, _round_up(M, _SUB))
    tn = min(tn, N)
    while N % tn:
        tn -= _LANE
    tk = min(tk, K)
    while K % tk:
        tk -= _LANE
    Mp = _round_up(M, tm)
    if Mp != M:
        x2d = jnp.pad(x2d, ((0, Mp - M), (0, 0)))
    nk = K // tk

    out = pl.pallas_call(
        functools.partial(_linear_kernel, relu=relu, nk=nk),
        out_shape=jax.ShapeDtypeStruct((Mp, N), out_dtype),
        grid=(Mp // tm, N // tn, nk),
        in_specs=[
            pl.BlockSpec((tm, tk), lambda i, j, k: (i, k)),
            _w_spec(tk, tn, nk),
            pl.BlockSpec((1, tn), lambda i, j, k: (0, j)),
        ],
        out_specs=pl.BlockSpec((tm, tn), lambda i, j, k: (i, j)),
        scratch_shapes=[pltpu.VMEM((tm, tn), jnp.float32)],
        compiler_params=pltpu.CompilerParams(
            dimension_semantics=("parallel", "parallel", "arbitrary"),
            vmem_limit_bytes=_VMEM_LIMIT),
    )(x2d, w, b)
    return out[:M] if Mp != M else out


# ------------------------ (matmul +) add + LayerNorm -------------------------

def _ln_rows(y, g, b, true_n):
    """LayerNorm over the first true_n columns of f32 rows y.  Padded columns
    of y are zero on entry and stay zero on exit (g/b are zero-padded)."""
    n = y.shape[-1]
    mean = jnp.sum(y, axis=-1, keepdims=True) * (1.0 / true_n)
    xc = y - mean
    if true_n != n:
        mask = (lax.broadcasted_iota(jnp.int32, (1, n), 1) < true_n
                ).astype(jnp.float32)
        xc = xc * mask
    var = jnp.sum(xc * xc, axis=-1, keepdims=True) * (1.0 / true_n)
    return xc * lax.rsqrt(var + _EPS) * g + b


def _linear_add_ln_kernel(x_ref, w_ref, b_ref, r_ref, g_ref, bb_ref, o_ref,
                          acc_ref, *, nk, true_n):
    @pl.when(pl.program_id(1) == 0)
    def _():
        acc_ref[...] = jnp.zeros_like(acc_ref)

    acc_ref[...] += jnp.dot(x_ref[...].astype(w_ref.dtype), w_ref[...],
                            preferred_element_type=jnp.float32)

    @pl.when(pl.program_id(1) == nk - 1)
    def _():
        y = acc_ref[...] + b_ref[...] + r_ref[...].astype(jnp.float32)
        o_ref[...] = _ln_rows(y, g_ref[...], bb_ref[...], true_n
                              ).astype(o_ref.dtype)


def linear_add_ln(x2d, w, b, res2d, g, bb, *, true_n, tm=256, tk=512):
    """LayerNorm(res + x2d @ w + b): residual add + LN fused into the matmul
    epilogue (the full output row lives in the f32 accumulator)."""
    M, K = x2d.shape
    N = w.shape[1]
    assert K % _LANE == 0 and N % _LANE == 0, "weights must be pre-padded"
    if N > _MAX_FUSED_N:                      # rare: fall back to two kernels
        y = linear(x2d, w, b)
        return add_layer_norm2d(y, res2d, g, bb, true_n=true_n)
    tm = min(tm, _round_up(M, _SUB))
    tk = min(tk, K)
    while K % tk:
        tk -= _LANE
    Mp = _round_up(M, tm)
    if Mp != M:
        x2d = jnp.pad(x2d, ((0, Mp - M), (0, 0)))
        res2d = jnp.pad(res2d, ((0, Mp - M), (0, 0)))
    nk = K // tk

    out = pl.pallas_call(
        functools.partial(_linear_add_ln_kernel, nk=nk, true_n=true_n),
        out_shape=jax.ShapeDtypeStruct((Mp, N), jnp.bfloat16),
        grid=(Mp // tm, nk),
        in_specs=[
            pl.BlockSpec((tm, tk), lambda i, k: (i, k)),
            pl.BlockSpec((tk, N), lambda i, k: (k, 0)),
            pl.BlockSpec((1, N), lambda i, k: (0, 0)),
            pl.BlockSpec((tm, N), lambda i, k: (i, 0)),
            pl.BlockSpec((1, N), lambda i, k: (0, 0)),
            pl.BlockSpec((1, N), lambda i, k: (0, 0)),
        ],
        out_specs=pl.BlockSpec((tm, N), lambda i, k: (i, 0)),
        scratch_shapes=[pltpu.VMEM((tm, N), jnp.float32)],
        compiler_params=pltpu.CompilerParams(
            dimension_semantics=("parallel", "arbitrary"),
            vmem_limit_bytes=_VMEM_LIMIT),
    )(x2d, w, b, res2d, g, bb)
    return out[:M] if Mp != M else out


# -------------------------- standalone LayerNorm ------------------------------

def _ln_kernel(x_ref, g_ref, b_ref, o_ref, *, true_n):
    o_ref[...] = _ln_rows(x_ref[...].astype(jnp.float32), g_ref[...],
                          b_ref[...], true_n).astype(o_ref.dtype)


def _add_ln_kernel(x_ref, r_ref, g_ref, b_ref, o_ref, *, true_n):
    y = x_ref[...].astype(jnp.float32) + r_ref[...].astype(jnp.float32)
    o_ref[...] = _ln_rows(y, g_ref[...], b_ref[...], true_n).astype(o_ref.dtype)


def _ln_call(kernel, rows, g, b, *, true_n, tr=256):
    M, Np = rows[0].shape
    tr = min(tr, _round_up(M, _SUB))
    Mp = _round_up(M, tr)
    rows = [jnp.pad(a, ((0, Mp - M), (0, 0))) if Mp != M else a for a in rows]
    out = pl.pallas_call(
        functools.partial(kernel, true_n=true_n),
        out_shape=jax.ShapeDtypeStruct((Mp, Np), jnp.bfloat16),
        grid=(Mp // tr,),
        in_specs=[pl.BlockSpec((tr, Np), lambda i: (i, 0))] * len(rows)
        + [pl.BlockSpec((1, Np), lambda i: (0, 0)),
           pl.BlockSpec((1, Np), lambda i: (0, 0))],
        out_specs=pl.BlockSpec((tr, Np), lambda i: (i, 0)),
        compiler_params=pltpu.CompilerParams(
            dimension_semantics=("parallel",),
            vmem_limit_bytes=_VMEM_LIMIT),
    )(*rows, g, b)
    return out[:M] if Mp != M else out


def layer_norm(x3d, g, b, *, true_n):
    B, S, Np = x3d.shape
    return _ln_call(_ln_kernel, [x3d.reshape(B * S, Np)], g, b,
                    true_n=true_n).reshape(B, S, Np)


def add_layer_norm2d(x2d, res2d, g, b, *, true_n):
    return _ln_call(_add_ln_kernel, [x2d, res2d], g, b, true_n=true_n)


# --------------------------------- attention ----------------------------------

def _attention_kernel(q_ref, k_ref, v_ref, o_ref, *, nhead, dh, causal,
                      kv_len, scale):
    Sq, Dp = q_ref.shape[1], q_ref.shape[2]
    Sk = k_ref.shape[1]
    d_true = nhead * dh
    q = q_ref[0]                                   # (Sq, Dp) bf16
    k = k_ref[0]                                   # (Sk, Dp) bf16
    v = v_ref[0]

    mask_add = None
    if causal or kv_len < Sk:
        qi = lax.broadcasted_iota(jnp.int32, (Sq, Sk), 0)
        ki = lax.broadcasted_iota(jnp.int32, (Sq, Sk), 1)
        valid = ki < kv_len
        if causal:
            valid = jnp.logical_and(valid, ki <= qi)
        mask_add = jnp.where(valid, 0.0, _NEG_BIG).astype(jnp.float32)

    if d_true < Dp:   # keep padded lanes zero for downstream consumers
        o_ref[0, :, d_true:] = jnp.zeros((Sq, Dp - d_true), o_ref.dtype)

    # TODO(synk): pad dh to a lane multiple (or grid over heads) to avoid
    # sub-128-lane head slices for production d_head; and tile Sk flash-style
    # (online softmax) for long sequences on v7x's 64 MiB VMEM.
    for h in range(nhead):                         # static unroll over heads
        lo, hi = h * dh, (h + 1) * dh
        qh, kh, vh = q[:, lo:hi], k[:, lo:hi], v[:, lo:hi]
        # contract the head dim directly (no transpose); f32 scores on MXU
        s = lax.dot_general(qh, kh, (((1,), (1,)), ((), ())),
                            preferred_element_type=jnp.float32) * scale
        if mask_add is not None:
            s = s + mask_add
        m = jnp.max(s, axis=-1, keepdims=True)
        p = jnp.exp(s - m)
        p = p * pl.reciprocal(jnp.sum(p, axis=-1, keepdims=True), approx=True)
        oh = jnp.dot(p.astype(vh.dtype), vh, preferred_element_type=jnp.float32)
        o_ref[0, :, lo:hi] = oh.astype(o_ref.dtype)   # stream per head, no concat


def _col_spec(s, dp, col):
    return pl.BlockSpec((1, s, dp), lambda b: (b, 0, col))


def attention(q_arr, k_arr, v_arr, *, dp, q_col, k_col, v_col, nhead, dh,
              causal, kv_len):
    """q_arr (B,Sq,*), k_arr/v_arr (B,Sk,*) bf16.  The (col)-th dp-wide column
    block of each array holds the actual Q/K/V, so fused QKV / KV projection
    outputs are consumed directly (no HBM slice copies, no transposes).
    One batch per grid step, all heads in-kernel.  Output (B,Sq,dp) bf16."""
    B, Sq = q_arr.shape[0], q_arr.shape[1]
    Sk = k_arr.shape[1]
    scale = 1.0 / math.sqrt(dh)
    return pl.pallas_call(
        functools.partial(_attention_kernel, nhead=nhead, dh=dh, causal=causal,
                          kv_len=kv_len, scale=scale),
        out_shape=jax.ShapeDtypeStruct((B, Sq, dp), jnp.bfloat16),
        grid=(B,),
        in_specs=[_col_spec(Sq, dp, q_col),
                  _col_spec(Sk, dp, k_col),
                  _col_spec(Sk, dp, v_col)],
        out_specs=pl.BlockSpec((1, Sq, dp), lambda b: (b, 0, 0)),
        compiler_params=pltpu.CompilerParams(
            dimension_semantics=("parallel",),
            vmem_limit_bytes=_VMEM_LIMIT),
    )(q_arr, k_arr, v_arr)


# --------------------------------- RoPE glue ----------------------------------

def rope(x, base=10000.0):
    """torchtune RotaryPositionalEmbeddings.  x: (B, S, H, dh), dh even."""
    # TODO(synk): fuse the RoPE twiddle into a Pallas epilogue (pltpu.roll /
    # pairwise swizzle) instead of the strided reshape/stack in JAX.
    B, S, H, dh = x.shape
    half = dh // 2
    theta = 1.0 / (base ** (jnp.arange(0, dh, 2, dtype=jnp.float32) / dh))
    pos = jnp.arange(S, dtype=jnp.float32)
    idx_theta = pos[:, None] * theta[None, :]                  # (S, half)
    cos = jnp.cos(idx_theta)[None, :, None, :]                 # (1,S,1,half)
    sin = jnp.sin(idx_theta)[None, :, None, :]
    xs = x.reshape(B, S, H, half, 2)
    x0, x1 = xs[..., 0], xs[..., 1]
    out = jnp.stack([x0 * cos - x1 * sin, x1 * cos + x0 * sin], axis=-1)
    return out.reshape(B, S, H, dh)


# -------------------------------- forward pass ---------------------------------

def gcs_transformer_forward(params, map_array, trajs, *, nhead, d_head, vocab):
    B, Sm, C = map_array.shape
    St = trajs.shape[1]
    D = nhead * d_head
    Dp = _round_up(D, _LANE)
    Smp = _round_up(Sm, _SUB)
    Stp = _round_up(St, _SUB)

    # embedding gathers + RoPE kept as JAX glue (f32 twiddle math)
    map_e = jnp.take(params["map_emb"], map_array, axis=0).reshape(B, Sm, D)
    traj_e = jnp.take(params["traj_emb"], trajs, axis=0)        # (B, St, D)
    all_e = jnp.concatenate([map_e, traj_e], axis=1)
    all_e = rope(all_e.reshape(B, Sm + St, nhead, d_head)).reshape(B, Sm + St, D)

    # pad d_model -> Dp and the sequences -> multiples of 16 ONCE, cast bf16,
    # carry padded bf16 activations through every layer (slice only at logits)
    def pad_cast(x, s_pad):
        s = x.shape[1]
        return jnp.pad(x.astype(jnp.bfloat16),
                       ((0, 0), (0, s_pad - s), (0, Dp - D)))

    src = pad_cast(all_e[:, :Sm], Smp)        # (B, Smp, Dp) bf16
    tgt = pad_cast(all_e[:, Sm:], Stp)        # (B, Stp, Dp) bf16

    attn = functools.partial(attention, dp=Dp, nhead=nhead, dh=d_head)
    Me, Md = B * Smp, B * Stp

    # ---- encoder (post-LN, ReLU, eval-mode dropout = identity) ----
    x = src
    for lp in params["enc"]:
        qkv = linear(x.reshape(Me, Dp), lp["w_qkv"], lp["b_qkv"]
                     ).reshape(B, Smp, 3 * Dp)
        o = attn(qkv, qkv, qkv, q_col=0, k_col=1, v_col=2,
                 causal=False, kv_len=Sm)
        x = linear_add_ln(o.reshape(Me, Dp), lp["wo"], lp["bo"],
                          x.reshape(Me, Dp), lp["n1_g"], lp["n1_b"],
                          true_n=D).reshape(B, Smp, Dp)
        h = linear(x.reshape(Me, Dp), lp["w1"], lp["b1"], relu=True)
        x = linear_add_ln(h, lp["w2"], lp["b2"], x.reshape(Me, Dp),
                          lp["n2_g"], lp["n2_b"], true_n=D).reshape(B, Smp, Dp)
    memory = layer_norm(x, params["enc_norm_g"], params["enc_norm_b"], true_n=D)

    # ---- decoder (causal self-attn via tgt_mask semantics) ----
    y = tgt
    for lp in params["dec"]:
        qkv = linear(y.reshape(Md, Dp), lp["w_qkv"], lp["b_qkv"]
                     ).reshape(B, Stp, 3 * Dp)
        o = attn(qkv, qkv, qkv, q_col=0, k_col=1, v_col=2,
                 causal=True, kv_len=St)
        y = linear_add_ln(o.reshape(Md, Dp), lp["wo"], lp["bo"],
                          y.reshape(Md, Dp), lp["n1_g"], lp["n1_b"],
                          true_n=D).reshape(B, Stp, Dp)
        # cross-attention over the encoder memory (fused K/V projection)
        q = linear(y.reshape(Md, Dp), lp["c_wq"], lp["c_bq"]).reshape(B, Stp, Dp)
        kv = linear(memory.reshape(Me, Dp), lp["c_wkv"], lp["c_bkv"]
                    ).reshape(B, Smp, 2 * Dp)
        o = attn(q, kv, kv, q_col=0, k_col=0, v_col=1, causal=False, kv_len=Sm)
        y = linear_add_ln(o.reshape(Md, Dp), lp["c_wo"], lp["c_bo"],
                          y.reshape(Md, Dp), lp["n2_g"], lp["n2_b"],
                          true_n=D).reshape(B, Stp, Dp)
        # feed-forward
        h = linear(y.reshape(Md, Dp), lp["w1"], lp["b1"], relu=True)
        y = linear_add_ln(h, lp["w2"], lp["b2"], y.reshape(Md, Dp),
                          lp["n3_g"], lp["n3_b"], true_n=D).reshape(B, Stp, Dp)
    out = layer_norm(y, params["dec_norm_g"], params["dec_norm_b"], true_n=D)

    # final projection to the traj vocabulary in f32; padding sliced only here
    logits = linear(out.reshape(Md, Dp), params["lin_w"], params["lin_b"],
                    out_dtype=jnp.float32)
    return logits.reshape(B, Stp, -1)[:, :St, :vocab]


# ---------------------------- parameter init / prep ----------------------------

def init_params(key, *, num_time_bins, num_space_bins, num_map_tokens,
                d_model, nhead, nlayers, num_channels, dim_ff):
    emb_dim = d_model // num_channels
    vocab = num_time_bins + num_space_bins + 3
    padding_idx = num_time_bins + num_space_bins + 2

    keys = iter(jax.random.split(key, 4096))

    def w(shape, scale=0.02):
        return (scale * jax.random.normal(next(keys), shape)).astype(jnp.float32)

    # NOTE: when loading a trained PyTorch checkpoint, in_proj_weight must be
    # sliced (rows 0:D, D:2D, 2D:3D) and transposed into the w_qkv columns.
    def self_attn():
        return {"w_qkv": w((d_model, 3 * d_model)),
                "b_qkv": jnp.zeros((3 * d_model,), jnp.float32),
                "wo": w((d_model, d_model)),
                "bo": jnp.zeros((d_model,), jnp.float32)}

    def cross_attn():
        return {"wq": w((d_model, d_model)),
                "bq": jnp.zeros((d_model,), jnp.float32),
                "w_kv": w((d_model, 2 * d_model)),
                "b_kv": jnp.zeros((2 * d_model,), jnp.float32),
                "wo": w((d_model, d_model)),
                "bo": jnp.zeros((d_model,), jnp.float32)}

    def enc_layer():
        return {"self": self_attn(),
                "n1_g": jnp.ones((d_model,), jnp.float32),
                "n1_b": jnp.zeros((d_model,), jnp.float32),
                "w1": w((d_model, dim_ff)), "b1": jnp.zeros((dim_ff,), jnp.float32),
                "w2": w((dim_ff, d_model)), "b2": jnp.zeros((d_model,), jnp.float32),
                "n2_g": jnp.ones((d_model,), jnp.float32),
                "n2_b": jnp.zeros((d_model,), jnp.float32)}

    def dec_layer():
        lp = enc_layer()
        lp["cross"] = cross_attn()
        lp["n3_g"] = jnp.ones((d_model,), jnp.float32)
        lp["n3_b"] = jnp.zeros((d_model,), jnp.float32)
        return lp

    traj_emb = w((vocab, d_model))
    traj_emb = traj_emb.at[padding_idx].set(0.0)   # padding_idx row is zero

    return {"map_emb": w((num_map_tokens, emb_dim)),
            "traj_emb": traj_emb,
            "enc_layers": [enc_layer() for _ in range(nlayers)],
            "dec_layers": [dec_layer() for _ in range(nlayers)],
            "enc_norm_g": jnp.ones((d_model,), jnp.float32),
            "enc_norm_b": jnp.zeros((d_model,), jnp.float32),
            "dec_norm_g": jnp.ones((d_model,), jnp.float32),
            "dec_norm_b": jnp.zeros((d_model,), jnp.float32),
            "lin_w": w((d_model, vocab)),
            "lin_b": jnp.zeros((vocab,), jnp.float32)}


def prepare_params(raw, *, d_model, dim_ff):
    """One-time weight preparation (run OUTSIDE jit): cast matmul weights to
    bf16 and zero-pad everything to lane multiples so the forward pass never
    pads or casts a weight."""
    D = d_model
    Dp = _round_up(D, _LANE)
    Fp = _round_up(dim_ff, _LANE)

    def pw(w, kp, np_):                     # weight (K,N) -> (kp,np_) bf16
        return jnp.pad(w, ((0, kp - w.shape[0]), (0, np_ - w.shape[1]))
                       ).astype(jnp.bfloat16)

    def pb(b, np_):                         # bias / LN vec (N,) -> (1,np_) f32
        return jnp.pad(b.astype(jnp.float32), (0, np_ - b.shape[0])
                       ).reshape(1, np_)

    def blocks_w(w, nb):                    # (D, nb*D): pad each D-block to Dp
        parts = [pw(w[:, i * D:(i + 1) * D], Dp, Dp) for i in range(nb)]
        return jnp.concatenate(parts, axis=1)

    def blocks_b(b, nb):
        parts = [pb(b[i * D:(i + 1) * D], Dp) for i in range(nb)]
        return jnp.concatenate(parts, axis=1)

    def prep_layer(lp, cross):
        out = {"w_qkv": blocks_w(lp["self"]["w_qkv"], 3),
               "b_qkv": blocks_b(lp["self"]["b_qkv"], 3),
               "wo": pw(lp["self"]["wo"], Dp, Dp),
               "bo": pb(lp["self"]["bo"], Dp),
               "n1_g": pb(lp["n1_g"], Dp), "n1_b": pb(lp["n1_b"], Dp),
               "w1": pw(lp["w1"], Dp, Fp), "b1": pb(lp["b1"], Fp),
               "w2": pw(lp["w2"], Fp, Dp), "b2": pb(lp["b2"], Dp),
               "n2_g": pb(lp["n2_g"], Dp), "n2_b": pb(lp["n2_b"], Dp)}
        if cross:
            cp = lp["cross"]
            out.update({"c_wq": pw(cp["wq"], Dp, Dp), "c_bq": pb(cp["bq"], Dp),
                        "c_wkv": blocks_w(cp["w_kv"], 2),
                        "c_bkv": blocks_b(cp["b_kv"], 2),
                        "c_wo": pw(cp["wo"], Dp, Dp), "c_bo": pb(cp["bo"], Dp),
                        "n3_g": pb(lp["n3_g"], Dp), "n3_b": pb(lp["n3_b"], Dp)})
        return out

    V = raw["lin_b"].shape[0]
    Vp = _round_up(V, _LANE)
    return {"map_emb": raw["map_emb"],
            "traj_emb": raw["traj_emb"],
            "enc": [prep_layer(lp, False) for lp in raw["enc_layers"]],
            "dec": [prep_layer(lp, True) for lp in raw["dec_layers"]],
            "enc_norm_g": pb(raw["enc_norm_g"], Dp),
            "enc_norm_b": pb(raw["enc_norm_b"], Dp),
            "dec_norm_g": pb(raw["dec_norm_g"], Dp),
            "dec_norm_b": pb(raw["dec_norm_b"], Dp),
            "lin_w": pw(raw["lin_w"], Dp, Vp),
            "lin_b": pb(raw["lin_b"], Vp)}


# ------------------------------------ main -------------------------------------

if __name__ == "__main__":
    # small config consistent with the module (d_model divisible by nhead and
    # num_channels; d_head even for RoPE)
    NUM_TIME_BINS = 8
    NUM_SPACE_BINS = 8
    NUM_MAP_TOKENS = 16
    NUM_CHANNELS = 4
    NHEAD = 4
    D_MODEL = 32                 # emb_dim = 8, d_head = 8
    NLAYERS = 2
    DIM_FF = 64
    D_HEAD = D_MODEL // NHEAD
    VOCAB = NUM_TIME_BINS + NUM_SPACE_BINS + 3

    B, MAP_SEQ, TRAJ_SEQ = 2, 6, 8

    key = jax.random.PRNGKey(0)
    kp, km, kt = jax.random.split(key, 3)

    raw_params = init_params(
        kp,
        num_time_bins=NUM_TIME_BINS, num_space_bins=NUM_SPACE_BINS,
        num_map_tokens=NUM_MAP_TOKENS, d_model=D_MODEL, nhead=NHEAD,
        nlayers=NLAYERS, num_channels=NUM_CHANNELS, dim_ff=DIM_FF)
    params = prepare_params(raw_params, d_model=D_MODEL, dim_ff=DIM_FF)

    map_array = jax.random.randint(km, (B, MAP_SEQ, NUM_CHANNELS), 0, NUM_MAP_TOKENS)
    trajs = jax.random.randint(kt, (B, TRAJ_SEQ), 0, VOCAB)

    fwd = jax.jit(functools.partial(
        gcs_transformer_forward, nhead=NHEAD, d_head=D_HEAD, vocab=VOCAB))
    logits = jax.block_until_ready(fwd(params, map_array, trajs))

    assert logits.shape == (B, TRAJ_SEQ, VOCAB), logits.shape
    assert bool(jnp.all(jnp.isfinite(logits)))
    print("KERNEL_OK")
</pallas_src>

<mosaic_0001>
module attributes {stable_mosaic.version = 11 : i64} {
  func.func @_linear_kernel(%arg0: i32, %arg1: i32, %arg2: i32, %arg3: memref<32x128xbf16, #tpu.memory_space<vmem>>, %arg4: memref<128x128xbf16, #tpu.memory_space<vmem>>, %arg5: memref<1x128xf32, #tpu.memory_space<vmem>>, %arg6: memref<32x128xbf16, #tpu.memory_space<vmem>>, %arg7: memref<32x128xf32, #tpu.memory_space<vmem>>) attributes {dimension_semantics = [#tpu.dimension_semantics<parallel>, #tpu.dimension_semantics<parallel>, #tpu.dimension_semantics<arbitrary>], iteration_bounds = array<i64: 1, 1, 1>, scalar_prefetch = 0 : i64, scratch_operands = 1 : i64, tpu.core_type = #tpu.core_type<tc>, window_params = [{transform_indices = @transform_0, window_bounds = array<i64: 32, 128>}, {transform_indices = @transform_1, window_bounds = array<i64: 128, 128>}, {transform_indices = @transform_2, window_bounds = array<i64: 1, 128>}, {transform_indices = @transform_3, window_bounds = array<i64: 32, 128>}]} {
    %c0_i32 = arith.constant 0 : i32
    %0 = arith.cmpi eq, %arg2, %c0_i32 : i32
    %1 = arith.extui %0 : i1 to i32
    %c0_i32_0 = arith.constant 0 : i32
    %2 = arith.cmpi ne, %1, %c0_i32_0 : i32
    scf.if %2 {
      %cst_10 = arith.constant 0.000000e+00 : f32
      %12 = vector.broadcast %cst_10 : f32 to vector<32x128xf32>
      %c0_11 = arith.constant 0 : index
      %c0_12 = arith.constant 0 : index
      %13 = vector.load %arg7[%c0_11, %c0_12] : memref<32x128xf32, #tpu.memory_space<vmem>>, vector<32x128xf32>
      tpu.vector_store %arg7[%c0_11, %c0_12], %12 {strides = array<i32>} : memref<32x128xf32, #tpu.memory_space<vmem>>, vector<32x128xf32>,
    } else {
    }
    %c0 = arith.constant 0 : index
    %c0_1 = arith.constant 0 : index
    %3 = vector.load %arg7[%c0, %c0_1] : memref<32x128xf32, #tpu.memory_space<vmem>>, vector<32x128xf32>
    %c0_2 = arith.constant 0 : index
    %c0_3 = arith.constant 0 : index
    %4 = vector.load %arg3[%c0_2, %c0_3] : memref<32x128xbf16, #tpu.memory_space<vmem>>, vector<32x128xbf16>
    %c0_4 = arith.constant 0 : index
    %c0_5 = arith.constant 0 : index
    %5 = vector.load %arg4[%c0_4, %c0_5] : memref<128x128xbf16, #tpu.memory_space<vmem>>, vector<128x128xbf16>
    %cst = arith.constant dense<0.000000e+00> : vector<32x128xf32>
    %6 = tpu.matmul %4, %5, %cst {dimension_numbers = #tpu.dot_dimension_numbers<[1], [0], [0], [1], [0, 0, 1, 1], [], []>} : vector<32x128xbf16>, vector<128x128xbf16>, vector<32x128xf32> -> vector<32x128xf32>
    %7 = arith.addf %3, %6 : vector<32x128xf32>
    %c0_6 = arith.constant 0 : index
    %c0_7 = arith.constant 0 : index
    %8 = vector.load %arg7[%c0_6, %c0_7] : memref<32x128xf32, #tpu.memory_space<vmem>>, vector<32x128xf32>
    tpu.vector_store %arg7[%c0_6, %c0_7], %7 {strides = array<i32>} : memref<32x128xf32, #tpu.memory_space<vmem>>, vector<32x128xf32>,
    %c0_i32_8 = arith.constant 0 : i32
    %9 = arith.cmpi eq, %arg2, %c0_i32_8 : i32
    %10 = arith.extui %9 : i1 to i32
    %c0_i32_9 = arith.constant 0 : i32
    %11 = arith.cmpi ne, %10, %c0_i32_9 : i32
    scf.if %11 {
      %c0_10 = arith.constant 0 : index
      %c0_11 = arith.constant 0 : index
      %12 = vector.load %arg7[%c0_10, %c0_11] : memref<32x128xf32, #tpu.memory_space<vmem>>, vector<32x128xf32>
      %c0_12 = arith.constant 0 : index
      %c0_13 = arith.constant 0 : index
      %13 = vector.load %arg5[%c0_12, %c0_13] : memref<1x128xf32, #tpu.memory_space<vmem>>, vector<1x128xf32>
      %14 = vector.broadcast %13 : vector<1x128xf32> to vector<32x128xf32>
      %15 = arith.addf %12, %14 : vector<32x128xf32>
      %cst_14 = arith.constant 0.000000e+00 : f32
      %16 = vector.broadcast %cst_14 : f32 to vector<32x128xf32>
      %17 = arith.maximumf %15, %16 : vector<32x128xf32>
      %18 = arith.truncf %17 : vector<32x128xf32> to vector<32x128xbf16>
      %c0_15 = arith.constant 0 : index
      %c0_16 = arith.constant 0 : index
      %19 = vector.load %arg6[%c0_15, %c0_16] : memref<32x128xbf16, #tpu.memory_space<vmem>>, vector<32x128xbf16>
      tpu.vector_store %arg6[%c0_15, %c0_16], %18 {strides = array<i32>} : memref<32x128xbf16, #tpu.memory_space<vmem>>, vector<32x128xbf16>,
    } else {
    }
    return
  }
  func.func @transform_0(%arg0: i32, %arg1: i32, %arg2: i32) -> (i32, i32) {
    %c0_i32 = arith.constant 0 : i32
    return %arg0, %arg2 : i32, i32
  }
  func.func @transform_1(%arg0: i32, %arg1: i32, %arg2: i32) -> (i32, i32) {
    %c0_i32 = arith.constant 0 : i32
    return %arg2, %arg1 : i32, i32
  }
  func.func @transform_2(%arg0: i32, %arg1: i32, %arg2: i32) -> (i32, i32) {
    %c0_i32 = arith.constant 0 : i32
    %c0_i32_0 = arith.constant 0 : i32
    return %c0_i32, %arg1 : i32, i32
  }
  func.func @transform_3(%arg0: i32, %arg1: i32, %arg2: i32) -> (i32, i32) {
    %c0_i32 = arith.constant 0 : i32
    return %arg0, %arg1 : i32, i32
  }
}

module attributes {stable_mosaic.version = 11 : i64} {
  func.func @_linear_kernel(%arg0: i32, %arg1: i32, %arg2: i32, %arg3: memref<32x128xbf16, #tpu.memory_space<vmem>>, %arg4: memref<128x384xbf16, #tpu.memory_space<vmem>>, %arg5: memref<1x384xf32, #tpu.memory_space<vmem>>, %arg6: memref<32x384xbf16, #tpu.memory_space<vmem>>, %arg7: memref<32x384xf32, #tpu.memory_space<vmem>>) attributes {dimension_semantics = [#tpu.dimension_semantics<parallel>, #tpu.dimension_semantics<parallel>, #tpu.dimension_semantics<arbitrary>], iteration_bounds = array<i64: 1, 1, 1>, scalar_prefetch = 0 : i64, scratch_operands = 1 : i64, tpu.core_type = #tpu.core_type<tc>, window_params = [{transform_indices = @transform_0, window_bounds = array<i64: 32, 128>}, {transform_indices = @transform_1, window_bounds = array<i64: 128, 384>}, {transform_indices = @transform_2, window_bounds = array<i64: 1, 384>}, {transform_indices = @transform_3, window_bounds = array<i64: 32, 384>}]} {
    %c0_i32 = arith.constant 0 : i32
    %0 = arith.cmpi eq, %arg2, %c0_i32 : i32
    %1 = arith.extui %0 : i1 to i32
    %c0_i32_0 = arith.constant 0 : i32
    %2 = arith.cmpi ne, %1, %c0_i32_0 : i32
    scf.if %2 {
      %cst_10 = arith.constant 0.000000e+00 : f32
      %12 = vector.broadcast %cst_10 : f32 to vector<32x384xf32>
      %c0_11 = arith.constant 0 : index
      %c0_12 = arith.constant 0 : index
      %13 = vector.load %arg7[%c0_11, %c0_12] : memref<32x384xf32, #tpu.memory_space<vmem>>, vector<32x384xf32>
      tpu.vector_store %arg7[%c0_11, %c0_12], %12 {strides = array<i32>} : memref<32x384xf32, #tpu.memory_space<vmem>>, vector<32x384xf32>,
    } else {
    }
    %c0 = arith.constant 0 : index
    %c0_1 = arith.constant 0 : index
    %3 = vector.load %arg7[%c0, %c0_1] : memref<32x384xf32, #tpu.memory_space<vmem>>, vector<32x384xf32>
    %c0_2 = arith.constant 0 : index
    %c0_3 = arith.constant 0 : index
    %4 = vector.load %arg3[%c0_2, %c0_3] : memref<32x128xbf16, #tpu.memory_space<vmem>>, vector<32x128xbf16>
    %c0_4 = arith.constant 0 : index
    %c0_5 = arith.constant 0 : index
    %5 = vector.load %arg4[%c0_4, %c0_5] : memref<128x384xbf16, #tpu.memory_space<vmem>>, vector<128x384xbf16>
    %cst = arith.constant dense<0.000000e+00> : vector<32x384xf32>
    %6 = tpu.matmul %4, %5, %cst {dimension_numbers = #tpu.dot_dimension_numbers<[1], [0], [0], [1], [0, 0, 1, 1], [], []>} : vector<32x128xbf16>, vector<128x384xbf16>, vector<32x384xf32> -> vector<32x384xf32>
    %7 = arith.addf %3, %6 : vector<32x384xf32>
    %c0_6 = arith.constant 0 : index
    %c0_7 = arith.constant 0 : index
    %8 = vector.load %arg7[%c0_6, %c0_7] : memref<32x384xf32, #tpu.memory_space<vmem>>, vector<32x384xf32>
    tpu.vector_store %arg7[%c0_6, %c0_7], %7 {strides = array<i32>} : memref<32x384xf32, #tpu.memory_space<vmem>>, vector<32x384xf32>,
    %c0_i32_8 = arith.constant 0 : i32
    %9 = arith.cmpi eq, %arg2, %c0_i32_8 : i32
    %10 = arith.extui %9 : i1 to i32
    %c0_i32_9 = arith.constant 0 : i32
    %11 = arith.cmpi ne, %10, %c0_i32_9 : i32
    scf.if %11 {
      %c0_10 = arith.constant 0 : index
      %c0_11 = arith.constant 0 : index
      %12 = vector.load %arg7[%c0_10, %c0_11] : memref<32x384xf32, #tpu.memory_space<vmem>>, vector<32x384xf32>
      %c0_12 = arith.constant 0 : index
      %c0_13 = arith.constant 0 : index
      %13 = vector.load %arg5[%c0_12, %c0_13] : memref<1x384xf32, #tpu.memory_space<vmem>>, vector<1x384xf32>
      %14 = vector.broadcast %13 : vector<1x384xf32> to vector<32x384xf32>
      %15 = arith.addf %12, %14 : vector<32x384xf32>
      %16 = arith.truncf %15 : vector<32x384xf32> to vector<32x384xbf16>
      %c0_14 = arith.constant 0 : index
      %c0_15 = arith.constant 0 : index
      %17 = vector.load %arg6[%c0_14, %c0_15] : memref<32x384xbf16, #tpu.memory_space<vmem>>, vector<32x384xbf16>
      tpu.vector_store %arg6[%c0_14, %c0_15], %16 {strides = array<i32>} : memref<32x384xbf16, #tpu.memory_space<vmem>>, vector<32x384xbf16>,
    } else {
    }
    return
  }
  func.func @transform_0(%arg0: i32, %arg1: i32, %arg2: i32) -> (i32, i32) {
    %c0_i32 = arith.constant 0 : i32
    return %arg0, %arg2 : i32, i32
  }
  func.func @transform_1(%arg0: i32, %arg1: i32, %arg2: i32) -> (i32, i32) {
    %c0_i32 = arith.constant 0 : i32
    return %arg2, %arg1 : i32, i32
  }
  func.func @transform_2(%arg0: i32, %arg1: i32, %arg2: i32) -> (i32, i32) {
    %c0_i32 = arith.constant 0 : i32
    %c0_i32_0 = arith.constant 0 : i32
    return %c0_i32, %arg1 : i32, i32
  }
  func.func @transform_3(%arg0: i32, %arg1: i32, %arg2: i32) -> (i32, i32) {
    %c0_i32 = arith.constant 0 : i32
    return %arg0, %arg1 : i32, i32
  }
}

module attributes {stable_mosaic.version = 11 : i64} {
  func.func @_linear_add_ln_kernel(%arg0: i32, %arg1: i32, %arg2: memref<32x128xbf16, #tpu.memory_space<vmem>>, %arg3: memref<128x128xbf16, #tpu.memory_space<vmem>>, %arg4: memref<1x128xf32, #tpu.memory_space<vmem>>, %arg5: memref<32x128xbf16, #tpu.memory_space<vmem>>, %arg6: memref<1x128xf32, #tpu.memory_space<vmem>>, %arg7: memref<1x128xf32, #tpu.memory_space<vmem>>, %arg8: memref<32x128xbf16, #tpu.memory_space<vmem>>, %arg9: memref<32x128xf32, #tpu.memory_space<vmem>>) attributes {dimension_semantics = [#tpu.dimension_semantics<parallel>, #tpu.dimension_semantics<arbitrary>], iteration_bounds = array<i64: 1, 1>, scalar_prefetch = 0 : i64, scratch_operands = 1 : i64, tpu.core_type = #tpu.core_type<tc>, window_params = [{transform_indices = @transform_0, window_bounds = array<i64: 32, 128>}, {transform_indices = @transform_1, window_bounds = array<i64: 128, 128>}, {pipeline_mode = #tpu.pipeline_mode<synchronous>, transform_indices = @transform_2, window_bounds = array<i64: 1, 128>}, {transform_indices = @transform_3, window_bounds = array<i64: 32, 128>}, {pipeline_mode = #tpu.pipeline_mode<synchronous>, transform_indices = @transform_4, window_bounds = array<i64: 1, 128>}, {pipeline_mode = #tpu.pipeline_mode<synchronous>, transform_indices = @transform_5, window_bounds = array<i64: 1, 128>}, {transform_indices = @transform_6, window_bounds = array<i64: 32, 128>}]} {
    %c0_i32 = arith.constant 0 : i32
    %0 = arith.cmpi eq, %arg1, %c0_i32 : i32
    %1 = arith.extui %0 : i1 to i32
    %c0_i32_0 = arith.constant 0 : i32
    %2 = arith.cmpi ne, %1, %c0_i32_0 : i32
    scf.if %2 {
      %cst_10 = arith.constant 0.000000e+00 : f32
      %12 = vector.broadcast %cst_10 : f32 to vector<32x128xf32>
      %c0_11 = arith.constant 0 : index
      %c0_12 = arith.constant 0 : index
      %13 = vector.load %arg9[%c0_11, %c0_12] : memref<32x128xf32, #tpu.memory_space<vmem>>, vector<32x128xf32>
      tpu.vector_store %arg9[%c0_11, %c0_12], %12 {strides = array<i32>} : memref<32x128xf32, #tpu.memory_space<vmem>>, vector<32x128xf32>,
    } else {
    }
    %c0 = arith.constant 0 : index
    %c0_1 = arith.constant 0 : index
    %3 = vector.load %arg9[%c0, %c0_1] : memref<32x128xf32, #tpu.memory_space<vmem>>, vector<32x128xf32>
    %c0_2 = arith.constant 0 : index
    %c0_3 = arith.constant 0 : index
    %4 = vector.load %arg2[%c0_2, %c0_3] : memref<32x128xbf16, #tpu.memory_space<vmem>>, vector<32x128xbf16>
    %c0_4 = arith.constant 0 : index
    %c0_5 = arith.constant 0 : index
    %5 = vector.load %arg3[%c0_4, %c0_5] : memref<128x128xbf16, #tpu.memory_space<vmem>>, vector<128x128xbf16>
    %cst = arith.constant dense<0.000000e+00> : vector<32x128xf32>
    %6 = tpu.matmul %4, %5, %cst {dimension_numbers = #tpu.dot_dimension_numbers<[1], [0], [0], [1], [0, 0, 1, 1], [], []>} : vector<32x128xbf16>, vector<128x128xbf16>, vector<32x128xf32> -> vector<32x128xf32>
    %7 = arith.addf %3, %6 : vector<32x128xf32>
    %c0_6 = arith.constant 0 : index
    %c0_7 = arith.constant 0 : index
    %8 = vector.load %arg9[%c0_6, %c0_7] : memref<32x128xf32, #tpu.memory_space<vmem>>, vector<32x128xf32>
    tpu.vector_store %arg9[%c0_6, %c0_7], %7 {strides = array<i32>} : memref<32x128xf32, #tpu.memory_space<vmem>>, vector<32x128xf32>,
    %c0_i32_8 = arith.constant 0 : i32
    %9 = arith.cmpi eq, %arg1, %c0_i32_8 : i32
    %10 = arith.extui %9 : i1 to i32
    %c0_i32_9 = arith.constant 0 : i32
    %11 = arith.cmpi ne, %10, %c0_i32_9 : i32
    scf.if %11 {
      %c0_10 = arith.constant 0 : index
      %c0_11 = arith.constant 0 : index
      %12 = vector.load %arg9[%c0_10, %c0_11] : memref<32x128xf32, #tpu.memory_space<vmem>>, vector<32x128xf32>
      %c0_12 = arith.constant 0 : index
      %c0_13 = arith.constant 0 : index
      %13 = vector.load %arg4[%c0_12, %c0_13] : memref<1x128xf32, #tpu.memory_space<vmem>>, vector<1x128xf32>
      %14 = vector.broadcast %13 : vector<1x128xf32> to vector<32x128xf32>
      %15 = arith.addf %12, %14 : vector<32x128xf32>
      %c0_14 = arith.constant 0 : index
      %c0_15 = arith.constant 0 : index
      %16 = vector.load %arg5[%c0_14, %c0_15] : memref<32x128xbf16, #tpu.memory_space<vmem>>, vector<32x128xbf16>
      %17 = arith.extf %16 : vector<32x128xbf16> to vector<32x128xf32>
      %18 = arith.addf %15, %17 : vector<32x128xf32>
      %c0_16 = arith.constant 0 : index
      %c0_17 = arith.constant 0 : index
      %19 = vector.load %arg6[%c0_16, %c0_17] : memref<1x128xf32, #tpu.memory_space<vmem>>, vector<1x128xf32>
      %c0_18 = arith.constant 0 : index
      %c0_19 = arith.constant 0 : index
      %20 = vector.load %arg7[%c0_18, %c0_19] : memref<1x128xf32, #tpu.memory_space<vmem>>, vector<1x128xf32>
      %cst_20 = arith.constant dense<0.000000e+00> : vector<32xf32>
      %21 = vector.multi_reduction <add>, %18, %cst_20 [1] : vector<32x128xf32> to vector<32xf32>
      %22 = vector.shape_cast %21 : vector<32xf32> to vector<32x1xf32>
      %cst_21 = arith.constant 3.125000e-02 : f32
      %23 = vector.broadcast %cst_21 : f32 to vector<32x1xf32>
      %24 = arith.mulf %22, %23 : vector<32x1xf32>
      %25 = vector.broadcast %24 : vector<32x1xf32> to vector<32x128xf32>
      %26 = arith.subf %18, %25 : vector<32x128xf32>
      %27 = tpu.iota {dimensions = array<i32: 1>} : vector<1x128xi32>
      %c32_i32 = arith.constant 32 : i32
      %28 = vector.broadcast %c32_i32 : i32 to vector<1x128xi32>
      %29 = arith.cmpi slt, %27, %28 : vector<1x128xi32>
      %30 = arith.extui %29 : vector<1x128xi1> to vector<1x128xi32>
      %31 = arith.sitofp %30 : vector<1x128xi32> to vector<1x128xf32>
      %32 = vector.broadcast %31 : vector<1x128xf32> to vector<32x128xf32>
      %33 = arith.mulf %26, %32 : vector<32x128xf32>
      %34 = arith.mulf %33, %33 : vector<32x128xf32>
      %cst_22 = arith.constant dense<0.000000e+00> : vector<32xf32>
      %35 = vector.multi_reduction <add>, %34, %cst_22 [1] : vector<32x128xf32> to vector<32xf32>
      %36 = vector.shape_cast %35 : vector<32xf32> to vector<32x1xf32>
      %cst_23 = arith.constant 3.125000e-02 : f32
      %37 = vector.broadcast %cst_23 : f32 to vector<32x1xf32>
      %38 = arith.mulf %36, %37 : vector<32x1xf32>
      %cst_24 = arith.constant 9.99999974E-6 : f32
      %39 = vector.broadcast %cst_24 : f32 to vector<32x1xf32>
      %40 = arith.addf %38, %39 : vector<32x1xf32>
      %41 = math.rsqrt %40 : vector<32x1xf32>
      %42 = vector.broadcast %41 : vector<32x1xf32> to vector<32x128xf32>
      %43 = arith.mulf %33, %42 : vector<32x128xf32>
      %44 = vector.broadcast %19 : vector<1x128xf32> to vector<32x128xf32>
      %45 = arith.mulf %43, %44 : vector<32x128xf32>
      %46 = vector.broadcast %20 : vector<1x128xf32> to vector<32x128xf32>
      %47 = arith.addf %45, %46 : vector<32x128xf32>
      %48 = arith.truncf %47 : vector<32x128xf32> to vector<32x128xbf16>
      %c0_25 = arith.constant 0 : index
      %c0_26 = arith.constant 0 : index
      %49 = vector.load %arg8[%c0_25, %c0_26] : memref<32x128xbf16, #tpu.memory_space<vmem>>, vector<32x128xbf16>
      tpu.vector_store %arg8[%c0_25, %c0_26], %48 {strides = array<i32>} : memref<32x128xbf16, #tpu.memory_space<vmem>>, vector<32x128xbf16>,
    } else {
    }
    return
  }
  func.func @transform_0(%arg0: i32, %arg1: i32) -> (i32, i32) {
    %c0_i32 = arith.constant 0 : i32
    return %arg0, %arg1 : i32, i32
  }
  func.func @transform_1(%arg0: i32, %arg1: i32) -> (i32, i32) {
    %c0_i32 = arith.constant 0 : i32
    %c0_i32_0 = arith.constant 0 : i32
    return %arg1, %c0_i32 : i32, i32
  }
  func.func @transform_2(%arg0: i32, %arg1: i32) -> (i32, i32) {
    %c0_i32 = arith.constant 0 : i32
    %c0_i32_0 = arith.constant 0 : i32
    %c0_i32_1 = arith.constant 0 : i32
    return %c0_i32, %c0_i32_0 : i32, i32
  }
  func.func @transform_3(%arg0: i32, %arg1: i32) -> (i32, i32) {
    %c0_i32 = arith.constant 0 : i32
    %c0_i32_0 = arith.constant 0 : i32
    return %arg0, %c0_i32 : i32, i32
  }
  func.func @transform_4(%arg0: i32, %arg1: i32) -> (i32, i32) {
    %c0_i32 = arith.constant 0 : i32
    %c0_i32_0 = arith.constant 0 : i32
    %c0_i32_1 = arith.constant 0 : i32
    return %c0_i32, %c0_i32_0 : i32, i32
  }
  func.func @transform_5(%arg0: i32, %arg1: i32) -> (i32, i32) {
    %c0_i32 = arith.constant 0 : i32
    %c0_i32_0 = arith.constant 0 : i32
    %c0_i32_1 = arith.constant 0 : i32
    return %c0_i32, %c0_i32_0 : i32, i32
  }
  func.func @transform_6(%arg0: i32, %arg1: i32) -> (i32, i32) {
    %c0_i32 = arith.constant 0 : i32
    %c0_i32_0 = arith.constant 0 : i32
    return %arg0, %c0_i32 : i32, i32
  }
}

module attributes {stable_mosaic.version = 11 : i64} {
  func.func @_attention_kernel(%arg0: i32, %arg1: memref<1x16x128xbf16, #tpu.memory_space<vmem>>, %arg2: memref<1x16x128xbf16, #tpu.memory_space<vmem>>, %arg3: memref<1x16x128xbf16, #tpu.memory_space<vmem>>, %arg4: memref<1x16x128xbf16, #tpu.memory_space<vmem>>) attributes {dimension_semantics = [#tpu.dimension_semantics<parallel>], iteration_bounds = array<i64: 2>, scalar_prefetch = 0 : i64, scratch_operands = 0 : i64, tpu.core_type = #tpu.core_type<tc>, window_params = [{transform_indices = @transform_0, window_bounds = array<i64: 1, 16, 128>}, {transform_indices = @transform_1, window_bounds = array<i64: 1, 16, 128>}, {transform_indices = @transform_2, window_bounds = array<i64: 1, 16, 128>}, {transform_indices = @transform_3, window_bounds = array<i64: 1, 16, 128>}]} {
    %c0 = arith.constant 0 : index
    %c0_0 = arith.constant 0 : index
    %c0_1 = arith.constant 0 : index
    %0 = vector.load %arg1[%c0, %c0_0, %c0_1] : memref<1x16x128xbf16, #tpu.memory_space<vmem>>, vector<1x16x128xbf16>
    %1 = vector.shape_cast %0 : vector<1x16x128xbf16> to vector<16x128xbf16>
    %c0_2 = arith.constant 0 : index
    %c0_3 = arith.constant 0 : index
    %c0_4 = arith.constant 0 : index
    %2 = vector.load %arg2[%c0_2, %c0_3, %c0_4] : memref<1x16x128xbf16, #tpu.memory_space<vmem>>, vector<1x16x128xbf16>
    %3 = vector.shape_cast %2 : vector<1x16x128xbf16> to vector<16x128xbf16>
    %c0_5 = arith.constant 0 : index
    %c0_6 = arith.constant 0 : index
    %c0_7 = arith.constant 0 : index
    %4 = vector.load %arg3[%c0_5, %c0_6, %c0_7] : memref<1x16x128xbf16, #tpu.memory_space<vmem>>, vector<1x16x128xbf16>
    %5 = vector.shape_cast %4 : vector<1x16x128xbf16> to vector<16x128xbf16>
    %6 = tpu.iota {dimensions = array<i32: 1>} : vector<16x16xi32>
    %c6_i32 = arith.constant 6 : i32
    %7 = vector.broadcast %c6_i32 : i32 to vector<16x16xi32>
    %8 = arith.cmpi slt, %6, %7 : vector<16x16xi32>
    %cst = arith.constant 0.000000e+00 : f32
    %cst_8 = arith.constant -1.000000e+30 : f32
    %9 = vector.broadcast %cst : f32 to vector<16x16xf32>
    %10 = vector.broadcast %cst_8 : f32 to vector<16x16xf32>
    %11 = arith.select %8, %9, %10 : vector<16x16xi1>, vector<16x16xf32>
    %cst_9 = arith.constant 0.000000e+00 : bf16
    %12 = vector.broadcast %cst_9 : bf16 to vector<16x96xbf16>
    %c0_10 = arith.constant 0 : index
    %c0_11 = arith.constant 0 : index
    %c32 = arith.constant 32 : index
    %13 = vector.load %arg4[%c0_10, %c0_11, %c32] : memref<1x16x128xbf16, #tpu.memory_space<vmem>>, vector<1x16x96xbf16>
    %14 = vector.shape_cast %13 : vector<1x16x96xbf16> to vector<16x96xbf16>
    %15 = vector.shape_cast %12 : vector<16x96xbf16> to vector<1x16x96xbf16>
    tpu.vector_store %arg4[%c0_10, %c0_11, %c32], %15 {strides = array<i32>} : memref<1x16x128xbf16, #tpu.memory_space<vmem>>, vector<1x16x96xbf16>,
    %16 = vector.extract_strided_slice %1 {offsets = [0, 0], sizes = [16, 8], strides = [1, 1]} : vector<16x128xbf16> to vector<16x8xbf16>
    %17 = vector.extract_strided_slice %3 {offsets = [0, 0], sizes = [16, 8], strides = [1, 1]} : vector<16x128xbf16> to vector<16x8xbf16>
    %18 = vector.extract_strided_slice %5 {offsets = [0, 0], sizes = [16, 8], strides = [1, 1]} : vector<16x128xbf16> to vector<16x8xbf16>
    %cst_12 = arith.constant dense<0.000000e+00> : vector<16x16xf32>
    %19 = tpu.matmul %16, %17, %cst_12 {dimension_numbers = #tpu.dot_dimension_numbers<[1], [1], [0], [0], [0, 0, 1, 0], [], []>} : vector<16x8xbf16>, vector<16x8xbf16>, vector<16x16xf32> -> vector<16x16xf32>
    %cst_13 = arith.constant 0.353553385 : f32
    %20 = vector.broadcast %cst_13 : f32 to vector<16x16xf32>
    %21 = arith.mulf %19, %20 : vector<16x16xf32>
    %22 = arith.addf %21, %11 : vector<16x16xf32>
    %cst_14 = arith.constant dense<0xFF800000> : vector<16xf32>
    %23 = vector.multi_reduction <maximumf>, %22, %cst_14 [1] : vector<16x16xf32> to vector<16xf32>
    %24 = vector.shape_cast %23 : vector<16xf32> to vector<16x1xf32>
    %25 = vector.broadcast %24 : vector<16x1xf32> to vector<16x16xf32>
    %26 = arith.subf %22, %25 : vector<16x16xf32>
    %27 = math.exp %26 : vector<16x16xf32>
    %cst_15 = arith.constant dense<0.000000e+00> : vector<16xf32>
    %28 = vector.multi_reduction <add>, %27, %cst_15 [1] : vector<16x16xf32> to vector<16xf32>
    %29 = vector.shape_cast %28 : vector<16xf32> to vector<16x1xf32>
    %30 = tpu.reciprocal %29 {approx = true} : vector<16x1xf32> -> vector<16x1xf32>
    %31 = vector.broadcast %30 : vector<16x1xf32> to vector<16x16xf32>
    %32 = arith.mulf %27, %31 : vector<16x16xf32>
    %33 = arith.truncf %32 : vector<16x16xf32> to vector<16x16xbf16>
    %cst_16 = arith.constant dense<0.000000e+00> : vector<16x8xf32>
    %34 = tpu.matmul %33, %18, %cst_16 {dimension_numbers = #tpu.dot_dimension_numbers<[1], [0], [0], [1], [0, 0, 1, 1], [], []>} : vector<16x16xbf16>, vector<16x8xbf16>, vector<16x8xf32> -> vector<16x8xf32>
    %35 = arith.truncf %34 : vector<16x8xf32> to vector<16x8xbf16>
    %c0_17 = arith.constant 0 : index
    %c0_18 = arith.constant 0 : index
    %c0_19 = arith.constant 0 : index
    %36 = vector.load %arg4[%c0_17, %c0_18, %c0_19] : memref<1x16x128xbf16, #tpu.memory_space<vmem>>, vector<1x16x8xbf16>
    %37 = vector.shape_cast %36 : vector<1x16x8xbf16> to vector<16x8xbf16>
    %38 = vector.shape_cast %35 : vector<16x8xbf16> to vector<1x16x8xbf16>
    tpu.vector_store %arg4[%c0_17, %c0_18, %c0_19], %38 {strides = array<i32>} : memref<1x16x128xbf16, #tpu.memory_space<vmem>>, vector<1x16x8xbf16>,
    %39 = vector.extract_strided_slice %1 {offsets = [0, 8], sizes = [16, 8], strides = [1, 1]} : vector<16x128xbf16> to vector<16x8xbf16>
    %40 = vector.extract_strided_slice %3 {offsets = [0, 8], sizes = [16, 8], strides = [1, 1]} : vector<16x128xbf16> to vector<16x8xbf16>
    %41 = vector.extract_strided_slice %5 {offsets = [0, 8], sizes = [16, 8], strides = [1, 1]} : vector<16x128xbf16> to vector<16x8xbf16>
    %cst_20 = arith.constant dense<0.000000e+00> : vector<16x16xf32>
    %42 = tpu.matmul %39, %40, %cst_20 {dimension_numbers = #tpu.dot_dimension_numbers<[1], [1], [0], [0], [0, 0, 1, 0], [], []>} : vector<16x8xbf16>, vector<16x8xbf16>, vector<16x16xf32> -> vector<16x16xf32>
    %cst_21 = arith.constant 0.353553385 : f32
    %43 = vector.broadcast %cst_21 : f32 to vector<16x16xf32>
    %44 = arith.mulf %42, %43 : vector<16x16xf32>
    %45 = arith.addf %44, %11 : vector<16x16xf32>
    %cst_22 = arith.constant dense<0xFF800000> : vector<16xf32>
    %46 = vector.multi_reduction <maximumf>, %45, %cst_22 [1] : vector<16x16xf32> to vector<16xf32>
    %47 = vector.shape_cast %46 : vector<16xf32> to vector<16x1xf32>
    %48 = vector.broadcast %47 : vector<16x1xf32> to vector<16x16xf32>
    %49 = arith.subf %45, %48 : vector<16x16xf32>
    %50 = math.exp %49 : vector<16x16xf32>
    %cst_23 = arith.constant dense<0.000000e+00> : vector<16xf32>
    %51 = vector.multi_reduction <add>, %50, %cst_23 [1] : vector<16x16xf32> to vector<16xf32>
    %52 = vector.shape_cast %51 : vector<16xf32> to vector<16x1xf32>
    %53 = tpu.reciprocal %52 {approx = true} : vector<16x1xf32> -> vector<16x1xf32>
    %54 = vector.broadcast %53 : vector<16x1xf32> to vector<16x16xf32>
    %55 = arith.mulf %50, %54 : vector<16x16xf32>
    %56 = arith.truncf %55 : vector<16x16xf32> to vector<16x16xbf16>
    %cst_24 = arith.constant dense<0.000000e+00> : vector<16x8xf32>
    %57 = tpu.matmul %56, %41, %cst_24 {dimension_numbers = #tpu.dot_dimension_numbers<[1], [0], [0], [1], [0, 0, 1, 1], [], []>} : vector<16x16xbf16>, vector<16x8xbf16>, vector<16x8xf32> -> vector<16x8xf32>
    %58 = arith.truncf %57 : vector<16x8xf32> to vector<16x8xbf16>
    %c0_25 = arith.constant 0 : index
    %c0_26 = arith.constant 0 : index
    %c8 = arith.constant 8 : index
    %59 = vector.load %arg4[%c0_25, %c0_26, %c8] : memref<1x16x128xbf16, #tpu.memory_space<vmem>>, vector<1x16x8xbf16>
    %60 = vector.shape_cast %59 : vector<1x16x8xbf16> to vector<16x8xbf16>
    %61 = vector.shape_cast %58 : vector<16x8xbf16> to vector<1x16x8xbf16>
    tpu.vector_store %arg4[%c0_25, %c0_26, %c8], %61 {strides = array<i32>} : memref<1x16x128xbf16, #tpu.memory_space<vmem>>, vector<1x16x8xbf16>,
    %62 = vector.extract_strided_slice %1 {offsets = [0, 16], sizes = [16, 8], strides = [1, 1]} : vector<16x128xbf16> to vector<16x8xbf16>
    %63 = vector.extract_strided_slice %3 {offsets = [0, 16], sizes = [16, 8], strides = [1, 1]} : vector<16x128xbf16> to vector<16x8xbf16>
    %64 = vector.extract_strided_slice %5 {offsets = [0, 16], sizes = [16, 8], strides = [1, 1]} : vector<16x128xbf16> to vector<16x8xbf16>
    %cst_27 = arith.constant dense<0.000000e+00> : vector<16x16xf32>
    %65 = tpu.matmul %62, %63, %cst_27 {dimension_numbers = #tpu.dot_dimension_numbers<[1], [1], [0], [0], [0, 0, 1, 0], [], []>} : vector<16x8xbf16>, vector<16x8xbf16>, vector<16x16xf32> -> vector<16x16xf32>
    %cst_28 = arith.constant 0.353553385 : f32
    %66 = vector.broadcast %cst_28 : f32 to vector<16x16xf32>
    %67 = arith.mulf %65, %66 : vector<16x16xf32>
    %68 = arith.addf %67, %11 : vector<16x16xf32>
    %cst_29 = arith.constant dense<0xFF800000> : vector<16xf32>
    %69 = vector.multi_reduction <maximumf>, %68, %cst_29 [1] : vector<16x16xf32> to vector<16xf32>
    %70 = vector.shape_cast %69 : vector<16xf32> to vector<16x1xf32>
    %71 = vector.broadcast %70 : vector<16x1xf32> to vector<16x16xf32>
    %72 = arith.subf %68, %71 : vector<16x16xf32>
    %73 = math.exp %72 : vector<16x16xf32>
    %cst_30 = arith.constant dense<0.000000e+00> : vector<16xf32>
    %74 = vector.multi_reduction <add>, %73, %cst_30 [1] : vector<16x16xf32> to vector<16xf32>
    %75 = vector.shape_cast %74 : vector<16xf32> to vector<16x1xf32>
    %76 = tpu.reciprocal %75 {approx = true} : vector<16x1xf32> -> vector<16x1xf32>
    %77 = vector.broadcast %76 : vector<16x1xf32> to vector<16x16xf32>
    %78 = arith.mulf %73, %77 : vector<16x16xf32>
    %79 = arith.truncf %78 : vector<16x16xf32> to vector<16x16xbf16>
    %cst_31 = arith.constant dense<0.000000e+00> : vector<16x8xf32>
    %80 = tpu.matmul %79, %64, %cst_31 {dimension_numbers = #tpu.dot_dimension_numbers<[1], [0], [0], [1], [0, 0, 1, 1], [], []>} : vector<16x16xbf16>, vector<16x8xbf16>, vector<16x8xf32> -> vector<16x8xf32>
    %81 = arith.truncf %80 : vector<16x8xf32> to vector<16x8xbf16>
    %c0_32 = arith.constant 0 : index
    %c0_33 = arith.constant 0 : index
    %c16 = arith.constant 16 : index
    %82 = vector.load %arg4[%c0_32, %c0_33, %c16] : memref<1x16x128xbf16, #tpu.memory_space<vmem>>, vector<1x16x8xbf16>
    %83 = vector.shape_cast %82 : vector<1x16x8xbf16> to vector<16x8xbf16>
    %84 = vector.shape_cast %81 : vector<16x8xbf16> to vector<1x16x8xbf16>
    tpu.vector_store %arg4[%c0_32, %c0_33, %c16], %84 {strides = array<i32>} : memref<1x16x128xbf16, #tpu.memory_space<vmem>>, vector<1x16x8xbf16>,
    %85 = vector.extract_strided_slice %1 {offsets = [0, 24], sizes = [16, 8], strides = [1, 1]} : vector<16x128xbf16> to vector<16x8xbf16>
    %86 = vector.extract_strided_slice %3 {offsets = [0, 24], sizes = [16, 8], strides = [1, 1]} : vector<16x128xbf16> to vector<16x8xbf16>
    %87 = vector.extract_strided_slice %5 {offsets = [0, 24], sizes = [16, 8], strides = [1, 1]} : vector<16x128xbf16> to vector<16x8xbf16>
    %cst_34 = arith.constant dense<0.000000e+00> : vector<16x16xf32>
    %88 = tpu.matmul %85, %86, %cst_34 {dimension_numbers = #tpu.dot_dimension_numbers<[1], [1], [0], [0], [0, 0, 1, 0], [], []>} : vector<16x8xbf16>, vector<16x8xbf16>, vector<16x16xf32> -> vector<16x16xf32>
    %cst_35 = arith.constant 0.353553385 : f32
    %89 = vector.broadcast %cst_35 : f32 to vector<16x16xf32>
    %90 = arith.mulf %88, %89 : vector<16x16xf32>
    %91 = arith.addf %90, %11 : vector<16x16xf32>
    %cst_36 = arith.constant dense<0xFF800000> : vector<16xf32>
    %92 = vector.multi_reduction <maximumf>, %91, %cst_36 [1] : vector<16x16xf32> to vector<16xf32>
    %93 = vector.shape_cast %92 : vector<16xf32> to vector<16x1xf32>
    %94 = vector.broadcast %93 : vector<16x1xf32> to vector<16x16xf32>
    %95 = arith.subf %91, %94 : vector<16x16xf32>
    %96 = math.exp %95 : vector<16x16xf32>
    %cst_37 = arith.constant dense<0.000000e+00> : vector<16xf32>
    %97 = vector.multi_reduction <add>, %96, %cst_37 [1] : vector<16x16xf32> to vector<16xf32>
    %98 = vector.shape_cast %97 : vector<16xf32> to vector<16x1xf32>
    %99 = tpu.reciprocal %98 {approx = true} : vector<16x1xf32> -> vector<16x1xf32>
    %100 = vector.broadcast %99 : vector<16x1xf32> to vector<16x16xf32>
    %101 = arith.mulf %96, %100 : vector<16x16xf32>
    %102 = arith.truncf %101 : vector<16x16xf32> to vector<16x16xbf16>
    %cst_38 = arith.constant dense<0.000000e+00> : vector<16x8xf32>
    %103 = tpu.matmul %102, %87, %cst_38 {dimension_numbers = #tpu.dot_dimension_numbers<[1], [0], [0], [1], [0, 0, 1, 1], [], []>} : vector<16x16xbf16>, vector<16x8xbf16>, vector<16x8xf32> -> vector<16x8xf32>
    %104 = arith.truncf %103 : vector<16x8xf32> to vector<16x8xbf16>
    %c0_39 = arith.constant 0 : index
    %c0_40 = arith.constant 0 : index
    %c24 = arith.constant 24 : index
    %105 = vector.load %arg4[%c0_39, %c0_40, %c24] : memref<1x16x128xbf16, #tpu.memory_space<vmem>>, vector<1x16x8xbf16>
    %106 = vector.shape_cast %105 : vector<1x16x8xbf16> to vector<16x8xbf16>
    %107 = vector.shape_cast %104 : vector<16x8xbf16> to vector<1x16x8xbf16>
    tpu.vector_store %arg4[%c0_39, %c0_40, %c24], %107 {strides = array<i32>} : memref<1x16x128xbf16, #tpu.memory_space<vmem>>, vector<1x16x8xbf16>,
    return
  }
  func.func @transform_0(%arg0: i32) -> (i32, i32, i32) {
    %c0_i32 = arith.constant 0 : i32
    %c0_i32_0 = arith.constant 0 : i32
    %c0_i32_1 = arith.constant 0 : i32
    return %arg0, %c0_i32, %c0_i32_0 : i32, i32, i32
  }
  func.func @transform_1(%arg0: i32) -> (i32, i32, i32) {
    %c0_i32 = arith.constant 0 : i32
    %c1_i32 = arith.constant 1 : i32
    %c0_i32_0 = arith.constant 0 : i32
    return %arg0, %c0_i32, %c1_i32 : i32, i32, i32
  }
  func.func @transform_2(%arg0: i32) -> (i32, i32, i32) {
    %c0_i32 = arith.constant 0 : i32
    %c2_i32 = arith.constant 2 : i32
    %c0_i32_0 = arith.constant 0 : i32
    return %arg0, %c0_i32, %c2_i32 : i32, i32, i32
  }
  func.func @transform_3(%arg0: i32) -> (i32, i32, i32) {
    %c0_i32 = arith.constant 0 : i32
    %c0_i32_0 = arith.constant 0 : i32
    %c0_i32_1 = arith.constant 0 : i32
    return %arg0, %c0_i32, %c0_i32_0 : i32, i32, i32
  }
}

module attributes {stable_mosaic.version = 11 : i64} {
  func.func @_ln_kernel(%arg0: i32, %arg1: memref<32x128xbf16, #tpu.memory_space<vmem>>, %arg2: memref<1x128xf32, #tpu.memory_space<vmem>>, %arg3: memref<1x128xf32, #tpu.memory_space<vmem>>, %arg4: memref<32x128xbf16, #tpu.memory_space<vmem>>) attributes {dimension_semantics = [#tpu.dimension_semantics<parallel>], iteration_bounds = array<i64: 1>, scalar_prefetch = 0 : i64, scratch_operands = 0 : i64, tpu.core_type = #tpu.core_type<tc>, window_params = [{transform_indices = @transform_0, window_bounds = array<i64: 32, 128>}, {pipeline_mode = #tpu.pipeline_mode<synchronous>, transform_indices = @transform_1, window_bounds = array<i64: 1, 128>}, {pipeline_mode = #tpu.pipeline_mode<synchronous>, transform_indices = @transform_2, window_bounds = array<i64: 1, 128>}, {transform_indices = @transform_3, window_bounds = array<i64: 32, 128>}]} {
    %c0 = arith.constant 0 : index
    %c0_0 = arith.constant 0 : index
    %0 = vector.load %arg1[%c0, %c0_0] : memref<32x128xbf16, #tpu.memory_space<vmem>>, vector<32x128xbf16>
    %1 = arith.extf %0 : vector<32x128xbf16> to vector<32x128xf32>
    %c0_1 = arith.constant 0 : index
    %c0_2 = arith.constant 0 : index
    %2 = vector.load %arg2[%c0_1, %c0_2] : memref<1x128xf32, #tpu.memory_space<vmem>>, vector<1x128xf32>
    %c0_3 = arith.constant 0 : index
    %c0_4 = arith.constant 0 : index
    %3 = vector.load %arg3[%c0_3, %c0_4] : memref<1x128xf32, #tpu.memory_space<vmem>>, vector<1x128xf32>
    %cst = arith.constant dense<0.000000e+00> : vector<32xf32>
    %4 = vector.multi_reduction <add>, %1, %cst [1] : vector<32x128xf32> to vector<32xf32>
    %5 = vector.shape_cast %4 : vector<32xf32> to vector<32x1xf32>
    %cst_5 = arith.constant 3.125000e-02 : f32
    %6 = vector.broadcast %cst_5 : f32 to vector<32x1xf32>
    %7 = arith.mulf %5, %6 : vector<32x1xf32>
    %8 = vector.broadcast %7 : vector<32x1xf32> to vector<32x128xf32>
    %9 = arith.subf %1, %8 : vector<32x128xf32>
    %10 = tpu.iota {dimensions = array<i32: 1>} : vector<1x128xi32>
    %c32_i32 = arith.constant 32 : i32
    %11 = vector.broadcast %c32_i32 : i32 to vector<1x128xi32>
    %12 = arith.cmpi slt, %10, %11 : vector<1x128xi32>
    %13 = arith.extui %12 : vector<1x128xi1> to vector<1x128xi32>
    %14 = arith.sitofp %13 : vector<1x128xi32> to vector<1x128xf32>
    %15 = vector.broadcast %14 : vector<1x128xf32> to vector<32x128xf32>
    %16 = arith.mulf %9, %15 : vector<32x128xf32>
    %17 = arith.mulf %16, %16 : vector<32x128xf32>
    %cst_6 = arith.constant dense<0.000000e+00> : vector<32xf32>
    %18 = vector.multi_reduction <add>, %17, %cst_6 [1] : vector<32x128xf32> to vector<32xf32>
    %19 = vector.shape_cast %18 : vector<32xf32> to vector<32x1xf32>
    %cst_7 = arith.constant 3.125000e-02 : f32
    %20 = vector.broadcast %cst_7 : f32 to vector<32x1xf32>
    %21 = arith.mulf %19, %20 : vector<32x1xf32>
    %cst_8 = arith.constant 9.99999974E-6 : f32
    %22 = vector.broadcast %cst_8 : f32 to vector<32x1xf32>
    %23 = arith.addf %21, %22 : vector<32x1xf32>
    %24 = math.rsqrt %23 : vector<32x1xf32>
    %25 = vector.broadcast %24 : vector<32x1xf32> to vector<32x128xf32>
    %26 = arith.mulf %16, %25 : vector<32x128xf32>
    %27 = vector.broadcast %2 : vector<1x128xf32> to vector<32x128xf32>
    %28 = arith.mulf %26, %27 : vector<32x128xf32>
    %29 = vector.broadcast %3 : vector<1x128xf32> to vector<32x128xf32>
    %30 = arith.addf %28, %29 : vector<32x128xf32>
    %31 = arith.truncf %30 : vector<32x128xf32> to vector<32x128xbf16>
    %c0_9 = arith.constant 0 : index
    %c0_10 = arith.constant 0 : index
    %32 = vector.load %arg4[%c0_9, %c0_10] : memref<32x128xbf16, #tpu.memory_space<vmem>>, vector<32x128xbf16>
    tpu.vector_store %arg4[%c0_9, %c0_10], %31 {strides = array<i32>} : memref<32x128xbf16, #tpu.memory_space<vmem>>, vector<32x128xbf16>,
    return
  }
  func.func @transform_0(%arg0: i32) -> (i32, i32) {
    %c0_i32 = arith.constant 0 : i32
    %c0_i32_0 = arith.constant 0 : i32
    return %arg0, %c0_i32 : i32, i32
  }
  func.func @transform_1(%arg0: i32) -> (i32, i32) {
    %c0_i32 = arith.constant 0 : i32
    %c0_i32_0 = arith.constant 0 : i32
    %c0_i32_1 = arith.constant 0 : i32
    return %c0_i32, %c0_i32_0 : i32, i32
  }
  func.func @transform_2(%arg0: i32) -> (i32, i32) {
    %c0_i32 = arith.constant 0 : i32
    %c0_i32_0 = arith.constant 0 : i32
    %c0_i32_1 = arith.constant 0 : i32
    return %c0_i32, %c0_i32_0 : i32, i32
  }
  func.func @transform_3(%arg0: i32) -> (i32, i32) {
    %c0_i32 = arith.constant 0 : i32
    %c0_i32_0 = arith.constant 0 : i32
    return %arg0, %c0_i32 : i32, i32
  }
}

module attributes {stable_mosaic.version = 11 : i64} {
  func.func @_linear_kernel(%arg0: i32, %arg1: i32, %arg2: i32, %arg3: memref<32x128xbf16, #tpu.memory_space<vmem>>, %arg4: memref<128x256xbf16, #tpu.memory_space<vmem>>, %arg5: memref<1x256xf32, #tpu.memory_space<vmem>>, %arg6: memref<32x256xbf16, #tpu.memory_space<vmem>>, %arg7: memref<32x256xf32, #tpu.memory_space<vmem>>) attributes {dimension_semantics = [#tpu.dimension_semantics<parallel>, #tpu.dimension_semantics<parallel>, #tpu.dimension_semantics<arbitrary>], iteration_bounds = array<i64: 1, 1, 1>, scalar_prefetch = 0 : i64, scratch_operands = 1 : i64, tpu.core_type = #tpu.core_type<tc>, window_params = [{transform_indices = @transform_0, window_bounds = array<i64: 32, 128>}, {transform_indices = @transform_1, window_bounds = array<i64: 128, 256>}, {transform_indices = @transform_2, window_bounds = array<i64: 1, 256>}, {transform_indices = @transform_3, window_bounds = array<i64: 32, 256>}]} {
    %c0_i32 = arith.constant 0 : i32
    %0 = arith.cmpi eq, %arg2, %c0_i32 : i32
    %1 = arith.extui %0 : i1 to i32
    %c0_i32_0 = arith.constant 0 : i32
    %2 = arith.cmpi ne, %1, %c0_i32_0 : i32
    scf.if %2 {
      %cst_10 = arith.constant 0.000000e+00 : f32
      %12 = vector.broadcast %cst_10 : f32 to vector<32x256xf32>
      %c0_11 = arith.constant 0 : index
      %c0_12 = arith.constant 0 : index
      %13 = vector.load %arg7[%c0_11, %c0_12] : memref<32x256xf32, #tpu.memory_space<vmem>>, vector<32x256xf32>
      tpu.vector_store %arg7[%c0_11, %c0_12], %12 {strides = array<i32>} : memref<32x256xf32, #tpu.memory_space<vmem>>, vector<32x256xf32>,
    } else {
    }
    %c0 = arith.constant 0 : index
    %c0_1 = arith.constant 0 : index
    %3 = vector.load %arg7[%c0, %c0_1] : memref<32x256xf32, #tpu.memory_space<vmem>>, vector<32x256xf32>
    %c0_2 = arith.constant 0 : index
    %c0_3 = arith.constant 0 : index
    %4 = vector.load %arg3[%c0_2, %c0_3] : memref<32x128xbf16, #tpu.memory_space<vmem>>, vector<32x128xbf16>
    %c0_4 = arith.constant 0 : index
    %c0_5 = arith.constant 0 : index
    %5 = vector.load %arg4[%c0_4, %c0_5] : memref<128x256xbf16, #tpu.memory_space<vmem>>, vector<128x256xbf16>
    %cst = arith.constant dense<0.000000e+00> : vector<32x256xf32>
    %6 = tpu.matmul %4, %5, %cst {dimension_numbers = #tpu.dot_dimension_numbers<[1], [0], [0], [1], [0, 0, 1, 1], [], []>} : vector<32x128xbf16>, vector<128x256xbf16>, vector<32x256xf32> -> vector<32x256xf32>
    %7 = arith.addf %3, %6 : vector<32x256xf32>
    %c0_6 = arith.constant 0 : index
    %c0_7 = arith.constant 0 : index
    %8 = vector.load %arg7[%c0_6, %c0_7] : memref<32x256xf32, #tpu.memory_space<vmem>>, vector<32x256xf32>
    tpu.vector_store %arg7[%c0_6, %c0_7], %7 {strides = array<i32>} : memref<32x256xf32, #tpu.memory_space<vmem>>, vector<32x256xf32>,
    %c0_i32_8 = arith.constant 0 : i32
    %9 = arith.cmpi eq, %arg2, %c0_i32_8 : i32
    %10 = arith.extui %9 : i1 to i32
    %c0_i32_9 = arith.constant 0 : i32
    %11 = arith.cmpi ne, %10, %c0_i32_9 : i32
    scf.if %11 {
      %c0_10 = arith.constant 0 : index
      %c0_11 = arith.constant 0 : index
      %12 = vector.load %arg7[%c0_10, %c0_11] : memref<32x256xf32, #tpu.memory_space<vmem>>, vector<32x256xf32>
      %c0_12 = arith.constant 0 : index
      %c0_13 = arith.constant 0 : index
      %13 = vector.load %arg5[%c0_12, %c0_13] : memref<1x256xf32, #tpu.memory_space<vmem>>, vector<1x256xf32>
      %14 = vector.broadcast %13 : vector<1x256xf32> to vector<32x256xf32>
      %15 = arith.addf %12, %14 : vector<32x256xf32>
      %16 = arith.truncf %15 : vector<32x256xf32> to vector<32x256xbf16>
      %c0_14 = arith.constant 0 : index
      %c0_15 = arith.constant 0 : index
      %17 = vector.load %arg6[%c0_14, %c0_15] : memref<32x256xbf16, #tpu.memory_space<vmem>>, vector<32x256xbf16>
      tpu.vector_store %arg6[%c0_14, %c0_15], %16 {strides = array<i32>} : memref<32x256xbf16, #tpu.memory_space<vmem>>, vector<32x256xbf16>,
    } else {
    }
    return
  }
  func.func @transform_0(%arg0: i32, %arg1: i32, %arg2: i32) -> (i32, i32) {
    %c0_i32 = arith.constant 0 : i32
    return %arg0, %arg2 : i32, i32
  }
  func.func @transform_1(%arg0: i32, %arg1: i32, %arg2: i32) -> (i32, i32) {
    %c0_i32 = arith.constant 0 : i32
    return %arg2, %arg1 : i32, i32
  }
  func.func @transform_2(%arg0: i32, %arg1: i32, %arg2: i32) -> (i32, i32) {
    %c0_i32 = arith.constant 0 : i32
    %c0_i32_0 = arith.constant 0 : i32
    return %c0_i32, %arg1 : i32, i32
  }
  func.func @transform_3(%arg0: i32, %arg1: i32, %arg2: i32) -> (i32, i32) {
    %c0_i32 = arith.constant 0 : i32
    return %arg0, %arg1 : i32, i32
  }
}

module attributes {stable_mosaic.version = 11 : i64} {
  func.func @_attention_kernel(%arg0: i32, %arg1: memref<1x16x128xbf16, #tpu.memory_space<vmem>>, %arg2: memref<1x16x128xbf16, #tpu.memory_space<vmem>>, %arg3: memref<1x16x128xbf16, #tpu.memory_space<vmem>>, %arg4: memref<1x16x128xbf16, #tpu.memory_space<vmem>>) attributes {dimension_semantics = [#tpu.dimension_semantics<parallel>], iteration_bounds = array<i64: 2>, scalar_prefetch = 0 : i64, scratch_operands = 0 : i64, tpu.core_type = #tpu.core_type<tc>, window_params = [{transform_indices = @transform_0, window_bounds = array<i64: 1, 16, 128>}, {transform_indices = @transform_1, window_bounds = array<i64: 1, 16, 128>}, {transform_indices = @transform_2, window_bounds = array<i64: 1, 16, 128>}, {transform_indices = @transform_3, window_bounds = array<i64: 1, 16, 128>}]} {
    %c0 = arith.constant 0 : index
    %c0_0 = arith.constant 0 : index
    %c0_1 = arith.constant 0 : index
    %0 = vector.load %arg1[%c0, %c0_0, %c0_1] : memref<1x16x128xbf16, #tpu.memory_space<vmem>>, vector<1x16x128xbf16>
    %1 = vector.shape_cast %0 : vector<1x16x128xbf16> to vector<16x128xbf16>
    %c0_2 = arith.constant 0 : index
    %c0_3 = arith.constant 0 : index
    %c0_4 = arith.constant 0 : index
    %2 = vector.load %arg2[%c0_2, %c0_3, %c0_4] : memref<1x16x128xbf16, #tpu.memory_space<vmem>>, vector<1x16x128xbf16>
    %3 = vector.shape_cast %2 : vector<1x16x128xbf16> to vector<16x128xbf16>
    %c0_5 = arith.constant 0 : index
    %c0_6 = arith.constant 0 : index
    %c0_7 = arith.constant 0 : index
    %4 = vector.load %arg3[%c0_5, %c0_6, %c0_7] : memref<1x16x128xbf16, #tpu.memory_space<vmem>>, vector<1x16x128xbf16>
    %5 = vector.shape_cast %4 : vector<1x16x128xbf16> to vector<16x128xbf16>
    %6 = tpu.iota {dimensions = array<i32: 0>} : vector<16x16xi32>
    %7 = tpu.iota {dimensions = array<i32: 1>} : vector<16x16xi32>
    %c8_i32 = arith.constant 8 : i32
    %8 = vector.broadcast %c8_i32 : i32 to vector<16x16xi32>
    %9 = arith.cmpi slt, %7, %8 : vector<16x16xi32>
    %10 = arith.cmpi sle, %7, %6 : vector<16x16xi32>
    %11 = arith.andi %9, %10 : vector<16x16xi1>
    %cst = arith.constant 0.000000e+00 : f32
    %cst_8 = arith.constant -1.000000e+30 : f32
    %12 = vector.broadcast %cst : f32 to vector<16x16xf32>
    %13 = vector.broadcast %cst_8 : f32 to vector<16x16xf32>
    %14 = arith.select %11, %12, %13 : vector<16x16xi1>, vector<16x16xf32>
    %cst_9 = arith.constant 0.000000e+00 : bf16
    %15 = vector.broadcast %cst_9 : bf16 to vector<16x96xbf16>
    %c0_10 = arith.constant 0 : index
    %c0_11 = arith.constant 0 : index
    %c32 = arith.constant 32 : index
    %16 = vector.load %arg4[%c0_10, %c0_11, %c32] : memref<1x16x128xbf16, #tpu.memory_space<vmem>>, vector<1x16x96xbf16>
    %17 = vector.shape_cast %16 : vector<1x16x96xbf16> to vector<16x96xbf16>
    %18 = vector.shape_cast %15 : vector<16x96xbf16> to vector<1x16x96xbf16>
    tpu.vector_store %arg4[%c0_10, %c0_11, %c32], %18 {strides = array<i32>} : memref<1x16x128xbf16, #tpu.memory_space<vmem>>, vector<1x16x96xbf16>,
    %19 = vector.extract_strided_slice %1 {offsets = [0, 0], sizes = [16, 8], strides = [1, 1]} : vector<16x128xbf16> to vector<16x8xbf16>
    %20 = vector.extract_strided_slice %3 {offsets = [0, 0], sizes = [16, 8], strides = [1, 1]} : vector<16x128xbf16> to vector<16x8xbf16>
    %21 = vector.extract_strided_slice %5 {offsets = [0, 0], sizes = [16, 8], strides = [1, 1]} : vector<16x128xbf16> to vector<16x8xbf16>
    %cst_12 = arith.constant dense<0.000000e+00> : vector<16x16xf32>
    %22 = tpu.matmul %19, %20, %cst_12 {dimension_numbers = #tpu.dot_dimension_numbers<[1], [1], [0], [0], [0, 0, 1, 0], [], []>} : vector<16x8xbf16>, vector<16x8xbf16>, vector<16x16xf32> -> vector<16x16xf32>
    %cst_13 = arith.constant 0.353553385 : f32
    %23 = vector.broadcast %cst_13 : f32 to vector<16x16xf32>
    %24 = arith.mulf %22, %23 : vector<16x16xf32>
    %25 = arith.addf %24, %14 : vector<16x16xf32>
    %cst_14 = arith.constant dense<0xFF800000> : vector<16xf32>
    %26 = vector.multi_reduction <maximumf>, %25, %cst_14 [1] : vector<16x16xf32> to vector<16xf32>
    %27 = vector.shape_cast %26 : vector<16xf32> to vector<16x1xf32>
    %28 = vector.broadcast %27 : vector<16x1xf32> to vector<16x16xf32>
    %29 = arith.subf %25, %28 : vector<16x16xf32>
    %30 = math.exp %29 : vector<16x16xf32>
    %cst_15 = arith.constant dense<0.000000e+00> : vector<16xf32>
    %31 = vector.multi_reduction <add>, %30, %cst_15 [1] : vector<16x16xf32> to vector<16xf32>
    %32 = vector.shape_cast %31 : vector<16xf32> to vector<16x1xf32>
    %33 = tpu.reciprocal %32 {approx = true} : vector<16x1xf32> -> vector<16x1xf32>
    %34 = vector.broadcast %33 : vector<16x1xf32> to vector<16x16xf32>
    %35 = arith.mulf %30, %34 : vector<16x16xf32>
    %36 = arith.truncf %35 : vector<16x16xf32> to vector<16x16xbf16>
    %cst_16 = arith.constant dense<0.000000e+00> : vector<16x8xf32>
    %37 = tpu.matmul %36, %21, %cst_16 {dimension_numbers = #tpu.dot_dimension_numbers<[1], [0], [0], [1], [0, 0, 1, 1], [], []>} : vector<16x16xbf16>, vector<16x8xbf16>, vector<16x8xf32> -> vector<16x8xf32>
    %38 = arith.truncf %37 : vector<16x8xf32> to vector<16x8xbf16>
    %c0_17 = arith.constant 0 : index
    %c0_18 = arith.constant 0 : index
    %c0_19 = arith.constant 0 : index
    %39 = vector.load %arg4[%c0_17, %c0_18, %c0_19] : memref<1x16x128xbf16, #tpu.memory_space<vmem>>, vector<1x16x8xbf16>
    %40 = vector.shape_cast %39 : vector<1x16x8xbf16> to vector<16x8xbf16>
    %41 = vector.shape_cast %38 : vector<16x8xbf16> to vector<1x16x8xbf16>
    tpu.vector_store %arg4[%c0_17, %c0_18, %c0_19], %41 {strides = array<i32>} : memref<1x16x128xbf16, #tpu.memory_space<vmem>>, vector<1x16x8xbf16>,
    %42 = vector.extract_strided_slice %1 {offsets = [0, 8], sizes = [16, 8], strides = [1, 1]} : vector<16x128xbf16> to vector<16x8xbf16>
    %43 = vector.extract_strided_slice %3 {offsets = [0, 8], sizes = [16, 8], strides = [1, 1]} : vector<16x128xbf16> to vector<16x8xbf16>
    %44 = vector.extract_strided_slice %5 {offsets = [0, 8], sizes = [16, 8], strides = [1, 1]} : vector<16x128xbf16> to vector<16x8xbf16>
    %cst_20 = arith.constant dense<0.000000e+00> : vector<16x16xf32>
    %45 = tpu.matmul %42, %43, %cst_20 {dimension_numbers = #tpu.dot_dimension_numbers<[1], [1], [0], [0], [0, 0, 1, 0], [], []>} : vector<16x8xbf16>, vector<16x8xbf16>, vector<16x16xf32> -> vector<16x16xf32>
    %cst_21 = arith.constant 0.353553385 : f32
    %46 = vector.broadcast %cst_21 : f32 to vector<16x16xf32>
    %47 = arith.mulf %45, %46 : vector<16x16xf32>
    %48 = arith.addf %47, %14 : vector<16x16xf32>
    %cst_22 = arith.constant dense<0xFF800000> : vector<16xf32>
    %49 = vector.multi_reduction <maximumf>, %48, %cst_22 [1] : vector<16x16xf32> to vector<16xf32>
    %50 = vector.shape_cast %49 : vector<16xf32> to vector<16x1xf32>
    %51 = vector.broadcast %50 : vector<16x1xf32> to vector<16x16xf32>
    %52 = arith.subf %48, %51 : vector<16x16xf32>
    %53 = math.exp %52 : vector<16x16xf32>
    %cst_23 = arith.constant dense<0.000000e+00> : vector<16xf32>
    %54 = vector.multi_reduction <add>, %53, %cst_23 [1] : vector<16x16xf32> to vector<16xf32>
    %55 = vector.shape_cast %54 : vector<16xf32> to vector<16x1xf32>
    %56 = tpu.reciprocal %55 {approx = true} : vector<16x1xf32> -> vector<16x1xf32>
    %57 = vector.broadcast %56 : vector<16x1xf32> to vector<16x16xf32>
    %58 = arith.mulf %53, %57 : vector<16x16xf32>
    %59 = arith.truncf %58 : vector<16x16xf32> to vector<16x16xbf16>
    %cst_24 = arith.constant dense<0.000000e+00> : vector<16x8xf32>
    %60 = tpu.matmul %59, %44, %cst_24 {dimension_numbers = #tpu.dot_dimension_numbers<[1], [0], [0], [1], [0, 0, 1, 1], [], []>} : vector<16x16xbf16>, vector<16x8xbf16>, vector<16x8xf32> -> vector<16x8xf32>
    %61 = arith.truncf %60 : vector<16x8xf32> to vector<16x8xbf16>
    %c0_25 = arith.constant 0 : index
    %c0_26 = arith.constant 0 : index
    %c8 = arith.constant 8 : index
    %62 = vector.load %arg4[%c0_25, %c0_26, %c8] : memref<1x16x128xbf16, #tpu.memory_space<vmem>>, vector<1x16x8xbf16>
    %63 = vector.shape_cast %62 : vector<1x16x8xbf16> to vector<16x8xbf16>
    %64 = vector.shape_cast %61 : vector<16x8xbf16> to vector<1x16x8xbf16>
    tpu.vector_store %arg4[%c0_25, %c0_26, %c8], %64 {strides = array<i32>} : memref<1x16x128xbf16, #tpu.memory_space<vmem>>, vector<1x16x8xbf16>,
    %65 = vector.extract_strided_slice %1 {offsets = [0, 16], sizes = [16, 8], strides = [1, 1]} : vector<16x128xbf16> to vector<16x8xbf16>
    %66 = vector.extract_strided_slice %3 {offsets = [0, 16], sizes = [16, 8], strides = [1, 1]} : vector<16x128xbf16> to vector<16x8xbf16>
    %67 = vector.extract_strided_slice %5 {offsets = [0, 16], sizes = [16, 8], strides = [1, 1]} : vector<16x128xbf16> to vector<16x8xbf16>
    %cst_27 = arith.constant dense<0.000000e+00> : vector<16x16xf32>
    %68 = tpu.matmul %65, %66, %cst_27 {dimension_numbers = #tpu.dot_dimension_numbers<[1], [1], [0], [0], [0, 0, 1, 0], [], []>} : vector<16x8xbf16>, vector<16x8xbf16>, vector<16x16xf32> -> vector<16x16xf32>
    %cst_28 = arith.constant 0.353553385 : f32
    %69 = vector.broadcast %cst_28 : f32 to vector<16x16xf32>
    %70 = arith.mulf %68, %69 : vector<16x16xf32>
    %71 = arith.addf %70, %14 : vector<16x16xf32>
    %cst_29 = arith.constant dense<0xFF800000> : vector<16xf32>
    %72 = vector.multi_reduction <maximumf>, %71, %cst_29 [1] : vector<16x16xf32> to vector<16xf32>
    %73 = vector.shape_cast %72 : vector<16xf32> to vector<16x1xf32>
    %74 = vector.broadcast %73 : vector<16x1xf32> to vector<16x16xf32>
    %75 = arith.subf %71, %74 : vector<16x16xf32>
    %76 = math.exp %75 : vector<16x16xf32>
    %cst_30 = arith.constant dense<0.000000e+00> : vector<16xf32>
    %77 = vector.multi_reduction <add>, %76, %cst_30 [1] : vector<16x16xf32> to vector<16xf32>
    %78 = vector.shape_cast %77 : vector<16xf32> to vector<16x1xf32>
    %79 = tpu.reciprocal %78 {approx = true} : vector<16x1xf32> -> vector<16x1xf32>
    %80 = vector.broadcast %79 : vector<16x1xf32> to vector<16x16xf32>
    %81 = arith.mulf %76, %80 : vector<16x16xf32>
    %82 = arith.truncf %81 : vector<16x16xf32> to vector<16x16xbf16>
    %cst_31 = arith.constant dense<0.000000e+00> : vector<16x8xf32>
    %83 = tpu.matmul %82, %67, %cst_31 {dimension_numbers = #tpu.dot_dimension_numbers<[1], [0], [0], [1], [0, 0, 1, 1], [], []>} : vector<16x16xbf16>, vector<16x8xbf16>, vector<16x8xf32> -> vector<16x8xf32>
    %84 = arith.truncf %83 : vector<16x8xf32> to vector<16x8xbf16>
    %c0_32 = arith.constant 0 : index
    %c0_33 = arith.constant 0 : index
    %c16 = arith.constant 16 : index
    %85 = vector.load %arg4[%c0_32, %c0_33, %c16] : memref<1x16x128xbf16, #tpu.memory_space<vmem>>, vector<1x16x8xbf16>
    %86 = vector.shape_cast %85 : vector<1x16x8xbf16> to vector<16x8xbf16>
    %87 = vector.shape_cast %84 : vector<16x8xbf16> to vector<1x16x8xbf16>
    tpu.vector_store %arg4[%c0_32, %c0_33, %c16], %87 {strides = array<i32>} : memref<1x16x128xbf16, #tpu.memory_space<vmem>>, vector<1x16x8xbf16>,
    %88 = vector.extract_strided_slice %1 {offsets = [0, 24], sizes = [16, 8], strides = [1, 1]} : vector<16x128xbf16> to vector<16x8xbf16>
    %89 = vector.extract_strided_slice %3 {offsets = [0, 24], sizes = [16, 8], strides = [1, 1]} : vector<16x128xbf16> to vector<16x8xbf16>
    %90 = vector.extract_strided_slice %5 {offsets = [0, 24], sizes = [16, 8], strides = [1, 1]} : vector<16x128xbf16> to vector<16x8xbf16>
    %cst_34 = arith.constant dense<0.000000e+00> : vector<16x16xf32>
    %91 = tpu.matmul %88, %89, %cst_34 {dimension_numbers = #tpu.dot_dimension_numbers<[1], [1], [0], [0], [0, 0, 1, 0], [], []>} : vector<16x8xbf16>, vector<16x8xbf16>, vector<16x16xf32> -> vector<16x16xf32>
    %cst_35 = arith.constant 0.353553385 : f32
    %92 = vector.broadcast %cst_35 : f32 to vector<16x16xf32>
    %93 = arith.mulf %91, %92 : vector<16x16xf32>
    %94 = arith.addf %93, %14 : vector<16x16xf32>
    %cst_36 = arith.constant dense<0xFF800000> : vector<16xf32>
    %95 = vector.multi_reduction <maximumf>, %94, %cst_36 [1] : vector<16x16xf32> to vector<16xf32>
    %96 = vector.shape_cast %95 : vector<16xf32> to vector<16x1xf32>
    %97 = vector.broadcast %96 : vector<16x1xf32> to vector<16x16xf32>
    %98 = arith.subf %94, %97 : vector<16x16xf32>
    %99 = math.exp %98 : vector<16x16xf32>
    %cst_37 = arith.constant dense<0.000000e+00> : vector<16xf32>
    %100 = vector.multi_reduction <add>, %99, %cst_37 [1] : vector<16x16xf32> to vector<16xf32>
    %101 = vector.shape_cast %100 : vector<16xf32> to vector<16x1xf32>
    %102 = tpu.reciprocal %101 {approx = true} : vector<16x1xf32> -> vector<16x1xf32>
    %103 = vector.broadcast %102 : vector<16x1xf32> to vector<16x16xf32>
    %104 = arith.mulf %99, %103 : vector<16x16xf32>
    %105 = arith.truncf %104 : vector<16x16xf32> to vector<16x16xbf16>
    %cst_38 = arith.constant dense<0.000000e+00> : vector<16x8xf32>
    %106 = tpu.matmul %105, %90, %cst_38 {dimension_numbers = #tpu.dot_dimension_numbers<[1], [0], [0], [1], [0, 0, 1, 1], [], []>} : vector<16x16xbf16>, vector<16x8xbf16>, vector<16x8xf32> -> vector<16x8xf32>
    %107 = arith.truncf %106 : vector<16x8xf32> to vector<16x8xbf16>
    %c0_39 = arith.constant 0 : index
    %c0_40 = arith.constant 0 : index
    %c24 = arith.constant 24 : index
    %108 = vector.load %arg4[%c0_39, %c0_40, %c24] : memref<1x16x128xbf16, #tpu.memory_space<vmem>>, vector<1x16x8xbf16>
    %109 = vector.shape_cast %108 : vector<1x16x8xbf16> to vector<16x8xbf16>
    %110 = vector.shape_cast %107 : vector<16x8xbf16> to vector<1x16x8xbf16>
    tpu.vector_store %arg4[%c0_39, %c0_40, %c24], %110 {strides = array<i32>} : memref<1x16x128xbf16, #tpu.memory_space<vmem>>, vector<1x16x8xbf16>,
    return
  }
  func.func @transform_0(%arg0: i32) -> (i32, i32, i32) {
    %c0_i32 = arith.constant 0 : i32
    %c0_i32_0 = arith.constant 0 : i32
    %c0_i32_1 = arith.constant 0 : i32
    return %arg0, %c0_i32, %c0_i32_0 : i32, i32, i32
  }
  func.func @transform_1(%arg0: i32) -> (i32, i32, i32) {
    %c0_i32 = arith.constant 0 : i32
    %c1_i32 = arith.constant 1 : i32
    %c0_i32_0 = arith.constant 0 : i32
    return %arg0, %c0_i32, %c1_i32 : i32, i32, i32
  }
  func.func @transform_2(%arg0: i32) -> (i32, i32, i32) {
    %c0_i32 = arith.constant 0 : i32
    %c2_i32 = arith.constant 2 : i32
    %c0_i32_0 = arith.constant 0 : i32
    return %arg0, %c0_i32, %c2_i32 : i32, i32, i32
  }
  func.func @transform_3(%arg0: i32) -> (i32, i32, i32) {
    %c0_i32 = arith.constant 0 : i32
    %c0_i32_0 = arith.constant 0 : i32
    %c0_i32_1 = arith.constant 0 : i32
    return %arg0, %c0_i32, %c0_i32_0 : i32, i32, i32
  }
}

module attributes {stable_mosaic.version = 11 : i64} {
  func.func @_linear_kernel(%arg0: i32, %arg1: i32, %arg2: i32, %arg3: memref<32x128xbf16, #tpu.memory_space<vmem>>, %arg4: memref<128x128xbf16, #tpu.memory_space<vmem>>, %arg5: memref<1x128xf32, #tpu.memory_space<vmem>>, %arg6: memref<32x128xbf16, #tpu.memory_space<vmem>>, %arg7: memref<32x128xf32, #tpu.memory_space<vmem>>) attributes {dimension_semantics = [#tpu.dimension_semantics<parallel>, #tpu.dimension_semantics<parallel>, #tpu.dimension_semantics<arbitrary>], iteration_bounds = array<i64: 1, 1, 1>, scalar_prefetch = 0 : i64, scratch_operands = 1 : i64, tpu.core_type = #tpu.core_type<tc>, window_params = [{transform_indices = @transform_0, window_bounds = array<i64: 32, 128>}, {transform_indices = @transform_1, window_bounds = array<i64: 128, 128>}, {transform_indices = @transform_2, window_bounds = array<i64: 1, 128>}, {transform_indices = @transform_3, window_bounds = array<i64: 32, 128>}]} {
    %c0_i32 = arith.constant 0 : i32
    %0 = arith.cmpi eq, %arg2, %c0_i32 : i32
    %1 = arith.extui %0 : i1 to i32
    %c0_i32_0 = arith.constant 0 : i32
    %2 = arith.cmpi ne, %1, %c0_i32_0 : i32
    scf.if %2 {
      %cst_10 = arith.constant 0.000000e+00 : f32
      %12 = vector.broadcast %cst_10 : f32 to vector<32x128xf32>
      %c0_11 = arith.constant 0 : index
      %c0_12 = arith.constant 0 : index
      %13 = vector.load %arg7[%c0_11, %c0_12] : memref<32x128xf32, #tpu.memory_space<vmem>>, vector<32x128xf32>
      tpu.vector_store %arg7[%c0_11, %c0_12], %12 {strides = array<i32>} : memref<32x128xf32, #tpu.memory_space<vmem>>, vector<32x128xf32>,
    } else {
    }
    %c0 = arith.constant 0 : index
    %c0_1 = arith.constant 0 : index
    %3 = vector.load %arg7[%c0, %c0_1] : memref<32x128xf32, #tpu.memory_space<vmem>>, vector<32x128xf32>
    %c0_2 = arith.constant 0 : index
    %c0_3 = arith.constant 0 : index
    %4 = vector.load %arg3[%c0_2, %c0_3] : memref<32x128xbf16, #tpu.memory_space<vmem>>, vector<32x128xbf16>
    %c0_4 = arith.constant 0 : index
    %c0_5 = arith.constant 0 : index
    %5 = vector.load %arg4[%c0_4, %c0_5] : memref<128x128xbf16, #tpu.memory_space<vmem>>, vector<128x128xbf16>
    %cst = arith.constant dense<0.000000e+00> : vector<32x128xf32>
    %6 = tpu.matmul %4, %5, %cst {dimension_numbers = #tpu.dot_dimension_numbers<[1], [0], [0], [1], [0, 0, 1, 1], [], []>} : vector<32x128xbf16>, vector<128x128xbf16>, vector<32x128xf32> -> vector<32x128xf32>
    %7 = arith.addf %3, %6 : vector<32x128xf32>
    %c0_6 = arith.constant 0 : index
    %c0_7 = arith.constant 0 : index
    %8 = vector.load %arg7[%c0_6, %c0_7] : memref<32x128xf32, #tpu.memory_space<vmem>>, vector<32x128xf32>
    tpu.vector_store %arg7[%c0_6, %c0_7], %7 {strides = array<i32>} : memref<32x128xf32, #tpu.memory_space<vmem>>, vector<32x128xf32>,
    %c0_i32_8 = arith.constant 0 : i32
    %9 = arith.cmpi eq, %arg2, %c0_i32_8 : i32
    %10 = arith.extui %9 : i1 to i32
    %c0_i32_9 = arith.constant 0 : i32
    %11 = arith.cmpi ne, %10, %c0_i32_9 : i32
    scf.if %11 {
      %c0_10 = arith.constant 0 : index
      %c0_11 = arith.constant 0 : index
      %12 = vector.load %arg7[%c0_10, %c0_11] : memref<32x128xf32, #tpu.memory_space<vmem>>, vector<32x128xf32>
      %c0_12 = arith.constant 0 : index
      %c0_13 = arith.constant 0 : index
      %13 = vector.load %arg5[%c0_12, %c0_13] : memref<1x128xf32, #tpu.memory_space<vmem>>, vector<1x128xf32>
      %14 = vector.broadcast %13 : vector<1x128xf32> to vector<32x128xf32>
      %15 = arith.addf %12, %14 : vector<32x128xf32>
      %16 = arith.truncf %15 : vector<32x128xf32> to vector<32x128xbf16>
      %c0_14 = arith.constant 0 : index
      %c0_15 = arith.constant 0 : index
      %17 = vector.load %arg6[%c0_14, %c0_15] : memref<32x128xbf16, #tpu.memory_space<vmem>>, vector<32x128xbf16>
      tpu.vector_store %arg6[%c0_14, %c0_15], %16 {strides = array<i32>} : memref<32x128xbf16, #tpu.memory_space<vmem>>, vector<32x128xbf16>,
    } else {
    }
    return
  }
  func.func @transform_0(%arg0: i32, %arg1: i32, %arg2: i32) -> (i32, i32) {
    %c0_i32 = arith.constant 0 : i32
    return %arg0, %arg2 : i32, i32
  }
  func.func @transform_1(%arg0: i32, %arg1: i32, %arg2: i32) -> (i32, i32) {
    %c0_i32 = arith.constant 0 : i32
    return %arg2, %arg1 : i32, i32
  }
  func.func @transform_2(%arg0: i32, %arg1: i32, %arg2: i32) -> (i32, i32) {
    %c0_i32 = arith.constant 0 : i32
    %c0_i32_0 = arith.constant 0 : i32
    return %c0_i32, %arg1 : i32, i32
  }
  func.func @transform_3(%arg0: i32, %arg1: i32, %arg2: i32) -> (i32, i32) {
    %c0_i32 = arith.constant 0 : i32
    return %arg0, %arg1 : i32, i32
  }
}

module attributes {stable_mosaic.version = 11 : i64} {
  func.func @_attention_kernel(%arg0: i32, %arg1: memref<1x16x128xbf16, #tpu.memory_space<vmem>>, %arg2: memref<1x16x128xbf16, #tpu.memory_space<vmem>>, %arg3: memref<1x16x128xbf16, #tpu.memory_space<vmem>>, %arg4: memref<1x16x128xbf16, #tpu.memory_space<vmem>>) attributes {dimension_semantics = [#tpu.dimension_semantics<parallel>], iteration_bounds = array<i64: 2>, scalar_prefetch = 0 : i64, scratch_operands = 0 : i64, tpu.core_type = #tpu.core_type<tc>, window_params = [{transform_indices = @transform_0, window_bounds = array<i64: 1, 16, 128>}, {transform_indices = @transform_1, window_bounds = array<i64: 1, 16, 128>}, {transform_indices = @transform_2, window_bounds = array<i64: 1, 16, 128>}, {transform_indices = @transform_3, window_bounds = array<i64: 1, 16, 128>}]} {
    %c0 = arith.constant 0 : index
    %c0_0 = arith.constant 0 : index
    %c0_1 = arith.constant 0 : index
    %0 = vector.load %arg1[%c0, %c0_0, %c0_1] : memref<1x16x128xbf16, #tpu.memory_space<vmem>>, vector<1x16x128xbf16>
    %1 = vector.shape_cast %0 : vector<1x16x128xbf16> to vector<16x128xbf16>
    %c0_2 = arith.constant 0 : index
    %c0_3 = arith.constant 0 : index
    %c0_4 = arith.constant 0 : index
    %2 = vector.load %arg2[%c0_2, %c0_3, %c0_4] : memref<1x16x128xbf16, #tpu.memory_space<vmem>>, vector<1x16x128xbf16>
    %3 = vector.shape_cast %2 : vector<1x16x128xbf16> to vector<16x128xbf16>
    %c0_5 = arith.constant 0 : index
    %c0_6 = arith.constant 0 : index
    %c0_7 = arith.constant 0 : index
    %4 = vector.load %arg3[%c0_5, %c0_6, %c0_7] : memref<1x16x128xbf16, #tpu.memory_space<vmem>>, vector<1x16x128xbf16>
    %5 = vector.shape_cast %4 : vector<1x16x128xbf16> to vector<16x128xbf16>
    %6 = tpu.iota {dimensions = array<i32: 1>} : vector<16x16xi32>
    %c6_i32 = arith.constant 6 : i32
    %7 = vector.broadcast %c6_i32 : i32 to vector<16x16xi32>
    %8 = arith.cmpi slt, %6, %7 : vector<16x16xi32>
    %cst = arith.constant 0.000000e+00 : f32
    %cst_8 = arith.constant -1.000000e+30 : f32
    %9 = vector.broadcast %cst : f32 to vector<16x16xf32>
    %10 = vector.broadcast %cst_8 : f32 to vector<16x16xf32>
    %11 = arith.select %8, %9, %10 : vector<16x16xi1>, vector<16x16xf32>
    %cst_9 = arith.constant 0.000000e+00 : bf16
    %12 = vector.broadcast %cst_9 : bf16 to vector<16x96xbf16>
    %c0_10 = arith.constant 0 : index
    %c0_11 = arith.constant 0 : index
    %c32 = arith.constant 32 : index
    %13 = vector.load %arg4[%c0_10, %c0_11, %c32] : memref<1x16x128xbf16, #tpu.memory_space<vmem>>, vector<1x16x96xbf16>
    %14 = vector.shape_cast %13 : vector<1x16x96xbf16> to vector<16x96xbf16>
    %15 = vector.shape_cast %12 : vector<16x96xbf16> to vector<1x16x96xbf16>
    tpu.vector_store %arg4[%c0_10, %c0_11, %c32], %15 {strides = array<i32>} : memref<1x16x128xbf16, #tpu.memory_space<vmem>>, vector<1x16x96xbf16>,
    %16 = vector.extract_strided_slice %1 {offsets = [0, 0], sizes = [16, 8], strides = [1, 1]} : vector<16x128xbf16> to vector<16x8xbf16>
    %17 = vector.extract_strided_slice %3 {offsets = [0, 0], sizes = [16, 8], strides = [1, 1]} : vector<16x128xbf16> to vector<16x8xbf16>
    %18 = vector.extract_strided_slice %5 {offsets = [0, 0], sizes = [16, 8], strides = [1, 1]} : vector<16x128xbf16> to vector<16x8xbf16>
    %cst_12 = arith.constant dense<0.000000e+00> : vector<16x16xf32>
    %19 = tpu.matmul %16, %17, %cst_12 {dimension_numbers = #tpu.dot_dimension_numbers<[1], [1], [0], [0], [0, 0, 1, 0], [], []>} : vector<16x8xbf16>, vector<16x8xbf16>, vector<16x16xf32> -> vector<16x16xf32>
    %cst_13 = arith.constant 0.353553385 : f32
    %20 = vector.broadcast %cst_13 : f32 to vector<16x16xf32>
    %21 = arith.mulf %19, %20 : vector<16x16xf32>
    %22 = arith.addf %21, %11 : vector<16x16xf32>
    %cst_14 = arith.constant dense<0xFF800000> : vector<16xf32>
    %23 = vector.multi_reduction <maximumf>, %22, %cst_14 [1] : vector<16x16xf32> to vector<16xf32>
    %24 = vector.shape_cast %23 : vector<16xf32> to vector<16x1xf32>
    %25 = vector.broadcast %24 : vector<16x1xf32> to vector<16x16xf32>
    %26 = arith.subf %22, %25 : vector<16x16xf32>
    %27 = math.exp %26 : vector<16x16xf32>
    %cst_15 = arith.constant dense<0.000000e+00> : vector<16xf32>
    %28 = vector.multi_reduction <add>, %27, %cst_15 [1] : vector<16x16xf32> to vector<16xf32>
    %29 = vector.shape_cast %28 : vector<16xf32> to vector<16x1xf32>
    %30 = tpu.reciprocal %29 {approx = true} : vector<16x1xf32> -> vector<16x1xf32>
    %31 = vector.broadcast %30 : vector<16x1xf32> to vector<16x16xf32>
    %32 = arith.mulf %27, %31 : vector<16x16xf32>
    %33 = arith.truncf %32 : vector<16x16xf32> to vector<16x16xbf16>
    %cst_16 = arith.constant dense<0.000000e+00> : vector<16x8xf32>
    %34 = tpu.matmul %33, %18, %cst_16 {dimension_numbers = #tpu.dot_dimension_numbers<[1], [0], [0], [1], [0, 0, 1, 1], [], []>} : vector<16x16xbf16>, vector<16x8xbf16>, vector<16x8xf32> -> vector<16x8xf32>
    %35 = arith.truncf %34 : vector<16x8xf32> to vector<16x8xbf16>
    %c0_17 = arith.constant 0 : index
    %c0_18 = arith.constant 0 : index
    %c0_19 = arith.constant 0 : index
    %36 = vector.load %arg4[%c0_17, %c0_18, %c0_19] : memref<1x16x128xbf16, #tpu.memory_space<vmem>>, vector<1x16x8xbf16>
    %37 = vector.shape_cast %36 : vector<1x16x8xbf16> to vector<16x8xbf16>
    %38 = vector.shape_cast %35 : vector<16x8xbf16> to vector<1x16x8xbf16>
    tpu.vector_store %arg4[%c0_17, %c0_18, %c0_19], %38 {strides = array<i32>} : memref<1x16x128xbf16, #tpu.memory_space<vmem>>, vector<1x16x8xbf16>,
    %39 = vector.extract_strided_slice %1 {offsets = [0, 8], sizes = [16, 8], strides = [1, 1]} : vector<16x128xbf16> to vector<16x8xbf16>
    %40 = vector.extract_strided_slice %3 {offsets = [0, 8], sizes = [16, 8], strides = [1, 1]} : vector<16x128xbf16> to vector<16x8xbf16>
    %41 = vector.extract_strided_slice %5 {offsets = [0, 8], sizes = [16, 8], strides = [1, 1]} : vector<16x128xbf16> to vector<16x8xbf16>
    %cst_20 = arith.constant dense<0.000000e+00> : vector<16x16xf32>
    %42 = tpu.matmul %39, %40, %cst_20 {dimension_numbers = #tpu.dot_dimension_numbers<[1], [1], [0], [0], [0, 0, 1, 0], [], []>} : vector<16x8xbf16>, vector<16x8xbf16>, vector<16x16xf32> -> vector<16x16xf32>
    %cst_21 = arith.constant 0.353553385 : f32
    %43 = vector.broadcast %cst_21 : f32 to vector<16x16xf32>
    %44 = arith.mulf %42, %43 : vector<16x16xf32>
    %45 = arith.addf %44, %11 : vector<16x16xf32>
    %cst_22 = arith.constant dense<0xFF800000> : vector<16xf32>
    %46 = vector.multi_reduction <maximumf>, %45, %cst_22 [1] : vector<16x16xf32> to vector<16xf32>
    %47 = vector.shape_cast %46 : vector<16xf32> to vector<16x1xf32>
    %48 = vector.broadcast %47 : vector<16x1xf32> to vector<16x16xf32>
    %49 = arith.subf %45, %48 : vector<16x16xf32>
    %50 = math.exp %49 : vector<16x16xf32>
    %cst_23 = arith.constant dense<0.000000e+00> : vector<16xf32>
    %51 = vector.multi_reduction <add>, %50, %cst_23 [1] : vector<16x16xf32> to vector<16xf32>
    %52 = vector.shape_cast %51 : vector<16xf32> to vector<16x1xf32>
    %53 = tpu.reciprocal %52 {approx = true} : vector<16x1xf32> -> vector<16x1xf32>
    %54 = vector.broadcast %53 : vector<16x1xf32> to vector<16x16xf32>
    %55 = arith.mulf %50, %54 : vector<16x16xf32>
    %56 = arith.truncf %55 : vector<16x16xf32> to vector<16x16xbf16>
    %cst_24 = arith.constant dense<0.000000e+00> : vector<16x8xf32>
    %57 = tpu.matmul %56, %41, %cst_24 {dimension_numbers = #tpu.dot_dimension_numbers<[1], [0], [0], [1], [0, 0, 1, 1], [], []>} : vector<16x16xbf16>, vector<16x8xbf16>, vector<16x8xf32> -> vector<16x8xf32>
    %58 = arith.truncf %57 : vector<16x8xf32> to vector<16x8xbf16>
    %c0_25 = arith.constant 0 : index
    %c0_26 = arith.constant 0 : index
    %c8 = arith.constant 8 : index
    %59 = vector.load %arg4[%c0_25, %c0_26, %c8] : memref<1x16x128xbf16, #tpu.memory_space<vmem>>, vector<1x16x8xbf16>
    %60 = vector.shape_cast %59 : vector<1x16x8xbf16> to vector<16x8xbf16>
    %61 = vector.shape_cast %58 : vector<16x8xbf16> to vector<1x16x8xbf16>
    tpu.vector_store %arg4[%c0_25, %c0_26, %c8], %61 {strides = array<i32>} : memref<1x16x128xbf16, #tpu.memory_space<vmem>>, vector<1x16x8xbf16>,
    %62 = vector.extract_strided_slice %1 {offsets = [0, 16], sizes = [16, 8], strides = [1, 1]} : vector<16x128xbf16> to vector<16x8xbf16>
    %63 = vector.extract_strided_slice %3 {offsets = [0, 16], sizes = [16, 8], strides = [1, 1]} : vector<16x128xbf16> to vector<16x8xbf16>
    %64 = vector.extract_strided_slice %5 {offsets = [0, 16], sizes = [16, 8], strides = [1, 1]} : vector<16x128xbf16> to vector<16x8xbf16>
    %cst_27 = arith.constant dense<0.000000e+00> : vector<16x16xf32>
    %65 = tpu.matmul %62, %63, %cst_27 {dimension_numbers = #tpu.dot_dimension_numbers<[1], [1], [0], [0], [0, 0, 1, 0], [], []>} : vector<16x8xbf16>, vector<16x8xbf16>, vector<16x16xf32> -> vector<16x16xf32>
    %cst_28 = arith.constant 0.353553385 : f32
    %66 = vector.broadcast %cst_28 : f32 to vector<16x16xf32>
    %67 = arith.mulf %65, %66 : vector<16x16xf32>
    %68 = arith.addf %67, %11 : vector<16x16xf32>
    %cst_29 = arith.constant dense<0xFF800000> : vector<16xf32>
    %69 = vector.multi_reduction <maximumf>, %68, %cst_29 [1] : vector<16x16xf32> to vector<16xf32>
    %70 = vector.shape_cast %69 : vector<16xf32> to vector<16x1xf32>
    %71 = vector.broadcast %70 : vector<16x1xf32> to vector<16x16xf32>
    %72 = arith.subf %68, %71 : vector<16x16xf32>
    %73 = math.exp %72 : vector<16x16xf32>
    %cst_30 = arith.constant dense<0.000000e+00> : vector<16xf32>
    %74 = vector.multi_reduction <add>, %73, %cst_30 [1] : vector<16x16xf32> to vector<16xf32>
    %75 = vector.shape_cast %74 : vector<16xf32> to vector<16x1xf32>
    %76 = tpu.reciprocal %75 {approx = true} : vector<16x1xf32> -> vector<16x1xf32>
    %77 = vector.broadcast %76 : vector<16x1xf32> to vector<16x16xf32>
    %78 = arith.mulf %73, %77 : vector<16x16xf32>
    %79 = arith.truncf %78 : vector<16x16xf32> to vector<16x16xbf16>
    %cst_31 = arith.constant dense<0.000000e+00> : vector<16x8xf32>
    %80 = tpu.matmul %79, %64, %cst_31 {dimension_numbers = #tpu.dot_dimension_numbers<[1], [0], [0], [1], [0, 0, 1, 1], [], []>} : vector<16x16xbf16>, vector<16x8xbf16>, vector<16x8xf32> -> vector<16x8xf32>
    %81 = arith.truncf %80 : vector<16x8xf32> to vector<16x8xbf16>
    %c0_32 = arith.constant 0 : index
    %c0_33 = arith.constant 0 : index
    %c16 = arith.constant 16 : index
    %82 = vector.load %arg4[%c0_32, %c0_33, %c16] : memref<1x16x128xbf16, #tpu.memory_space<vmem>>, vector<1x16x8xbf16>
    %83 = vector.shape_cast %82 : vector<1x16x8xbf16> to vector<16x8xbf16>
    %84 = vector.shape_cast %81 : vector<16x8xbf16> to vector<1x16x8xbf16>
    tpu.vector_store %arg4[%c0_32, %c0_33, %c16], %84 {strides = array<i32>} : memref<1x16x128xbf16, #tpu.memory_space<vmem>>, vector<1x16x8xbf16>,
    %85 = vector.extract_strided_slice %1 {offsets = [0, 24], sizes = [16, 8], strides = [1, 1]} : vector<16x128xbf16> to vector<16x8xbf16>
    %86 = vector.extract_strided_slice %3 {offsets = [0, 24], sizes = [16, 8], strides = [1, 1]} : vector<16x128xbf16> to vector<16x8xbf16>
    %87 = vector.extract_strided_slice %5 {offsets = [0, 24], sizes = [16, 8], strides = [1, 1]} : vector<16x128xbf16> to vector<16x8xbf16>
    %cst_34 = arith.constant dense<0.000000e+00> : vector<16x16xf32>
    %88 = tpu.matmul %85, %86, %cst_34 {dimension_numbers = #tpu.dot_dimension_numbers<[1], [1], [0], [0], [0, 0, 1, 0], [], []>} : vector<16x8xbf16>, vector<16x8xbf16>, vector<16x16xf32> -> vector<16x16xf32>
    %cst_35 = arith.constant 0.353553385 : f32
    %89 = vector.broadcast %cst_35 : f32 to vector<16x16xf32>
    %90 = arith.mulf %88, %89 : vector<16x16xf32>
    %91 = arith.addf %90, %11 : vector<16x16xf32>
    %cst_36 = arith.constant dense<0xFF800000> : vector<16xf32>
    %92 = vector.multi_reduction <maximumf>, %91, %cst_36 [1] : vector<16x16xf32> to vector<16xf32>
    %93 = vector.shape_cast %92 : vector<16xf32> to vector<16x1xf32>
    %94 = vector.broadcast %93 : vector<16x1xf32> to vector<16x16xf32>
    %95 = arith.subf %91, %94 : vector<16x16xf32>
    %96 = math.exp %95 : vector<16x16xf32>
    %cst_37 = arith.constant dense<0.000000e+00> : vector<16xf32>
    %97 = vector.multi_reduction <add>, %96, %cst_37 [1] : vector<16x16xf32> to vector<16xf32>
    %98 = vector.shape_cast %97 : vector<16xf32> to vector<16x1xf32>
    %99 = tpu.reciprocal %98 {approx = true} : vector<16x1xf32> -> vector<16x1xf32>
    %100 = vector.broadcast %99 : vector<16x1xf32> to vector<16x16xf32>
    %101 = arith.mulf %96, %100 : vector<16x16xf32>
    %102 = arith.truncf %101 : vector<16x16xf32> to vector<16x16xbf16>
    %cst_38 = arith.constant dense<0.000000e+00> : vector<16x8xf32>
    %103 = tpu.matmul %102, %87, %cst_38 {dimension_numbers = #tpu.dot_dimension_numbers<[1], [0], [0], [1], [0, 0, 1, 1], [], []>} : vector<16x16xbf16>, vector<16x8xbf16>, vector<16x8xf32> -> vector<16x8xf32>
    %104 = arith.truncf %103 : vector<16x8xf32> to vector<16x8xbf16>
    %c0_39 = arith.constant 0 : index
    %c0_40 = arith.constant 0 : index
    %c24 = arith.constant 24 : index
    %105 = vector.load %arg4[%c0_39, %c0_40, %c24] : memref<1x16x128xbf16, #tpu.memory_space<vmem>>, vector<1x16x8xbf16>
    %106 = vector.shape_cast %105 : vector<1x16x8xbf16> to vector<16x8xbf16>
    %107 = vector.shape_cast %104 : vector<16x8xbf16> to vector<1x16x8xbf16>
    tpu.vector_store %arg4[%c0_39, %c0_40, %c24], %107 {strides = array<i32>} : memref<1x16x128xbf16, #tpu.memory_space<vmem>>, vector<1x16x8xbf16>,
    return
  }
  func.func @transform_0(%arg0: i32) -> (i32, i32, i32) {
    %c0_i32 = arith.constant 0 : i32
    %c0_i32_0 = arith.constant 0 : i32
    %c0_i32_1 = arith.constant 0 : i32
    return %arg0, %c0_i32, %c0_i32_0 : i32, i32, i32
  }
  func.func @transform_1(%arg0: i32) -> (i32, i32, i32) {
    %c0_i32 = arith.constant 0 : i32
    %c0_i32_0 = arith.constant 0 : i32
    %c0_i32_1 = arith.constant 0 : i32
    return %arg0, %c0_i32, %c0_i32_0 : i32, i32, i32
  }
  func.func @transform_2(%arg0: i32) -> (i32, i32, i32) {
    %c0_i32 = arith.constant 0 : i32
    %c1_i32 = arith.constant 1 : i32
    %c0_i32_0 = arith.constant 0 : i32
    return %arg0, %c0_i32, %c1_i32 : i32, i32, i32
  }
  func.func @transform_3(%arg0: i32) -> (i32, i32, i32) {
    %c0_i32 = arith.constant 0 : i32
    %c0_i32_0 = arith.constant 0 : i32
    %c0_i32_1 = arith.constant 0 : i32
    return %arg0, %c0_i32, %c0_i32_0 : i32, i32, i32
  }
}

module attributes {stable_mosaic.version = 11 : i64} {
  func.func @_linear_kernel(%arg0: i32, %arg1: i32, %arg2: i32, %arg3: memref<32x128xbf16, #tpu.memory_space<vmem>>, %arg4: memref<128x128xbf16, #tpu.memory_space<vmem>>, %arg5: memref<1x128xf32, #tpu.memory_space<vmem>>, %arg6: memref<32x128xf32, #tpu.memory_space<vmem>>, %arg7: memref<32x128xf32, #tpu.memory_space<vmem>>) attributes {dimension_semantics = [#tpu.dimension_semantics<parallel>, #tpu.dimension_semantics<parallel>, #tpu.dimension_semantics<arbitrary>], iteration_bounds = array<i64: 1, 1, 1>, scalar_prefetch = 0 : i64, scratch_operands = 1 : i64, tpu.core_type = #tpu.core_type<tc>, window_params = [{transform_indices = @transform_0, window_bounds = array<i64: 32, 128>}, {transform_indices = @transform_1, window_bounds = array<i64: 128, 128>}, {transform_indices = @transform_2, window_bounds = array<i64: 1, 128>}, {transform_indices = @transform_3, window_bounds = array<i64: 32, 128>}]} {
    %c0_i32 = arith.constant 0 : i32
    %0 = arith.cmpi eq, %arg2, %c0_i32 : i32
    %1 = arith.extui %0 : i1 to i32
    %c0_i32_0 = arith.constant 0 : i32
    %2 = arith.cmpi ne, %1, %c0_i32_0 : i32
    scf.if %2 {
      %cst_10 = arith.constant 0.000000e+00 : f32
      %12 = vector.broadcast %cst_10 : f32 to vector<32x128xf32>
      %c0_11 = arith.constant 0 : index
      %c0_12 = arith.constant 0 : index
      %13 = vector.load %arg7[%c0_11, %c0_12] : memref<32x128xf32, #tpu.memory_space<vmem>>, vector<32x128xf32>
      tpu.vector_store %arg7[%c0_11, %c0_12], %12 {strides = array<i32>} : memref<32x128xf32, #tpu.memory_space<vmem>>, vector<32x128xf32>,
    } else {
    }
    %c0 = arith.constant 0 : index
    %c0_1 = arith.constant 0 : index
    %3 = vector.load %arg7[%c0, %c0_1] : memref<32x128xf32, #tpu.memory_space<vmem>>, vector<32x128xf32>
    %c0_2 = arith.constant 0 : index
    %c0_3 = arith.constant 0 : index
    %4 = vector.load %arg3[%c0_2, %c0_3] : memref<32x128xbf16, #tpu.memory_space<vmem>>, vector<32x128xbf16>
    %c0_4 = arith.constant 0 : index
    %c0_5 = arith.constant 0 : index
    %5 = vector.load %arg4[%c0_4, %c0_5] : memref<128x128xbf16, #tpu.memory_space<vmem>>, vector<128x128xbf16>
    %cst = arith.constant dense<0.000000e+00> : vector<32x128xf32>
    %6 = tpu.matmul %4, %5, %cst {dimension_numbers = #tpu.dot_dimension_numbers<[1], [0], [0], [1], [0, 0, 1, 1], [], []>} : vector<32x128xbf16>, vector<128x128xbf16>, vector<32x128xf32> -> vector<32x128xf32>
    %7 = arith.addf %3, %6 : vector<32x128xf32>
    %c0_6 = arith.constant 0 : index
    %c0_7 = arith.constant 0 : index
    %8 = vector.load %arg7[%c0_6, %c0_7] : memref<32x128xf32, #tpu.memory_space<vmem>>, vector<32x128xf32>
    tpu.vector_store %arg7[%c0_6, %c0_7], %7 {strides = array<i32>} : memref<32x128xf32, #tpu.memory_space<vmem>>, vector<32x128xf32>,
    %c0_i32_8 = arith.constant 0 : i32
    %9 = arith.cmpi eq, %arg2, %c0_i32_8 : i32
    %10 = arith.extui %9 : i1 to i32
    %c0_i32_9 = arith.constant 0 : i32
    %11 = arith.cmpi ne, %10, %c0_i32_9 : i32
    scf.if %11 {
      %c0_10 = arith.constant 0 : index
      %c0_11 = arith.constant 0 : index
      %12 = vector.load %arg7[%c0_10, %c0_11] : memref<32x128xf32, #tpu.memory_space<vmem>>, vector<32x128xf32>
      %c0_12 = arith.constant 0 : index
      %c0_13 = arith.constant 0 : index
      %13 = vector.load %arg5[%c0_12, %c0_13] : memref<1x128xf32, #tpu.memory_space<vmem>>, vector<1x128xf32>
      %14 = vector.broadcast %13 : vector<1x128xf32> to vector<32x128xf32>
      %15 = arith.addf %12, %14 : vector<32x128xf32>
      %c0_14 = arith.constant 0 : index
      %c0_15 = arith.constant 0 : index
      %16 = vector.load %arg6[%c0_14, %c0_15] : memref<32x128xf32, #tpu.memory_space<vmem>>, vector<32x128xf32>
      tpu.vector_store %arg6[%c0_14, %c0_15], %15 {strides = array<i32>} : memref<32x128xf32, #tpu.memory_space<vmem>>, vector<32x128xf32>,
    } else {
    }
    return
  }
  func.func @transform_0(%arg0: i32, %arg1: i32, %arg2: i32) -> (i32, i32) {
    %c0_i32 = arith.constant 0 : i32
    return %arg0, %arg2 : i32, i32
  }
  func.func @transform_1(%arg0: i32, %arg1: i32, %arg2: i32) -> (i32, i32) {
    %c0_i32 = arith.constant 0 : i32
    return %arg2, %arg1 : i32, i32
  }
  func.func @transform_2(%arg0: i32, %arg1: i32, %arg2: i32) -> (i32, i32) {
    %c0_i32 = arith.constant 0 : i32
    %c0_i32_0 = arith.constant 0 : i32
    return %c0_i32, %arg1 : i32, i32
  }
  func.func @transform_3(%arg0: i32, %arg1: i32, %arg2: i32) -> (i32, i32) {
    %c0_i32 = arith.constant 0 : i32
    return %arg0, %arg1 : i32, i32
  }
}

</mosaic_0001>

<llo_original>
// kernel: gcs_transformer_forward.34
$region0: #{gcs_transformer_forward.34}
  #allocation0 [shape = 'u32[]', space=smem, size = 0x4, offset = 0x4, fixed_abs, tag = 'smem constant byte address 0x4 - core index']
  #allocation1 [shape = 'u32[144,128]{1,0:T(1,128)}', space=vmem, size = 0x12000, scoped, tag = 'internal scratch']
  #allocation2 [shape = 'f32[32,128]{1,0:T(8,128)}', space=vmem, size = 0x4000, scoped, tag = 'scratch operand']
  %s0 = inlined_call_operand.vmem [shape: bf16[32,128], index: 0, kind: input, shape index: {}]
  %s1 = inlined_call_operand.vmem [shape: bf16[128,128], index: 1, kind: input, shape index: {}]
  %s2 = inlined_call_operand.vmem [shape: f32[1,128], index: 2, kind: input, shape index: {}]
  %s3 = inlined_call_operand.vmem [shape: bf16[32,128], index: 3, kind: output, shape index: {}]
  %s4 = sld [smem:[#allocation0]]
  $region30: #{gcs_transformer_forward.34} parent=0
    _
  %s6 = ssub.s32 1, %s4
  %s7 = scalar_select 0, %s6, %s4
  // Predicated region
  $region2: #{gcs_transformer_forward.34} parent=0 // pred_check
    _
  $region3: #{gcs_transformer_forward.34} parent=0 // pred_check_branch
    %9 = sbr.rel (0) target = $region5
  $region4: #{gcs_transformer_forward.34} parent=0 // pred_region
    _
  $region5: #{gcs_transformer_forward.34} parent=0 // pred_fallthru
    _
  // Predicated region
  $region6: #{gcs_transformer_forward.34} parent=0 // pred_check
    _
  $region7: #{gcs_transformer_forward.34} parent=0 // pred_check_branch
    %11 = sbr.rel (0) target = $region9
  $region8: #{gcs_transformer_forward.34} parent=0 // pred_region
    _
  $region9: #{gcs_transformer_forward.34} parent=0 // pred_fallthru
    _
  // Predicated region
  $region10: #{gcs_transformer_forward.34} parent=0 // pred_check
    _
  $region11: #{gcs_transformer_forward.34} parent=0 // pred_check_branch
    %13 = sbr.rel (0) target = $region13
  $region12: #{gcs_transformer_forward.34} parent=0 // pred_region
    _
  $region13: #{gcs_transformer_forward.34} parent=0 // pred_fallthru
    _
  %p15 = scmp.eq.s32.totalorder 0, 0
  // Predicated region
  $region14: #{gcs_transformer_forward.34} parent=0 // pred_check
    %p16 = pneg %p15
  $region15: #{gcs_transformer_forward.34} parent=0 // pred_check_branch
    %18 = sbr.rel (%p16) target = $region17
  $region16: #{gcs_transformer_forward.34} parent=0 // pred_region
    %19 = vst [vmem:[#allocation2] sm:$0xff] 0.0
    %20 = vst [vmem:[#allocation2 + $0x8] sm:$0xff] 0.0
    %21 = vst [vmem:[#allocation2 + $0x10] sm:$0xff] 0.0
    %22 = vst [vmem:[#allocation2 + $0x18] sm:$0xff] 0.0
  $region17: #{gcs_transformer_forward.34} parent=0 // pred_fallthru
    _
  %v23 = vld [vmem:[#allocation2] sm:$0xff]
  %v24 = vld [vmem:[#allocation2 + $0x8] sm:$0xff]
  %v25 = vld [vmem:[#allocation2 + $0x10] sm:$0xff]
  %v26 = vld [vmem:[#allocation2 + $0x18] sm:$0xff]
  %v27 = vld [vmem:[%s0] sm:$0xf]
  %v28 = vld [vmem:[%s0 + $0x4] sm:$0xf]
  %v29 = vld [vmem:[%s0 + $0x8] sm:$0xf]
  %v30 = vld [vmem:[%s0 + $0xc] sm:$0xf]
  %v31 = vld [vmem:[%s1] sm:$0xf]
  %v32 = vld [vmem:[%s1 + $0x4] sm:$0xf]
  %v33 = vld [vmem:[%s1 + $0x8] sm:$0xf]
  %v34 = vld [vmem:[%s1 + $0xc] sm:$0xf]
  %v35 = vld [vmem:[%s1 + $0x10] sm:$0xf]
  %v36 = vld [vmem:[%s1 + $0x14] sm:$0xf]
  %v37 = vld [vmem:[%s1 + $0x18] sm:$0xf]
  %v38 = vld [vmem:[%s1 + $0x1c] sm:$0xf]
  %v39 = vld [vmem:[%s1 + $0x20] sm:$0xf]
  %v40 = vld [vmem:[%s1 + $0x24] sm:$0xf]
  %v41 = vld [vmem:[%s1 + $0x28] sm:$0xf]
  %v42 = vld [vmem:[%s1 + $0x2c] sm:$0xf]
  %v43 = vld [vmem:[%s1 + $0x30] sm:$0xf]
  %v44 = vld [vmem:[%s1 + $0x34] sm:$0xf]
  %v45 = vld [vmem:[%s1 + $0x38] sm:$0xf]
  %v46 = vld [vmem:[%s1 + $0x3c] sm:$0xf]
  %v51 = vunpack.c.l.b16 %v27
  %v52 = vunpack.c.l.b16 %v28
  %v53 = vunpack.c.l.b16 %v29
  %v54 = vunpack.c.l.b16 %v30
  %v55 = vpack.c.b16 %v52, %v51
  %v56 = vpack.c.b16 %v54, %v53
  %v75 = vunpack.c.l.b16 %v31
  %v76 = vunpack.c.l.b16 %v32
  %v77 = vunpack.c.l.b16 %v33
  %v78 = vunpack.c.l.b16 %v34
  %v79 = vunpack.c.l.b16 %v35
  %v80 = vunpack.c.l.b16 %v36
  %v81 = vunpack.c.l.b16 %v37
  %v82 = vunpack.c.l.b16 %v38
  %v83 = vunpack.c.l.b16 %v39
  %v84 = vunpack.c.l.b16 %v40
  %v85 = vunpack.c.l.b16 %v41
  %v86 = vunpack.c.l.b16 %v42
  %v87 = vunpack.c.l.b16 %v43
  %v88 = vunpack.c.l.b16 %v44
  %v89 = vunpack.c.l.b16 %v45
  %v90 = vunpack.c.l.b16 %v46
  %v91 = vpack.c.b16 %v76, %v75
  %v92 = vpack.c.b16 %v78, %v77
  %v93 = vpack.c.b16 %v80, %v79
  %v94 = vpack.c.b16 %v82, %v81
  %v95 = vpack.c.b16 %v84, %v83
  %v96 = vpack.c.b16 %v86, %v85
  %v97 = vpack.c.b16 %v88, %v87
  %v98 = vpack.c.b16 %v90, %v89
  %107 = vmatprep.subr.bf16.mxu0 0
  %108 = vmatpush1.bf16.msra.mxu0 %v91
  %109 = vmatprep.subr.bf16.mxu0 0
  %110 = vmatpush1.bf16.msra.mxu0 %v92
  %111 = vmatprep.subr.bf16.mxu0 0
  %112 = vmatpush1.bf16.msra.mxu0 %v93
  %113 = vmatprep.subr.bf16.mxu0 0
  %114 = vmatpush1.bf16.msra.mxu0 %v94
  %115 = vmatprep.subr.bf16.mxu0 0
  %116 = vmatpush1.bf16.msra.mxu0 %v95
  %117 = vmatprep.subr.bf16.mxu0 0
  %118 = vmatpush1.bf16.msra.mxu0 %v96
  %119 = vmatprep.subr.bf16.mxu0 0
  %120 = vmatpush1.bf16.msra.mxu0 %v97
  %121 = vmatprep.subr.bf16.mxu0 0
  %122 = vmatpush1.bf16.msra.mxu0 %v98
  %123 = vmatprep.subr.bf16.mxu0 0
  %124 = vmatpush1.bf16.msra.mxu0 0
  %125 = vmatprep.subr.bf16.mxu0 0
  %126 = vmatpush1.bf16.msra.mxu0 0
  %127 = vmatprep.subr.bf16.mxu0 0
  %128 = vmatpush1.bf16.msra.mxu0 0
  %129 = vmatprep.subr.bf16.mxu0 0
  %130 = vmatpush1.bf16.msra.mxu0 0
  %131 = vmatprep.subr.bf16.mxu0 0
  %132 = vmatpush1.bf16.msra.mxu0 0
  %133 = vmatprep.subr.bf16.mxu0 0
  %134 = vmatpush1.bf16.msra.mxu0 0
  %135 = vmatprep.subr.bf16.mxu0 0
  %136 = vmatpush1.bf16.msra.mxu0 0
  %137 = vmatprep.subr.bf16.mxu0 0
  %138 = vmatpush1.bf16.msra.mxu0 0
  %139 = vmatprep.mubr.bf16.mxu0 0
  %140 = vmatmul.mubr.bf16.gmra.mrb[0].mxu0 %v55
  %v141 = vpop.f32.mrb[0].mxu0
  %v142 = vadd.f32 0.0, %v141
  %v143 = vpop.f32.mrb[0].mxu0
  %v144 = vpop.f32.mrb[0].mxu0
  %v145 = vadd.f32 0.0, %v144
  %v146 = vpop.f32.mrb[0].mxu0
  %147 = vmatprep.mubr.bf16.mxu0 0
  %148 = vmatmul.mubr.bf16.gmra.mrb[0].mxu0 %v56
  %v149 = vpop.f32.mrb[0].mxu0
  %v150 = vadd.f32 0.0, %v149
  %v151 = vpop.f32.mrb[0].mxu0
  %v152 = vpop.f32.mrb[0].mxu0
  %v153 = vadd.f32 0.0, %v152
  %v154 = vpop.f32.mrb[0].mxu0
  %155 = vdwg.mxu0
  %v156 = vadd.f32 %v23, %v142
  %v157 = vadd.f32 %v24, %v145
  %v158 = vadd.f32 %v25, %v150
  %v159 = vadd.f32 %v26, %v153
  %160 = vst [vmem:[#allocation2] sm:$0xff] %v156
  %161 = vst [vmem:[#allocation2 + $0x8] sm:$0xff] %v157
  %162 = vst [vmem:[#allocation2 + $0x10] sm:$0xff] %v158
  %163 = vst [vmem:[#allocation2 + $0x18] sm:$0xff] %v159
  // Predicated region
  $region18: #{gcs_transformer_forward.34} parent=0 // pred_check
    %p164 = pneg %p15
  $region19: #{gcs_transformer_forward.34} parent=0 // pred_check_branch
    %166 = sbr.rel (%p164) target = $region21
  $region20: #{gcs_transformer_forward.34} parent=0 // pred_region
    %v167 = vld [vmem:[#allocation2] sm:$0xff]
    %v168 = vld [vmem:[#allocation2 + $0x8] sm:$0xff]
    %v169 = vld [vmem:[#allocation2 + $0x10] sm:$0xff]
    %v170 = vld [vmem:[#allocation2 + $0x18] sm:$0xff]
    %v171 = vld [vmem:[%s2] sm:$0x1]
    %v173 = vlaneseq
    %v174 = vshrl.u32 %v173, 7
    %v175 = vsub.s32 0, %v174
    %v176 = vrot.slane %v171, %v175
    %v178 = vadd.f32 %v167, %v176
    %v179 = vadd.f32 %v168, %v176
    %v180 = vadd.f32 %v169, %v176
    %v181 = vadd.f32 %v170, %v176
    %v182 = vmax.f32 %v178, 0.0
    %v183 = vmax.f32 %v179, 0.0
    %v184 = vmax.f32 %v180, 0.0
    %v185 = vmax.f32 %v181, 0.0
    %v186 = vpack.c.bf16 %v183, %v182
    %v187 = vpack.c.bf16 %v185, %v184
    %v190 = vunpack.c.l.b16 %v186
    %v191 = vunpack.c.h.b16 %v186
    %v192 = vunpack.c.l.b16 %v187
    %v193 = vunpack.c.h.b16 %v187
    %v194 = vpack.c.b16 %v190, %v190
    %v195 = vpack.c.b16 %v191, %v191
    %v196 = vpack.c.b16 %v192, %v192
    %v197 = vpack.c.b16 %v193, %v193
    %202 = vst [vmem:[%s3] sm:$0xf] %v194
    %203 = vst [vmem:[%s3 + $0x4] sm:$0xf] %v195
    %204 = vst [vmem:[%s3 + $0x8] sm:$0xf] %v196
    %205 = vst [vmem:[%s3 + $0xc] sm:$0xf] %v197
  $region21: #{gcs_transformer_forward.34} parent=0 // pred_fallthru
    _
  // Predicated region
  $region22: #{gcs_transformer_forward.34} parent=0 // pred_check
    _
  $region23: #{gcs_transformer_forward.34} parent=0 // pred_check_branch
    %207 = sbr.rel (0) target = $region25
  $region24: #{gcs_transformer_forward.34} parent=0 // pred_region
    _
  $region25: #{gcs_transformer_forward.34} parent=0 // pred_fallthru
    _
  // Predicated region
  $region26: #{gcs_transformer_forward.34} parent=0 // pred_check
    _
  $region27: #{gcs_transformer_forward.34} parent=0 // pred_check_branch
    %209 = sbr.rel (0) target = $region29
  $region28: #{gcs_transformer_forward.34} parent=0 // pred_region
    _
  $region29: #{gcs_transformer_forward.34} parent=0 // pred_fallthru
    _

// kernel: gcs_transformer_forward.33
$region0: #{gcs_transformer_forward.33}
  #allocation0 [shape = 'u32[]', space=smem, size = 0x4, offset = 0x4, fixed_abs, tag = 'smem constant byte address 0x4 - core index']
  #allocation1 [shape = 'u32[144,128]{1,0:T(1,128)}', space=vmem, size = 0x12000, scoped, tag = 'internal scratch']
  #allocation2 [shape = 'f32[32,128]{1,0:T(8,128)}', space=vmem, size = 0x4000, scoped, tag = 'scratch operand']
  %s0 = inlined_call_operand.vmem [shape: bf16[32,128], index: 0, kind: input, shape index: {}]
  %s1 = inlined_call_operand.vmem [shape: bf16[128,128], index: 1, kind: input, shape index: {}]
  %s2 = inlined_call_operand.vmem [shape: f32[1,128], index: 2, kind: input, shape index: {}]
  %s3 = inlined_call_operand.vmem [shape: bf16[32,128], index: 3, kind: input, shape index: {}]
  %s4 = inlined_call_operand.vmem [shape: f32[1,128], index: 4, kind: input, shape index: {}]
  %s5 = inlined_call_operand.vmem [shape: f32[1,128], index: 5, kind: input, shape index: {}]
  %s6 = inlined_call_operand.vmem [shape: bf16[32,128], index: 6, kind: output, shape index: {}]
  %s7 = sld [smem:[#allocation0]]
  $region42: #{gcs_transformer_forward.33} parent=0
    _
  %s9 = ssub.s32 1, %s7
  %s10 = scalar_select 0, %s9, %s7
  // Predicated region
  $region2: #{gcs_transformer_forward.33} parent=0 // pred_check
    _
  $region3: #{gcs_transformer_forward.33} parent=0 // pred_check_branch
    %12 = sbr.rel (0) target = $region5
  $region4: #{gcs_transformer_forward.33} parent=0 // pred_region
    _
  $region5: #{gcs_transformer_forward.33} parent=0 // pred_fallthru
    _
  // Predicated region
  $region6: #{gcs_transformer_forward.33} parent=0 // pred_check
    _
  $region7: #{gcs_transformer_forward.33} parent=0 // pred_check_branch
    %14 = sbr.rel (0) target = $region9
  $region8: #{gcs_transformer_forward.33} parent=0 // pred_region
    _
  $region9: #{gcs_transformer_forward.33} parent=0 // pred_fallthru
    _
  // Predicated region
  $region10: #{gcs_transformer_forward.33} parent=0 // pred_check
    _
  $region11: #{gcs_transformer_forward.33} parent=0 // pred_check_branch
    %16 = sbr.rel (0) target = $region13
  $region12: #{gcs_transformer_forward.33} parent=0 // pred_region
    _
  $region13: #{gcs_transformer_forward.33} parent=0 // pred_fallthru
    _
  // Predicated region
  $region14: #{gcs_transformer_forward.33} parent=0 // pred_check
    _
  $region15: #{gcs_transformer_forward.33} parent=0 // pred_check_branch
    %18 = sbr.rel (0) target = $region17
  $region16: #{gcs_transformer_forward.33} parent=0 // pred_region
    _
  $region17: #{gcs_transformer_forward.33} parent=0 // pred_fallthru
    _
  // Predicated region
  $region18: #{gcs_transformer_forward.33} parent=0 // pred_check
    _
  $region19: #{gcs_transformer_forward.33} parent=0 // pred_check_branch
    %20 = sbr.rel (0) target = $region21
  $region20: #{gcs_transformer_forward.33} parent=0 // pred_region
    _
  $region21: #{gcs_transformer_forward.33} parent=0 // pred_fallthru
    _
  // Predicated region
  $region22: #{gcs_transformer_forward.33} parent=0 // pred_check
    _
  $region23: #{gcs_transformer_forward.33} parent=0 // pred_check_branch
    %22 = sbr.rel (0) target = $region25
  $region24: #{gcs_transformer_forward.33} parent=0 // pred_region
    _
  $region25: #{gcs_transformer_forward.33} parent=0 // pred_fallthru
    _
  %p24 = scmp.eq.s32.totalorder 0, 0
  // Predicated region
  $region26: #{gcs_transformer_forward.33} parent=0 // pred_check
    %p25 = pneg %p24
  $region27: #{gcs_transformer_forward.33} parent=0 // pred_check_branch
    %27 = sbr.rel (%p25) target = $region29
  $region28: #{gcs_transformer_forward.33} parent=0 // pred_region
    %28 = vst [vmem:[#allocation2] sm:$0xff] 0.0
    %29 = vst [vmem:[#allocation2 + $0x8] sm:$0xff] 0.0
    %30 = vst [vmem:[#allocation2 + $0x10] sm:$0xff] 0.0
    %31 = vst [vmem:[#allocation2 + $0x18] sm:$0xff] 0.0
  $region29: #{gcs_transformer_forward.33} parent=0 // pred_fallthru
    _
  %v32 = vld [vmem:[#allocation2] sm:$0xff]
  %v33 = vld [vmem:[#allocation2 + $0x8] sm:$0xff]
  %v34 = vld [vmem:[#allocation2 + $0x10] sm:$0xff]
  %v35 = vld [vmem:[#allocation2 + $0x18] sm:$0xff]
  %v36 = vld [vmem:[%s0] sm:$0xf]
  %v37 = vld [vmem:[%s0 + $0x4] sm:$0xf]
  %v38 = vld [vmem:[%s0 + $0x8] sm:$0xf]
  %v39 = vld [vmem:[%s0 + $0xc] sm:$0xf]
  %v40 = vld [vmem:[%s1] sm:$0xf]
  %v41 = vld [vmem:[%s1 + $0x4] sm:$0xf]
  %v42 = vld [vmem:[%s1 + $0x8] sm:$0xf]
  %v43 = vld [vmem:[%s1 + $0xc] sm:$0xf]
  %v44 = vld [vmem:[%s1 + $0x10] sm:$0xf]
  %v45 = vld [vmem:[%s1 + $0x14] sm:$0xf]
  %v46 = vld [vmem:[%s1 + $0x18] sm:$0xf]
  %v47 = vld [vmem:[%s1 + $0x1c] sm:$0xf]
  %v48 = vld [vmem:[%s1 + $0x20] sm:$0xf]
  %v49 = vld [vmem:[%s1 + $0x24] sm:$0xf]
  %v50 = vld [vmem:[%s1 + $0x28] sm:$0xf]
  %v51 = vld [vmem:[%s1 + $0x2c] sm:$0xf]
  %v52 = vld [vmem:[%s1 + $0x30] sm:$0xf]
  %v53 = vld [vmem:[%s1 + $0x34] sm:$0xf]
  %v54 = vld [vmem:[%s1 + $0x38] sm:$0xf]
  %v55 = vld [vmem:[%s1 + $0x3c] sm:$0xf]
  %v60 = vunpack.c.l.b16 %v36
  %v61 = vunpack.c.l.b16 %v37
  %v62 = vunpack.c.l.b16 %v38
  %v63 = vunpack.c.l.b16 %v39
  %v64 = vpack.c.b16 %v61, %v60
  %v65 = vpack.c.b16 %v63, %v62
  %v84 = vunpack.c.l.b16 %v40
  %v85 = vunpack.c.l.b16 %v41
  %v86 = vunpack.c.l.b16 %v42
  %v87 = vunpack.c.l.b16 %v43
  %v88 = vunpack.c.l.b16 %v44
  %v89 = vunpack.c.l.b16 %v45
  %v90 = vunpack.c.l.b16 %v46
  %v91 = vunpack.c.l.b16 %v47
  %v92 = vunpack.c.l.b16 %v48
  %v93 = vunpack.c.l.b16 %v49
  %v94 = vunpack.c.l.b16 %v50
  %v95 = vunpack.c.l.b16 %v51
  %v96 = vunpack.c.l.b16 %v52
  %v97 = vunpack.c.l.b16 %v53
  %v98 = vunpack.c.l.b16 %v54
  %v99 = vunpack.c.l.b16 %v55
  %v100 = vpack.c.b16 %v85, %v84
  %v101 = vpack.c.b16 %v87, %v86
  %v102 = vpack.c.b16 %v89, %v88
  %v103 = vpack.c.b16 %v91, %v90
  %v104 = vpack.c.b16 %v93, %v92
  %v105 = vpack.c.b16 %v95, %v94
  %v106 = vpack.c.b16 %v97, %v96
  %v107 = vpack.c.b16 %v99, %v98
  %116 = vmatprep.subr.bf16.mxu0 0
  %117 = vmatpush1.bf16.msra.mxu0 %v100
  %118 = vmatprep.subr.bf16.mxu0 0
  %119 = vmatpush1.bf16.msra.mxu0 %v101
  %120 = vmatprep.subr.bf16.mxu0 0
  %121 = vmatpush1.bf16.msra.mxu0 %v102
  %122 = vmatprep.subr.bf16.mxu0 0
  %123 = vmatpush1.bf16.msra.mxu0 %v103
  %124 = vmatprep.subr.bf16.mxu0 0
  %125 = vmatpush1.bf16.msra.mxu0 %v104
  %126 = vmatprep.subr.bf16.mxu0 0
  %127 = vmatpush1.bf16.msra.mxu0 %v105
  %128 = vmatprep.subr.bf16.mxu0 0
  %129 = vmatpush1.bf16.msra.mxu0 %v106
  %130 = vmatprep.subr.bf16.mxu0 0
  %131 = vmatpush1.bf16.msra.mxu0 %v107
  %132 = vmatprep.subr.bf16.mxu0 0
  %133 = vmatpush1.bf16.msra.mxu0 0
  %134 = vmatprep.subr.bf16.mxu0 0
  %135 = vmatpush1.bf16.msra.mxu0 0
  %136 = vmatprep.subr.bf16.mxu0 0
  %137 = vmatpush1.bf16.msra.mxu0 0
  %138 = vmatprep.subr.bf16.mxu0 0
  %139 = vmatpush1.bf16.msra.mxu0 0
  %140 = vmatprep.subr.bf16.mxu0 0
  %141 = vmatpush1.bf16.msra.mxu0 0
  %142 = vmatprep.subr.bf16.mxu0 0
  %143 = vmatpush1.bf16.msra.mxu0 0
  %144 = vmatprep.subr.bf16.mxu0 0
  %145 = vmatpush1.bf16.msra.mxu0 0
  %146 = vmatprep.subr.bf16.mxu0 0
  %147 = vmatpush1.bf16.msra.mxu0 0
  %148 = vmatprep.mubr.bf16.mxu0 0
  %149 = vmatmul.mubr.bf16.gmra.mrb[0].mxu0 %v64
  %v150 = vpop.f32.mrb[0].mxu0
  %v151 = vadd.f32 0.0, %v150
  %v152 = vpop.f32.mrb[0].mxu0
  %v153 = vpop.f32.mrb[0].mxu0
  %v154 = vadd.f32 0.0, %v153
  %v155 = vpop.f32.mrb[0].mxu0
  %156 = vmatprep.mubr.bf16.mxu0 0
  %157 = vmatmul.mubr.bf16.gmra.mrb[0].mxu0 %v65
  %v158 = vpop.f32.mrb[0].mxu0
  %v159 = vadd.f32 0.0, %v158
  %v160 = vpop.f32.mrb[0].mxu0
  %v161 = vpop.f32.mrb[0].mxu0
  %v162 = vadd.f32 0.0, %v161
  %v163 = vpop.f32.mrb[0].mxu0
  %164 = vdwg.mxu0
  %v165 = vadd.f32 %v32, %v151
  %v166 = vadd.f32 %v33, %v154
  %v167 = vadd.f32 %v34, %v159
  %v168 = vadd.f32 %v35, %v162
  %169 = vst [vmem:[#allocation2] sm:$0xff] %v165
  %170 = vst [vmem:[#allocation2 + $0x8] sm:$0xff] %v166
  %171 = vst [vmem:[#allocation2 + $0x10] sm:$0xff] %v167
  %172 = vst [vmem:[#allocation2 + $0x18] sm:$0xff] %v168
  // Predicated region
  $region30: #{gcs_transformer_forward.33} parent=0 // pred_check
    %p173 = pneg %p24
  $region31: #{gcs_transformer_forward.33} parent=0 // pred_check_branch
    %175 = sbr.rel (%p173) target = $region33
  $region32: #{gcs_transformer_forward.33} parent=0 // pred_region
    %v176 = vld [vmem:[#allocation2] sm:$0xff]
    %v177 = vld [vmem:[#allocation2 + $0x8] sm:$0xff]
    %v178 = vld [vmem:[#allocation2 + $0x10] sm:$0xff]
    %v179 = vld [vmem:[#allocation2 + $0x18] sm:$0xff]
    %v180 = vld [vmem:[%s2] sm:$0x1]
    %v182 = vlaneseq
    %v183 = vshrl.u32 %v182, 7
    %v184 = vsub.s32 0, %v183
    %v185 = vrot.slane %v180, %v184
    %v187 = vadd.f32 %v176, %v185
    %v188 = vadd.f32 %v177, %v185
    %v189 = vadd.f32 %v178, %v185
    %v190 = vadd.f32 %v179, %v185
    %v191 = vld [vmem:[%s3] sm:$0xf]
    %v192 = vld [vmem:[%s3 + $0x4] sm:$0xf]
    %v193 = vld [vmem:[%s3 + $0x8] sm:$0xf]
    %v194 = vld [vmem:[%s3 + $0xc] sm:$0xf]
    %v195 = vunpack.c.l.bf16 %v191
    %v196 = vunpack.c.l.bf16 %v192
    %v197 = vunpack.c.l.bf16 %v193
    %v198 = vunpack.c.l.bf16 %v194
    %v199 = vadd.f32 %v187, %v195
    %v200 = vadd.f32 %v188, %v196
    %v201 = vadd.f32 %v189, %v197
    %v202 = vadd.f32 %v190, %v198
    %v203 = vld [vmem:[%s4] sm:$0x1]
    %v204 = vld [vmem:[%s5] sm:$0x1]
    %205 = vadd.xlane.f32.xlu0 %v199
    %v206 = vpop.xlane.xlu0 %205
    %207 = vadd.xlane.f32.xlu0 %v200
    %v208 = vpop.xlane.xlu0 %207
    %209 = vadd.xlane.f32.xlu0 %v201
    %v210 = vpop.xlane.xlu0 %209
    %211 = vadd.xlane.f32.xlu0 %v202
    %v212 = vpop.xlane.xlu0 %211
    %v213 = vmul.f32 %v206, 0.03125
    %v214 = vmul.f32 %v208, 0.03125
    %v215 = vmul.f32 %v210, 0.03125
    %v216 = vmul.f32 %v212, 0.03125
    %v217 = vsub.f32 %v199, %v213
    %v218 = vsub.f32 %v200, %v214
    %v219 = vsub.f32 %v201, %v215
    %v220 = vsub.f32 %v202, %v216
    %v221 = vlaneseq
    %v222 = vand.u32 %v221, 127
    %vm223 = vcmp.lt.s32.totalorder %v222, 32
    %v224 = vsel %vm223, 1, 0
    %v225 = vcvt.s32.f32 %v224
    %v226 = vmul.f32 %v217, %v225
    %v227 = vmul.f32 %v218, %v225
    %v228 = vmul.f32 %v219, %v225
    %v229 = vmul.f32 %v220, %v225
    %v230 = vmul.f32 %v226, %v226
    %v231 = vmul.f32 %v227, %v227
    %v232 = vmul.f32 %v228, %v228
    %v233 = vmul.f32 %v229, %v229
    %234 = vadd.xlane.f32.xlu0 %v230
    %v235 = vpop.xlane.xlu0 %234
    %236 = vadd.xlane.f32.xlu0 %v231
    %v237 = vpop.xlane.xlu0 %236
    %238 = vadd.xlane.f32.xlu0 %v232
    %v239 = vpop.xlane.xlu0 %238
    %240 = vadd.xlane.f32.xlu0 %v233
    %v241 = vpop.xlane.xlu0 %240
    %v242 = vmul.f32 %v235, 0.03125
    %v243 = vmul.f32 %v237, 0.03125
    %v244 = vmul.f32 %v239, 0.03125
    %v245 = vmul.f32 %v241, 0.03125
    %v246 = vadd.f32 %v242, 1e-05
    %v247 = vadd.f32 %v243, 1e-05
    %v248 = vadd.f32 %v244, 1e-05
    %v249 = vadd.f32 %v245, 1e-05
    %v250 = vrsqrt.pop %v246
    %v251 = vrsqrt.pop %v247
    %v252 = vrsqrt.pop %v248
    %v253 = vrsqrt.pop %v249
    %v254 = vmul.f32 %v226, %v250
    %v255 = vmul.f32 %v227, %v251
    %v256 = vmul.f32 %v228, %v252
    %v257 = vmul.f32 %v229, %v253
    %v259 = vlaneseq
    %v260 = vshrl.u32 %v259, 7
    %v261 = vsub.s32 0, %v260
    %v262 = vrot.slane %v203, %v261
    %v264 = vmul.f32 %v254, %v262
    %v265 = vmul.f32 %v255, %v262
    %v266 = vmul.f32 %v256, %v262
    %v267 = vmul.f32 %v257, %v262
    %v269 = vlaneseq
    %v270 = vshrl.u32 %v269, 7
    %v271 = vsub.s32 0, %v270
    %v272 = vrot.slane %v204, %v271
    %v274 = vadd.f32 %v264, %v272
    %v275 = vadd.f32 %v265, %v272
    %v276 = vadd.f32 %v266, %v272
    %v277 = vadd.f32 %v267, %v272
    %v278 = vpack.c.bf16 %v275, %v274
    %v279 = vpack.c.bf16 %v277, %v276
    %v282 = vunpack.c.l.b16 %v278
    %v283 = vunpack.c.h.b16 %v278
    %v284 = vunpack.c.l.b16 %v279
    %v285 = vunpack.c.h.b16 %v279
    %v286 = vpack.c.b16 %v282, %v282
    %v287 = vpack.c.b16 %v283, %v283
    %v288 = vpack.c.b16 %v284, %v284
    %v289 = vpack.c.b16 %v285, %v285
    %294 = vst [vmem:[%s6] sm:$0xf] %v286
    %295 = vst [vmem:[%s6 + $0x4] sm:$0xf] %v287
    %296 = vst [vmem:[%s6 + $0x8] sm:$0xf] %v288
    %297 = vst [vmem:[%s6 + $0xc] sm:$0xf] %v289
  $region33: #{gcs_transformer_forward.33} parent=0 // pred_fallthru
    _
  // Predicated region
  $region34: #{gcs_transformer_forward.33} parent=0 // pred_check
    _
  $region35: #{gcs_transformer_forward.33} parent=0 // pred_check_branch
    %299 = sbr.rel (0) target = $region37
  $region36: #{gcs_transformer_forward.33} parent=0 // pred_region
    _
  $region37: #{gcs_transformer_forward.33} parent=0 // pred_fallthru
    _
  // Predicated region
  $region38: #{gcs_transformer_forward.33} parent=0 // pred_check
    _
  $region39: #{gcs_transformer_forward.33} parent=0 // pred_check_branch
    %301 = sbr.rel (0) target = $region41
  $region40: #{gcs_transformer_forward.33} parent=0 // pred_region
    _
  $region41: #{gcs_transformer_forward.33} parent=0 // pred_fallthru
    _

// kernel: gcs_transformer_forward.31
$region0: #{gcs_transformer_forward.31}
  #allocation0 [shape = 'u32[]', space=smem, size = 0x4, offset = 0x4, fixed_abs, tag = 'smem constant byte address 0x4 - core index']
  #allocation1 [shape = 'u32[144,128]{1,0:T(1,128)}', space=vmem, size = 0x12000, scoped, tag = 'internal scratch']
  #allocation2 [shape = 'f32[32,384]{1,0:T(8,128)}', space=vmem, size = 0xc000, scoped, tag = 'scratch operand']
  %s0 = inlined_call_operand.vmem [shape: bf16[32,128], index: 0, kind: input, shape index: {}]
  %s1 = inlined_call_operand.vmem [shape: bf16[128,384], index: 1, kind: input, shape index: {}]
  %s2 = inlined_call_operand.vmem [shape: f32[1,384], index: 2, kind: input, shape index: {}]
  %s3 = inlined_call_operand.vmem [shape: bf16[32,384], index: 3, kind: output, shape index: {}]
  %s4 = sld [smem:[#allocation0]]
  $region30: #{gcs_transformer_forward.31} parent=0
    _
  %s6 = ssub.s32 1, %s4
  %s7 = scalar_select 0, %s6, %s4
  // Predicated region
  $region2: #{gcs_transformer_forward.31} parent=0 // pred_check
    _
  $region3: #{gcs_transformer_forward.31} parent=0 // pred_check_branch
    %9 = sbr.rel (0) target = $region5
  $region4: #{gcs_transformer_forward.31} parent=0 // pred_region
    _
  $region5: #{gcs_transformer_forward.31} parent=0 // pred_fallthru
    _
  // Predicated region
  $region6: #{gcs_transformer_forward.31} parent=0 // pred_check
    _
  $region7: #{gcs_transformer_forward.31} parent=0 // pred_check_branch
    %11 = sbr.rel (0) target = $region9
  $region8: #{gcs_transformer_forward.31} parent=0 // pred_region
    _
  $region9: #{gcs_transformer_forward.31} parent=0 // pred_fallthru
    _
  // Predicated region
  $region10: #{gcs_transformer_forward.31} parent=0 // pred_check
    _
  $region11: #{gcs_transformer_forward.31} parent=0 // pred_check_branch
    %13 = sbr.rel (0) target = $region13
  $region12: #{gcs_transformer_forward.31} parent=0 // pred_region
    _
  $region13: #{gcs_transformer_forward.31} parent=0 // pred_fallthru
    _
  %p15 = scmp.eq.s32.totalorder 0, 0
  // Predicated region
  $region14: #{gcs_transformer_forward.31} parent=0 // pred_check
    %p16 = pneg %p15
  $region15: #{gcs_transformer_forward.31} parent=0 // pred_check_branch
    %18 = sbr.rel (%p16) target = $region17
  $region16: #{gcs_transformer_forward.31} parent=0 // pred_region
    %19 = vst [vmem:[#allocation2] sm:$0xff] 0.0
    %20 = vst [vmem:[#allocation2 + $0x8] sm:$0xff] 0.0
    %21 = vst [vmem:[#allocation2 + $0x10] sm:$0xff] 0.0
    %22 = vst [vmem:[#allocation2 + $0x18] sm:$0xff] 0.0
    %23 = vst [vmem:[#allocation2 + $0x20] sm:$0xff] 0.0
    %24 = vst [vmem:[#allocation2 + $0x28] sm:$0xff] 0.0
    %25 = vst [vmem:[#allocation2 + $0x30] sm:$0xff] 0.0
    %26 = vst [vmem:[#allocation2 + $0x38] sm:$0xff] 0.0
    %27 = vst [vmem:[#allocation2 + $0x40] sm:$0xff] 0.0
    %28 = vst [vmem:[#allocation2 + $0x48] sm:$0xff] 0.0
    %29 = vst [vmem:[#allocation2 + $0x50] sm:$0xff] 0.0
    %30 = vst [vmem:[#allocation2 + $0x58] sm:$0xff] 0.0
  $region17: #{gcs_transformer_forward.31} parent=0 // pred_fallthru
    _
  %v31 = vld [vmem:[#allocation2] sm:$0xff]
  %v32 = vld [vmem:[#allocation2 + $0x8] sm:$0xff]
  %v33 = vld [vmem:[#allocation2 + $0x10] sm:$0xff]
  %v34 = vld [vmem:[#allocation2 + $0x18] sm:$0xff]
  %v35 = vld [vmem:[#allocation2 + $0x20] sm:$0xff]
  %v36 = vld [vmem:[#allocation2 + $0x28] sm:$0xff]
  %v37 = vld [vmem:[#allocation2 + $0x30] sm:$0xff]
  %v38 = vld [vmem:[#allocation2 + $0x38] sm:$0xff]
  %v39 = vld [vmem:[#allocation2 + $0x40] sm:$0xff]
  %v40 = vld [vmem:[#allocation2 + $0x48] sm:$0xff]
  %v41 = vld [vmem:[#allocation2 + $0x50] sm:$0xff]
  %v42 = vld [vmem:[#allocation2 + $0x58] sm:$0xff]
  %v43 = vld [vmem:[%s0] sm:$0xf]
  %v44 = vld [vmem:[%s0 + $0x4] sm:$0xf]
  %v45 = vld [vmem:[%s0 + $0x8] sm:$0xf]
  %v46 = vld [vmem:[%s0 + $0xc] sm:$0xf]
  %v47 = vld [vmem:[%s1] sm:$0xff]
  %v48 = vld [vmem:[%s1 + $0x8] sm:$0xf]
  %v49 = vld [vmem:[%s1 + $0xc] sm:$0xff]
  %v50 = vld [vmem:[%s1 + $0x14] sm:$0xf]
  %v51 = vld [vmem:[%s1 + $0x18] sm:$0xff]
  %v52 = vld [vmem:[%s1 + $0x20] sm:$0xf]
  %v53 = vld [vmem:[%s1 + $0x24] sm:$0xff]
  %v54 = vld [vmem:[%s1 + $0x2c] sm:$0xf]
  %v55 = vld [vmem:[%s1 + $0x30] sm:$0xff]
  %v56 = vld [vmem:[%s1 + $0x38] sm:$0xf]
  %v57 = vld [vmem:[%s1 + $0x3c] sm:$0xff]
  %v58 = vld [vmem:[%s1 + $0x44] sm:$0xf]
  %v59 = vld [vmem:[%s1 + $0x48] sm:$0xff]
  %v60 = vld [vmem:[%s1 + $0x50] sm:$0xf]
  %v61 = vld [vmem:[%s1 + $0x54] sm:$0xff]
  %v62 = vld [vmem:[%s1 + $0x5c] sm:$0xf]
  %v63 = vld [vmem:[%s1 + $0x60] sm:$0xff]
  %v64 = vld [vmem:[%s1 + $0x68] sm:$0xf]
  %v65 = vld [vmem:[%s1 + $0x6c] sm:$0xff]
  %v66 = vld [vmem:[%s1 + $0x74] sm:$0xf]
  %v67 = vld [vmem:[%s1 + $0x78] sm:$0xff]
  %v68 = vld [vmem:[%s1 + $0x80] sm:$0xf]
  %v69 = vld [vmem:[%s1 + $0x84] sm:$0xff]
  %v70 = vld [vmem:[%s1 + $0x8c] sm:$0xf]
  %v71 = vld [vmem:[%s1 + $0x90] sm:$0xff]
  %v72 = vld [vmem:[%s1 + $0x98] sm:$0xf]
  %v73 = vld [vmem:[%s1 + $0x9c] sm:$0xff]
  %v74 = vld [vmem:[%s1 + $0xa4] sm:$0xf]
  %v75 = vld [vmem:[%s1 + $0xa8] sm:$0xff]
  %v76 = vld [vmem:[%s1 + $0xb0] sm:$0xf]
  %v77 = vld [vmem:[%s1 + $0xb4] sm:$0xff]
  %v78 = vld [vmem:[%s1 + $0xbc] sm:$0xf]
  %v83 = vunpack.c.l.b16 %v43
  %v84 = vunpack.c.l.b16 %v44
  %v85 = vunpack.c.l.b16 %v45
  %v86 = vunpack.c.l.b16 %v46
  %v87 = vpack.c.b16 %v84, %v83
  %v88 = vpack.c.b16 %v86, %v85
  %v123 = vunpack.c.l.b16 %v47
  %v124 = vunpack.c.h.b16 %v47
  %v125 = vunpack.c.l.b16 %v48
  %v126 = vunpack.c.l.b16 %v49
  %v127 = vunpack.c.h.b16 %v49
  %v128 = vunpack.c.l.b16 %v50
  %v129 = vunpack.c.l.b16 %v51
  %v130 = vunpack.c.h.b16 %v51
  %v131 = vunpack.c.l.b16 %v52
  %v132 = vunpack.c.l.b16 %v53
  %v133 = vunpack.c.h.b16 %v53
  %v134 = vunpack.c.l.b16 %v54
  %v135 = vunpack.c.l.b16 %v55
  %v136 = vunpack.c.h.b16 %v55
  %v137 = vunpack.c.l.b16 %v56
  %v138 = vunpack.c.l.b16 %v57
  %v139 = vunpack.c.h.b16 %v57
  %v140 = vunpack.c.l.b16 %v58
  %v141 = vunpack.c.l.b16 %v59
  %v142 = vunpack.c.h.b16 %v59
  %v143 = vunpack.c.l.b16 %v60
  %v144 = vunpack.c.l.b16 %v61
  %v145 = vunpack.c.h.b16 %v61
  %v146 = vunpack.c.l.b16 %v62
  %v147 = vunpack.c.l.b16 %v63
  %v148 = vunpack.c.h.b16 %v63
  %v149 = vunpack.c.l.b16 %v64
  %v150 = vunpack.c.l.b16 %v65
  %v151 = vunpack.c.h.b16 %v65
  %v152 = vunpack.c.l.b16 %v66
  %v153 = vunpack.c.l.b16 %v67
  %v154 = vunpack.c.h.b16 %v67
  %v155 = vunpack.c.l.b16 %v68
  %v156 = vunpack.c.l.b16 %v69
  %v157 = vunpack.c.h.b16 %v69
  %v158 = vunpack.c.l.b16 %v70
  %v159 = vunpack.c.l.b16 %v71
  %v160 = vunpack.c.h.b16 %v71
  %v161 = vunpack.c.l.b16 %v72
  %v162 = vunpack.c.l.b16 %v73
  %v163 = vunpack.c.h.b16 %v73
  %v164 = vunpack.c.l.b16 %v74
  %v165 = vunpack.c.l.b16 %v75
  %v166 = vunpack.c.h.b16 %v75
  %v167 = vunpack.c.l.b16 %v76
  %v168 = vunpack.c.l.b16 %v77
  %v169 = vunpack.c.h.b16 %v77
  %v170 = vunpack.c.l.b16 %v78
  %v171 = vpack.c.b16 %v126, %v123
  %v172 = vpack.c.b16 %v127, %v124
  %v173 = vpack.c.b16 %v128, %v125
  %v174 = vpack.c.b16 %v132, %v129
  %v175 = vpack.c.b16 %v133, %v130
  %v176 = vpack.c.b16 %v134, %v131
  %v177 = vpack.c.b16 %v138, %v135
  %v178 = vpack.c.b16 %v139, %v136
  %v179 = vpack.c.b16 %v140, %v137
  %v180 = vpack.c.b16 %v144, %v141
  %v181 = vpack.c.b16 %v145, %v142
  %v182 = vpack.c.b16 %v146, %v143
  %v183 = vpack.c.b16 %v150, %v147
  %v184 = vpack.c.b16 %v151, %v148
  %v185 = vpack.c.b16 %v152, %v149
  %v186 = vpack.c.b16 %v156, %v153
  %v187 = vpack.c.b16 %v157, %v154
  %v188 = vpack.c.b16 %v158, %v155
  %v189 = vpack.c.b16 %v162, %v159
  %v190 = vpack.c.b16 %v163, %v160
  %v191 = vpack.c.b16 %v164, %v161
  %v192 = vpack.c.b16 %v168, %v165
  %v193 = vpack.c.b16 %v169, %v166
  %v194 = vpack.c.b16 %v170, %v167
  %219 = vmatprep.subr.bf16.mxu0 %v172
  %220 = vmatpush1.bf16.msra.mxu0 %v171
  %221 = vmatprep.subr.bf16.mxu0 %v175
  %222 = vmatpush1.bf16.msra.mxu0 %v174
  %223 = vmatprep.subr.bf16.mxu0 %v178
  %224 = vmatpush1.bf16.msra.mxu0 %v177
  %225 = vmatprep.subr.bf16.mxu0 %v181
  %226 = vmatpush1.bf16.msra.mxu0 %v180
  %227 = vmatprep.subr.bf16.mxu0 %v184
  %228 = vmatpush1.bf16.msra.mxu0 %v183
  %229 = vmatprep.subr.bf16.mxu0 %v187
  %230 = vmatpush1.bf16.msra.mxu0 %v186
  %231 = vmatprep.subr.bf16.mxu0 %v190
  %232 = vmatpush1.bf16.msra.mxu0 %v189
  %233 = vmatprep.subr.bf16.mxu0 %v193
  %234 = vmatpush1.bf16.msra.mxu0 %v192
  %235 = vmatprep.subr.bf16.mxu0 0
  %236 = vmatpush1.bf16.msra.mxu0 0
  %237 = vmatprep.subr.bf16.mxu0 0
  %238 = vmatpush1.bf16.msra.mxu0 0
  %239 = vmatprep.subr.bf16.mxu0 0
  %240 = vmatpush1.bf16.msra.mxu0 0
  %241 = vmatprep.subr.bf16.mxu0 0
  %242 = vmatpush1.bf16.msra.mxu0 0
  %243 = vmatprep.subr.bf16.mxu0 0
  %244 = vmatpush1.bf16.msra.mxu0 0
  %245 = vmatprep.subr.bf16.mxu0 0
  %246 = vmatpush1.bf16.msra.mxu0 0
  %247 = vmatprep.subr.bf16.mxu0 0
  %248 = vmatpush1.bf16.msra.mxu0 0
  %249 = vmatprep.subr.bf16.mxu0 0
  %250 = vmatpush1.bf16.msra.mxu0 0
  %251 = vmatprep.mubr.bf16.mxu0 0
  %252 = vmatmul.mubr.bf16.gmra.mrb[0].mxu0 %v87
  %v253 = vpop.f32.mrb[0].mxu0
  %v254 = vadd.f32 0.0, %v253
  %v255 = vpop.f32.mrb[0].mxu0
  %v256 = vadd.f32 0.0, %v255
  %v257 = vpop.f32.mrb[0].mxu0
  %v258 = vadd.f32 0.0, %v257
  %v259 = vpop.f32.mrb[0].mxu0
  %v260 = vadd.f32 0.0, %v259
  %261 = vmatprep.mubr.bf16.mxu0 0
  %262 = vmatmul.mubr.bf16.gmra.mrb[0].mxu0 %v88
  %v263 = vpop.f32.mrb[0].mxu0
  %v264 = vadd.f32 0.0, %v263
  %v265 = vpop.f32.mrb[0].mxu0
  %v266 = vadd.f32 0.0, %v265
  %v267 = vpop.f32.mrb[0].mxu0
  %v268 = vadd.f32 0.0, %v267
  %v269 = vpop.f32.mrb[0].mxu0
  %v270 = vadd.f32 0.0, %v269
  %271 = vdwg.mxu0
  %272 = vmatprep.subr.bf16.mxu0 0
  %273 = vmatpush1.bf16.msra.mxu0 %v173
  %274 = vmatprep.subr.bf16.mxu0 0
  %275 = vmatpush1.bf16.msra.mxu0 %v176
  %276 = vmatprep.subr.bf16.mxu0 0
  %277 = vmatpush1.bf16.msra.mxu0 %v179
  %278 = vmatprep.subr.bf16.mxu0 0
  %279 = vmatpush1.bf16.msra.mxu0 %v182
  %280 = vmatprep.subr.bf16.mxu0 0
  %281 = vmatpush1.bf16.msra.mxu0 %v185
  %282 = vmatprep.subr.bf16.mxu0 0
  %283 = vmatpush1.bf16.msra.mxu0 %v188
  %284 = vmatprep.subr.bf16.mxu0 0
  %285 = vmatpush1.bf16.msra.mxu0 %v191
  %286 = vmatprep.subr.bf16.mxu0 0
  %287 = vmatpush1.bf16.msra.mxu0 %v194
  %288 = vmatprep.subr.bf16.mxu0 0
  %289 = vmatpush1.bf16.msra.mxu0 0
  %290 = vmatprep.subr.bf16.mxu0 0
  %291 = vmatpush1.bf16.msra.mxu0 0
  %292 = vmatprep.subr.bf16.mxu0 0
  %293 = vmatpush1.bf16.msra.mxu0 0
  %294 = vmatprep.subr.bf16.mxu0 0
  %295 = vmatpush1.bf16.msra.mxu0 0
  %296 = vmatprep.subr.bf16.mxu0 0
  %297 = vmatpush1.bf16.msra.mxu0 0
  %298 = vmatprep.subr.bf16.mxu0 0
  %299 = vmatpush1.bf16.msra.mxu0 0
  %300 = vmatprep.subr.bf16.mxu0 0
  %301 = vmatpush1.bf16.msra.mxu0 0
  %302 = vmatprep.subr.bf16.mxu0 0
  %303 = vmatpush1.bf16.msra.mxu0 0
  %304 = vmatprep.mubr.bf16.mxu0 0
  %305 = vmatmul.mubr.bf16.gmra.mrb[0].mxu0 %v87
  %v306 = vpop.f32.mrb[0].mxu0
  %v307 = vadd.f32 0.0, %v306
  %v308 = vpop.f32.mrb[0].mxu0
  %v309 = vpop.f32.mrb[0].mxu0
  %v310 = vadd.f32 0.0, %v309
  %v311 = vpop.f32.mrb[0].mxu0
  %312 = vmatprep.mubr.bf16.mxu0 0
  %313 = vmatmul.mubr.bf16.gmra.mrb[0].mxu0 %v88
  %v314 = vpop.f32.mrb[0].mxu0
  %v315 = vadd.f32 0.0, %v314
  %v316 = vpop.f32.mrb[0].mxu0
  %v317 = vpop.f32.mrb[0].mxu0
  %v318 = vadd.f32 0.0, %v317
  %v319 = vpop.f32.mrb[0].mxu0
  %320 = vdwg.mxu0
  %v321 = vadd.f32 %v31, %v254
  %v322 = vadd.f32 %v32, %v256
  %v323 = vadd.f32 %v33, %v307
  %v324 = vadd.f32 %v34, %v258
  %v325 = vadd.f32 %v35, %v260
  %v326 = vadd.f32 %v36, %v310
  %v327 = vadd.f32 %v37, %v264
  %v328 = vadd.f32 %v38, %v266
  %v329 = vadd.f32 %v39, %v315
  %v330 = vadd.f32 %v40, %v268
  %v331 = vadd.f32 %v41, %v270
  %v332 = vadd.f32 %v42, %v318
  %333 = vst [vmem:[#allocation2] sm:$0xff] %v321
  %334 = vst [vmem:[#allocation2 + $0x8] sm:$0xff] %v322
  %335 = vst [vmem:[#allocation2 + $0x10] sm:$0xff] %v323
  %336 = vst [vmem:[#allocation2 + $0x18] sm:$0xff] %v324
  %337 = vst [vmem:[#allocation2 + $0x20] sm:$0xff] %v325
  %338 = vst [vmem:[#allocation2 + $0x28] sm:$0xff] %v326
  %339 = vst [vmem:[#allocation2 + $0x30] sm:$0xff] %v327
  %340 = vst [vmem:[#allocation2 + $0x38] sm:$0xff] %v328
  %341 = vst [vmem:[#allocation2 + $0x40] sm:$0xff] %v329
  %342 = vst [vmem:[#allocation2 + $0x48] sm:$0xff] %v330
  %343 = vst [vmem:[#allocation2 + $0x50] sm:$0xff] %v331
  %344 = vst [vmem:[#allocation2 + $0x58] sm:$0xff] %v332
  // Predicated region
  $region18: #{gcs_transformer_forward.31} parent=0 // pred_check
    %p345 = pneg %p15
  $region19: #{gcs_transformer_forward.31} parent=0 // pred_check_branch
    %347 = sbr.rel (%p345) target = $region21
  $region20: #{gcs_transformer_forward.31} parent=0 // pred_region
    %v348 = vld [vmem:[#allocation2] sm:$0xff]
    %v349 = vld [vmem:[#allocation2 + $0x8] sm:$0xff]
    %v350 = vld [vmem:[#allocation2 + $0x10] sm:$0xff]
    %v351 = vld [vmem:[#allocation2 + $0x18] sm:$0xff]
    %v352 = vld [vmem:[#allocation2 + $0x20] sm:$0xff]
    %v353 = vld [vmem:[#allocation2 + $0x28] sm:$0xff]
    %v354 = vld [vmem:[#allocation2 + $0x30] sm:$0xff]
    %v355 = vld [vmem:[#allocation2 + $0x38] sm:$0xff]
    %v356 = vld [vmem:[#allocation2 + $0x40] sm:$0xff]
    %v357 = vld [vmem:[#allocation2 + $0x48] sm:$0xff]
    %v358 = vld [vmem:[#allocation2 + $0x50] sm:$0xff]
    %v359 = vld [vmem:[#allocation2 + $0x58] sm:$0xff]
    %v360 = vld [vmem:[%s2] sm:$0x7]
    %v362 = vlaneseq
    %v363 = vshrl.u32 %v362, 7
    %v364 = vsub.s32 0, %v363
    %v365 = vrot.slane %v360, %v364
    %v366 = vlaneseq
    %v367 = vshrl.u32 %v366, 7
    %v368 = vsub.s32 1, %v367
    %v369 = vrot.slane %v360, %v368
    %v370 = vlaneseq
    %v371 = vshrl.u32 %v370, 7
    %v372 = vsub.s32 2, %v371
    %v373 = vrot.slane %v360, %v372
    %v377 = vadd.f32 %v348, %v365
    %v378 = vadd.f32 %v349, %v369
    %v379 = vadd.f32 %v350, %v373
    %v380 = vadd.f32 %v351, %v365
    %v381 = vadd.f32 %v352, %v369
    %v382 = vadd.f32 %v353, %v373
    %v383 = vadd.f32 %v354, %v365
    %v384 = vadd.f32 %v355, %v369
    %v385 = vadd.f32 %v356, %v373
    %v386 = vadd.f32 %v357, %v365
    %v387 = vadd.f32 %v358, %v369
    %v388 = vadd.f32 %v359, %v373
    %v389 = vpack.c.bf16 %v380, %v377
    %v390 = vpack.c.bf16 %v381, %v378
    %v391 = vpack.c.bf16 %v382, %v379
    %v392 = vpack.c.bf16 %v386, %v383
    %v393 = vpack.c.bf16 %v387, %v384
    %v394 = vpack.c.bf16 %v388, %v385
    %v401 = vunpack.c.l.b16 %v389
    %v402 = vunpack.c.l.b16 %v390
    %v403 = vunpack.c.l.b16 %v391
    %v404 = vunpack.c.h.b16 %v389
    %v405 = vunpack.c.h.b16 %v390
    %v406 = vunpack.c.h.b16 %v391
    %v407 = vunpack.c.l.b16 %v392
    %v408 = vunpack.c.l.b16 %v393
    %v409 = vunpack.c.l.b16 %v394
    %v410 = vunpack.c.h.b16 %v392
    %v411 = vunpack.c.h.b16 %v393
    %v412 = vunpack.c.h.b16 %v394
    %v413 = vpack.c.b16 %v402, %v401
    %v414 = vpack.c.b16 %v403, %v403
    %v415 = vpack.c.b16 %v405, %v404
    %v416 = vpack.c.b16 %v406, %v406
    %v417 = vpack.c.b16 %v408, %v407
    %v418 = vpack.c.b16 %v409, %v409
    %v419 = vpack.c.b16 %v411, %v410
    %v420 = vpack.c.b16 %v412, %v412
    %429 = vst [vmem:[%s3] sm:$0xff] %v413
    %430 = vst [vmem:[%s3 + $0x8] sm:$0xf] %v414
    %431 = vst [vmem:[%s3 + $0xc] sm:$0xff] %v415
    %432 = vst [vmem:[%s3 + $0x14] sm:$0xf] %v416
    %433 = vst [vmem:[%s3 + $0x18] sm:$0xff] %v417
    %434 = vst [vmem:[%s3 + $0x20] sm:$0xf] %v418
    %435 = vst [vmem:[%s3 + $0x24] sm:$0xff] %v419
    %436 = vst [vmem:[%s3 + $0x2c] sm:$0xf] %v420
  $region21: #{gcs_transformer_forward.31} parent=0 // pred_fallthru
    _
  // Predicated region
  $region22: #{gcs_transformer_forward.31} parent=0 // pred_check
    _
  $region23: #{gcs_transformer_forward.31} parent=0 // pred_check_branch
    %438 = sbr.rel (0) target = $region25
  $region24: #{gcs_transformer_forward.31} parent=0 // pred_region
    _
  $region25: #{gcs_transformer_forward.31} parent=0 // pred_fallthru
    _
  // Predicated region
  $region26: #{gcs_transformer_forward.31} parent=0 // pred_check
    _
  $region27: #{gcs_transformer_forward.31} parent=0 // pred_check_branch
    %440 = sbr.rel (0) target = $region29
  $region28: #{gcs_transformer_forward.31} parent=0 // pred_region
    _
  $region29: #{gcs_transformer_forward.31} parent=0 // pred_fallthru
    _

// kernel: gcs_transformer_forward.32
$region0: #{gcs_transformer_forward.32}
  #allocation0 [shape = 'u32[]', space=smem, size = 0x4, offset = 0x4, fixed_abs, tag = 'smem constant byte address 0x4 - core index']
  #allocation1 [shape = 'u32[144,128]{1,0:T(1,128)}', space=vmem, size = 0x12000, scoped, tag = 'internal scratch']
  %s0 = inlined_call_operand.vmem [shape: bf16[2,16,384], index: 0, kind: input, shape index: {}, may-alias: {0,1,2}]
  %s1 = inlined_call_operand.vmem [shape: bf16[2,16,384], index: 1, kind: input, shape index: {}, may-alias: {0,1,2}]
  %s2 = inlined_call_operand.vmem [shape: bf16[2,16,384], index: 2, kind: input, shape index: {}, may-alias: {0,1,2}]
  %s3 = inlined_call_operand.vmem [shape: bf16[2,16,128], index: 3, kind: output, shape index: {}]
  %s4 = sld [smem:[#allocation0]]
  $region168: #{gcs_transformer_forward.32} parent=0
    _
  %s6 = ssub.s32 1, %s4
  %s7 = scalar_select 0, %s6, %s4
  $region1: #{gcs_transformer_forward.32} parent=0
    #allocation2 [shape = 'u8[8192]{0}', space=vmem, size = 0x2000, scoped, tag = 'input window, operand 0']
    #allocation3 [shape = 'u8[8192]{0}', space=vmem, size = 0x2000, scoped, tag = 'input window, operand 1']
    #allocation4 [shape = 'u8[8192]{0}', space=vmem, size = 0x2000, scoped, tag = 'input window, operand 2']
    loop: start=0, step=1, limit=4
    $region2: #{gcs_transformer_forward.32} parent=1 // loop_pre_header
      _
    $region3: #{gcs_transformer_forward.32} parent=1 // loop_header
      %s9 = sphi 0, %s13
      %p10 = scmp.ge.s32.totalorder %s9, 4
      %s19 = sphi 0, %s21
      %s22 = sphi 0, %s19
      %s23 = sphi 0, %s22
      %s39 = sphi 0, %s23
      %s45 = sphi 0, %s47
      %s48 = sphi 0, %s45
      %s49 = sphi 0, %s48
      %s65 = sphi 0, %s49
      %s71 = sphi 0, %s73
      %s74 = sphi 0, %s71
      %s75 = sphi 0, %s74
      %s91 = sphi 0, %s75
      %s97 = sphi 0, %s99
      %s100 = sphi 0, %s97
      %s101 = sphi 0, %s100
      %s117 = sphi 0, %s101
    $region4: #{gcs_transformer_forward.32} parent=1 // loop_header_branch
      %12 = sbr.rel (%p10) target = $region8
    $region5: #{gcs_transformer_forward.32} parent=1 // loop_body
      %s14 = ssub.s32 %s9, 1
      %s15 = ssub.s32 %s9, 2
      %s16 = sadd.s32 %s9, 1
      %s17 = ssub.s32 %s9, %s16
      %p18 = scmp.eq.s32.totalorder %s17, 0
      %s20 = sadd.s32 %s19, 1
      %s21 = scalar_select %p18, %s19, %s20
      %p24 = pneg %p18
      %p25 = scmp.eq.s32.totalorder %s9, 1
      %p26 = por %p24, %p25
      %p27 = scmp.ne.s32.totalorder %s19, %s22
      %p28 = scmp.eq.s32.totalorder %s9, 0
      %p29 = por %p27, %p28
      %p30 = scmp.ne.s32.totalorder %s19, %s22
      %p31 = scmp.eq.s32.totalorder %s14, 1
      %p32 = por %p30, %p31
      %p33 = scmp.ne.s32.totalorder %s22, %s23
      %p34 = scmp.eq.s32.totalorder %s14, 0
      %p35 = por %p33, %p34
      %p36 = scmp.ne.s32.totalorder %s22, %s23
      %p37 = scmp.eq.s32.totalorder %s15, 1
      %p38 = por %p36, %p37
      %p40 = scmp.ne.s32.totalorder %s23, %s39
      %p41 = scmp.eq.s32.totalorder %s15, 0
      %p42 = por %p40, %p41
      %s43 = ssub.s32 %s9, %s16
      %p44 = scmp.eq.s32.totalorder %s43, 0
      %s46 = sadd.s32 %s45, 1
      %s47 = scalar_select %p44, %s45, %s46
      %p50 = pneg %p44
      %p51 = scmp.eq.s32.totalorder %s9, 1
      %p52 = por %p50, %p51
      %p53 = scmp.ne.s32.totalorder %s45, %s48
      %p54 = scmp.eq.s32.totalorder %s9, 0
      %p55 = por %p53, %p54
      %p56 = scmp.ne.s32.totalorder %s45, %s48
      %p57 = scmp.eq.s32.totalorder %s14, 1
      %p58 = por %p56, %p57
      %p59 = scmp.ne.s32.totalorder %s48, %s49
      %p60 = scmp.eq.s32.totalorder %s14, 0
      %p61 = por %p59, %p60
      %p62 = scmp.ne.s32.totalorder %s48, %s49
      %p63 = scmp.eq.s32.totalorder %s15, 1
      %p64 = por %p62, %p63
      %p66 = scmp.ne.s32.totalorder %s49, %s65
      %p67 = scmp.eq.s32.totalorder %s15, 0
      %p68 = por %p66, %p67
      %s69 = ssub.s32 %s9, %s16
      %p70 = scmp.eq.s32.totalorder %s69, 0
      %s72 = sadd.s32 %s71, 1
      %s73 = scalar_select %p70, %s71, %s72
      %p76 = pneg %p70
      %p77 = scmp.eq.s32.totalorder %s9, 1
      %p78 = por %p76, %p77
      %p79 = scmp.ne.s32.totalorder %s71, %s74
      %p80 = scmp.eq.s32.totalorder %s9, 0
      %p81 = por %p79, %p80
      %p82 = scmp.ne.s32.totalorder %s71, %s74
      %p83 = scmp.eq.s32.totalorder %s14, 1
      %p84 = por %p82, %p83
      %p85 = scmp.ne.s32.totalorder %s74, %s75
      %p86 = scmp.eq.s32.totalorder %s14, 0
      %p87 = por %p85, %p86
      %p88 = scmp.ne.s32.totalorder %s74, %s75
      %p89 = scmp.eq.s32.totalorder %s15, 1
      %p90 = por %p88, %p89
      %p92 = scmp.ne.s32.totalorder %s75, %s91
      %p93 = scmp.eq.s32.totalorder %s15, 0
      %p94 = por %p92, %p93
      %s95 = ssub.s32 %s9, %s16
      %p96 = scmp.eq.s32.totalorder %s95, 0
      %s98 = sadd.s32 %s97, 1
      %s99 = scalar_select %p96, %s97, %s98
      %p102 = pneg %p96
      %p103 = scmp.eq.s32.totalorder %s9, 1
      %p104 = por %p102, %p103
      %p105 = scmp.ne.s32.totalorder %s97, %s100
      %p106 = scmp.eq.s32.totalorder %s9, 0
      %p107 = por %p105, %p106
      %p108 = scmp.ne.s32.totalorder %s97, %s100
      %p109 = scmp.eq.s32.totalorder %s14, 1
      %p110 = por %p108, %p109
      %p111 = scmp.ne.s32.totalorder %s100, %s101
      %p112 = scmp.eq.s32.totalorder %s14, 0
      %p113 = por %p111, %p112
      %p114 = scmp.ne.s32.totalorder %s100, %s101
      %p115 = scmp.eq.s32.totalorder %s15, 1
      %p116 = por %p114, %p115
      %p118 = scmp.ne.s32.totalorder %s101, %s117
      %p119 = scmp.eq.s32.totalorder %s15, 0
      %p120 = por %p118, %p119
      %p121 = scmp.le.s32.totalorder 1, %s9
      %p122 = scmp.lt.s32.totalorder %s9, 3
      %p123 = pnand %p121, %p122
      %p124 = pneg %p123
      // Predicated region
      $region9: #{gcs_transformer_forward.32} parent=5 // pred_check
        _
      $region10: #{gcs_transformer_forward.32} parent=5 // pred_check_branch
        %126 = sbr.rel (%p123) target = $region12
      $region11: #{gcs_transformer_forward.32} parent=5 // pred_region
        %s127 = ssub.s32 %s9, 1
      $region12: #{gcs_transformer_forward.32} parent=5 // pred_fallthru
        _
      %p128 = scmp.lt.s32.totalorder %s9, 2
      // Predicated region
      $region13: #{gcs_transformer_forward.32} parent=5 // pred_check
        %p129 = pneg %p128
      $region14: #{gcs_transformer_forward.32} parent=5 // pred_check_branch
        %131 = sbr.rel (%p129) target = $region16
      $region15: #{gcs_transformer_forward.32} parent=5 // pred_region
        // Predicated region
        $region17: #{gcs_transformer_forward.32} parent=15 // pred_check
          %p132 = pneg %p29
        $region18: #{gcs_transformer_forward.32} parent=15 // pred_check_branch
          %134 = sbr.rel (%p132) target = $region20
        $region19: #{gcs_transformer_forward.32} parent=15 // pred_region
          %s135 = sand.u32 %s19, 1
          %s136 = sand.u32 %s19, 1
          %s137 = smul.addr %s136, 8
          %s138 = scalar_lea.vmem [#allocation2], %s137
          %s139 = smul.addr %s9, 6
          %s140 = smul.addr %s139, 4
          %s141 = scalar_lea.vmem %s0, %s140
          // Predicated region
          $region21: #{gcs_transformer_forward.32} parent=19 // pred_check
            _
          $region22: #{gcs_transformer_forward.32} parent=19 // pred_check_branch
            %143 = sbr.rel (0) target = $region24
          $region23: #{gcs_transformer_forward.32} parent=19 // pred_region
            // Predicated region
            $region25: #{gcs_transformer_forward.32} parent=23 // pred_check
              _
            $region26: #{gcs_transformer_forward.32} parent=23 // pred_check_branch
              %145 = sbr.rel target = $region28
            $region27: #{gcs_transformer_forward.32} parent=23 // pred_region
              // Predicated region
              $region40: #{gcs_transformer_forward.32} parent=27 // pred_check
                _
              $region41: #{gcs_transformer_forward.32} parent=27 // pred_check_branch
                %162 = sbr.rel (0) target = $region43
              $region42: #{gcs_transformer_forward.32} parent=27 // pred_region
                loop: start=0, step=1, limit=1
                $region44: #{gcs_transformer_forward.32} parent=42 // loop_pre_header
                  _
                $region45: #{gcs_transformer_forward.32} parent=42 // loop_header
                  %s164 = sphi 0, %s168
                  %p165 = scmp.ge.s32.totalorder %s164, 1
                  %s169 = sphi %s141, %s141
                  %s170 = sphi %s138, %s138
                $region46: #{gcs_transformer_forward.32} parent=42 // loop_header_branch
                  %167 = sbr.rel (%p165) target = $region50
                $region47: #{gcs_transformer_forward.32} parent=42 // loop_body
                  _
                $region48: #{gcs_transformer_forward.32} parent=42 // loop_footer
                  %s168 = sadd.s32 1, %s164
                $region49: #{gcs_transformer_forward.32} parent=42 // loop_footer_branch
                  %163 = sbr.rel target = $region45
                $region50: #{gcs_transformer_forward.32} parent=42 // loop_exit
                  _
                loop: start=0, step=1, limit=1
                $region51: #{gcs_transformer_forward.32} parent=42 // loop_pre_header
                  _
                $region52: #{gcs_transformer_forward.32} parent=42 // loop_header
                  %s173 = sphi 0, %s177
                  %p174 = scmp.ge.s32.totalorder %s173, 1
                  %s178 = sphi %s141, %s141
                  %s179 = sphi %s138, %s138
                $region53: #{gcs_transformer_forward.32} parent=42 // loop_header_branch
                  %176 = sbr.rel (%p174) target = $region57
                $region54: #{gcs_transformer_forward.32} parent=42 // loop_body
                  %v180 = vld [vmem:[%s178] sm:$0xf]
                  %181 = vst [vmem:[%s179] sm:$0xf] %v180
                  %v182 = vld [vmem:[%s178 + $0xc] sm:$0xf]
                  %183 = vst [vmem:[%s179 + $0x4] sm:$0xf] %v182
                $region55: #{gcs_transformer_forward.32} parent=42 // loop_footer
                  %s177 = sadd.s32 1, %s173
                $region56: #{gcs_transformer_forward.32} parent=42 // loop_footer_branch
                  %172 = sbr.rel target = $region52
                $region57: #{gcs_transformer_forward.32} parent=42 // loop_exit
                  _
              $region43: #{gcs_transformer_forward.32} parent=27 // pred_fallthru
                _
            $region28: #{gcs_transformer_forward.32} parent=23 // pred_fallthru
              _
            // Predicated region
            $region29: #{gcs_transformer_forward.32} parent=23 // pred_check
              _
            $region30: #{gcs_transformer_forward.32} parent=23 // pred_check_branch
              %147 = sbr.rel (0) target = $region32
            $region31: #{gcs_transformer_forward.32} parent=23 // pred_region
              loop: start=0, step=1, limit=1
              $region33: #{gcs_transformer_forward.32} parent=31 // loop_pre_header
                _
              $region34: #{gcs_transformer_forward.32} parent=31 // loop_header
                %s150 = sphi 0, %s154
                %p151 = scmp.ge.s32.totalorder %s150, 1
                %s155 = sphi %s141, %s141
                %s156 = sphi %s138, %s138
              $region35: #{gcs_transformer_forward.32} parent=31 // loop_header_branch
                %153 = sbr.rel (%p151) target = $region39
              $region36: #{gcs_transformer_forward.32} parent=31 // loop_body
                %v157 = vld [vmem:[%s155] sm:$0xf]
                %158 = vst [vmem:[%s156] sm:$0xf] %v157
                %v159 = vld [vmem:[%s155 + $0xc] sm:$0xf]
                %160 = vst [vmem:[%s156 + $0x4] sm:$0xf] %v159
              $region37: #{gcs_transformer_forward.32} parent=31 // loop_footer
                %s154 = sadd.s32 1, %s150
              $region38: #{gcs_transformer_forward.32} parent=31 // loop_footer_branch
                %149 = sbr.rel target = $region34
              $region39: #{gcs_transformer_forward.32} parent=31 // loop_exit
                _
            $region32: #{gcs_transformer_forward.32} parent=23 // pred_fallthru
              _
          $region24: #{gcs_transformer_forward.32} parent=19 // pred_fallthru
            _
          %184 = vnop
        $region20: #{gcs_transformer_forward.32} parent=15 // pred_fallthru
          _
        // Predicated region
        $region58: #{gcs_transformer_forward.32} parent=15 // pred_check
          %p185 = pneg %p55
        $region59: #{gcs_transformer_forward.32} parent=15 // pred_check_branch
          %187 = sbr.rel (%p185) target = $region61
        $region60: #{gcs_transformer_forward.32} parent=15 // pred_region
          %s188 = sand.u32 %s45, 1
          %s189 = sand.u32 %s45, 1
          %s190 = smul.addr %s189, 8
          %s191 = scalar_lea.vmem [#allocation3], %s190
          %s192 = smul.addr %s9, 6
          %s193 = sadd.s32 1, %s192
          %s194 = smul.addr %s193, 4
          %s195 = scalar_lea.vmem %s1, %s194
          // Predicated region
          $region62: #{gcs_transformer_forward.32} parent=60 // pred_check
            _
          $region63: #{gcs_transformer_forward.32} parent=60 // pred_check_branch
            %197 = sbr.rel (0) target = $region65
          $region64: #{gcs_transformer_forward.32} parent=60 // pred_region
            // Predicated region
            $region66: #{gcs_transformer_forward.32} parent=64 // pred_check
              _
            $region67: #{gcs_transformer_forward.32} parent=64 // pred_check_branch
              %199 = sbr.rel target = $region69
            $region68: #{gcs_transformer_forward.32} parent=64 // pred_region
              // Predicated region
              $region81: #{gcs_transformer_forward.32} parent=68 // pred_check
                _
              $region82: #{gcs_transformer_forward.32} parent=68 // pred_check_branch
                %216 = sbr.rel (0) target = $region84
              $region83: #{gcs_transformer_forward.32} parent=68 // pred_region
                loop: start=0, step=1, limit=1
                $region85: #{gcs_transformer_forward.32} parent=83 // loop_pre_header
                  _
                $region86: #{gcs_transformer_forward.32} parent=83 // loop_header
                  %s218 = sphi 0, %s222
                  %p219 = scmp.ge.s32.totalorder %s218, 1
                  %s223 = sphi %s195, %s195
                  %s224 = sphi %s191, %s191
                $region87: #{gcs_transformer_forward.32} parent=83 // loop_header_branch
                  %221 = sbr.rel (%p219) target = $region91
                $region88: #{gcs_transformer_forward.32} parent=83 // loop_body
                  _
                $region89: #{gcs_transformer_forward.32} parent=83 // loop_footer
                  %s222 = sadd.s32 1, %s218
                $region90: #{gcs_transformer_forward.32} parent=83 // loop_footer_branch
                  %217 = sbr.rel target = $region86
                $region91: #{gcs_transformer_forward.32} parent=83 // loop_exit
                  _
                loop: start=0, step=1, limit=1
                $region92: #{gcs_transformer_forward.32} parent=83 // loop_pre_header
                  _
                $region93: #{gcs_transformer_forward.32} parent=83 // loop_header
                  %s227 = sphi 0, %s231
                  %p228 = scmp.ge.s32.totalorder %s227, 1
                  %s232 = sphi %s195, %s195
                  %s233 = sphi %s191, %s191
                $region94: #{gcs_transformer_forward.32} parent=83 // loop_header_branch
                  %230 = sbr.rel (%p228) target = $region98
                $region95: #{gcs_transformer_forward.32} parent=83 // loop_body
                  %v234 = vld [vmem:[%s232] sm:$0xf]
                  %235 = vst [vmem:[%s233] sm:$0xf] %v234
                  %v236 = vld [vmem:[%s232 + $0xc] sm:$0xf]
                  %237 = vst [vmem:[%s233 + $0x4] sm:$0xf] %v236
                $region96: #{gcs_transformer_forward.32} parent=83 // loop_footer
                  %s231 = sadd.s32 1, %s227
                $region97: #{gcs_transformer_forward.32} parent=83 // loop_footer_branch
                  %226 = sbr.rel target = $region93
                $region98: #{gcs_transformer_forward.32} parent=83 // loop_exit
                  _
              $region84: #{gcs_transformer_forward.32} parent=68 // pred_fallthru
                _
            $region69: #{gcs_transformer_forward.32} parent=64 // pred_fallthru
              _
            // Predicated region
            $region70: #{gcs_transformer_forward.32} parent=64 // pred_check
              _
            $region71: #{gcs_transformer_forward.32} parent=64 // pred_check_branch
              %201 = sbr.rel (0) target = $region73
            $region72: #{gcs_transformer_forward.32} parent=64 // pred_region
              loop: start=0, step=1, limit=1
              $region74: #{gcs_transformer_forward.32} parent=72 // loop_pre_header
                _
              $region75: #{gcs_transformer_forward.32} parent=72 // loop_header
                %s204 = sphi 0, %s208
                %p205 = scmp.ge.s32.totalorder %s204, 1
                %s209 = sphi %s195, %s195
                %s210 = sphi %s191, %s191
              $region76: #{gcs_transformer_forward.32} parent=72 // loop_header_branch
                %207 = sbr.rel (%p205) target = $region80
              $region77: #{gcs_transformer_forward.32} parent=72 // loop_body
                %v211 = vld [vmem:[%s209] sm:$0xf]
                %212 = vst [vmem:[%s210] sm:$0xf] %v211
                %v213 = vld [vmem:[%s209 + $0xc] sm:$0xf]
                %214 = vst [vmem:[%s210 + $0x4] sm:$0xf] %v213
              $region78: #{gcs_transformer_forward.32} parent=72 // loop_footer
                %s208 = sadd.s32 1, %s204
              $region79: #{gcs_transformer_forward.32} parent=72 // loop_footer_branch
                %203 = sbr.rel target = $region75
              $region80: #{gcs_transformer_forward.32} parent=72 // loop_exit
                _
            $region73: #{gcs_transformer_forward.32} parent=64 // pred_fallthru
              _
          $region65: #{gcs_transformer_forward.32} parent=60 // pred_fallthru
            _
          %238 = vnop
        $region61: #{gcs_transformer_forward.32} parent=15 // pred_fallthru
          _
        // Predicated region
        $region99: #{gcs_transformer_forward.32} parent=15 // pred_check
          %p239 = pneg %p81
        $region100: #{gcs_transformer_forward.32} parent=15 // pred_check_branch
          %241 = sbr.rel (%p239) target = $region102
        $region101: #{gcs_transformer_forward.32} parent=15 // pred_region
          %s242 = sand.u32 %s71, 1
          %s243 = sand.u32 %s71, 1
          %s244 = smul.addr %s243, 8
          %s245 = scalar_lea.vmem [#allocation4], %s244
          %s246 = smul.addr %s9, 6
          %s247 = sadd.s32 2, %s246
          %s248 = smul.addr %s247, 4
          %s249 = scalar_lea.vmem %s2, %s248
          // Predicated region
          $region103: #{gcs_transformer_forward.32} parent=101 // pred_check
            _
          $region104: #{gcs_transformer_forward.32} parent=101 // pred_check_branch
            %251 = sbr.rel (0) target = $region106
          $region105: #{gcs_transformer_forward.32} parent=101 // pred_region
            // Predicated region
            $region107: #{gcs_transformer_forward.32} parent=105 // pred_check
              _
            $region108: #{gcs_transformer_forward.32} parent=105 // pred_check_branch
              %253 = sbr.rel target = $region110
            $region109: #{gcs_transformer_forward.32} parent=105 // pred_region
              // Predicated region
              $region122: #{gcs_transformer_forward.32} parent=109 // pred_check
                _
              $region123: #{gcs_transformer_forward.32} parent=109 // pred_check_branch
                %270 = sbr.rel (0) target = $region125
              $region124: #{gcs_transformer_forward.32} parent=109 // pred_region
                loop: start=0, step=1, limit=1
                $region126: #{gcs_transformer_forward.32} parent=124 // loop_pre_header
                  _
                $region127: #{gcs_transformer_forward.32} parent=124 // loop_header
                  %s272 = sphi 0, %s276
                  %p273 = scmp.ge.s32.totalorder %s272, 1
                  %s277 = sphi %s249, %s249
                  %s278 = sphi %s245, %s245
                $region128: #{gcs_transformer_forward.32} parent=124 // loop_header_branch
                  %275 = sbr.rel (%p273) target = $region132
                $region129: #{gcs_transformer_forward.32} parent=124 // loop_body
                  _
                $region130: #{gcs_transformer_forward.32} parent=124 // loop_footer
                  %s276 = sadd.s32 1, %s272
                $region131: #{gcs_transformer_forward.32} parent=124 // loop_footer_branch
                  %271 = sbr.rel target = $region127
                $region132: #{gcs_transformer_forward.32} parent=124 // loop_exit
                  _
                loop: start=0, step=1, limit=1
                $region133: #{gcs_transformer_forward.32} parent=124 // loop_pre_header
                  _
                $region134: #{gcs_transformer_forward.32} parent=124 // loop_header
                  %s281 = sphi 0, %s285
                  %p282 = scmp.ge.s32.totalorder %s281, 1
                  %s286 = sphi %s249, %s249
                  %s287 = sphi %s245, %s245
                $region135: #{gcs_transformer_forward.32} parent=124 // loop_header_branch
                  %284 = sbr.rel (%p282) target = $region139
                $region136: #{gcs_transformer_forward.32} parent=124 // loop_body
                  %v288 = vld [vmem:[%s286] sm:$0xf]
                  %289 = vst [vmem:[%s287] sm:$0xf] %v288
                  %v290 = vld [vmem:[%s286 + $0xc] sm:$0xf]
                  %291 = vst [vmem:[%s287 + $0x4] sm:$0xf] %v290
                $region137: #{gcs_transformer_forward.32} parent=124 // loop_footer
                  %s285 = sadd.s32 1, %s281
                $region138: #{gcs_transformer_forward.32} parent=124 // loop_footer_branch
                  %280 = sbr.rel target = $region134
                $region139: #{gcs_transformer_forward.32} parent=124 // loop_exit
                  _
              $region125: #{gcs_transformer_forward.32} parent=109 // pred_fallthru
                _
            $region110: #{gcs_transformer_forward.32} parent=105 // pred_fallthru
              _
            // Predicated region
            $region111: #{gcs_transformer_forward.32} parent=105 // pred_check
              _
            $region112: #{gcs_transformer_forward.32} parent=105 // pred_check_branch
              %255 = sbr.rel (0) target = $region114
            $region113: #{gcs_transformer_forward.32} parent=105 // pred_region
              loop: start=0, step=1, limit=1
              $region115: #{gcs_transformer_forward.32} parent=113 // loop_pre_header
                _
              $region116: #{gcs_transformer_forward.32} parent=113 // loop_header
                %s258 = sphi 0, %s262
                %p259 = scmp.ge.s32.totalorder %s258, 1
                %s263 = sphi %s249, %s249
                %s264 = sphi %s245, %s245
              $region117: #{gcs_transformer_forward.32} parent=113 // loop_header_branch
                %261 = sbr.rel (%p259) target = $region121
              $region118: #{gcs_transformer_forward.32} parent=113 // loop_body
                %v265 = vld [vmem:[%s263] sm:$0xf]
                %266 = vst [vmem:[%s264] sm:$0xf] %v265
                %v267 = vld [vmem:[%s263 + $0xc] sm:$0xf]
                %268 = vst [vmem:[%s264 + $0x4] sm:$0xf] %v267
              $region119: #{gcs_transformer_forward.32} parent=113 // loop_footer
                %s262 = sadd.s32 1, %s258
              $region120: #{gcs_transformer_forward.32} parent=113 // loop_footer_branch
                %257 = sbr.rel target = $region116
              $region121: #{gcs_transformer_forward.32} parent=113 // loop_exit
                _
            $region114: #{gcs_transformer_forward.32} parent=105 // pred_fallthru
              _
          $region106: #{gcs_transformer_forward.32} parent=101 // pred_fallthru
            _
          %292 = vnop
        $region102: #{gcs_transformer_forward.32} parent=15 // pred_fallthru
          _
      $region16: #{gcs_transformer_forward.32} parent=5 // pred_fallthru
        _
      %p293 = scmp.le.s32.totalorder 1, %s9
      %p294 = scmp.lt.s32.totalorder %s9, 3
      %p295 = pnand %p293, %p294
      %p296 = pneg %p295
      // Predicated region
      $region140: #{gcs_transformer_forward.32} parent=5 // pred_check
        _
      $region141: #{gcs_transformer_forward.32} parent=5 // pred_check_branch
        %298 = sbr.rel (%p295) target = $region143
      $region142: #{gcs_transformer_forward.32} parent=5 // pred_region
        %s299 = ssub.s32 %s9, 1
        %s300 = sand.u32 %s22, 1
        %s301 = sand.u32 %s22, 1
        %s302 = smul.addr %s301, 8
        %s303 = scalar_lea.vmem [#allocation2], %s302
        // Predicated region
        $region144: #{gcs_transformer_forward.32} parent=142 // pred_check
          %p304 = pneg %p35
        $region145: #{gcs_transformer_forward.32} parent=142 // pred_check_branch
          %306 = sbr.rel (%p304) target = $region147
        $region146: #{gcs_transformer_forward.32} parent=142 // pred_region
          _
        $region147: #{gcs_transformer_forward.32} parent=142 // pred_fallthru
          _
        %s307 = sand.u32 %s48, 1
        %s308 = sand.u32 %s48, 1
        %s309 = smul.addr %s308, 8
        %s310 = scalar_lea.vmem [#allocation3], %s309
        // Predicated region
        $region148: #{gcs_transformer_forward.32} parent=142 // pred_check
          %p311 = pneg %p61
        $region149: #{gcs_transformer_forward.32} parent=142 // pred_check_branch
          %313 = sbr.rel (%p311) target = $region151
        $region150: #{gcs_transformer_forward.32} parent=142 // pred_region
          _
        $region151: #{gcs_transformer_forward.32} parent=142 // pred_fallthru
          _
        %s314 = sand.u32 %s74, 1
        %s315 = sand.u32 %s74, 1
        %s316 = smul.addr %s315, 8
        %s317 = scalar_lea.vmem [#allocation4], %s316
        // Predicated region
        $region152: #{gcs_transformer_forward.32} parent=142 // pred_check
          %p318 = pneg %p87
        $region153: #{gcs_transformer_forward.32} parent=142 // pred_check_branch
          %320 = sbr.rel (%p318) target = $region155
        $region154: #{gcs_transformer_forward.32} parent=142 // pred_region
          _
        $region155: #{gcs_transformer_forward.32} parent=142 // pred_fallthru
          _
        %s321 = sand.u32 %s22, 1
        %s322 = sand.u32 %s22, 1
        %s323 = smul.addr %s322, 8
        %s324 = scalar_lea.vmem [#allocation2], %s323
        %p325 = pneg %p35
        %p326 = pneg %p32
        %s327 = sand.u32 %s48, 1
        %s328 = sand.u32 %s48, 1
        %s329 = smul.addr %s328, 8
        %s330 = scalar_lea.vmem [#allocation3], %s329
        %p331 = pneg %p61
        %p332 = pneg %p58
        %s333 = sand.u32 %s74, 1
        %s334 = sand.u32 %s74, 1
        %s335 = smul.addr %s334, 8
        %s336 = scalar_lea.vmem [#allocation4], %s335
        %p337 = pneg %p87
        %p338 = pneg %p84
        %p339 = pneg %p113
        %p340 = pneg %p110
        %p341 = scmp.lt.s32.totalorder %s14, 1
        %s342 = scalar_select %p341, %s14, 1
        %s343 = smul.addr %s342, 2
        %s344 = smul.addr %s343, 4
        %s345 = scalar_lea.vmem %s3, %s344
        %p346 = scmp.lt.s32.totalorder %s14, 1
        %s347 = scalar_select %p346, %s14, 1
        %s348 = smul.addr %s347, 2
        %s349 = smul.addr %s348, 4
        %s350 = scalar_lea.vmem %s3, %s349
        %v352 = vld [vmem:[%s303] sm:$0xf]
        %v353 = vld [vmem:[%s303 + $0x4] sm:$0xf]
        %v354 = vld [vmem:[%s310] sm:$0xf]
        %v355 = vld [vmem:[%s310 + $0x4] sm:$0xf]
        %v356 = vld [vmem:[%s317] sm:$0xf]
        %v357 = vld [vmem:[%s317 + $0x4] sm:$0xf]
        %v358 = vlaneseq
        %v359 = vand.u32 %v358, 127
        %vm360 = vcmp.lt.s32.totalorder %v359, 6
        %v361 = vsel %vm360, 0.0, -1e+30
        %vm362 = vcmask 1043712
        %363 = vst.msk [vmem:[%s350] sm:$0xf] %vm362, 0
        %364 = vst.msk [vmem:[%s350 + $0x4] sm:$0xf] %vm362, 0
        %v367 = vunpack.c.l.b16 %v352
        %v368 = vunpack.c.l.b16 %v353
        %v369 = vpack.c.b16 %v368, %v367
        %v372 = vunpack.c.l.b16 %v354
        %v373 = vunpack.c.l.b16 %v355
        %v374 = vpack.c.b16 %v373, %v372
        %vm375 = vcmask 64512
        %v377 = vsel %vm375, %v369, 0
        %v380 = vsel %vm375, %v374, 0
        %382 = vmatprep.subr.bf16.mxu0 0
        %383 = vmatpush1.bf16.xpose.msra.mxu0 %v380
        %384 = vmatprep.subr.bf16.mxu0 0
        %385 = vmatpush1.bf16.xpose.msra.mxu0 0
        %386 = vmatprep.subr.bf16.mxu0 0
        %387 = vmatpush1.bf16.xpose.msra.mxu0 0
        %388 = vmatprep.subr.bf16.mxu0 0
        %389 = vmatpush1.bf16.xpose.msra.mxu0 0
        %390 = vmatprep.subr.bf16.mxu0 0
        %391 = vmatpush1.bf16.xpose.msra.mxu0 0
        %392 = vmatprep.subr.bf16.mxu0 0
        %393 = vmatpush1.bf16.xpose.msra.mxu0 0
        %394 = vmatprep.subr.bf16.mxu0 0
        %395 = vmatpush1.bf16.xpose.msra.mxu0 0
        %396 = vmatprep.subr.bf16.mxu0 0
        %397 = vmatpush1.bf16.xpose.msra.mxu0 0
        %398 = vmatprep.subr.bf16.mxu0 0
        %399 = vmatpush1.bf16.xpose.msra.mxu0 0
        %400 = vmatprep.subr.bf16.mxu0 0
        %401 = vmatpush1.bf16.xpose.msra.mxu0 0
        %402 = vmatprep.subr.bf16.mxu0 0
        %403 = vmatpush1.bf16.xpose.msra.mxu0 0
        %404 = vmatprep.subr.bf16.mxu0 0
        %405 = vmatpush1.bf16.xpose.msra.mxu0 0
        %406 = vmatprep.subr.bf16.mxu0 0
        %407 = vmatpush1.bf16.xpose.msra.mxu0 0
        %408 = vmatprep.subr.bf16.mxu0 0
        %409 = vmatpush1.bf16.xpose.msra.mxu0 0
        %410 = vmatprep.subr.bf16.mxu0 0
        %411 = vmatpush1.bf16.xpose.msra.mxu0 0
        %412 = vmatprep.subr.bf16.mxu0 0
        %413 = vmatpush1.bf16.xpose.msra.mxu0 0
        %414 = vmatprep.mubr.bf16.mxu0 0
        %415 = vmatmul.mubr.bf16.gmra.mrb[0].mxu0 %v377
        %v416 = vpop.f32.mrb[0].mxu0
        %v417 = vadd.f32 0.0, %v416
        %v418 = vpop.f32.mrb[0].mxu0
        %v419 = vpop.f32.mrb[0].mxu0
        %v420 = vadd.f32 0.0, %v419
        %v421 = vpop.f32.mrb[0].mxu0
        %422 = vdwg.mxu0
        %v423 = vmul.f32 %v417, 0.35355338
        %v424 = vmul.f32 %v420, 0.35355338
        %v425 = vadd.f32 %v423, %v361
        %v426 = vadd.f32 %v424, %v361
        %vm427 = vcmask 130048
        %v428 = vsel %vm427, %v425, -inf
        %429 = vmax.xlane.f32.xlu0 %v428
        %v430 = vpop.xlane.xlu0 %429
        %v431 = vsel %vm427, %v426, -inf
        %432 = vmax.xlane.f32.xlu0 %v431
        %v433 = vpop.xlane.xlu0 %432
        %v434 = vsub.f32 %v425, %v430
        %v435 = vsub.f32 %v426, %v433
        %v436 = vmul.f32 %v434, 1.442695
        %v437 = vpow.pop %v436
        %v438 = vmul.f32 %v435, 1.442695
        %v439 = vpow.pop %v438
        %v440 = vsel %vm427, %v437, 0.0
        %441 = vadd.xlane.f32.xlu0 %v440
        %v442 = vpop.xlane.xlu0 %441
        %v443 = vsel %vm427, %v439, 0.0
        %444 = vadd.xlane.f32.xlu0 %v443
        %v445 = vpop.xlane.xlu0 %444
        %v446 = vrcp.pop %v442
        %v447 = vrcp.pop %v445
        %v448 = vmul.f32 %v437, %v446
        %v449 = vmul.f32 %v439, %v447
        %v450 = vpack.c.bf16 %v449, %v448
        %v453 = vunpack.c.l.b16 %v356
        %v454 = vunpack.c.l.b16 %v357
        %v455 = vpack.c.b16 %v454, %v453
        %v458 = vsel %vm427, %v450, 0
        %460 = vmatprep.subr.bf16.mxu0 0
        %461 = vmatpush1.bf16.msra.mxu0 %v455
        %462 = vmatprep.subr.bf16.mxu0 0
        %463 = vmatpush1.bf16.msra.mxu0 0
        %464 = vmatprep.subr.bf16.mxu0 0
        %465 = vmatpush1.bf16.msra.mxu0 0
        %466 = vmatprep.subr.bf16.mxu0 0
        %467 = vmatpush1.bf16.msra.mxu0 0
        %468 = vmatprep.subr.bf16.mxu0 0
        %469 = vmatpush1.bf16.msra.mxu0 0
        %470 = vmatprep.subr.bf16.mxu0 0
        %471 = vmatpush1.bf16.msra.mxu0 0
        %472 = vmatprep.subr.bf16.mxu0 0
        %473 = vmatpush1.bf16.msra.mxu0 0
        %474 = vmatprep.subr.bf16.mxu0 0
        %475 = vmatpush1.bf16.msra.mxu0 0
        %476 = vmatprep.subr.bf16.mxu0 0
        %477 = vmatpush1.bf16.msra.mxu0 0
        %478 = vmatprep.subr.bf16.mxu0 0
        %479 = vmatpush1.bf16.msra.mxu0 0
        %480 = vmatprep.subr.bf16.mxu0 0
        %481 = vmatpush1.bf16.msra.mxu0 0
        %482 = vmatprep.subr.bf16.mxu0 0
        %483 = vmatpush1.bf16.msra.mxu0 0
        %484 = vmatprep.subr.bf16.mxu0 0
        %485 = vmatpush1.bf16.msra.mxu0 0
        %486 = vmatprep.subr.bf16.mxu0 0
        %487 = vmatpush1.bf16.msra.mxu0 0
        %488 = vmatprep.subr.bf16.mxu0 0
        %489 = vmatpush1.bf16.msra.mxu0 0
        %490 = vmatprep.subr.bf16.mxu0 0
        %491 = vmatpush1.bf16.msra.mxu0 0
        %492 = vmatprep.mubr.bf16.mxu0 0
        %493 = vmatmul.mubr.bf16.gmra.mrb[0].mxu0 %v458
        %v494 = vpop.f32.mrb[0].mxu0
        %v495 = vadd.f32 0.0, %v494
        %v496 = vpop.f32.mrb[0].mxu0
        %v497 = vpop.f32.mrb[0].mxu0
        %v498 = vadd.f32 0.0, %v497
        %v499 = vpop.f32.mrb[0].mxu0
        %500 = vdwg.mxu0
        %v501 = vpack.c.bf16 %v498, %v495
        %v503 = vunpack.c.l.b16 %v501
        %v504 = vunpack.c.h.b16 %v501
        %v505 = vpack.c.b16 %v503, %v503
        %v506 = vpack.c.b16 %v504, %v504
        %vm509 = vcmask 60416
        %510 = vst.msk [vmem:[%s350] sm:$0xf] %vm509, %v505
        %511 = vst.msk [vmem:[%s350 + $0x4] sm:$0xf] %vm509, %v506
        %512 = vrot.lane.b32.xlu0 %v369, 120
        %v513 = vpop.permute.xlu0 %512
        %514 = vrot.lane.b32.xlu0 %v374, 120
        %v515 = vpop.permute.xlu0 %514
        %v517 = vsel %vm375, %v513, 0
        %v520 = vsel %vm375, %v515, 0
        %522 = vmatprep.subr.bf16.mxu0 0
        %523 = vmatpush1.bf16.xpose.msra.mxu0 %v520
        %524 = vmatprep.subr.bf16.mxu0 0
        %525 = vmatpush1.bf16.xpose.msra.mxu0 0
        %526 = vmatprep.subr.bf16.mxu0 0
        %527 = vmatpush1.bf16.xpose.msra.mxu0 0
        %528 = vmatprep.subr.bf16.mxu0 0
        %529 = vmatpush1.bf16.xpose.msra.mxu0 0
        %530 = vmatprep.subr.bf16.mxu0 0
        %531 = vmatpush1.bf16.xpose.msra.mxu0 0
        %532 = vmatprep.subr.bf16.mxu0 0
        %533 = vmatpush1.bf16.xpose.msra.mxu0 0
        %534 = vmatprep.subr.bf16.mxu0 0
        %535 = vmatpush1.bf16.xpose.msra.mxu0 0
        %536 = vmatprep.subr.bf16.mxu0 0
        %537 = vmatpush1.bf16.xpose.msra.mxu0 0
        %538 = vmatprep.subr.bf16.mxu0 0
        %539 = vmatpush1.bf16.xpose.msra.mxu0 0
        %540 = vmatprep.subr.bf16.mxu0 0
        %541 = vmatpush1.bf16.xpose.msra.mxu0 0
        %542 = vmatprep.subr.bf16.mxu0 0
        %543 = vmatpush1.bf16.xpose.msra.mxu0 0
        %544 = vmatprep.subr.bf16.mxu0 0
        %545 = vmatpush1.bf16.xpose.msra.mxu0 0
        %546 = vmatprep.subr.bf16.mxu0 0
        %547 = vmatpush1.bf16.xpose.msra.mxu0 0
        %548 = vmatprep.subr.bf16.mxu0 0
        %549 = vmatpush1.bf16.xpose.msra.mxu0 0
        %550 = vmatprep.subr.bf16.mxu0 0
        %551 = vmatpush1.bf16.xpose.msra.mxu0 0
        %552 = vmatprep.subr.bf16.mxu0 0
        %553 = vmatpush1.bf16.xpose.msra.mxu0 0
        %554 = vmatprep.mubr.bf16.mxu0 0
        %555 = vmatmul.mubr.bf16.gmra.mrb[0].mxu0 %v517
        %v556 = vpop.f32.mrb[0].mxu0
        %v557 = vadd.f32 0.0, %v556
        %v558 = vpop.f32.mrb[0].mxu0
        %v559 = vpop.f32.mrb[0].mxu0
        %v560 = vadd.f32 0.0, %v559
        %v561 = vpop.f32.mrb[0].mxu0
        %562 = vdwg.mxu0
        %v563 = vmul.f32 %v557, 0.35355338
        %v564 = vmul.f32 %v560, 0.35355338
        %v565 = vadd.f32 %v563, %v361
        %v566 = vadd.f32 %v564, %v361
        %v567 = vsel %vm427, %v565, -inf
        %568 = vmax.xlane.f32.xlu0 %v567
        %v569 = vpop.xlane.xlu0 %568
        %v570 = vsel %vm427, %v566, -inf
        %571 = vmax.xlane.f32.xlu0 %v570
        %v572 = vpop.xlane.xlu0 %571
        %v573 = vsub.f32 %v565, %v569
        %v574 = vsub.f32 %v566, %v572
        %v575 = vmul.f32 %v573, 1.442695
        %v576 = vpow.pop %v575
        %v577 = vmul.f32 %v574, 1.442695
        %v578 = vpow.pop %v577
        %v579 = vsel %vm427, %v576, 0.0
        %580 = vadd.xlane.f32.xlu0 %v579
        %v581 = vpop.xlane.xlu0 %580
        %v582 = vsel %vm427, %v578, 0.0
        %583 = vadd.xlane.f32.xlu0 %v582
        %v584 = vpop.xlane.xlu0 %583
        %v585 = vrcp.pop %v581
        %v586 = vrcp.pop %v584
        %v587 = vmul.f32 %v576, %v585
        %v588 = vmul.f32 %v578, %v586
        %v589 = vpack.c.bf16 %v588, %v587
        %590 = vrot.lane.b32.xlu0 %v455, 120
        %v591 = vpop.permute.xlu0 %590
        %v594 = vsel %vm427, %v589, 0
        %596 = vmatprep.subr.bf16.mxu0 0
        %597 = vmatpush1.bf16.msra.mxu0 %v591
        %598 = vmatprep.subr.bf16.mxu0 0
        %599 = vmatpush1.bf16.msra.mxu0 0
        %600 = vmatprep.subr.bf16.mxu0 0
        %601 = vmatpush1.bf16.msra.mxu0 0
        %602 = vmatprep.subr.bf16.mxu0 0
        %603 = vmatpush1.bf16.msra.mxu0 0
        %604 = vmatprep.subr.bf16.mxu0 0
        %605 = vmatpush1.bf16.msra.mxu0 0
        %606 = vmatprep.subr.bf16.mxu0 0
        %607 = vmatpush1.bf16.msra.mxu0 0
        %608 = vmatprep.subr.bf16.mxu0 0
        %609 = vmatpush1.bf16.msra.mxu0 0
        %610 = vmatprep.subr.bf16.mxu0 0
        %611 = vmatpush1.bf16.msra.mxu0 0
        %612 = vmatprep.subr.bf16.mxu0 0
        %613 = vmatpush1.bf16.msra.mxu0 0
        %614 = vmatprep.subr.bf16.mxu0 0
        %615 = vmatpush1.bf16.msra.mxu0 0
        %616 = vmatprep.subr.bf16.mxu0 0
        %617 = vmatpush1.bf16.msra.mxu0 0
        %618 = vmatprep.subr.bf16.mxu0 0
        %619 = vmatpush1.bf16.msra.mxu0 0
        %620 = vmatprep.subr.bf16.mxu0 0
        %621 = vmatpush1.bf16.msra.mxu0 0
        %622 = vmatprep.subr.bf16.mxu0 0
        %623 = vmatpush1.bf16.msra.mxu0 0
        %624 = vmatprep.subr.bf16.mxu0 0
        %625 = vmatpush1.bf16.msra.mxu0 0
        %626 = vmatprep.subr.bf16.mxu0 0
        %627 = vmatpush1.bf16.msra.mxu0 0
        %628 = vmatprep.mubr.bf16.mxu0 0
        %629 = vmatmul.mubr.bf16.gmra.mrb[0].mxu0 %v594
        %v630 = vpop.f32.mrb[0].mxu0
        %v631 = vadd.f32 0.0, %v630
        %v632 = vpop.f32.mrb[0].mxu0
        %v633 = vpop.f32.mrb[0].mxu0
        %v634 = vadd.f32 0.0, %v633
        %v635 = vpop.f32.mrb[0].mxu0
        %636 = vdwg.mxu0
        %v637 = vpack.c.bf16 %v634, %v631
        %v639 = vunpack.c.l.b16 %v637
        %v640 = vunpack.c.h.b16 %v637
        %v641 = vpack.c.b16 %v639, %v639
        %v642 = vpack.c.b16 %v640, %v640
        %643 = vrot.lane.b32.xlu0 %v641, 8
        %v644 = vpop.permute.xlu0 %643
        %645 = vrot.lane.b32.xlu0 %v642, 8
        %v646 = vpop.permute.xlu0 %645
        %vm649 = vcmask 126016
        %650 = vst.msk [vmem:[%s350] sm:$0xf] %vm649, %v644
        %651 = vst.msk [vmem:[%s350 + $0x4] sm:$0xf] %vm649, %v646
        %652 = vrot.lane.b32.xlu0 %v369, 112
        %v653 = vpop.permute.xlu0 %652
        %654 = vrot.lane.b32.xlu0 %v374, 112
        %v655 = vpop.permute.xlu0 %654
        %v657 = vsel %vm375, %v653, 0
        %v660 = vsel %vm375, %v655, 0
        %662 = vmatprep.subr.bf16.mxu0 0
        %663 = vmatpush1.bf16.xpose.msra.mxu0 %v660
        %664 = vmatprep.subr.bf16.mxu0 0
        %665 = vmatpush1.bf16.xpose.msra.mxu0 0
        %666 = vmatprep.subr.bf16.mxu0 0
        %667 = vmatpush1.bf16.xpose.msra.mxu0 0
        %668 = vmatprep.subr.bf16.mxu0 0
        %669 = vmatpush1.bf16.xpose.msra.mxu0 0
        %670 = vmatprep.subr.bf16.mxu0 0
        %671 = vmatpush1.bf16.xpose.msra.mxu0 0
        %672 = vmatprep.subr.bf16.mxu0 0
        %673 = vmatpush1.bf16.xpose.msra.mxu0 0
        %674 = vmatprep.subr.bf16.mxu0 0
        %675 = vmatpush1.bf16.xpose.msra.mxu0 0
        %676 = vmatprep.subr.bf16.mxu0 0
        %677 = vmatpush1.bf16.xpose.msra.mxu0 0
        %678 = vmatprep.subr.bf16.mxu0 0
        %679 = vmatpush1.bf16.xpose.msra.mxu0 0
        %680 = vmatprep.subr.bf16.mxu0 0
        %681 = vmatpush1.bf16.xpose.msra.mxu0 0
        %682 = vmatprep.subr.bf16.mxu0 0
        %683 = vmatpush1.bf16.xpose.msra.mxu0 0
        %684 = vmatprep.subr.bf16.mxu0 0
        %685 = vmatpush1.bf16.xpose.msra.mxu0 0
        %686 = vmatprep.subr.bf16.mxu0 0
        %687 = vmatpush1.bf16.xpose.msra.mxu0 0
        %688 = vmatprep.subr.bf16.mxu0 0
        %689 = vmatpush1.bf16.xpose.msra.mxu0 0
        %690 = vmatprep.subr.bf16.mxu0 0
        %691 = vmatpush1.bf16.xpose.msra.mxu0 0
        %692 = vmatprep.subr.bf16.mxu0 0
        %693 = vmatpush1.bf16.xpose.msra.mxu0 0
        %694 = vmatprep.mubr.bf16.mxu0 0
        %695 = vmatmul.mubr.bf16.gmra.mrb[0].mxu0 %v657
        %v696 = vpop.f32.mrb[0].mxu0
        %v697 = vadd.f32 0.0, %v696
        %v698 = vpop.f32.mrb[0].mxu0
        %v699 = vpop.f32.mrb[0].mxu0
        %v700 = vadd.f32 0.0, %v699
        %v701 = vpop.f32.mrb[0].mxu0
        %702 = vdwg.mxu0
        %v703 = vmul.f32 %v697, 0.35355338
        %v704 = vmul.f32 %v700, 0.35355338
        %v705 = vadd.f32 %v703, %v361
        %v706 = vadd.f32 %v704, %v361
        %v707 = vsel %vm427, %v705, -inf
        %708 = vmax.xlane.f32.xlu0 %v707
        %v709 = vpop.xlane.xlu0 %708
        %v710 = vsel %vm427, %v706, -inf
        %711 = vmax.xlane.f32.xlu0 %v710
        %v712 = vpop.xlane.xlu0 %711
        %v713 = vsub.f32 %v705, %v709
        %v714 = vsub.f32 %v706, %v712
        %v715 = vmul.f32 %v713, 1.442695
        %v716 = vpow.pop %v715
        %v717 = vmul.f32 %v714, 1.442695
        %v718 = vpow.pop %v717
        %v719 = vsel %vm427, %v716, 0.0
        %720 = vadd.xlane.f32.xlu0 %v719
        %v721 = vpop.xlane.xlu0 %720
        %v722 = vsel %vm427, %v718, 0.0
        %723 = vadd.xlane.f32.xlu0 %v722
        %v724 = vpop.xlane.xlu0 %723
        %v725 = vrcp.pop %v721
        %v726 = vrcp.pop %v724
        %v727 = vmul.f32 %v716, %v725
        %v728 = vmul.f32 %v718, %v726
        %v729 = vpack.c.bf16 %v728, %v727
        %730 = vrot.lane.b32.xlu0 %v455, 112
        %v731 = vpop.permute.xlu0 %730
        %v734 = vsel %vm427, %v729, 0
        %736 = vmatprep.subr.bf16.mxu0 0
        %737 = vmatpush1.bf16.msra.mxu0 %v731
        %738 = vmatprep.subr.bf16.mxu0 0
        %739 = vmatpush1.bf16.msra.mxu0 0
        %740 = vmatprep.subr.bf16.mxu0 0
        %741 = vmatpush1.bf16.msra.mxu0 0
        %742 = vmatprep.subr.bf16.mxu0 0
        %743 = vmatpush1.bf16.msra.mxu0 0
        %744 = vmatprep.subr.bf16.mxu0 0
        %745 = vmatpush1.bf16.msra.mxu0 0
        %746 = vmatprep.subr.bf16.mxu0 0
        %747 = vmatpush1.bf16.msra.mxu0 0
        %748 = vmatprep.subr.bf16.mxu0 0
        %749 = vmatpush1.bf16.msra.mxu0 0
        %750 = vmatprep.subr.bf16.mxu0 0
        %751 = vmatpush1.bf16.msra.mxu0 0
        %752 = vmatprep.subr.bf16.mxu0 0
        %753 = vmatpush1.bf16.msra.mxu0 0
        %754 = vmatprep.subr.bf16.mxu0 0
        %755 = vmatpush1.bf16.msra.mxu0 0
        %756 = vmatprep.subr.bf16.mxu0 0
        %757 = vmatpush1.bf16.msra.mxu0 0
        %758 = vmatprep.subr.bf16.mxu0 0
        %759 = vmatpush1.bf16.msra.mxu0 0
        %760 = vmatprep.subr.bf16.mxu0 0
        %761 = vmatpush1.bf16.msra.mxu0 0
        %762 = vmatprep.subr.bf16.mxu0 0
        %763 = vmatpush1.bf16.msra.mxu0 0
        %764 = vmatprep.subr.bf16.mxu0 0
        %765 = vmatpush1.bf16.msra.mxu0 0
        %766 = vmatprep.subr.bf16.mxu0 0
        %767 = vmatpush1.bf16.msra.mxu0 0
        %768 = vmatprep.mubr.bf16.mxu0 0
        %769 = vmatmul.mubr.bf16.gmra.mrb[0].mxu0 %v734
        %v770 = vpop.f32.mrb[0].mxu0
        %v771 = vadd.f32 0.0, %v770
        %v772 = vpop.f32.mrb[0].mxu0
        %v773 = vpop.f32.mrb[0].mxu0
        %v774 = vadd.f32 0.0, %v773
        %v775 = vpop.f32.mrb[0].mxu0
        %776 = vdwg.mxu0
        %v777 = vpack.c.bf16 %v774, %v771
        %v779 = vunpack.c.l.b16 %v777
        %v780 = vunpack.c.h.b16 %v777
        %v781 = vpack.c.b16 %v779, %v779
        %v782 = vpack.c.b16 %v780, %v780
        %783 = vrot.lane.b32.xlu0 %v781, 16
        %v784 = vpop.permute.xlu0 %783
        %785 = vrot.lane.b32.xlu0 %v782, 16
        %v786 = vpop.permute.xlu0 %785
        %vm789 = vcmask 191616
        %790 = vst.msk [vmem:[%s350] sm:$0xf] %vm789, %v784
        %791 = vst.msk [vmem:[%s350 + $0x4] sm:$0xf] %vm789, %v786
        %792 = vrot.lane.b32.xlu0 %v369, 104
        %v793 = vpop.permute.xlu0 %792
        %794 = vrot.lane.b32.xlu0 %v374, 104
        %v795 = vpop.permute.xlu0 %794
        %v797 = vsel %vm375, %v793, 0
        %v800 = vsel %vm375, %v795, 0
        %802 = vmatprep.subr.bf16.mxu0 0
        %803 = vmatpush1.bf16.xpose.msra.mxu0 %v800
        %804 = vmatprep.subr.bf16.mxu0 0
        %805 = vmatpush1.bf16.xpose.msra.mxu0 0
        %806 = vmatprep.subr.bf16.mxu0 0
        %807 = vmatpush1.bf16.xpose.msra.mxu0 0
        %808 = vmatprep.subr.bf16.mxu0 0
        %809 = vmatpush1.bf16.xpose.msra.mxu0 0
        %810 = vmatprep.subr.bf16.mxu0 0
        %811 = vmatpush1.bf16.xpose.msra.mxu0 0
        %812 = vmatprep.subr.bf16.mxu0 0
        %813 = vmatpush1.bf16.xpose.msra.mxu0 0
        %814 = vmatprep.subr.bf16.mxu0 0
        %815 = vmatpush1.bf16.xpose.msra.mxu0 0
        %816 = vmatprep.subr.bf16.mxu0 0
        %817 = vmatpush1.bf16.xpose.msra.mxu0 0
        %818 = vmatprep.subr.bf16.mxu0 0
        %819 = vmatpush1.bf16.xpose.msra.mxu0 0
        %820 = vmatprep.subr.bf16.mxu0 0
        %821 = vmatpush1.bf16.xpose.msra.mxu0 0
        %822 = vmatprep.subr.bf16.mxu0 0
        %823 = vmatpush1.bf16.xpose.msra.mxu0 0
        %824 = vmatprep.subr.bf16.mxu0 0
        %825 = vmatpush1.bf16.xpose.msra.mxu0 0
        %826 = vmatprep.subr.bf16.mxu0 0
        %827 = vmatpush1.bf16.xpose.msra.mxu0 0
        %828 = vmatprep.subr.bf16.mxu0 0
        %829 = vmatpush1.bf16.xpose.msra.mxu0 0
        %830 = vmatprep.subr.bf16.mxu0 0
        %831 = vmatpush1.bf16.xpose.msra.mxu0 0
        %832 = vmatprep.subr.bf16.mxu0 0
        %833 = vmatpush1.bf16.xpose.msra.mxu0 0
        %834 = vmatprep.mubr.bf16.mxu0 0
        %835 = vmatmul.mubr.bf16.gmra.mrb[0].mxu0 %v797
        %v836 = vpop.f32.mrb[0].mxu0
        %v837 = vadd.f32 0.0, %v836
        %v838 = vpop.f32.mrb[0].mxu0
        %v839 = vpop.f32.mrb[0].mxu0
        %v840 = vadd.f32 0.0, %v839
        %v841 = vpop.f32.mrb[0].mxu0
        %842 = vdwg.mxu0
        %v843 = vmul.f32 %v837, 0.35355338
        %v844 = vmul.f32 %v840, 0.35355338
        %v845 = vadd.f32 %v843, %v361
        %v846 = vadd.f32 %v844, %v361
        %v847 = vsel %vm427, %v845, -inf
        %848 = vmax.xlane.f32.xlu0 %v847
        %v849 = vpop.xlane.xlu0 %848
        %v850 = vsel %vm427, %v846, -inf
        %851 = vmax.xlane.f32.xlu0 %v850
        %v852 = vpop.xlane.xlu0 %851
        %v853 = vsub.f32 %v845, %v849
        %v854 = vsub.f32 %v846, %v852
        %v855 = vmul.f32 %v853, 1.442695
        %v856 = vpow.pop %v855
        %v857 = vmul.f32 %v854, 1.442695
        %v858 = vpow.pop %v857
        %v859 = vsel %vm427, %v856, 0.0
        %860 = vadd.xlane.f32.xlu0 %v859
        %v861 = vpop.xlane.xlu0 %860
        %v862 = vsel %vm427, %v858, 0.0
        %863 = vadd.xlane.f32.xlu0 %v862
        %v864 = vpop.xlane.xlu0 %863
        %v865 = vrcp.pop %v861
        %v866 = vrcp.pop %v864
        %v867 = vmul.f32 %v856, %v865
        %v868 = vmul.f32 %v858, %v866
        %v869 = vpack.c.bf16 %v868, %v867
        %870 = vrot.lane.b32.xlu0 %v455, 104
        %v871 = vpop.permute.xlu0 %870
        %v874 = vsel %vm427, %v869, 0
        %876 = vmatprep.subr.bf16.mxu0 0
        %877 = vmatpush1.bf16.msra.mxu0 %v871
        %878 = vmatprep.subr.bf16.mxu0 0
        %879 = vmatpush1.bf16.msra.mxu0 0
        %880 = vmatprep.subr.bf16.mxu0 0
        %881 = vmatpush1.bf16.msra.mxu0 0
        %882 = vmatprep.subr.bf16.mxu0 0
        %883 = vmatpush1.bf16.msra.mxu0 0
        %884 = vmatprep.subr.bf16.mxu0 0
        %885 = vmatpush1.bf16.msra.mxu0 0
        %886 = vmatprep.subr.bf16.mxu0 0
        %887 = vmatpush1.bf16.msra.mxu0 0
        %888 = vmatprep.subr.bf16.mxu0 0
        %889 = vmatpush1.bf16.msra.mxu0 0
        %890 = vmatprep.subr.bf16.mxu0 0
        %891 = vmatpush1.bf16.msra.mxu0 0
        %892 = vmatprep.subr.bf16.mxu0 0
        %893 = vmatpush1.bf16.msra.mxu0 0
        %894 = vmatprep.subr.bf16.mxu0 0
        %895 = vmatpush1.bf16.msra.mxu0 0
        %896 = vmatprep.subr.bf16.mxu0 0
        %897 = vmatpush1.bf16.msra.mxu0 0
        %898 = vmatprep.subr.bf16.mxu0 0
        %899 = vmatpush1.bf16.msra.mxu0 0
        %900 = vmatprep.subr.bf16.mxu0 0
        %901 = vmatpush1.bf16.msra.mxu0 0
        %902 = vmatprep.subr.bf16.mxu0 0
        %903 = vmatpush1.bf16.msra.mxu0 0
        %904 = vmatprep.subr.bf16.mxu0 0
        %905 = vmatpush1.bf16.msra.mxu0 0
        %906 = vmatprep.subr.bf16.mxu0 0
        %907 = vmatpush1.bf16.msra.mxu0 0
        %908 = vmatprep.mubr.bf16.mxu0 0
        %909 = vmatmul.mubr.bf16.gmra.mrb[0].mxu0 %v874
        %v910 = vpop.f32.mrb[0].mxu0
        %v911 = vadd.f32 0.0, %v910
        %v912 = vpop.f32.mrb[0].mxu0
        %v913 = vpop.f32.mrb[0].mxu0
        %v914 = vadd.f32 0.0, %v913
        %v915 = vpop.f32.mrb[0].mxu0
        %916 = vdwg.mxu0
        %v917 = vpack.c.bf16 %v914, %v911
        %v919 = vunpack.c.l.b16 %v917
        %v920 = vunpack.c.h.b16 %v917
        %v921 = vpack.c.b16 %v919, %v919
        %v922 = vpack.c.b16 %v920, %v920
        %923 = vrot.lane.b32.xlu0 %v921, 24
        %v924 = vpop.permute.xlu0 %923
        %925 = vrot.lane.b32.xlu0 %v922, 24
        %v926 = vpop.permute.xlu0 %925
        %vm929 = vcmask 257216
        %930 = vst.msk [vmem:[%s350] sm:$0xf] %vm929, %v924
        %931 = vst.msk [vmem:[%s350 + $0x4] sm:$0xf] %vm929, %v926
        %p932 = scmp.lt.s32.totalorder %s14, 1
        %s933 = scalar_select %p932, %s14, 1
        %s934 = smul.addr %s933, 2
        %s935 = smul.addr %s934, 4
        %s936 = scalar_lea.vmem %s3, %s935
        // Predicated region
        $region156: #{gcs_transformer_forward.32} parent=142 // pred_check
          %p937 = pneg %p110
        $region157: #{gcs_transformer_forward.32} parent=142 // pred_check_branch
          %939 = sbr.rel (%p937) target = $region159
        $region158: #{gcs_transformer_forward.32} parent=142 // pred_region
          _
        $region159: #{gcs_transformer_forward.32} parent=142 // pred_fallthru
          _
      $region143: #{gcs_transformer_forward.32} parent=5 // pred_fallthru
        _
      %p940 = scmp.le.s32.totalorder 2, %s9
      // Predicated region
      $region160: #{gcs_transformer_forward.32} parent=5 // pred_check
        %p941 = pneg %p940
      $region161: #{gcs_transformer_forward.32} parent=5 // pred_check_branch
        %943 = sbr.rel (%p941) target = $region163
      $region162: #{gcs_transformer_forward.32} parent=5 // pred_region
        %s944 = ssub.s32 %s9, 2
        // Predicated region
        $region164: #{gcs_transformer_forward.32} parent=162 // pred_check
          %p945 = pneg %p116
        $region165: #{gcs_transformer_forward.32} parent=162 // pred_check_branch
          %947 = sbr.rel (%p945) target = $region167
        $region166: #{gcs_transformer_forward.32} parent=162 // pred_region
          %p948 = scmp.lt.s32.totalorder %s15, 1
          %s949 = scalar_select %p948, %s15, 1
          %s950 = smul.addr %s949, 2
          %s951 = smul.addr %s950, 4
          %s952 = scalar_lea.vmem %s3, %s951
        $region167: #{gcs_transformer_forward.32} parent=162 // pred_fallthru
          _
      $region163: #{gcs_transformer_forward.32} parent=5 // pred_fallthru
        _
    $region6: #{gcs_transformer_forward.32} parent=1 // loop_footer
      %s13 = sadd.s32 1, %s9
    $region7: #{gcs_transformer_forward.32} parent=1 // loop_footer_branch
      %8 = sbr.rel target = $region3
    $region8: #{gcs_transformer_forward.32} parent=1 // loop_exit
      _

// kernel: gcs_transformer_forward.41
$region0: #{gcs_transformer_forward.41}
  #allocation0 [shape = 'u32[]', space=smem, size = 0x4, offset = 0x4, fixed_abs, tag = 'smem constant byte address 0x4 - core index']
  #allocation1 [shape = 'u32[144,128]{1,0:T(1,128)}', space=vmem, size = 0x12000, scoped, tag = 'internal scratch']
  %s0 = inlined_call_operand.vmem [shape: bf16[32,128], index: 0, kind: input, shape index: {}]
  %s1 = inlined_call_operand.vmem [shape: f32[1,128], index: 1, kind: input, shape index: {}]
  %s2 = inlined_call_operand.vmem [shape: f32[1,128], index: 2, kind: input, shape index: {}]
  %s3 = inlined_call_operand.vmem [shape: bf16[32,128], index: 3, kind: output, shape index: {}]
  %s4 = sld [smem:[#allocation0]]
  $region22: #{gcs_transformer_forward.41} parent=0
    _
  %s6 = ssub.s32 1, %s4
  %s7 = scalar_select 0, %s6, %s4
  // Predicated region
  $region2: #{gcs_transformer_forward.41} parent=0 // pred_check
    _
  $region3: #{gcs_transformer_forward.41} parent=0 // pred_check_branch
    %9 = sbr.rel (0) target = $region5
  $region4: #{gcs_transformer_forward.41} parent=0 // pred_region
    _
  $region5: #{gcs_transformer_forward.41} parent=0 // pred_fallthru
    _
  // Predicated region
  $region6: #{gcs_transformer_forward.41} parent=0 // pred_check
    _
  $region7: #{gcs_transformer_forward.41} parent=0 // pred_check_branch
    %11 = sbr.rel (0) target = $region9
  $region8: #{gcs_transformer_forward.41} parent=0 // pred_region
    _
  $region9: #{gcs_transformer_forward.41} parent=0 // pred_fallthru
    _
  // Predicated region
  $region10: #{gcs_transformer_forward.41} parent=0 // pred_check
    _
  $region11: #{gcs_transformer_forward.41} parent=0 // pred_check_branch
    %13 = sbr.rel (0) target = $region13
  $region12: #{gcs_transformer_forward.41} parent=0 // pred_region
    _
  $region13: #{gcs_transformer_forward.41} parent=0 // pred_fallthru
    _
  %v14 = vld [vmem:[%s0] sm:$0xf]
  %v15 = vld [vmem:[%s0 + $0x4] sm:$0xf]
  %v16 = vld [vmem:[%s0 + $0x8] sm:$0xf]
  %v17 = vld [vmem:[%s0 + $0xc] sm:$0xf]
  %v18 = vunpack.c.l.bf16 %v14
  %v19 = vunpack.c.l.bf16 %v15
  %v20 = vunpack.c.l.bf16 %v16
  %v21 = vunpack.c.l.bf16 %v17
  %v22 = vld [vmem:[%s1] sm:$0x1]
  %v23 = vld [vmem:[%s2] sm:$0x1]
  %24 = vadd.xlane.f32.xlu0 %v18
  %v25 = vpop.xlane.xlu0 %24
  %26 = vadd.xlane.f32.xlu0 %v19
  %v27 = vpop.xlane.xlu0 %26
  %28 = vadd.xlane.f32.xlu0 %v20
  %v29 = vpop.xlane.xlu0 %28
  %30 = vadd.xlane.f32.xlu0 %v21
  %v31 = vpop.xlane.xlu0 %30
  %v32 = vmul.f32 %v25, 0.03125
  %v33 = vmul.f32 %v27, 0.03125
  %v34 = vmul.f32 %v29, 0.03125
  %v35 = vmul.f32 %v31, 0.03125
  %v36 = vsub.f32 %v18, %v32
  %v37 = vsub.f32 %v19, %v33
  %v38 = vsub.f32 %v20, %v34
  %v39 = vsub.f32 %v21, %v35
  %v40 = vlaneseq
  %v41 = vand.u32 %v40, 127
  %vm42 = vcmp.lt.s32.totalorder %v41, 32
  %v43 = vsel %vm42, 1, 0
  %v44 = vcvt.s32.f32 %v43
  %v45 = vmul.f32 %v36, %v44
  %v46 = vmul.f32 %v37, %v44
  %v47 = vmul.f32 %v38, %v44
  %v48 = vmul.f32 %v39, %v44
  %v49 = vmul.f32 %v45, %v45
  %v50 = vmul.f32 %v46, %v46
  %v51 = vmul.f32 %v47, %v47
  %v52 = vmul.f32 %v48, %v48
  %53 = vadd.xlane.f32.xlu0 %v49
  %v54 = vpop.xlane.xlu0 %53
  %55 = vadd.xlane.f32.xlu0 %v50
  %v56 = vpop.xlane.xlu0 %55
  %57 = vadd.xlane.f32.xlu0 %v51
  %v58 = vpop.xlane.xlu0 %57
  %59 = vadd.xlane.f32.xlu0 %v52
  %v60 = vpop.xlane.xlu0 %59
  %v61 = vmul.f32 %v54, 0.03125
  %v62 = vmul.f32 %v56, 0.03125
  %v63 = vmul.f32 %v58, 0.03125
  %v64 = vmul.f32 %v60, 0.03125
  %v65 = vadd.f32 %v61, 1e-05
  %v66 = vadd.f32 %v62, 1e-05
  %v67 = vadd.f32 %v63, 1e-05
  %v68 = vadd.f32 %v64, 1e-05
  %v69 = vrsqrt.pop %v65
  %v70 = vrsqrt.pop %v66
  %v71 = vrsqrt.pop %v67
  %v72 = vrsqrt.pop %v68
  %v73 = vmul.f32 %v45, %v69
  %v74 = vmul.f32 %v46, %v70
  %v75 = vmul.f32 %v47, %v71
  %v76 = vmul.f32 %v48, %v72
  %v78 = vlaneseq
  %v79 = vshrl.u32 %v78, 7
  %v80 = vsub.s32 0, %v79
  %v81 = vrot.slane %v22, %v80
  %v83 = vmul.f32 %v73, %v81
  %v84 = vmul.f32 %v74, %v81
  %v85 = vmul.f32 %v75, %v81
  %v86 = vmul.f32 %v76, %v81
  %v88 = vlaneseq
  %v89 = vshrl.u32 %v88, 7
  %v90 = vsub.s32 0, %v89
  %v91 = vrot.slane %v23, %v90
  %v93 = vadd.f32 %v83, %v91
  %v94 = vadd.f32 %v84, %v91
  %v95 = vadd.f32 %v85, %v91
  %v96 = vadd.f32 %v86, %v91
  %v97 = vpack.c.bf16 %v94, %v93
  %v98 = vpack.c.bf16 %v96, %v95
  %v101 = vunpack.c.l.b16 %v97
  %v102 = vunpack.c.h.b16 %v97
  %v103 = vunpack.c.l.b16 %v98
  %v104 = vunpack.c.h.b16 %v98
  %v105 = vpack.c.b16 %v101, %v101
  %v106 = vpack.c.b16 %v102, %v102
  %v107 = vpack.c.b16 %v103, %v103
  %v108 = vpack.c.b16 %v104, %v104
  %113 = vst [vmem:[%s3] sm:$0xf] %v105
  %114 = vst [vmem:[%s3 + $0x4] sm:$0xf] %v106
  %115 = vst [vmem:[%s3 + $0x8] sm:$0xf] %v107
  %116 = vst [vmem:[%s3 + $0xc] sm:$0xf] %v108
  // Predicated region
  $region14: #{gcs_transformer_forward.41} parent=0 // pred_check
    _
  $region15: #{gcs_transformer_forward.41} parent=0 // pred_check_branch
    %118 = sbr.rel (0) target = $region17
  $region16: #{gcs_transformer_forward.41} parent=0 // pred_region
    _
  $region17: #{gcs_transformer_forward.41} parent=0 // pred_fallthru
    _
  // Predicated region
  $region18: #{gcs_transformer_forward.41} parent=0 // pred_check
    _
  $region19: #{gcs_transformer_forward.41} parent=0 // pred_check_branch
    %120 = sbr.rel (0) target = $region21
  $region20: #{gcs_transformer_forward.41} parent=0 // pred_region
    _
  $region21: #{gcs_transformer_forward.41} parent=0 // pred_fallthru
    _

// kernel: gcs_transformer_forward.46
$region0: #{gcs_transformer_forward.46}
  #allocation0 [shape = 'u32[]', space=smem, size = 0x4, offset = 0x4, fixed_abs, tag = 'smem constant byte address 0x4 - core index']
  #allocation1 [shape = 'u32[144,128]{1,0:T(1,128)}', space=vmem, size = 0x12000, scoped, tag = 'internal scratch']
  #allocation2 [shape = 'f32[32,256]{1,0:T(8,128)}', space=vmem, size = 0x8000, scoped, tag = 'scratch operand']
  %s0 = inlined_call_operand.vmem [shape: bf16[32,128], index: 0, kind: input, shape index: {}]
  %s1 = inlined_call_operand.vmem [shape: bf16[128,256], index: 1, kind: input, shape index: {}]
  %s2 = inlined_call_operand.vmem [shape: f32[1,256], index: 2, kind: input, shape index: {}]
  %s3 = inlined_call_operand.vmem [shape: bf16[32,256], index: 3, kind: output, shape index: {}]
  %s4 = sld [smem:[#allocation0]]
  $region30: #{gcs_transformer_forward.46} parent=0
    _
  %s6 = ssub.s32 1, %s4
  %s7 = scalar_select 0, %s6, %s4
  // Predicated region
  $region2: #{gcs_transformer_forward.46} parent=0 // pred_check
    _
  $region3: #{gcs_transformer_forward.46} parent=0 // pred_check_branch
    %9 = sbr.rel (0) target = $region5
  $region4: #{gcs_transformer_forward.46} parent=0 // pred_region
    _
  $region5: #{gcs_transformer_forward.46} parent=0 // pred_fallthru
    _
  // Predicated region
  $region6: #{gcs_transformer_forward.46} parent=0 // pred_check
    _
  $region7: #{gcs_transformer_forward.46} parent=0 // pred_check_branch
    %11 = sbr.rel (0) target = $region9
  $region8: #{gcs_transformer_forward.46} parent=0 // pred_region
    _
  $region9: #{gcs_transformer_forward.46} parent=0 // pred_fallthru
    _
  // Predicated region
  $region10: #{gcs_transformer_forward.46} parent=0 // pred_check
    _
  $region11: #{gcs_transformer_forward.46} parent=0 // pred_check_branch
    %13 = sbr.rel (0) target = $region13
  $region12: #{gcs_transformer_forward.46} parent=0 // pred_region
    _
  $region13: #{gcs_transformer_forward.46} parent=0 // pred_fallthru
    _
  %p15 = scmp.eq.s32.totalorder 0, 0
  // Predicated region
  $region14: #{gcs_transformer_forward.46} parent=0 // pred_check
    %p16 = pneg %p15
  $region15: #{gcs_transformer_forward.46} parent=0 // pred_check_branch
    %18 = sbr.rel (%p16) target = $region17
  $region16: #{gcs_transformer_forward.46} parent=0 // pred_region
    %19 = vst [vmem:[#allocation2] sm:$0xff] 0.0
    %20 = vst [vmem:[#allocation2 + $0x8] sm:$0xff] 0.0
    %21 = vst [vmem:[#allocation2 + $0x10] sm:$0xff] 0.0
    %22 = vst [vmem:[#allocation2 + $0x18] sm:$0xff] 0.0
    %23 = vst [vmem:[#allocation2 + $0x20] sm:$0xff] 0.0
    %24 = vst [vmem:[#allocation2 + $0x28] sm:$0xff] 0.0
    %25 = vst [vmem:[#allocation2 + $0x30] sm:$0xff] 0.0
    %26 = vst [vmem:[#allocation2 + $0x38] sm:$0xff] 0.0
  $region17: #{gcs_transformer_forward.46} parent=0 // pred_fallthru
    _
  %v27 = vld [vmem:[#allocation2] sm:$0xff]
  %v28 = vld [vmem:[#allocation2 + $0x8] sm:$0xff]
  %v29 = vld [vmem:[#allocation2 + $0x10] sm:$0xff]
  %v30 = vld [vmem:[#allocation2 + $0x18] sm:$0xff]
  %v31 = vld [vmem:[#allocation2 + $0x20] sm:$0xff]
  %v32 = vld [vmem:[#allocation2 + $0x28] sm:$0xff]
  %v33 = vld [vmem:[#allocation2 + $0x30] sm:$0xff]
  %v34 = vld [vmem:[#allocation2 + $0x38] sm:$0xff]
  %v35 = vld [vmem:[%s0] sm:$0xf]
  %v36 = vld [vmem:[%s0 + $0x4] sm:$0xf]
  %v37 = vld [vmem:[%s0 + $0x8] sm:$0xf]
  %v38 = vld [vmem:[%s0 + $0xc] sm:$0xf]
  %v39 = vld [vmem:[%s1] sm:$0xff]
  %v40 = vld [vmem:[%s1 + $0x8] sm:$0xff]
  %v41 = vld [vmem:[%s1 + $0x10] sm:$0xff]
  %v42 = vld [vmem:[%s1 + $0x18] sm:$0xff]
  %v43 = vld [vmem:[%s1 + $0x20] sm:$0xff]
  %v44 = vld [vmem:[%s1 + $0x28] sm:$0xff]
  %v45 = vld [vmem:[%s1 + $0x30] sm:$0xff]
  %v46 = vld [vmem:[%s1 + $0x38] sm:$0xff]
  %v47 = vld [vmem:[%s1 + $0x40] sm:$0xff]
  %v48 = vld [vmem:[%s1 + $0x48] sm:$0xff]
  %v49 = vld [vmem:[%s1 + $0x50] sm:$0xff]
  %v50 = vld [vmem:[%s1 + $0x58] sm:$0xff]
  %v51 = vld [vmem:[%s1 + $0x60] sm:$0xff]
  %v52 = vld [vmem:[%s1 + $0x68] sm:$0xff]
  %v53 = vld [vmem:[%s1 + $0x70] sm:$0xff]
  %v54 = vld [vmem:[%s1 + $0x78] sm:$0xff]
  %v59 = vunpack.c.l.b16 %v35
  %v60 = vunpack.c.l.b16 %v36
  %v61 = vunpack.c.l.b16 %v37
  %v62 = vunpack.c.l.b16 %v38
  %v63 = vpack.c.b16 %v60, %v59
  %v64 = vpack.c.b16 %v62, %v61
  %v83 = vunpack.c.l.b16 %v39
  %v84 = vunpack.c.h.b16 %v39
  %v85 = vunpack.c.l.b16 %v40
  %v86 = vunpack.c.h.b16 %v40
  %v87 = vunpack.c.l.b16 %v41
  %v88 = vunpack.c.h.b16 %v41
  %v89 = vunpack.c.l.b16 %v42
  %v90 = vunpack.c.h.b16 %v42
  %v91 = vunpack.c.l.b16 %v43
  %v92 = vunpack.c.h.b16 %v43
  %v93 = vunpack.c.l.b16 %v44
  %v94 = vunpack.c.h.b16 %v44
  %v95 = vunpack.c.l.b16 %v45
  %v96 = vunpack.c.h.b16 %v45
  %v97 = vunpack.c.l.b16 %v46
  %v98 = vunpack.c.h.b16 %v46
  %v99 = vunpack.c.l.b16 %v47
  %v100 = vunpack.c.h.b16 %v47
  %v101 = vunpack.c.l.b16 %v48
  %v102 = vunpack.c.h.b16 %v48
  %v103 = vunpack.c.l.b16 %v49
  %v104 = vunpack.c.h.b16 %v49
  %v105 = vunpack.c.l.b16 %v50
  %v106 = vunpack.c.h.b16 %v50
  %v107 = vunpack.c.l.b16 %v51
  %v108 = vunpack.c.h.b16 %v51
  %v109 = vunpack.c.l.b16 %v52
  %v110 = vunpack.c.h.b16 %v52
  %v111 = vunpack.c.l.b16 %v53
  %v112 = vunpack.c.h.b16 %v53
  %v113 = vunpack.c.l.b16 %v54
  %v114 = vunpack.c.h.b16 %v54
  %v115 = vpack.c.b16 %v85, %v83
  %v116 = vpack.c.b16 %v86, %v84
  %v117 = vpack.c.b16 %v89, %v87
  %v118 = vpack.c.b16 %v90, %v88
  %v119 = vpack.c.b16 %v93, %v91
  %v120 = vpack.c.b16 %v94, %v92
  %v121 = vpack.c.b16 %v97, %v95
  %v122 = vpack.c.b16 %v98, %v96
  %v123 = vpack.c.b16 %v101, %v99
  %v124 = vpack.c.b16 %v102, %v100
  %v125 = vpack.c.b16 %v105, %v103
  %v126 = vpack.c.b16 %v106, %v104
  %v127 = vpack.c.b16 %v109, %v107
  %v128 = vpack.c.b16 %v110, %v108
  %v129 = vpack.c.b16 %v113, %v111
  %v130 = vpack.c.b16 %v114, %v112
  %147 = vmatprep.subr.bf16.mxu0 %v116
  %148 = vmatpush1.bf16.msra.mxu0 %v115
  %149 = vmatprep.subr.bf16.mxu0 %v118
  %150 = vmatpush1.bf16.msra.mxu0 %v117
  %151 = vmatprep.subr.bf16.mxu0 %v120
  %152 = vmatpush1.bf16.msra.mxu0 %v119
  %153 = vmatprep.subr.bf16.mxu0 %v122
  %154 = vmatpush1.bf16.msra.mxu0 %v121
  %155 = vmatprep.subr.bf16.mxu0 %v124
  %156 = vmatpush1.bf16.msra.mxu0 %v123
  %157 = vmatprep.subr.bf16.mxu0 %v126
  %158 = vmatpush1.bf16.msra.mxu0 %v125
  %159 = vmatprep.subr.bf16.mxu0 %v128
  %160 = vmatpush1.bf16.msra.mxu0 %v127
  %161 = vmatprep.subr.bf16.mxu0 %v130
  %162 = vmatpush1.bf16.msra.mxu0 %v129
  %163 = vmatprep.subr.bf16.mxu0 0
  %164 = vmatpush1.bf16.msra.mxu0 0
  %165 = vmatprep.subr.bf16.mxu0 0
  %166 = vmatpush1.bf16.msra.mxu0 0
  %167 = vmatprep.subr.bf16.mxu0 0
  %168 = vmatpush1.bf16.msra.mxu0 0
  %169 = vmatprep.subr.bf16.mxu0 0
  %170 = vmatpush1.bf16.msra.mxu0 0
  %171 = vmatprep.subr.bf16.mxu0 0
  %172 = vmatpush1.bf16.msra.mxu0 0
  %173 = vmatprep.subr.bf16.mxu0 0
  %174 = vmatpush1.bf16.msra.mxu0 0
  %175 = vmatprep.subr.bf16.mxu0 0
  %176 = vmatpush1.bf16.msra.mxu0 0
  %177 = vmatprep.subr.bf16.mxu0 0
  %178 = vmatpush1.bf16.msra.mxu0 0
  %179 = vmatprep.mubr.bf16.mxu0 0
  %180 = vmatmul.mubr.bf16.gmra.mrb[0].mxu0 %v63
  %v181 = vpop.f32.mrb[0].mxu0
  %v182 = vadd.f32 0.0, %v181
  %v183 = vpop.f32.mrb[0].mxu0
  %v184 = vadd.f32 0.0, %v183
  %v185 = vpop.f32.mrb[0].mxu0
  %v186 = vadd.f32 0.0, %v185
  %v187 = vpop.f32.mrb[0].mxu0
  %v188 = vadd.f32 0.0, %v187
  %189 = vmatprep.mubr.bf16.mxu0 0
  %190 = vmatmul.mubr.bf16.gmra.mrb[0].mxu0 %v64
  %v191 = vpop.f32.mrb[0].mxu0
  %v192 = vadd.f32 0.0, %v191
  %v193 = vpop.f32.mrb[0].mxu0
  %v194 = vadd.f32 0.0, %v193
  %v195 = vpop.f32.mrb[0].mxu0
  %v196 = vadd.f32 0.0, %v195
  %v197 = vpop.f32.mrb[0].mxu0
  %v198 = vadd.f32 0.0, %v197
  %199 = vdwg.mxu0
  %v200 = vadd.f32 %v27, %v182
  %v201 = vadd.f32 %v28, %v184
  %v202 = vadd.f32 %v29, %v186
  %v203 = vadd.f32 %v30, %v188
  %v204 = vadd.f32 %v31, %v192
  %v205 = vadd.f32 %v32, %v194
  %v206 = vadd.f32 %v33, %v196
  %v207 = vadd.f32 %v34, %v198
  %208 = vst [vmem:[#allocation2] sm:$0xff] %v200
  %209 = vst [vmem:[#allocation2 + $0x8] sm:$0xff] %v201
  %210 = vst [vmem:[#allocation2 + $0x10] sm:$0xff] %v202
  %211 = vst [vmem:[#allocation2 + $0x18] sm:$0xff] %v203
  %212 = vst [vmem:[#allocation2 + $0x20] sm:$0xff] %v204
  %213 = vst [vmem:[#allocation2 + $0x28] sm:$0xff] %v205
  %214 = vst [vmem:[#allocation2 + $0x30] sm:$0xff] %v206
  %215 = vst [vmem:[#allocation2 + $0x38] sm:$0xff] %v207
  // Predicated region
  $region18: #{gcs_transformer_forward.46} parent=0 // pred_check
    %p216 = pneg %p15
  $region19: #{gcs_transformer_forward.46} parent=0 // pred_check_branch
    %218 = sbr.rel (%p216) target = $region21
  $region20: #{gcs_transformer_forward.46} parent=0 // pred_region
    %v219 = vld [vmem:[#allocation2] sm:$0xff]
    %v220 = vld [vmem:[#allocation2 + $0x8] sm:$0xff]
    %v221 = vld [vmem:[#allocation2 + $0x10] sm:$0xff]
    %v222 = vld [vmem:[#allocation2 + $0x18] sm:$0xff]
    %v223 = vld [vmem:[#allocation2 + $0x20] sm:$0xff]
    %v224 = vld [vmem:[#allocation2 + $0x28] sm:$0xff]
    %v225 = vld [vmem:[#allocation2 + $0x30] sm:$0xff]
    %v226 = vld [vmem:[#allocation2 + $0x38] sm:$0xff]
    %v227 = vld [vmem:[%s2] sm:$0x3]
    %v229 = vlaneseq
    %v230 = vshrl.u32 %v229, 7
    %v231 = vsub.s32 0, %v230
    %v232 = vrot.slane %v227, %v231
    %v233 = vlaneseq
    %v234 = vshrl.u32 %v233, 7
    %v235 = vsub.s32 1, %v234
    %v236 = vrot.slane %v227, %v235
    %v239 = vadd.f32 %v219, %v232
    %v240 = vadd.f32 %v220, %v236
    %v241 = vadd.f32 %v221, %v232
    %v242 = vadd.f32 %v222, %v236
    %v243 = vadd.f32 %v223, %v232
    %v244 = vadd.f32 %v224, %v236
    %v245 = vadd.f32 %v225, %v232
    %v246 = vadd.f32 %v226, %v236
    %v247 = vpack.c.bf16 %v241, %v239
    %v248 = vpack.c.bf16 %v242, %v240
    %v249 = vpack.c.bf16 %v245, %v243
    %v250 = vpack.c.bf16 %v246, %v244
    %v255 = vunpack.c.l.b16 %v247
    %v256 = vunpack.c.l.b16 %v248
    %v257 = vunpack.c.h.b16 %v247
    %v258 = vunpack.c.h.b16 %v248
    %v259 = vunpack.c.l.b16 %v249
    %v260 = vunpack.c.l.b16 %v250
    %v261 = vunpack.c.h.b16 %v249
    %v262 = vunpack.c.h.b16 %v250
    %v263 = vpack.c.b16 %v256, %v255
    %v264 = vpack.c.b16 %v258, %v257
    %v265 = vpack.c.b16 %v260, %v259
    %v266 = vpack.c.b16 %v262, %v261
    %271 = vst [vmem:[%s3] sm:$0xff] %v263
    %272 = vst [vmem:[%s3 + $0x8] sm:$0xff] %v264
    %273 = vst [vmem:[%s3 + $0x10] sm:$0xff] %v265
    %274 = vst [vmem:[%s3 + $0x18] sm:$0xff] %v266
  $region21: #{gcs_transformer_forward.46} parent=0 // pred_fallthru
    _
  // Predicated region
  $region22: #{gcs_transformer_forward.46} parent=0 // pred_check
    _
  $region23: #{gcs_transformer_forward.46} parent=0 // pred_check_branch
    %276 = sbr.rel (0) target = $region25
  $region24: #{gcs_transformer_forward.46} parent=0 // pred_region
    _
  $region25: #{gcs_transformer_forward.46} parent=0 // pred_fallthru
    _
  // Predicated region
  $region26: #{gcs_transformer_forward.46} parent=0 // pred_check
    _
  $region27: #{gcs_transformer_forward.46} parent=0 // pred_check_branch
    %278 = sbr.rel (0) target = $region29
  $region28: #{gcs_transformer_forward.46} parent=0 // pred_region
    _
  $region29: #{gcs_transformer_forward.46} parent=0 // pred_fallthru
    _

// kernel: gcs_transformer_forward.45
$region0: #{gcs_transformer_forward.45}
  #allocation0 [shape = 'u32[]', space=smem, size = 0x4, offset = 0x4, fixed_abs, tag = 'smem constant byte address 0x4 - core index']
  #allocation1 [shape = 'u32[144,128]{1,0:T(1,128)}', space=vmem, size = 0x12000, scoped, tag = 'internal scratch']
  #allocation2 [shape = 'f32[32,128]{1,0:T(8,128)}', space=vmem, size = 0x4000, scoped, tag = 'scratch operand']
  %s0 = inlined_call_operand.vmem [shape: bf16[32,128], index: 0, kind: input, shape index: {}]
  %s1 = inlined_call_operand.vmem [shape: bf16[128,128], index: 1, kind: input, shape index: {}]
  %s2 = inlined_call_operand.vmem [shape: f32[1,128], index: 2, kind: input, shape index: {}]
  %s3 = inlined_call_operand.vmem [shape: bf16[32,128], index: 3, kind: output, shape index: {}]
  %s4 = sld [smem:[#allocation0]]
  $region30: #{gcs_transformer_forward.45} parent=0
    _
  %s6 = ssub.s32 1, %s4
  %s7 = scalar_select 0, %s6, %s4
  // Predicated region
  $region2: #{gcs_transformer_forward.45} parent=0 // pred_check
    _
  $region3: #{gcs_transformer_forward.45} parent=0 // pred_check_branch
    %9 = sbr.rel (0) target = $region5
  $region4: #{gcs_transformer_forward.45} parent=0 // pred_region
    _
  $region5: #{gcs_transformer_forward.45} parent=0 // pred_fallthru
    _
  // Predicated region
  $region6: #{gcs_transformer_forward.45} parent=0 // pred_check
    _
  $region7: #{gcs_transformer_forward.45} parent=0 // pred_check_branch
    %11 = sbr.rel (0) target = $region9
  $region8: #{gcs_transformer_forward.45} parent=0 // pred_region
    _
  $region9: #{gcs_transformer_forward.45} parent=0 // pred_fallthru
    _
  // Predicated region
  $region10: #{gcs_transformer_forward.45} parent=0 // pred_check
    _
  $region11: #{gcs_transformer_forward.45} parent=0 // pred_check_branch
    %13 = sbr.rel (0) target = $region13
  $region12: #{gcs_transformer_forward.45} parent=0 // pred_region
    _
  $region13: #{gcs_transformer_forward.45} parent=0 // pred_fallthru
    _
  %p15 = scmp.eq.s32.totalorder 0, 0
  // Predicated region
  $region14: #{gcs_transformer_forward.45} parent=0 // pred_check
    %p16 = pneg %p15
  $region15: #{gcs_transformer_forward.45} parent=0 // pred_check_branch
    %18 = sbr.rel (%p16) target = $region17
  $region16: #{gcs_transformer_forward.45} parent=0 // pred_region
    %19 = vst [vmem:[#allocation2] sm:$0xff] 0.0
    %20 = vst [vmem:[#allocation2 + $0x8] sm:$0xff] 0.0
    %21 = vst [vmem:[#allocation2 + $0x10] sm:$0xff] 0.0
    %22 = vst [vmem:[#allocation2 + $0x18] sm:$0xff] 0.0
  $region17: #{gcs_transformer_forward.45} parent=0 // pred_fallthru
    _
  %v23 = vld [vmem:[#allocation2] sm:$0xff]
  %v24 = vld [vmem:[#allocation2 + $0x8] sm:$0xff]
  %v25 = vld [vmem:[#allocation2 + $0x10] sm:$0xff]
  %v26 = vld [vmem:[#allocation2 + $0x18] sm:$0xff]
  %v27 = vld [vmem:[%s0] sm:$0xf]
  %v28 = vld [vmem:[%s0 + $0x4] sm:$0xf]
  %v29 = vld [vmem:[%s0 + $0x8] sm:$0xf]
  %v30 = vld [vmem:[%s0 + $0xc] sm:$0xf]
  %v31 = vld [vmem:[%s1] sm:$0xf]
  %v32 = vld [vmem:[%s1 + $0x4] sm:$0xf]
  %v33 = vld [vmem:[%s1 + $0x8] sm:$0xf]
  %v34 = vld [vmem:[%s1 + $0xc] sm:$0xf]
  %v35 = vld [vmem:[%s1 + $0x10] sm:$0xf]
  %v36 = vld [vmem:[%s1 + $0x14] sm:$0xf]
  %v37 = vld [vmem:[%s1 + $0x18] sm:$0xf]
  %v38 = vld [vmem:[%s1 + $0x1c] sm:$0xf]
  %v39 = vld [vmem:[%s1 + $0x20] sm:$0xf]
  %v40 = vld [vmem:[%s1 + $0x24] sm:$0xf]
  %v41 = vld [vmem:[%s1 + $0x28] sm:$0xf]
  %v42 = vld [vmem:[%s1 + $0x2c] sm:$0xf]
  %v43 = vld [vmem:[%s1 + $0x30] sm:$0xf]
  %v44 = vld [vmem:[%s1 + $0x34] sm:$0xf]
  %v45 = vld [vmem:[%s1 + $0x38] sm:$0xf]
  %v46 = vld [vmem:[%s1 + $0x3c] sm:$0xf]
  %v51 = vunpack.c.l.b16 %v27
  %v52 = vunpack.c.l.b16 %v28
  %v53 = vunpack.c.l.b16 %v29
  %v54 = vunpack.c.l.b16 %v30
  %v55 = vpack.c.b16 %v52, %v51
  %v56 = vpack.c.b16 %v54, %v53
  %v75 = vunpack.c.l.b16 %v31
  %v76 = vunpack.c.l.b16 %v32
  %v77 = vunpack.c.l.b16 %v33
  %v78 = vunpack.c.l.b16 %v34
  %v79 = vunpack.c.l.b16 %v35
  %v80 = vunpack.c.l.b16 %v36
  %v81 = vunpack.c.l.b16 %v37
  %v82 = vunpack.c.l.b16 %v38
  %v83 = vunpack.c.l.b16 %v39
  %v84 = vunpack.c.l.b16 %v40
  %v85 = vunpack.c.l.b16 %v41
  %v86 = vunpack.c.l.b16 %v42
  %v87 = vunpack.c.l.b16 %v43
  %v88 = vunpack.c.l.b16 %v44
  %v89 = vunpack.c.l.b16 %v45
  %v90 = vunpack.c.l.b16 %v46
  %v91 = vpack.c.b16 %v76, %v75
  %v92 = vpack.c.b16 %v78, %v77
  %v93 = vpack.c.b16 %v80, %v79
  %v94 = vpack.c.b16 %v82, %v81
  %v95 = vpack.c.b16 %v84, %v83
  %v96 = vpack.c.b16 %v86, %v85
  %v97 = vpack.c.b16 %v88, %v87
  %v98 = vpack.c.b16 %v90, %v89
  %107 = vmatprep.subr.bf16.mxu0 0
  %108 = vmatpush1.bf16.msra.mxu0 %v91
  %109 = vmatprep.subr.bf16.mxu0 0
  %110 = vmatpush1.bf16.msra.mxu0 %v92
  %111 = vmatprep.subr.bf16.mxu0 0
  %112 = vmatpush1.bf16.msra.mxu0 %v93
  %113 = vmatprep.subr.bf16.mxu0 0
  %114 = vmatpush1.bf16.msra.mxu0 %v94
  %115 = vmatprep.subr.bf16.mxu0 0
  %116 = vmatpush1.bf16.msra.mxu0 %v95
  %117 = vmatprep.subr.bf16.mxu0 0
  %118 = vmatpush1.bf16.msra.mxu0 %v96
  %119 = vmatprep.subr.bf16.mxu0 0
  %120 = vmatpush1.bf16.msra.mxu0 %v97
  %121 = vmatprep.subr.bf16.mxu0 0
  %122 = vmatpush1.bf16.msra.mxu0 %v98
  %123 = vmatprep.subr.bf16.mxu0 0
  %124 = vmatpush1.bf16.msra.mxu0 0
  %125 = vmatprep.subr.bf16.mxu0 0
  %126 = vmatpush1.bf16.msra.mxu0 0
  %127 = vmatprep.subr.bf16.mxu0 0
  %128 = vmatpush1.bf16.msra.mxu0 0
  %129 = vmatprep.subr.bf16.mxu0 0
  %130 = vmatpush1.bf16.msra.mxu0 0
  %131 = vmatprep.subr.bf16.mxu0 0
  %132 = vmatpush1.bf16.msra.mxu0 0
  %133 = vmatprep.subr.bf16.mxu0 0
  %134 = vmatpush1.bf16.msra.mxu0 0
  %135 = vmatprep.subr.bf16.mxu0 0
  %136 = vmatpush1.bf16.msra.mxu0 0
  %137 = vmatprep.subr.bf16.mxu0 0
  %138 = vmatpush1.bf16.msra.mxu0 0
  %139 = vmatprep.mubr.bf16.mxu0 0
  %140 = vmatmul.mubr.bf16.gmra.mrb[0].mxu0 %v55
  %v141 = vpop.f32.mrb[0].mxu0
  %v142 = vadd.f32 0.0, %v141
  %v143 = vpop.f32.mrb[0].mxu0
  %v144 = vpop.f32.mrb[0].mxu0
  %v145 = vadd.f32 0.0, %v144
  %v146 = vpop.f32.mrb[0].mxu0
  %147 = vmatprep.mubr.bf16.mxu0 0
  %148 = vmatmul.mubr.bf16.gmra.mrb[0].mxu0 %v56
  %v149 = vpop.f32.mrb[0].mxu0
  %v150 = vadd.f32 0.0, %v149
  %v151 = vpop.f32.mrb[0].mxu0
  %v152 = vpop.f32.mrb[0].mxu0
  %v153 = vadd.f32 0.0, %v152
  %v154 = vpop.f32.mrb[0].mxu0
  %155 = vdwg.mxu0
  %v156 = vadd.f32 %v23, %v142
  %v157 = vadd.f32 %v24, %v145
  %v158 = vadd.f32 %v25, %v150
  %v159 = vadd.f32 %v26, %v153
  %160 = vst [vmem:[#allocation2] sm:$0xff] %v156
  %161 = vst [vmem:[#allocation2 + $0x8] sm:$0xff] %v157
  %162 = vst [vmem:[#allocation2 + $0x10] sm:$0xff] %v158
  %163 = vst [vmem:[#allocation2 + $0x18] sm:$0xff] %v159
  // Predicated region
  $region18: #{gcs_transformer_forward.45} parent=0 // pred_check
    %p164 = pneg %p15
  $region19: #{gcs_transformer_forward.45} parent=0 // pred_check_branch
    %166 = sbr.rel (%p164) target = $region21
  $region20: #{gcs_transformer_forward.45} parent=0 // pred_region
    %v167 = vld [vmem:[#allocation2] sm:$0xff]
    %v168 = vld [vmem:[#allocation2 + $0x8] sm:$0xff]
    %v169 = vld [vmem:[#allocation2 + $0x10] sm:$0xff]
    %v170 = vld [vmem:[#allocation2 + $0x18] sm:$0xff]
    %v171 = vld [vmem:[%s2] sm:$0x1]
    %v173 = vlaneseq
    %v174 = vshrl.u32 %v173, 7
    %v175 = vsub.s32 0, %v174
    %v176 = vrot.slane %v171, %v175
    %v178 = vadd.f32 %v167, %v176
    %v179 = vadd.f32 %v168, %v176
    %v180 = vadd.f32 %v169, %v176
    %v181 = vadd.f32 %v170, %v176
    %v182 = vpack.c.bf16 %v179, %v178
    %v183 = vpack.c.bf16 %v181, %v180
    %v186 = vunpack.c.l.b16 %v182
    %v187 = vunpack.c.h.b16 %v182
    %v188 = vunpack.c.l.b16 %v183
    %v189 = vunpack.c.h.b16 %v183
    %v190 = vpack.c.b16 %v186, %v186
    %v191 = vpack.c.b16 %v187, %v187
    %v192 = vpack.c.b16 %v188, %v188
    %v193 = vpack.c.b16 %v189, %v189
    %198 = vst [vmem:[%s3] sm:$0xf] %v190
    %199 = vst [vmem:[%s3 + $0x4] sm:$0xf] %v191
    %200 = vst [vmem:[%s3 + $0x8] sm:$0xf] %v192
    %201 = vst [vmem:[%s3 + $0xc] sm:$0xf] %v193
  $region21: #{gcs_transformer_forward.45} parent=0 // pred_fallthru
    _
  // Predicated region
  $region22: #{gcs_transformer_forward.45} parent=0 // pred_check
    _
  $region23: #{gcs_transformer_forward.45} parent=0 // pred_check_branch
    %203 = sbr.rel (0) target = $region25
  $region24: #{gcs_transformer_forward.45} parent=0 // pred_region
    _
  $region25: #{gcs_transformer_forward.45} parent=0 // pred_fallthru
    _
  // Predicated region
  $region26: #{gcs_transformer_forward.45} parent=0 // pred_check
    _
  $region27: #{gcs_transformer_forward.45} parent=0 // pred_check_branch
    %205 = sbr.rel (0) target = $region29
  $region28: #{gcs_transformer_forward.45} parent=0 // pred_region
    _
  $region29: #{gcs_transformer_forward.45} parent=0 // pred_fallthru
    _

// kernel: gcs_transformer_forward.43
$region0: #{gcs_transformer_forward.43}
  #allocation0 [shape = 'u32[]', space=smem, size = 0x4, offset = 0x4, fixed_abs, tag = 'smem constant byte address 0x4 - core index']
  #allocation1 [shape = 'u32[144,128]{1,0:T(1,128)}', space=vmem, size = 0x12000, scoped, tag = 'internal scratch']
  %s0 = inlined_call_operand.vmem [shape: bf16[2,16,384], index: 0, kind: input, shape index: {}, may-alias: {0,1,2}]
  %s1 = inlined_call_operand.vmem [shape: bf16[2,16,384], index: 1, kind: input, shape index: {}, may-alias: {0,1,2}]
  %s2 = inlined_call_operand.vmem [shape: bf16[2,16,384], index: 2, kind: input, shape index: {}, may-alias: {0,1,2}]
  %s3 = inlined_call_operand.vmem [shape: bf16[2,16,128], index: 3, kind: output, shape index: {}]
  %s4 = sld [smem:[#allocation0]]
  $region168: #{gcs_transformer_forward.43} parent=0
    _
  %s6 = ssub.s32 1, %s4
  %s7 = scalar_select 0, %s6, %s4
  $region1: #{gcs_transformer_forward.43} parent=0
    #allocation2 [shape = 'u8[8192]{0}', space=vmem, size = 0x2000, scoped, tag = 'input window, operand 0']
    #allocation3 [shape = 'u8[8192]{0}', space=vmem, size = 0x2000, scoped, tag = 'input window, operand 1']
    #allocation4 [shape = 'u8[8192]{0}', space=vmem, size = 0x2000, scoped, tag = 'input window, operand 2']
    loop: start=0, step=1, limit=4
    $region2: #{gcs_transformer_forward.43} parent=1 // loop_pre_header
      _
    $region3: #{gcs_transformer_forward.43} parent=1 // loop_header
      %s9 = sphi 0, %s13
      %p10 = scmp.ge.s32.totalorder %s9, 4
      %s19 = sphi 0, %s21
      %s22 = sphi 0, %s19
      %s23 = sphi 0, %s22
      %s39 = sphi 0, %s23
      %s45 = sphi 0, %s47
      %s48 = sphi 0, %s45
      %s49 = sphi 0, %s48
      %s65 = sphi 0, %s49
      %s71 = sphi 0, %s73
      %s74 = sphi 0, %s71
      %s75 = sphi 0, %s74
      %s91 = sphi 0, %s75
      %s97 = sphi 0, %s99
      %s100 = sphi 0, %s97
      %s101 = sphi 0, %s100
      %s117 = sphi 0, %s101
    $region4: #{gcs_transformer_forward.43} parent=1 // loop_header_branch
      %12 = sbr.rel (%p10) target = $region8
    $region5: #{gcs_transformer_forward.43} parent=1 // loop_body
      %s14 = ssub.s32 %s9, 1
      %s15 = ssub.s32 %s9, 2
      %s16 = sadd.s32 %s9, 1
      %s17 = ssub.s32 %s9, %s16
      %p18 = scmp.eq.s32.totalorder %s17, 0
      %s20 = sadd.s32 %s19, 1
      %s21 = scalar_select %p18, %s19, %s20
      %p24 = pneg %p18
      %p25 = scmp.eq.s32.totalorder %s9, 1
      %p26 = por %p24, %p25
      %p27 = scmp.ne.s32.totalorder %s19, %s22
      %p28 = scmp.eq.s32.totalorder %s9, 0
      %p29 = por %p27, %p28
      %p30 = scmp.ne.s32.totalorder %s19, %s22
      %p31 = scmp.eq.s32.totalorder %s14, 1
      %p32 = por %p30, %p31
      %p33 = scmp.ne.s32.totalorder %s22, %s23
      %p34 = scmp.eq.s32.totalorder %s14, 0
      %p35 = por %p33, %p34
      %p36 = scmp.ne.s32.totalorder %s22, %s23
      %p37 = scmp.eq.s32.totalorder %s15, 1
      %p38 = por %p36, %p37
      %p40 = scmp.ne.s32.totalorder %s23, %s39
      %p41 = scmp.eq.s32.totalorder %s15, 0
      %p42 = por %p40, %p41
      %s43 = ssub.s32 %s9, %s16
      %p44 = scmp.eq.s32.totalorder %s43, 0
      %s46 = sadd.s32 %s45, 1
      %s47 = scalar_select %p44, %s45, %s46
      %p50 = pneg %p44
      %p51 = scmp.eq.s32.totalorder %s9, 1
      %p52 = por %p50, %p51
      %p53 = scmp.ne.s32.totalorder %s45, %s48
      %p54 = scmp.eq.s32.totalorder %s9, 0
      %p55 = por %p53, %p54
      %p56 = scmp.ne.s32.totalorder %s45, %s48
      %p57 = scmp.eq.s32.totalorder %s14, 1
      %p58 = por %p56, %p57
      %p59 = scmp.ne.s32.totalorder %s48, %s49
      %p60 = scmp.eq.s32.totalorder %s14, 0
      %p61 = por %p59, %p60
      %p62 = scmp.ne.s32.totalorder %s48, %s49
      %p63 = scmp.eq.s32.totalorder %s15, 1
      %p64 = por %p62, %p63
      %p66 = scmp.ne.s32.totalorder %s49, %s65
      %p67 = scmp.eq.s32.totalorder %s15, 0
      %p68 = por %p66, %p67
      %s69 = ssub.s32 %s9, %s16
      %p70 = scmp.eq.s32.totalorder %s69, 0
      %s72 = sadd.s32 %s71, 1
      %s73 = scalar_select %p70, %s71, %s72
      %p76 = pneg %p70
      %p77 = scmp.eq.s32.totalorder %s9, 1
      %p78 = por %p76, %p77
      %p79 = scmp.ne.s32.totalorder %s71, %s74
      %p80 = scmp.eq.s32.totalorder %s9, 0
      %p81 = por %p79, %p80
      %p82 = scmp.ne.s32.totalorder %s71, %s74
      %p83 = scmp.eq.s32.totalorder %s14, 1
      %p84 = por %p82, %p83
      %p85 = scmp.ne.s32.totalorder %s74, %s75
      %p86 = scmp.eq.s32.totalorder %s14, 0
      %p87 = por %p85, %p86
      %p88 = scmp.ne.s32.totalorder %s74, %s75
      %p89 = scmp.eq.s32.totalorder %s15, 1
      %p90 = por %p88, %p89
      %p92 = scmp.ne.s32.totalorder %s75, %s91
      %p93 = scmp.eq.s32.totalorder %s15, 0
      %p94 = por %p92, %p93
      %s95 = ssub.s32 %s9, %s16
      %p96 = scmp.eq.s32.totalorder %s95, 0
      %s98 = sadd.s32 %s97, 1
      %s99 = scalar_select %p96, %s97, %s98
      %p102 = pneg %p96
      %p103 = scmp.eq.s32.totalorder %s9, 1
      %p104 = por %p102, %p103
      %p105 = scmp.ne.s32.totalorder %s97, %s100
      %p106 = scmp.eq.s32.totalorder %s9, 0
      %p107 = por %p105, %p106
      %p108 = scmp.ne.s32.totalorder %s97, %s100
      %p109 = scmp.eq.s32.totalorder %s14, 1
      %p110 = por %p108, %p109
      %p111 = scmp.ne.s32.totalorder %s100, %s101
      %p112 = scmp.eq.s32.totalorder %s14, 0
      %p113 = por %p111, %p112
      %p114 = scmp.ne.s32.totalorder %s100, %s101
      %p115 = scmp.eq.s32.totalorder %s15, 1
      %p116 = por %p114, %p115
      %p118 = scmp.ne.s32.totalorder %s101, %s117
      %p119 = scmp.eq.s32.totalorder %s15, 0
      %p120 = por %p118, %p119
      %p121 = scmp.le.s32.totalorder 1, %s9
      %p122 = scmp.lt.s32.totalorder %s9, 3
      %p123 = pnand %p121, %p122
      %p124 = pneg %p123
      // Predicated region
      $region9: #{gcs_transformer_forward.43} parent=5 // pred_check
        _
      $region10: #{gcs_transformer_forward.43} parent=5 // pred_check_branch
        %126 = sbr.rel (%p123) target = $region12
      $region11: #{gcs_transformer_forward.43} parent=5 // pred_region
        %s127 = ssub.s32 %s9, 1
      $region12: #{gcs_transformer_forward.43} parent=5 // pred_fallthru
        _
      %p128 = scmp.lt.s32.totalorder %s9, 2
      // Predicated region
      $region13: #{gcs_transformer_forward.43} parent=5 // pred_check
        %p129 = pneg %p128
      $region14: #{gcs_transformer_forward.43} parent=5 // pred_check_branch
        %131 = sbr.rel (%p129) target = $region16
      $region15: #{gcs_transformer_forward.43} parent=5 // pred_region
        // Predicated region
        $region17: #{gcs_transformer_forward.43} parent=15 // pred_check
          %p132 = pneg %p29
        $region18: #{gcs_transformer_forward.43} parent=15 // pred_check_branch
          %134 = sbr.rel (%p132) target = $region20
        $region19: #{gcs_transformer_forward.43} parent=15 // pred_region
          %s135 = sand.u32 %s19, 1
          %s136 = sand.u32 %s19, 1
          %s137 = smul.addr %s136, 8
          %s138 = scalar_lea.vmem [#allocation2], %s137
          %s139 = smul.addr %s9, 6
          %s140 = smul.addr %s139, 4
          %s141 = scalar_lea.vmem %s0, %s140
          // Predicated region
          $region21: #{gcs_transformer_forward.43} parent=19 // pred_check
            _
          $region22: #{gcs_transformer_forward.43} parent=19 // pred_check_branch
            %143 = sbr.rel (0) target = $region24
          $region23: #{gcs_transformer_forward.43} parent=19 // pred_region
            // Predicated region
            $region25: #{gcs_transformer_forward.43} parent=23 // pred_check
              _
            $region26: #{gcs_transformer_forward.43} parent=23 // pred_check_branch
              %145 = sbr.rel target = $region28
            $region27: #{gcs_transformer_forward.43} parent=23 // pred_region
              // Predicated region
              $region40: #{gcs_transformer_forward.43} parent=27 // pred_check
                _
              $region41: #{gcs_transformer_forward.43} parent=27 // pred_check_branch
                %162 = sbr.rel (0) target = $region43
              $region42: #{gcs_transformer_forward.43} parent=27 // pred_region
                loop: start=0, step=1, limit=1
                $region44: #{gcs_transformer_forward.43} parent=42 // loop_pre_header
                  _
                $region45: #{gcs_transformer_forward.43} parent=42 // loop_header
                  %s164 = sphi 0, %s168
                  %p165 = scmp.ge.s32.totalorder %s164, 1
                  %s169 = sphi %s141, %s141
                  %s170 = sphi %s138, %s138
                $region46: #{gcs_transformer_forward.43} parent=42 // loop_header_branch
                  %167 = sbr.rel (%p165) target = $region50
                $region47: #{gcs_transformer_forward.43} parent=42 // loop_body
                  _
                $region48: #{gcs_transformer_forward.43} parent=42 // loop_footer
                  %s168 = sadd.s32 1, %s164
                $region49: #{gcs_transformer_forward.43} parent=42 // loop_footer_branch
                  %163 = sbr.rel target = $region45
                $region50: #{gcs_transformer_forward.43} parent=42 // loop_exit
                  _
                loop: start=0, step=1, limit=1
                $region51: #{gcs_transformer_forward.43} parent=42 // loop_pre_header
                  _
                $region52: #{gcs_transformer_forward.43} parent=42 // loop_header
                  %s173 = sphi 0, %s177
                  %p174 = scmp.ge.s32.totalorder %s173, 1
                  %s178 = sphi %s141, %s141
                  %s179 = sphi %s138, %s138
                $region53: #{gcs_transformer_forward.43} parent=42 // loop_header_branch
                  %176 = sbr.rel (%p174) target = $region57
                $region54: #{gcs_transformer_forward.43} parent=42 // loop_body
                  %v180 = vld [vmem:[%s178] sm:$0xf]
                  %181 = vst [vmem:[%s179] sm:$0xf] %v180
                  %v182 = vld [vmem:[%s178 + $0xc] sm:$0xf]
                  %183 = vst [vmem:[%s179 + $0x4] sm:$0xf] %v182
                $region55: #{gcs_transformer_forward.43} parent=42 // loop_footer
                  %s177 = sadd.s32 1, %s173
                $region56: #{gcs_transformer_forward.43} parent=42 // loop_footer_branch
                  %172 = sbr.rel target = $region52
                $region57: #{gcs_transformer_forward.43} parent=42 // loop_exit
                  _
              $region43: #{gcs_transformer_forward.43} parent=27 // pred_fallthru
                _
            $region28: #{gcs_transformer_forward.43} parent=23 // pred_fallthru
              _
            // Predicated region
            $region29: #{gcs_transformer_forward.43} parent=23 // pred_check
              _
            $region30: #{gcs_transformer_forward.43} parent=23 // pred_check_branch
              %147 = sbr.rel (0) target = $region32
            $region31: #{gcs_transformer_forward.43} parent=23 // pred_region
              loop: start=0, step=1, limit=1
              $region33: #{gcs_transformer_forward.43} parent=31 // loop_pre_header
                _
              $region34: #{gcs_transformer_forward.43} parent=31 // loop_header
                %s150 = sphi 0, %s154
                %p151 = scmp.ge.s32.totalorder %s150, 1
                %s155 = sphi %s141, %s141
                %s156 = sphi %s138, %s138
              $region35: #{gcs_transformer_forward.43} parent=31 // loop_header_branch
                %153 = sbr.rel (%p151) target = $region39
              $region36: #{gcs_transformer_forward.43} parent=31 // loop_body
                %v157 = vld [vmem:[%s155] sm:$0xf]
                %158 = vst [vmem:[%s156] sm:$0xf] %v157
                %v159 = vld [vmem:[%s155 + $0xc] sm:$0xf]
                %160 = vst [vmem:[%s156 + $0x4] sm:$0xf] %v159
              $region37: #{gcs_transformer_forward.43} parent=31 // loop_footer
                %s154 = sadd.s32 1, %s150
              $region38: #{gcs_transformer_forward.43} parent=31 // loop_footer_branch
                %149 = sbr.rel target = $region34
              $region39: #{gcs_transformer_forward.43} parent=31 // loop_exit
                _
            $region32: #{gcs_transformer_forward.43} parent=23 // pred_fallthru
              _
          $region24: #{gcs_transformer_forward.43} parent=19 // pred_fallthru
            _
          %184 = vnop
        $region20: #{gcs_transformer_forward.43} parent=15 // pred_fallthru
          _
        // Predicated region
        $region58: #{gcs_transformer_forward.43} parent=15 // pred_check
          %p185 = pneg %p55
        $region59: #{gcs_transformer_forward.43} parent=15 // pred_check_branch
          %187 = sbr.rel (%p185) target = $region61
        $region60: #{gcs_transformer_forward.43} parent=15 // pred_region
          %s188 = sand.u32 %s45, 1
          %s189 = sand.u32 %s45, 1
          %s190 = smul.addr %s189, 8
          %s191 = scalar_lea.vmem [#allocation3], %s190
          %s192 = smul.addr %s9, 6
          %s193 = sadd.s32 1, %s192
          %s194 = smul.addr %s193, 4
          %s195 = scalar_lea.vmem %s1, %s194
          // Predicated region
          $region62: #{gcs_transformer_forward.43} parent=60 // pred_check
            _
          $region63: #{gcs_transformer_forward.43} parent=60 // pred_check_branch
            %197 = sbr.rel (0) target = $region65
          $region64: #{gcs_transformer_forward.43} parent=60 // pred_region
            // Predicated region
            $region66: #{gcs_transformer_forward.43} parent=64 // pred_check
              _
            $region67: #{gcs_transformer_forward.43} parent=64 // pred_check_branch
              %199 = sbr.rel target = $region69
            $region68: #{gcs_transformer_forward.43} parent=64 // pred_region
              // Predicated region
              $region81: #{gcs_transformer_forward.43} parent=68 // pred_check
                _
              $region82: #{gcs_transformer_forward.43} parent=68 // pred_check_branch
                %216 = sbr.rel (0) target = $region84
              $region83: #{gcs_transformer_forward.43} parent=68 // pred_region
                loop: start=0, step=1, limit=1
                $region85: #{gcs_transformer_forward.43} parent=83 // loop_pre_header
                  _
                $region86: #{gcs_transformer_forward.43} parent=83 // loop_header
                  %s218 = sphi 0, %s222
                  %p219 = scmp.ge.s32.totalorder %s218, 1
                  %s223 = sphi %s195, %s195
                  %s224 = sphi %s191, %s191
                $region87: #{gcs_transformer_forward.43} parent=83 // loop_header_branch
                  %221 = sbr.rel (%p219) target = $region91
                $region88: #{gcs_transformer_forward.43} parent=83 // loop_body
                  _
                $region89: #{gcs_transformer_forward.43} parent=83 // loop_footer
                  %s222 = sadd.s32 1, %s218
                $region90: #{gcs_transformer_forward.43} parent=83 // loop_footer_branch
                  %217 = sbr.rel target = $region86
                $region91: #{gcs_transformer_forward.43} parent=83 // loop_exit
                  _
                loop: start=0, step=1, limit=1
                $region92: #{gcs_transformer_forward.43} parent=83 // loop_pre_header
                  _
                $region93: #{gcs_transformer_forward.43} parent=83 // loop_header
                  %s227 = sphi 0, %s231
                  %p228 = scmp.ge.s32.totalorder %s227, 1
                  %s232 = sphi %s195, %s195
                  %s233 = sphi %s191, %s191
                $region94: #{gcs_transformer_forward.43} parent=83 // loop_header_branch
                  %230 = sbr.rel (%p228) target = $region98
                $region95: #{gcs_transformer_forward.43} parent=83 // loop_body
                  %v234 = vld [vmem:[%s232] sm:$0xf]
                  %235 = vst [vmem:[%s233] sm:$0xf] %v234
                  %v236 = vld [vmem:[%s232 + $0xc] sm:$0xf]
                  %237 = vst [vmem:[%s233 + $0x4] sm:$0xf] %v236
                $region96: #{gcs_transformer_forward.43} parent=83 // loop_footer
                  %s231 = sadd.s32 1, %s227
                $region97: #{gcs_transformer_forward.43} parent=83 // loop_footer_branch
                  %226 = sbr.rel target = $region93
                $region98: #{gcs_transformer_forward.43} parent=83 // loop_exit
                  _
              $region84: #{gcs_transformer_forward.43} parent=68 // pred_fallthru
                _
            $region69: #{gcs_transformer_forward.43} parent=64 // pred_fallthru
              _
            // Predicated region
            $region70: #{gcs_transformer_forward.43} parent=64 // pred_check
              _
            $region71: #{gcs_transformer_forward.43} parent=64 // pred_check_branch
              %201 = sbr.rel (0) target = $region73
            $region72: #{gcs_transformer_forward.43} parent=64 // pred_region
              loop: start=0, step=1, limit=1
              $region74: #{gcs_transformer_forward.43} parent=72 // loop_pre_header
                _
              $region75: #{gcs_transformer_forward.43} parent=72 // loop_header
                %s204 = sphi 0, %s208
                %p205 = scmp.ge.s32.totalorder %s204, 1
                %s209 = sphi %s195, %s195
                %s210 = sphi %s191, %s191
              $region76: #{gcs_transformer_forward.43} parent=72 // loop_header_branch
                %207 = sbr.rel (%p205) target = $region80
              $region77: #{gcs_transformer_forward.43} parent=72 // loop_body
                %v211 = vld [vmem:[%s209] sm:$0xf]
                %212 = vst [vmem:[%s210] sm:$0xf] %v211
                %v213 = vld [vmem:[%s209 + $0xc] sm:$0xf]
                %214 = vst [vmem:[%s210 + $0x4] sm:$0xf] %v213
              $region78: #{gcs_transformer_forward.43} parent=72 // loop_footer
                %s208 = sadd.s32 1, %s204
              $region79: #{gcs_transformer_forward.43} parent=72 // loop_footer_branch
                %203 = sbr.rel target = $region75
              $region80: #{gcs_transformer_forward.43} parent=72 // loop_exit
                _
            $region73: #{gcs_transformer_forward.43} parent=64 // pred_fallthru
              _
          $region65: #{gcs_transformer_forward.43} parent=60 // pred_fallthru
            _
          %238 = vnop
        $region61: #{gcs_transformer_forward.43} parent=15 // pred_fallthru
          _
        // Predicated region
        $region99: #{gcs_transformer_forward.43} parent=15 // pred_check
          %p239 = pneg %p81
        $region100: #{gcs_transformer_forward.43} parent=15 // pred_check_branch
          %241 = sbr.rel (%p239) target = $region102
        $region101: #{gcs_transformer_forward.43} parent=15 // pred_region
          %s242 = sand.u32 %s71, 1
          %s243 = sand.u32 %s71, 1
          %s244 = smul.addr %s243, 8
          %s245 = scalar_lea.vmem [#allocation4], %s244
          %s246 = smul.addr %s9, 6
          %s247 = sadd.s32 2, %s246
          %s248 = smul.addr %s247, 4
          %s249 = scalar_lea.vmem %s2, %s248
          // Predicated region
          $region103: #{gcs_transformer_forward.43} parent=101 // pred_check
            _
          $region104: #{gcs_transformer_forward.43} parent=101 // pred_check_branch
            %251 = sbr.rel (0) target = $region106
          $region105: #{gcs_transformer_forward.43} parent=101 // pred_region
            // Predicated region
            $region107: #{gcs_transformer_forward.43} parent=105 // pred_check
              _
            $region108: #{gcs_transformer_forward.43} parent=105 // pred_check_branch
              %253 = sbr.rel target = $region110
            $region109: #{gcs_transformer_forward.43} parent=105 // pred_region
              // Predicated region
              $region122: #{gcs_transformer_forward.43} parent=109 // pred_check
                _
              $region123: #{gcs_transformer_forward.43} parent=109 // pred_check_branch
                %270 = sbr.rel (0) target = $region125
              $region124: #{gcs_transformer_forward.43} parent=109 // pred_region
                loop: start=0, step=1, limit=1
                $region126: #{gcs_transformer_forward.43} parent=124 // loop_pre_header
                  _
                $region127: #{gcs_transformer_forward.43} parent=124 // loop_header
                  %s272 = sphi 0, %s276
                  %p273 = scmp.ge.s32.totalorder %s272, 1
                  %s277 = sphi %s249, %s249
                  %s278 = sphi %s245, %s245
                $region128: #{gcs_transformer_forward.43} parent=124 // loop_header_branch
                  %275 = sbr.rel (%p273) target = $region132
                $region129: #{gcs_transformer_forward.43} parent=124 // loop_body
                  _
                $region130: #{gcs_transformer_forward.43} parent=124 // loop_footer
                  %s276 = sadd.s32 1, %s272
                $region131: #{gcs_transformer_forward.43} parent=124 // loop_footer_branch
                  %271 = sbr.rel target = $region127
                $region132: #{gcs_transformer_forward.43} parent=124 // loop_exit
                  _
                loop: start=0, step=1, limit=1
                $region133: #{gcs_transformer_forward.43} parent=124 // loop_pre_header
                  _
                $region134: #{gcs_transformer_forward.43} parent=124 // loop_header
                  %s281 = sphi 0, %s285
                  %p282 = scmp.ge.s32.totalorder %s281, 1
                  %s286 = sphi %s249, %s249
                  %s287 = sphi %s245, %s245
                $region135: #{gcs_transformer_forward.43} parent=124 // loop_header_branch
                  %284 = sbr.rel (%p282) target = $region139
                $region136: #{gcs_transformer_forward.43} parent=124 // loop_body
                  %v288 = vld [vmem:[%s286] sm:$0xf]
                  %289 = vst [vmem:[%s287] sm:$0xf] %v288
                  %v290 = vld [vmem:[%s286 + $0xc] sm:$0xf]
                  %291 = vst [vmem:[%s287 + $0x4] sm:$0xf] %v290
                $region137: #{gcs_transformer_forward.43} parent=124 // loop_footer
                  %s285 = sadd.s32 1, %s281
                $region138: #{gcs_transformer_forward.43} parent=124 // loop_footer_branch
                  %280 = sbr.rel target = $region134
                $region139: #{gcs_transformer_forward.43} parent=124 // loop_exit
                  _
              $region125: #{gcs_transformer_forward.43} parent=109 // pred_fallthru
                _
            $region110: #{gcs_transformer_forward.43} parent=105 // pred_fallthru
              _
            // Predicated region
            $region111: #{gcs_transformer_forward.43} parent=105 // pred_check
              _
            $region112: #{gcs_transformer_forward.43} parent=105 // pred_check_branch
              %255 = sbr.rel (0) target = $region114
            $region113: #{gcs_transformer_forward.43} parent=105 // pred_region
              loop: start=0, step=1, limit=1
              $region115: #{gcs_transformer_forward.43} parent=113 // loop_pre_header
                _
              $region116: #{gcs_transformer_forward.43} parent=113 // loop_header
                %s258 = sphi 0, %s262
                %p259 = scmp.ge.s32.totalorder %s258, 1
                %s263 = sphi %s249, %s249
                %s264 = sphi %s245, %s245
              $region117: #{gcs_transformer_forward.43} parent=113 // loop_header_branch
                %261 = sbr.rel (%p259) target = $region121
              $region118: #{gcs_transformer_forward.43} parent=113 // loop_body
                %v265 = vld [vmem:[%s263] sm:$0xf]
                %266 = vst [vmem:[%s264] sm:$0xf] %v265
                %v267 = vld [vmem:[%s263 + $0xc] sm:$0xf]
                %268 = vst [vmem:[%s264 + $0x4] sm:$0xf] %v267
              $region119: #{gcs_transformer_forward.43} parent=113 // loop_footer
                %s262 = sadd.s32 1, %s258
              $region120: #{gcs_transformer_forward.43} parent=113 // loop_footer_branch
                %257 = sbr.rel target = $region116
              $region121: #{gcs_transformer_forward.43} parent=113 // loop_exit
                _
            $region114: #{gcs_transformer_forward.43} parent=105 // pred_fallthru
              _
          $region106: #{gcs_transformer_forward.43} parent=101 // pred_fallthru
            _
          %292 = vnop
        $region102: #{gcs_transformer_forward.43} parent=15 // pred_fallthru
          _
      $region16: #{gcs_transformer_forward.43} parent=5 // pred_fallthru
        _
      %p293 = scmp.le.s32.totalorder 1, %s9
      %p294 = scmp.lt.s32.totalorder %s9, 3
      %p295 = pnand %p293, %p294
      %p296 = pneg %p295
      // Predicated region
      $region140: #{gcs_transformer_forward.43} parent=5 // pred_check
        _
      $region141: #{gcs_transformer_forward.43} parent=5 // pred_check_branch
        %298 = sbr.rel (%p295) target = $region143
      $region142: #{gcs_transformer_forward.43} parent=5 // pred_region
        %s299 = ssub.s32 %s9, 1
        %s300 = sand.u32 %s22, 1
        %s301 = sand.u32 %s22, 1
        %s302 = smul.addr %s301, 8
        %s303 = scalar_lea.vmem [#allocation2], %s302
        // Predicated region
        $region144: #{gcs_transformer_forward.43} parent=142 // pred_check
          %p304 = pneg %p35
        $region145: #{gcs_transformer_forward.43} parent=142 // pred_check_branch
          %306 = sbr.rel (%p304) target = $region147
        $region146: #{gcs_transformer_forward.43} parent=142 // pred_region
          _
        $region147: #{gcs_transformer_forward.43} parent=142 // pred_fallthru
          _
        %s307 = sand.u32 %s48, 1
        %s308 = sand.u32 %s48, 1
        %s309 = smul.addr %s308, 8
        %s310 = scalar_lea.vmem [#allocation3], %s309
        // Predicated region
        $region148: #{gcs_transformer_forward.43} parent=142 // pred_check
          %p311 = pneg %p61
        $region149: #{gcs_transformer_forward.43} parent=142 // pred_check_branch
          %313 = sbr.rel (%p311) target = $region151
        $region150: #{gcs_transformer_forward.43} parent=142 // pred_region
          _
        $region151: #{gcs_transformer_forward.43} parent=142 // pred_fallthru
          _
        %s314 = sand.u32 %s74, 1
        %s315 = sand.u32 %s74, 1
        %s316 = smul.addr %s315, 8
        %s317 = scalar_lea.vmem [#allocation4], %s316
        // Predicated region
        $region152: #{gcs_transformer_forward.43} parent=142 // pred_check
          %p318 = pneg %p87
        $region153: #{gcs_transformer_forward.43} parent=142 // pred_check_branch
          %320 = sbr.rel (%p318) target = $region155
        $region154: #{gcs_transformer_forward.43} parent=142 // pred_region
          _
        $region155: #{gcs_transformer_forward.43} parent=142 // pred_fallthru
          _
        %s321 = sand.u32 %s22, 1
        %s322 = sand.u32 %s22, 1
        %s323 = smul.addr %s322, 8
        %s324 = scalar_lea.vmem [#allocation2], %s323
        %p325 = pneg %p35
        %p326 = pneg %p32
        %s327 = sand.u32 %s48, 1
        %s328 = sand.u32 %s48, 1
        %s329 = smul.addr %s328, 8
        %s330 = scalar_lea.vmem [#allocation3], %s329
        %p331 = pneg %p61
        %p332 = pneg %p58
        %s333 = sand.u32 %s74, 1
        %s334 = sand.u32 %s74, 1
        %s335 = smul.addr %s334, 8
        %s336 = scalar_lea.vmem [#allocation4], %s335
        %p337 = pneg %p87
        %p338 = pneg %p84
        %p339 = pneg %p113
        %p340 = pneg %p110
        %p341 = scmp.lt.s32.totalorder %s14, 1
        %s342 = scalar_select %p341, %s14, 1
        %s343 = smul.addr %s342, 2
        %s344 = smul.addr %s343, 4
        %s345 = scalar_lea.vmem %s3, %s344
        %p346 = scmp.lt.s32.totalorder %s14, 1
        %s347 = scalar_select %p346, %s14, 1
        %s348 = smul.addr %s347, 2
        %s349 = smul.addr %s348, 4
        %s350 = scalar_lea.vmem %s3, %s349
        %v352 = vld [vmem:[%s303] sm:$0xf]
        %v353 = vld [vmem:[%s303 + $0x4] sm:$0xf]
        %v354 = vld [vmem:[%s310] sm:$0xf]
        %v355 = vld [vmem:[%s310 + $0x4] sm:$0xf]
        %v356 = vld [vmem:[%s317] sm:$0xf]
        %v357 = vld [vmem:[%s317 + $0x4] sm:$0xf]
        %v358 = vlaneseq
        %v359 = vshrl.u32 %v358, 7
        %v360 = vadd.s32 %v359, 8
        %v361 = vlaneseq
        %v362 = vand.u32 %v361, 127
        %vm363 = vcmp.lt.s32.totalorder %v362, 8
        %vm364 = vcmp.le.s32.totalorder %v362, %v359
        %vm365 = vcmp.le.s32.totalorder %v362, %v360
        %vm366 = vmand %vm363, %vm364
        %vm367 = vmand %vm363, %vm365
        %v368 = vsel %vm366, 0.0, -1e+30
        %v369 = vsel %vm367, 0.0, -1e+30
        %vm370 = vcmask 1043712
        %371 = vst.msk [vmem:[%s350] sm:$0xf] %vm370, 0
        %372 = vst.msk [vmem:[%s350 + $0x4] sm:$0xf] %vm370, 0
        %v375 = vunpack.c.l.b16 %v352
        %v376 = vunpack.c.l.b16 %v353
        %v377 = vpack.c.b16 %v376, %v375
        %v380 = vunpack.c.l.b16 %v354
        %v381 = vunpack.c.l.b16 %v355
        %v382 = vpack.c.b16 %v381, %v380
        %vm383 = vcmask 64512
        %v385 = vsel %vm383, %v377, 0
        %v388 = vsel %vm383, %v382, 0
        %390 = vmatprep.subr.bf16.mxu0 0
        %391 = vmatpush1.bf16.xpose.msra.mxu0 %v388
        %392 = vmatprep.subr.bf16.mxu0 0
        %393 = vmatpush1.bf16.xpose.msra.mxu0 0
        %394 = vmatprep.subr.bf16.mxu0 0
        %395 = vmatpush1.bf16.xpose.msra.mxu0 0
        %396 = vmatprep.subr.bf16.mxu0 0
        %397 = vmatpush1.bf16.xpose.msra.mxu0 0
        %398 = vmatprep.subr.bf16.mxu0 0
        %399 = vmatpush1.bf16.xpose.msra.mxu0 0
        %400 = vmatprep.subr.bf16.mxu0 0
        %401 = vmatpush1.bf16.xpose.msra.mxu0 0
        %402 = vmatprep.subr.bf16.mxu0 0
        %403 = vmatpush1.bf16.xpose.msra.mxu0 0
        %404 = vmatprep.subr.bf16.mxu0 0
        %405 = vmatpush1.bf16.xpose.msra.mxu0 0
        %406 = vmatprep.subr.bf16.mxu0 0
        %407 = vmatpush1.bf16.xpose.msra.mxu0 0
        %408 = vmatprep.subr.bf16.mxu0 0
        %409 = vmatpush1.bf16.xpose.msra.mxu0 0
        %410 = vmatprep.subr.bf16.mxu0 0
        %411 = vmatpush1.bf16.xpose.msra.mxu0 0
        %412 = vmatprep.subr.bf16.mxu0 0
        %413 = vmatpush1.bf16.xpose.msra.mxu0 0
        %414 = vmatprep.subr.bf16.mxu0 0
        %415 = vmatpush1.bf16.xpose.msra.mxu0 0
        %416 = vmatprep.subr.bf16.mxu0 0
        %417 = vmatpush1.bf16.xpose.msra.mxu0 0
        %418 = vmatprep.subr.bf16.mxu0 0
        %419 = vmatpush1.bf16.xpose.msra.mxu0 0
        %420 = vmatprep.subr.bf16.mxu0 0
        %421 = vmatpush1.bf16.xpose.msra.mxu0 0
        %422 = vmatprep.mubr.bf16.mxu0 0
        %423 = vmatmul.mubr.bf16.gmra.mrb[0].mxu0 %v385
        %v424 = vpop.f32.mrb[0].mxu0
        %v425 = vadd.f32 0.0, %v424
        %v426 = vpop.f32.mrb[0].mxu0
        %v427 = vpop.f32.mrb[0].mxu0
        %v428 = vadd.f32 0.0, %v427
        %v429 = vpop.f32.mrb[0].mxu0
        %430 = vdwg.mxu0
        %v431 = vmul.f32 %v425, 0.35355338
        %v432 = vmul.f32 %v428, 0.35355338
        %v433 = vadd.f32 %v431, %v368
        %v434 = vadd.f32 %v432, %v369
        %vm435 = vcmask 130048
        %v436 = vsel %vm435, %v433, -inf
        %437 = vmax.xlane.f32.xlu0 %v436
        %v438 = vpop.xlane.xlu0 %437
        %v439 = vsel %vm435, %v434, -inf
        %440 = vmax.xlane.f32.xlu0 %v439
        %v441 = vpop.xlane.xlu0 %440
        %v442 = vsub.f32 %v433, %v438
        %v443 = vsub.f32 %v434, %v441
        %v444 = vmul.f32 %v442, 1.442695
        %v445 = vpow.pop %v444
        %v446 = vmul.f32 %v443, 1.442695
        %v447 = vpow.pop %v446
        %v448 = vsel %vm435, %v445, 0.0
        %449 = vadd.xlane.f32.xlu0 %v448
        %v450 = vpop.xlane.xlu0 %449
        %v451 = vsel %vm435, %v447, 0.0
        %452 = vadd.xlane.f32.xlu0 %v451
        %v453 = vpop.xlane.xlu0 %452
        %v454 = vrcp.pop %v450
        %v455 = vrcp.pop %v453
        %v456 = vmul.f32 %v445, %v454
        %v457 = vmul.f32 %v447, %v455
        %v458 = vpack.c.bf16 %v457, %v456
        %v461 = vunpack.c.l.b16 %v356
        %v462 = vunpack.c.l.b16 %v357
        %v463 = vpack.c.b16 %v462, %v461
        %v466 = vsel %vm435, %v458, 0
        %468 = vmatprep.subr.bf16.mxu0 0
        %469 = vmatpush1.bf16.msra.mxu0 %v463
        %470 = vmatprep.subr.bf16.mxu0 0
        %471 = vmatpush1.bf16.msra.mxu0 0
        %472 = vmatprep.subr.bf16.mxu0 0
        %473 = vmatpush1.bf16.msra.mxu0 0
        %474 = vmatprep.subr.bf16.mxu0 0
        %475 = vmatpush1.bf16.msra.mxu0 0
        %476 = vmatprep.subr.bf16.mxu0 0
        %477 = vmatpush1.bf16.msra.mxu0 0
        %478 = vmatprep.subr.bf16.mxu0 0
        %479 = vmatpush1.bf16.msra.mxu0 0
        %480 = vmatprep.subr.bf16.mxu0 0
        %481 = vmatpush1.bf16.msra.mxu0 0
        %482 = vmatprep.subr.bf16.mxu0 0
        %483 = vmatpush1.bf16.msra.mxu0 0
        %484 = vmatprep.subr.bf16.mxu0 0
        %485 = vmatpush1.bf16.msra.mxu0 0
        %486 = vmatprep.subr.bf16.mxu0 0
        %487 = vmatpush1.bf16.msra.mxu0 0
        %488 = vmatprep.subr.bf16.mxu0 0
        %489 = vmatpush1.bf16.msra.mxu0 0
        %490 = vmatprep.subr.bf16.mxu0 0
        %491 = vmatpush1.bf16.msra.mxu0 0
        %492 = vmatprep.subr.bf16.mxu0 0
        %493 = vmatpush1.bf16.msra.mxu0 0
        %494 = vmatprep.subr.bf16.mxu0 0
        %495 = vmatpush1.bf16.msra.mxu0 0
        %496 = vmatprep.subr.bf16.mxu0 0
        %497 = vmatpush1.bf16.msra.mxu0 0
        %498 = vmatprep.subr.bf16.mxu0 0
        %499 = vmatpush1.bf16.msra.mxu0 0
        %500 = vmatprep.mubr.bf16.mxu0 0
        %501 = vmatmul.mubr.bf16.gmra.mrb[0].mxu0 %v466
        %v502 = vpop.f32.mrb[0].mxu0
        %v503 = vadd.f32 0.0, %v502
        %v504 = vpop.f32.mrb[0].mxu0
        %v505 = vpop.f32.mrb[0].mxu0
        %v506 = vadd.f32 0.0, %v505
        %v507 = vpop.f32.mrb[0].mxu0
        %508 = vdwg.mxu0
        %v509 = vpack.c.bf16 %v506, %v503
        %v511 = vunpack.c.l.b16 %v509
        %v512 = vunpack.c.h.b16 %v509
        %v513 = vpack.c.b16 %v511, %v511
        %v514 = vpack.c.b16 %v512, %v512
        %vm517 = vcmask 60416
        %518 = vst.msk [vmem:[%s350] sm:$0xf] %vm517, %v513
        %519 = vst.msk [vmem:[%s350 + $0x4] sm:$0xf] %vm517, %v514
        %520 = vrot.lane.b32.xlu0 %v377, 120
        %v521 = vpop.permute.xlu0 %520
        %522 = vrot.lane.b32.xlu0 %v382, 120
        %v523 = vpop.permute.xlu0 %522
        %v525 = vsel %vm383, %v521, 0
        %v528 = vsel %vm383, %v523, 0
        %530 = vmatprep.subr.bf16.mxu0 0
        %531 = vmatpush1.bf16.xpose.msra.mxu0 %v528
        %532 = vmatprep.subr.bf16.mxu0 0
        %533 = vmatpush1.bf16.xpose.msra.mxu0 0
        %534 = vmatprep.subr.bf16.mxu0 0
        %535 = vmatpush1.bf16.xpose.msra.mxu0 0
        %536 = vmatprep.subr.bf16.mxu0 0
        %537 = vmatpush1.bf16.xpose.msra.mxu0 0
        %538 = vmatprep.subr.bf16.mxu0 0
        %539 = vmatpush1.bf16.xpose.msra.mxu0 0
        %540 = vmatprep.subr.bf16.mxu0 0
        %541 = vmatpush1.bf16.xpose.msra.mxu0 0
        %542 = vmatprep.subr.bf16.mxu0 0
        %543 = vmatpush1.bf16.xpose.msra.mxu0 0
        %544 = vmatprep.subr.bf16.mxu0 0
        %545 = vmatpush1.bf16.xpose.msra.mxu0 0
        %546 = vmatprep.subr.bf16.mxu0 0
        %547 = vmatpush1.bf16.xpose.msra.mxu0 0
        %548 = vmatprep.subr.bf16.mxu0 0
        %549 = vmatpush1.bf16.xpose.msra.mxu0 0
        %550 = vmatprep.subr.bf16.mxu0 0
        %551 = vmatpush1.bf16.xpose.msra.mxu0 0
        %552 = vmatprep.subr.bf16.mxu0 0
        %553 = vmatpush1.bf16.xpose.msra.mxu0 0
        %554 = vmatprep.subr.bf16.mxu0 0
        %555 = vmatpush1.bf16.xpose.msra.mxu0 0
        %556 = vmatprep.subr.bf16.mxu0 0
        %557 = vmatpush1.bf16.xpose.msra.mxu0 0
        %558 = vmatprep.subr.bf16.mxu0 0
        %559 = vmatpush1.bf16.xpose.msra.mxu0 0
        %560 = vmatprep.subr.bf16.mxu0 0
        %561 = vmatpush1.bf16.xpose.msra.mxu0 0
        %562 = vmatprep.mubr.bf16.mxu0 0
        %563 = vmatmul.mubr.bf16.gmra.mrb[0].mxu0 %v525
        %v564 = vpop.f32.mrb[0].mxu0
        %v565 = vadd.f32 0.0, %v564
        %v566 = vpop.f32.mrb[0].mxu0
        %v567 = vpop.f32.mrb[0].mxu0
        %v568 = vadd.f32 0.0, %v567
        %v569 = vpop.f32.mrb[0].mxu0
        %570 = vdwg.mxu0
        %v571 = vmul.f32 %v565, 0.35355338
        %v572 = vmul.f32 %v568, 0.35355338
        %v573 = vadd.f32 %v571, %v368
        %v574 = vadd.f32 %v572, %v369
        %v575 = vsel %vm435, %v573, -inf
        %576 = vmax.xlane.f32.xlu0 %v575
        %v577 = vpop.xlane.xlu0 %576
        %v578 = vsel %vm435, %v574, -inf
        %579 = vmax.xlane.f32.xlu0 %v578
        %v580 = vpop.xlane.xlu0 %579
        %v581 = vsub.f32 %v573, %v577
        %v582 = vsub.f32 %v574, %v580
        %v583 = vmul.f32 %v581, 1.442695
        %v584 = vpow.pop %v583
        %v585 = vmul.f32 %v582, 1.442695
        %v586 = vpow.pop %v585
        %v587 = vsel %vm435, %v584, 0.0
        %588 = vadd.xlane.f32.xlu0 %v587
        %v589 = vpop.xlane.xlu0 %588
        %v590 = vsel %vm435, %v586, 0.0
        %591 = vadd.xlane.f32.xlu0 %v590
        %v592 = vpop.xlane.xlu0 %591
        %v593 = vrcp.pop %v589
        %v594 = vrcp.pop %v592
        %v595 = vmul.f32 %v584, %v593
        %v596 = vmul.f32 %v586, %v594
        %v597 = vpack.c.bf16 %v596, %v595
        %598 = vrot.lane.b32.xlu0 %v463, 120
        %v599 = vpop.permute.xlu0 %598
        %v602 = vsel %vm435, %v597, 0
        %604 = vmatprep.subr.bf16.mxu0 0
        %605 = vmatpush1.bf16.msra.mxu0 %v599
        %606 = vmatprep.subr.bf16.mxu0 0
        %607 = vmatpush1.bf16.msra.mxu0 0
        %608 = vmatprep.subr.bf16.mxu0 0
        %609 = vmatpush1.bf16.msra.mxu0 0
        %610 = vmatprep.subr.bf16.mxu0 0
        %611 = vmatpush1.bf16.msra.mxu0 0
        %612 = vmatprep.subr.bf16.mxu0 0
        %613 = vmatpush1.bf16.msra.mxu0 0
        %614 = vmatprep.subr.bf16.mxu0 0
        %615 = vmatpush1.bf16.msra.mxu0 0
        %616 = vmatprep.subr.bf16.mxu0 0
        %617 = vmatpush1.bf16.msra.mxu0 0
        %618 = vmatprep.subr.bf16.mxu0 0
        %619 = vmatpush1.bf16.msra.mxu0 0
        %620 = vmatprep.subr.bf16.mxu0 0
        %621 = vmatpush1.bf16.msra.mxu0 0
        %622 = vmatprep.subr.bf16.mxu0 0
        %623 = vmatpush1.bf16.msra.mxu0 0
        %624 = vmatprep.subr.bf16.mxu0 0
        %625 = vmatpush1.bf16.msra.mxu0 0
        %626 = vmatprep.subr.bf16.mxu0 0
        %627 = vmatpush1.bf16.msra.mxu0 0
        %628 = vmatprep.subr.bf16.mxu0 0
        %629 = vmatpush1.bf16.msra.mxu0 0
        %630 = vmatprep.subr.bf16.mxu0 0
        %631 = vmatpush1.bf16.msra.mxu0 0
        %632 = vmatprep.subr.bf16.mxu0 0
        %633 = vmatpush1.bf16.msra.mxu0 0
        %634 = vmatprep.subr.bf16.mxu0 0
        %635 = vmatpush1.bf16.msra.mxu0 0
        %636 = vmatprep.mubr.bf16.mxu0 0
        %637 = vmatmul.mubr.bf16.gmra.mrb[0].mxu0 %v602
        %v638 = vpop.f32.mrb[0].mxu0
        %v639 = vadd.f32 0.0, %v638
        %v640 = vpop.f32.mrb[0].mxu0
        %v641 = vpop.f32.mrb[0].mxu0
        %v642 = vadd.f32 0.0, %v641
        %v643 = vpop.f32.mrb[0].mxu0
        %644 = vdwg.mxu0
        %v645 = vpack.c.bf16 %v642, %v639
        %v647 = vunpack.c.l.b16 %v645
        %v648 = vunpack.c.h.b16 %v645
        %v649 = vpack.c.b16 %v647, %v647
        %v650 = vpack.c.b16 %v648, %v648
        %651 = vrot.lane.b32.xlu0 %v649, 8
        %v652 = vpop.permute.xlu0 %651
        %653 = vrot.lane.b32.xlu0 %v650, 8
        %v654 = vpop.permute.xlu0 %653
        %vm657 = vcmask 126016
        %658 = vst.msk [vmem:[%s350] sm:$0xf] %vm657, %v652
        %659 = vst.msk [vmem:[%s350 + $0x4] sm:$0xf] %vm657, %v654
        %660 = vrot.lane.b32.xlu0 %v377, 112
        %v661 = vpop.permute.xlu0 %660
        %662 = vrot.lane.b32.xlu0 %v382, 112
        %v663 = vpop.permute.xlu0 %662
        %v665 = vsel %vm383, %v661, 0
        %v668 = vsel %vm383, %v663, 0
        %670 = vmatprep.subr.bf16.mxu0 0
        %671 = vmatpush1.bf16.xpose.msra.mxu0 %v668
        %672 = vmatprep.subr.bf16.mxu0 0
        %673 = vmatpush1.bf16.xpose.msra.mxu0 0
        %674 = vmatprep.subr.bf16.mxu0 0
        %675 = vmatpush1.bf16.xpose.msra.mxu0 0
        %676 = vmatprep.subr.bf16.mxu0 0
        %677 = vmatpush1.bf16.xpose.msra.mxu0 0
        %678 = vmatprep.subr.bf16.mxu0 0
        %679 = vmatpush1.bf16.xpose.msra.mxu0 0
        %680 = vmatprep.subr.bf16.mxu0 0
        %681 = vmatpush1.bf16.xpose.msra.mxu0 0
        %682 = vmatprep.subr.bf16.mxu0 0
        %683 = vmatpush1.bf16.xpose.msra.mxu0 0
        %684 = vmatprep.subr.bf16.mxu0 0
        %685 = vmatpush1.bf16.xpose.msra.mxu0 0
        %686 = vmatprep.subr.bf16.mxu0 0
        %687 = vmatpush1.bf16.xpose.msra.mxu0 0
        %688 = vmatprep.subr.bf16.mxu0 0
        %689 = vmatpush1.bf16.xpose.msra.mxu0 0
        %690 = vmatprep.subr.bf16.mxu0 0
        %691 = vmatpush1.bf16.xpose.msra.mxu0 0
        %692 = vmatprep.subr.bf16.mxu0 0
        %693 = vmatpush1.bf16.xpose.msra.mxu0 0
        %694 = vmatprep.subr.bf16.mxu0 0
        %695 = vmatpush1.bf16.xpose.msra.mxu0 0
        %696 = vmatprep.subr.bf16.mxu0 0
        %697 = vmatpush1.bf16.xpose.msra.mxu0 0
        %698 = vmatprep.subr.bf16.mxu0 0
        %699 = vmatpush1.bf16.xpose.msra.mxu0 0
        %700 = vmatprep.subr.bf16.mxu0 0
        %701 = vmatpush1.bf16.xpose.msra.mxu0 0
        %702 = vmatprep.mubr.bf16.mxu0 0
        %703 = vmatmul.mubr.bf16.gmra.mrb[0].mxu0 %v665
        %v704 = vpop.f32.mrb[0].mxu0
        %v705 = vadd.f32 0.0, %v704
        %v706 = vpop.f32.mrb[0].mxu0
        %v707 = vpop.f32.mrb[0].mxu0
        %v708 = vadd.f32 0.0, %v707
        %v709 = vpop.f32.mrb[0].mxu0
        %710 = vdwg.mxu0
        %v711 = vmul.f32 %v705, 0.35355338
        %v712 = vmul.f32 %v708, 0.35355338
        %v713 = vadd.f32 %v711, %v368
        %v714 = vadd.f32 %v712, %v369
        %v715 = vsel %vm435, %v713, -inf
        %716 = vmax.xlane.f32.xlu0 %v715
        %v717 = vpop.xlane.xlu0 %716
        %v718 = vsel %vm435, %v714, -inf
        %719 = vmax.xlane.f32.xlu0 %v718
        %v720 = vpop.xlane.xlu0 %719
        %v721 = vsub.f32 %v713, %v717
        %v722 = vsub.f32 %v714, %v720
        %v723 = vmul.f32 %v721, 1.442695
        %v724 = vpow.pop %v723
        %v725 = vmul.f32 %v722, 1.442695
        %v726 = vpow.pop %v725
        %v727 = vsel %vm435, %v724, 0.0
        %728 = vadd.xlane.f32.xlu0 %v727
        %v729 = vpop.xlane.xlu0 %728
        %v730 = vsel %vm435, %v726, 0.0
        %731 = vadd.xlane.f32.xlu0 %v730
        %v732 = vpop.xlane.xlu0 %731
        %v733 = vrcp.pop %v729
        %v734 = vrcp.pop %v732
        %v735 = vmul.f32 %v724, %v733
        %v736 = vmul.f32 %v726, %v734
        %v737 = vpack.c.bf16 %v736, %v735
        %738 = vrot.lane.b32.xlu0 %v463, 112
        %v739 = vpop.permute.xlu0 %738
        %v742 = vsel %vm435, %v737, 0
        %744 = vmatprep.subr.bf16.mxu0 0
        %745 = vmatpush1.bf16.msra.mxu0 %v739
        %746 = vmatprep.subr.bf16.mxu0 0
        %747 = vmatpush1.bf16.msra.mxu0 0
        %748 = vmatprep.subr.bf16.mxu0 0
        %749 = vmatpush1.bf16.msra.mxu0 0
        %750 = vmatprep.subr.bf16.mxu0 0
        %751 = vmatpush1.bf16.msra.mxu0 0
        %752 = vmatprep.subr.bf16.mxu0 0
        %753 = vmatpush1.bf16.msra.mxu0 0
        %754 = vmatprep.subr.bf16.mxu0 0
        %755 = vmatpush1.bf16.msra.mxu0 0
        %756 = vmatprep.subr.bf16.mxu0 0
        %757 = vmatpush1.bf16.msra.mxu0 0
        %758 = vmatprep.subr.bf16.mxu0 0
        %759 = vmatpush1.bf16.msra.mxu0 0
        %760 = vmatprep.subr.bf16.mxu0 0
        %761 = vmatpush1.bf16.msra.mxu0 0
        %762 = vmatprep.subr.bf16.mxu0 0
        %763 = vmatpush1.bf16.msra.mxu0 0
        %764 = vmatprep.subr.bf16.mxu0 0
        %765 = vmatpush1.bf16.msra.mxu0 0
        %766 = vmatprep.subr.bf16.mxu0 0
        %767 = vmatpush1.bf16.msra.mxu0 0
        %768 = vmatprep.subr.bf16.mxu0 0
        %769 = vmatpush1.bf16.msra.mxu0 0
        %770 = vmatprep.subr.bf16.mxu0 0
        %771 = vmatpush1.bf16.msra.mxu0 0
        %772 = vmatprep.subr.bf16.mxu0 0
        %773 = vmatpush1.bf16.msra.mxu0 0
        %774 = vmatprep.subr.bf16.mxu0 0
        %775 = vmatpush1.bf16.msra.mxu0 0
        %776 = vmatprep.mubr.bf16.mxu0 0
        %777 = vmatmul.mubr.bf16.gmra.mrb[0].mxu0 %v742
        %v778 = vpop.f32.mrb[0].mxu0
        %v779 = vadd.f32 0.0, %v778
        %v780 = vpop.f32.mrb[0].mxu0
        %v781 = vpop.f32.mrb[0].mxu0
        %v782 = vadd.f32 0.0, %v781
        %v783 = vpop.f32.mrb[0].mxu0
        %784 = vdwg.mxu0
        %v785 = vpack.c.bf16 %v782, %v779
        %v787 = vunpack.c.l.b16 %v785
        %v788 = vunpack.c.h.b16 %v785
        %v789 = vpack.c.b16 %v787, %v787
        %v790 = vpack.c.b16 %v788, %v788
        %791 = vrot.lane.b32.xlu0 %v789, 16
        %v792 = vpop.permute.xlu0 %791
        %793 = vrot.lane.b32.xlu0 %v790, 16
        %v794 = vpop.permute.xlu0 %793
        %vm797 = vcmask 191616
        %798 = vst.msk [vmem:[%s350] sm:$0xf] %vm797, %v792
        %799 = vst.msk [vmem:[%s350 + $0x4] sm:$0xf] %vm797, %v794
        %800 = vrot.lane.b32.xlu0 %v377, 104
        %v801 = vpop.permute.xlu0 %800
        %802 = vrot.lane.b32.xlu0 %v382, 104
        %v803 = vpop.permute.xlu0 %802
        %v805 = vsel %vm383, %v801, 0
        %v808 = vsel %vm383, %v803, 0
        %810 = vmatprep.subr.bf16.mxu0 0
        %811 = vmatpush1.bf16.xpose.msra.mxu0 %v808
        %812 = vmatprep.subr.bf16.mxu0 0
        %813 = vmatpush1.bf16.xpose.msra.mxu0 0
        %814 = vmatprep.subr.bf16.mxu0 0
        %815 = vmatpush1.bf16.xpose.msra.mxu0 0
        %816 = vmatprep.subr.bf16.mxu0 0
        %817 = vmatpush1.bf16.xpose.msra.mxu0 0
        %818 = vmatprep.subr.bf16.mxu0 0
        %819 = vmatpush1.bf16.xpose.msra.mxu0 0
        %820 = vmatprep.subr.bf16.mxu0 0
        %821 = vmatpush1.bf16.xpose.msra.mxu0 0
        %822 = vmatprep.subr.bf16.mxu0 0
        %823 = vmatpush1.bf16.xpose.msra.mxu0 0
        %824 = vmatprep.subr.bf16.mxu0 0
        %825 = vmatpush1.bf16.xpose.msra.mxu0 0
        %826 = vmatprep.subr.bf16.mxu0 0
        %827 = vmatpush1.bf16.xpose.msra.mxu0 0
        %828 = vmatprep.subr.bf16.mxu0 0
        %829 = vmatpush1.bf16.xpose.msra.mxu0 0
        %830 = vmatprep.subr.bf16.mxu0 0
        %831 = vmatpush1.bf16.xpose.msra.mxu0 0
        %832 = vmatprep.subr.bf16.mxu0 0
        %833 = vmatpush1.bf16.xpose.msra.mxu0 0
        %834 = vmatprep.subr.bf16.mxu0 0
        %835 = vmatpush1.bf16.xpose.msra.mxu0 0
        %836 = vmatprep.subr.bf16.mxu0 0
        %837 = vmatpush1.bf16.xpose.msra.mxu0 0
        %838 = vmatprep.subr.bf16.mxu0 0
        %839 = vmatpush1.bf16.xpose.msra.mxu0 0
        %840 = vmatprep.subr.bf16.mxu0 0
        %841 = vmatpush1.bf16.xpose.msra.mxu0 0
        %842 = vmatprep.mubr.bf16.mxu0 0
        %843 = vmatmul.mubr.bf16.gmra.mrb[0].mxu0 %v805
        %v844 = vpop.f32.mrb[0].mxu0
        %v845 = vadd.f32 0.0, %v844
        %v846 = vpop.f32.mrb[0].mxu0
        %v847 = vpop.f32.mrb[0].mxu0
        %v848 = vadd.f32 0.0, %v847
        %v849 = vpop.f32.mrb[0].mxu0
        %850 = vdwg.mxu0
        %v851 = vmul.f32 %v845, 0.35355338
        %v852 = vmul.f32 %v848, 0.35355338
        %v853 = vadd.f32 %v851, %v368
        %v854 = vadd.f32 %v852, %v369
        %v855 = vsel %vm435, %v853, -inf
        %856 = vmax.xlane.f32.xlu0 %v855
        %v857 = vpop.xlane.xlu0 %856
        %v858 = vsel %vm435, %v854, -inf
        %859 = vmax.xlane.f32.xlu0 %v858
        %v860 = vpop.xlane.xlu0 %859
        %v861 = vsub.f32 %v853, %v857
        %v862 = vsub.f32 %v854, %v860
        %v863 = vmul.f32 %v861, 1.442695
        %v864 = vpow.pop %v863
        %v865 = vmul.f32 %v862, 1.442695
        %v866 = vpow.pop %v865
        %v867 = vsel %vm435, %v864, 0.0
        %868 = vadd.xlane.f32.xlu0 %v867
        %v869 = vpop.xlane.xlu0 %868
        %v870 = vsel %vm435, %v866, 0.0
        %871 = vadd.xlane.f32.xlu0 %v870
        %v872 = vpop.xlane.xlu0 %871
        %v873 = vrcp.pop %v869
        %v874 = vrcp.pop %v872
        %v875 = vmul.f32 %v864, %v873
        %v876 = vmul.f32 %v866, %v874
        %v877 = vpack.c.bf16 %v876, %v875
        %878 = vrot.lane.b32.xlu0 %v463, 104
        %v879 = vpop.permute.xlu0 %878
        %v882 = vsel %vm435, %v877, 0
        %884 = vmatprep.subr.bf16.mxu0 0
        %885 = vmatpush1.bf16.msra.mxu0 %v879
        %886 = vmatprep.subr.bf16.mxu0 0
        %887 = vmatpush1.bf16.msra.mxu0 0
        %888 = vmatprep.subr.bf16.mxu0 0
        %889 = vmatpush1.bf16.msra.mxu0 0
        %890 = vmatprep.subr.bf16.mxu0 0
        %891 = vmatpush1.bf16.msra.mxu0 0
        %892 = vmatprep.subr.bf16.mxu0 0
        %893 = vmatpush1.bf16.msra.mxu0 0
        %894 = vmatprep.subr.bf16.mxu0 0
        %895 = vmatpush1.bf16.msra.mxu0 0
        %896 = vmatprep.subr.bf16.mxu0 0
        %897 = vmatpush1.bf16.msra.mxu0 0
        %898 = vmatprep.subr.bf16.mxu0 0
        %899 = vmatpush1.bf16.msra.mxu0 0
        %900 = vmatprep.subr.bf16.mxu0 0
        %901 = vmatpush1.bf16.msra.mxu0 0
        %902 = vmatprep.subr.bf16.mxu0 0
        %903 = vmatpush1.bf16.msra.mxu0 0
        %904 = vmatprep.subr.bf16.mxu0 0
        %905 = vmatpush1.bf16.msra.mxu0 0
        %906 = vmatprep.subr.bf16.mxu0 0
        %907 = vmatpush1.bf16.msra.mxu0 0
        %908 = vmatprep.subr.bf16.mxu0 0
        %909 = vmatpush1.bf16.msra.mxu0 0
        %910 = vmatprep.subr.bf16.mxu0 0
        %911 = vmatpush1.bf16.msra.mxu0 0
        %912 = vmatprep.subr.bf16.mxu0 0
        %913 = vmatpush1.bf16.msra.mxu0 0
        %914 = vmatprep.subr.bf16.mxu0 0
        %915 = vmatpush1.bf16.msra.mxu0 0
        %916 = vmatprep.mubr.bf16.mxu0 0
        %917 = vmatmul.mubr.bf16.gmra.mrb[0].mxu0 %v882
        %v918 = vpop.f32.mrb[0].mxu0
        %v919 = vadd.f32 0.0, %v918
        %v920 = vpop.f32.mrb[0].mxu0
        %v921 = vpop.f32.mrb[0].mxu0
        %v922 = vadd.f32 0.0, %v921
        %v923 = vpop.f32.mrb[0].mxu0
        %924 = vdwg.mxu0
        %v925 = vpack.c.bf16 %v922, %v919
        %v927 = vunpack.c.l.b16 %v925
        %v928 = vunpack.c.h.b16 %v925
        %v929 = vpack.c.b16 %v927, %v927
        %v930 = vpack.c.b16 %v928, %v928
        %931 = vrot.lane.b32.xlu0 %v929, 24
        %v932 = vpop.permute.xlu0 %931
        %933 = vrot.lane.b32.xlu0 %v930, 24
        %v934 = vpop.permute.xlu0 %933
        %vm937 = vcmask 257216
        %938 = vst.msk [vmem:[%s350] sm:$0xf] %vm937, %v932
        %939 = vst.msk [vmem:[%s350 + $0x4] sm:$0xf] %vm937, %v934
        %p940 = scmp.lt.s32.totalorder %s14, 1
        %s941 = scalar_select %p940, %s14, 1
        %s942 = smul.addr %s941, 2
        %s943 = smul.addr %s942, 4
        %s944 = scalar_lea.vmem %s3, %s943
        // Predicated region
        $region156: #{gcs_transformer_forward.43} parent=142 // pred_check
          %p945 = pneg %p110
        $region157: #{gcs_transformer_forward.43} parent=142 // pred_check_branch
          %947 = sbr.rel (%p945) target = $region159
        $region158: #{gcs_transformer_forward.43} parent=142 // pred_region
          _
        $region159: #{gcs_transformer_forward.43} parent=142 // pred_fallthru
          _
      $region143: #{gcs_transformer_forward.43} parent=5 // pred_fallthru
        _
      %p948 = scmp.le.s32.totalorder 2, %s9
      // Predicated region
      $region160: #{gcs_transformer_forward.43} parent=5 // pred_check
        %p949 = pneg %p948
      $region161: #{gcs_transformer_forward.43} parent=5 // pred_check_branch
        %951 = sbr.rel (%p949) target = $region163
      $region162: #{gcs_transformer_forward.43} parent=5 // pred_region
        %s952 = ssub.s32 %s9, 2
        // Predicated region
        $region164: #{gcs_transformer_forward.43} parent=162 // pred_check
          %p953 = pneg %p116
        $region165: #{gcs_transformer_forward.43} parent=162 // pred_check_branch
          %955 = sbr.rel (%p953) target = $region167
        $region166: #{gcs_transformer_forward.43} parent=162 // pred_region
          %p956 = scmp.lt.s32.totalorder %s15, 1
          %s957 = scalar_select %p956, %s15, 1
          %s958 = smul.addr %s957, 2
          %s959 = smul.addr %s958, 4
          %s960 = scalar_lea.vmem %s3, %s959
        $region167: #{gcs_transformer_forward.43} parent=162 // pred_fallthru
          _
      $region163: #{gcs_transformer_forward.43} parent=5 // pred_fallthru
        _
    $region6: #{gcs_transformer_forward.43} parent=1 // loop_footer
      %s13 = sadd.s32 1, %s9
    $region7: #{gcs_transformer_forward.43} parent=1 // loop_footer_branch
      %8 = sbr.rel target = $region3
    $region8: #{gcs_transformer_forward.43} parent=1 // loop_exit
      _

// kernel: gcs_transformer_forward.47
$region0: #{gcs_transformer_forward.47}
  #allocation0 [shape = 'u32[]', space=smem, size = 0x4, offset = 0x4, fixed_abs, tag = 'smem constant byte address 0x4 - core index']
  #allocation1 [shape = 'u32[144,128]{1,0:T(1,128)}', space=vmem, size = 0x12000, scoped, tag = 'internal scratch']
  %s0 = inlined_call_operand.vmem [shape: bf16[2,16,128], index: 0, kind: input, shape index: {}]
  %s1 = inlined_call_operand.vmem [shape: bf16[2,16,256], index: 1, kind: input, shape index: {}, may-alias: {1,2}]
  %s2 = inlined_call_operand.vmem [shape: bf16[2,16,256], index: 2, kind: input, shape index: {}, may-alias: {1,2}]
  %s3 = inlined_call_operand.vmem [shape: bf16[2,16,128], index: 3, kind: output, shape index: {}]
  %s4 = sld [smem:[#allocation0]]
  $region127: #{gcs_transformer_forward.47} parent=0
    _
  %s6 = ssub.s32 1, %s4
  %s7 = scalar_select 0, %s6, %s4
  $region1: #{gcs_transformer_forward.47} parent=0
    #allocation2 [shape = 'u8[8192]{0}', space=vmem, size = 0x2000, scoped, tag = 'input window, operand 1']
    #allocation3 [shape = 'u8[8192]{0}', space=vmem, size = 0x2000, scoped, tag = 'input window, operand 2']
    loop: start=0, step=1, limit=4
    $region2: #{gcs_transformer_forward.47} parent=1 // loop_pre_header
      _
    $region3: #{gcs_transformer_forward.47} parent=1 // loop_header
      %s9 = sphi 0, %s13
      %p10 = scmp.ge.s32.totalorder %s9, 4
      %s19 = sphi 0, %s21
      %s22 = sphi 0, %s19
      %s23 = sphi 0, %s22
      %s39 = sphi 0, %s23
      %s45 = sphi 0, %s47
      %s48 = sphi 0, %s45
      %s49 = sphi 0, %s48
      %s65 = sphi 0, %s49
      %s71 = sphi 0, %s73
      %s74 = sphi 0, %s71
      %s75 = sphi 0, %s74
      %s91 = sphi 0, %s75
      %s97 = sphi 0, %s99
      %s100 = sphi 0, %s97
      %s101 = sphi 0, %s100
      %s117 = sphi 0, %s101
    $region4: #{gcs_transformer_forward.47} parent=1 // loop_header_branch
      %12 = sbr.rel (%p10) target = $region8
    $region5: #{gcs_transformer_forward.47} parent=1 // loop_body
      %s14 = ssub.s32 %s9, 1
      %s15 = ssub.s32 %s9, 2
      %s16 = sadd.s32 %s9, 1
      %s17 = ssub.s32 %s9, %s16
      %p18 = scmp.eq.s32.totalorder %s17, 0
      %s20 = sadd.s32 %s19, 1
      %s21 = scalar_select %p18, %s19, %s20
      %p24 = pneg %p18
      %p25 = scmp.eq.s32.totalorder %s9, 1
      %p26 = por %p24, %p25
      %p27 = scmp.ne.s32.totalorder %s19, %s22
      %p28 = scmp.eq.s32.totalorder %s9, 0
      %p29 = por %p27, %p28
      %p30 = scmp.ne.s32.totalorder %s19, %s22
      %p31 = scmp.eq.s32.totalorder %s14, 1
      %p32 = por %p30, %p31
      %p33 = scmp.ne.s32.totalorder %s22, %s23
      %p34 = scmp.eq.s32.totalorder %s14, 0
      %p35 = por %p33, %p34
      %p36 = scmp.ne.s32.totalorder %s22, %s23
      %p37 = scmp.eq.s32.totalorder %s15, 1
      %p38 = por %p36, %p37
      %p40 = scmp.ne.s32.totalorder %s23, %s39
      %p41 = scmp.eq.s32.totalorder %s15, 0
      %p42 = por %p40, %p41
      %s43 = ssub.s32 %s9, %s16
      %p44 = scmp.eq.s32.totalorder %s43, 0
      %s46 = sadd.s32 %s45, 1
      %s47 = scalar_select %p44, %s45, %s46
      %p50 = pneg %p44
      %p51 = scmp.eq.s32.totalorder %s9, 1
      %p52 = por %p50, %p51
      %p53 = scmp.ne.s32.totalorder %s45, %s48
      %p54 = scmp.eq.s32.totalorder %s9, 0
      %p55 = por %p53, %p54
      %p56 = scmp.ne.s32.totalorder %s45, %s48
      %p57 = scmp.eq.s32.totalorder %s14, 1
      %p58 = por %p56, %p57
      %p59 = scmp.ne.s32.totalorder %s48, %s49
      %p60 = scmp.eq.s32.totalorder %s14, 0
      %p61 = por %p59, %p60
      %p62 = scmp.ne.s32.totalorder %s48, %s49
      %p63 = scmp.eq.s32.totalorder %s15, 1
      %p64 = por %p62, %p63
      %p66 = scmp.ne.s32.totalorder %s49, %s65
      %p67 = scmp.eq.s32.totalorder %s15, 0
      %p68 = por %p66, %p67
      %s69 = ssub.s32 %s9, %s16
      %p70 = scmp.eq.s32.totalorder %s69, 0
      %s72 = sadd.s32 %s71, 1
      %s73 = scalar_select %p70, %s71, %s72
      %p76 = pneg %p70
      %p77 = scmp.eq.s32.totalorder %s9, 1
      %p78 = por %p76, %p77
      %p79 = scmp.ne.s32.totalorder %s71, %s74
      %p80 = scmp.eq.s32.totalorder %s9, 0
      %p81 = por %p79, %p80
      %p82 = scmp.ne.s32.totalorder %s71, %s74
      %p83 = scmp.eq.s32.totalorder %s14, 1
      %p84 = por %p82, %p83
      %p85 = scmp.ne.s32.totalorder %s74, %s75
      %p86 = scmp.eq.s32.totalorder %s14, 0
      %p87 = por %p85, %p86
      %p88 = scmp.ne.s32.totalorder %s74, %s75
      %p89 = scmp.eq.s32.totalorder %s15, 1
      %p90 = por %p88, %p89
      %p92 = scmp.ne.s32.totalorder %s75, %s91
      %p93 = scmp.eq.s32.totalorder %s15, 0
      %p94 = por %p92, %p93
      %s95 = ssub.s32 %s9, %s16
      %p96 = scmp.eq.s32.totalorder %s95, 0
      %s98 = sadd.s32 %s97, 1
      %s99 = scalar_select %p96, %s97, %s98
      %p102 = pneg %p96
      %p103 = scmp.eq.s32.totalorder %s9, 1
      %p104 = por %p102, %p103
      %p105 = scmp.ne.s32.totalorder %s97, %s100
      %p106 = scmp.eq.s32.totalorder %s9, 0
      %p107 = por %p105, %p106
      %p108 = scmp.ne.s32.totalorder %s97, %s100
      %p109 = scmp.eq.s32.totalorder %s14, 1
      %p110 = por %p108, %p109
      %p111 = scmp.ne.s32.totalorder %s100, %s101
      %p112 = scmp.eq.s32.totalorder %s14, 0
      %p113 = por %p111, %p112
      %p114 = scmp.ne.s32.totalorder %s100, %s101
      %p115 = scmp.eq.s32.totalorder %s15, 1
      %p116 = por %p114, %p115
      %p118 = scmp.ne.s32.totalorder %s101, %s117
      %p119 = scmp.eq.s32.totalorder %s15, 0
      %p120 = por %p118, %p119
      %p121 = scmp.le.s32.totalorder 1, %s9
      %p122 = scmp.lt.s32.totalorder %s9, 3
      %p123 = pnand %p121, %p122
      %p124 = pneg %p123
      // Predicated region
      $region9: #{gcs_transformer_forward.47} parent=5 // pred_check
        _
      $region10: #{gcs_transformer_forward.47} parent=5 // pred_check_branch
        %126 = sbr.rel (%p123) target = $region12
      $region11: #{gcs_transformer_forward.47} parent=5 // pred_region
        %s127 = ssub.s32 %s9, 1
      $region12: #{gcs_transformer_forward.47} parent=5 // pred_fallthru
        _
      %p128 = scmp.lt.s32.totalorder %s9, 2
      // Predicated region
      $region13: #{gcs_transformer_forward.47} parent=5 // pred_check
        %p129 = pneg %p128
      $region14: #{gcs_transformer_forward.47} parent=5 // pred_check_branch
        %131 = sbr.rel (%p129) target = $region16
      $region15: #{gcs_transformer_forward.47} parent=5 // pred_region
        // Predicated region
        $region17: #{gcs_transformer_forward.47} parent=15 // pred_check
          %p132 = pneg %p29
        $region18: #{gcs_transformer_forward.47} parent=15 // pred_check_branch
          %134 = sbr.rel (%p132) target = $region20
        $region19: #{gcs_transformer_forward.47} parent=15 // pred_region
          %p135 = scmp.lt.s32.totalorder %s9, 1
          %s136 = scalar_select %p135, %s9, 1
          %s137 = smul.addr %s136, 2
          %s138 = smul.addr %s137, 4
          %s139 = scalar_lea.vmem %s0, %s138
        $region20: #{gcs_transformer_forward.47} parent=15 // pred_fallthru
          _
        // Predicated region
        $region21: #{gcs_transformer_forward.47} parent=15 // pred_check
          %p140 = pneg %p55
        $region22: #{gcs_transformer_forward.47} parent=15 // pred_check_branch
          %142 = sbr.rel (%p140) target = $region24
        $region23: #{gcs_transformer_forward.47} parent=15 // pred_region
          %s143 = sand.u32 %s45, 1
          %s144 = sand.u32 %s45, 1
          %s145 = smul.addr %s144, 8
          %s146 = scalar_lea.vmem [#allocation2], %s145
          %s147 = smul.addr %s9, 4
          %s148 = smul.addr %s147, 4
          %s149 = scalar_lea.vmem %s1, %s148
          // Predicated region
          $region25: #{gcs_transformer_forward.47} parent=23 // pred_check
            _
          $region26: #{gcs_transformer_forward.47} parent=23 // pred_check_branch
            %151 = sbr.rel (0) target = $region28
          $region27: #{gcs_transformer_forward.47} parent=23 // pred_region
            // Predicated region
            $region29: #{gcs_transformer_forward.47} parent=27 // pred_check
              _
            $region30: #{gcs_transformer_forward.47} parent=27 // pred_check_branch
              %153 = sbr.rel target = $region32
            $region31: #{gcs_transformer_forward.47} parent=27 // pred_region
              // Predicated region
              $region44: #{gcs_transformer_forward.47} parent=31 // pred_check
                _
              $region45: #{gcs_transformer_forward.47} parent=31 // pred_check_branch
                %170 = sbr.rel (0) target = $region47
              $region46: #{gcs_transformer_forward.47} parent=31 // pred_region
                loop: start=0, step=1, limit=1
                $region48: #{gcs_transformer_forward.47} parent=46 // loop_pre_header
                  _
                $region49: #{gcs_transformer_forward.47} parent=46 // loop_header
                  %s172 = sphi 0, %s176
                  %p173 = scmp.ge.s32.totalorder %s172, 1
                  %s177 = sphi %s149, %s149
                  %s178 = sphi %s146, %s146
                $region50: #{gcs_transformer_forward.47} parent=46 // loop_header_branch
                  %175 = sbr.rel (%p173) target = $region54
                $region51: #{gcs_transformer_forward.47} parent=46 // loop_body
                  _
                $region52: #{gcs_transformer_forward.47} parent=46 // loop_footer
                  %s176 = sadd.s32 1, %s172
                $region53: #{gcs_transformer_forward.47} parent=46 // loop_footer_branch
                  %171 = sbr.rel target = $region49
                $region54: #{gcs_transformer_forward.47} parent=46 // loop_exit
                  _
                loop: start=0, step=1, limit=1
                $region55: #{gcs_transformer_forward.47} parent=46 // loop_pre_header
                  _
                $region56: #{gcs_transformer_forward.47} parent=46 // loop_header
                  %s181 = sphi 0, %s185
                  %p182 = scmp.ge.s32.totalorder %s181, 1
                  %s186 = sphi %s149, %s149
                  %s187 = sphi %s146, %s146
                $region57: #{gcs_transformer_forward.47} parent=46 // loop_header_branch
                  %184 = sbr.rel (%p182) target = $region61
                $region58: #{gcs_transformer_forward.47} parent=46 // loop_body
                  %v188 = vld [vmem:[%s186] sm:$0xf]
                  %189 = vst [vmem:[%s187] sm:$0xf] %v188
                  %v190 = vld [vmem:[%s186 + $0x8] sm:$0xf]
                  %191 = vst [vmem:[%s187 + $0x4] sm:$0xf] %v190
                $region59: #{gcs_transformer_forward.47} parent=46 // loop_footer
                  %s185 = sadd.s32 1, %s181
                $region60: #{gcs_transformer_forward.47} parent=46 // loop_footer_branch
                  %180 = sbr.rel target = $region56
                $region61: #{gcs_transformer_forward.47} parent=46 // loop_exit
                  _
              $region47: #{gcs_transformer_forward.47} parent=31 // pred_fallthru
                _
            $region32: #{gcs_transformer_forward.47} parent=27 // pred_fallthru
              _
            // Predicated region
            $region33: #{gcs_transformer_forward.47} parent=27 // pred_check
              _
            $region34: #{gcs_transformer_forward.47} parent=27 // pred_check_branch
              %155 = sbr.rel (0) target = $region36
            $region35: #{gcs_transformer_forward.47} parent=27 // pred_region
              loop: start=0, step=1, limit=1
              $region37: #{gcs_transformer_forward.47} parent=35 // loop_pre_header
                _
              $region38: #{gcs_transformer_forward.47} parent=35 // loop_header
                %s158 = sphi 0, %s162
                %p159 = scmp.ge.s32.totalorder %s158, 1
                %s163 = sphi %s149, %s149
                %s164 = sphi %s146, %s146
              $region39: #{gcs_transformer_forward.47} parent=35 // loop_header_branch
                %161 = sbr.rel (%p159) target = $region43
              $region40: #{gcs_transformer_forward.47} parent=35 // loop_body
                %v165 = vld [vmem:[%s163] sm:$0xf]
                %166 = vst [vmem:[%s164] sm:$0xf] %v165
                %v167 = vld [vmem:[%s163 + $0x8] sm:$0xf]
                %168 = vst [vmem:[%s164 + $0x4] sm:$0xf] %v167
              $region41: #{gcs_transformer_forward.47} parent=35 // loop_footer
                %s162 = sadd.s32 1, %s158
              $region42: #{gcs_transformer_forward.47} parent=35 // loop_footer_branch
                %157 = sbr.rel target = $region38
              $region43: #{gcs_transformer_forward.47} parent=35 // loop_exit
                _
            $region36: #{gcs_transformer_forward.47} parent=27 // pred_fallthru
              _
          $region28: #{gcs_transformer_forward.47} parent=23 // pred_fallthru
            _
          %192 = vnop
        $region24: #{gcs_transformer_forward.47} parent=15 // pred_fallthru
          _
        // Predicated region
        $region62: #{gcs_transformer_forward.47} parent=15 // pred_check
          %p193 = pneg %p81
        $region63: #{gcs_transformer_forward.47} parent=15 // pred_check_branch
          %195 = sbr.rel (%p193) target = $region65
        $region64: #{gcs_transformer_forward.47} parent=15 // pred_region
          %s196 = sand.u32 %s71, 1
          %s197 = sand.u32 %s71, 1
          %s198 = smul.addr %s197, 8
          %s199 = scalar_lea.vmem [#allocation3], %s198
          %s200 = smul.addr %s9, 4
          %s201 = sadd.s32 1, %s200
          %s202 = smul.addr %s201, 4
          %s203 = scalar_lea.vmem %s2, %s202
          // Predicated region
          $region66: #{gcs_transformer_forward.47} parent=64 // pred_check
            _
          $region67: #{gcs_transformer_forward.47} parent=64 // pred_check_branch
            %205 = sbr.rel (0) target = $region69
          $region68: #{gcs_transformer_forward.47} parent=64 // pred_region
            // Predicated region
            $region70: #{gcs_transformer_forward.47} parent=68 // pred_check
              _
            $region71: #{gcs_transformer_forward.47} parent=68 // pred_check_branch
              %207 = sbr.rel target = $region73
            $region72: #{gcs_transformer_forward.47} parent=68 // pred_region
              // Predicated region
              $region85: #{gcs_transformer_forward.47} parent=72 // pred_check
                _
              $region86: #{gcs_transformer_forward.47} parent=72 // pred_check_branch
                %224 = sbr.rel (0) target = $region88
              $region87: #{gcs_transformer_forward.47} parent=72 // pred_region
                loop: start=0, step=1, limit=1
                $region89: #{gcs_transformer_forward.47} parent=87 // loop_pre_header
                  _
                $region90: #{gcs_transformer_forward.47} parent=87 // loop_header
                  %s226 = sphi 0, %s230
                  %p227 = scmp.ge.s32.totalorder %s226, 1
                  %s231 = sphi %s203, %s203
                  %s232 = sphi %s199, %s199
                $region91: #{gcs_transformer_forward.47} parent=87 // loop_header_branch
                  %229 = sbr.rel (%p227) target = $region95
                $region92: #{gcs_transformer_forward.47} parent=87 // loop_body
                  _
                $region93: #{gcs_transformer_forward.47} parent=87 // loop_footer
                  %s230 = sadd.s32 1, %s226
                $region94: #{gcs_transformer_forward.47} parent=87 // loop_footer_branch
                  %225 = sbr.rel target = $region90
                $region95: #{gcs_transformer_forward.47} parent=87 // loop_exit
                  _
                loop: start=0, step=1, limit=1
                $region96: #{gcs_transformer_forward.47} parent=87 // loop_pre_header
                  _
                $region97: #{gcs_transformer_forward.47} parent=87 // loop_header
                  %s235 = sphi 0, %s239
                  %p236 = scmp.ge.s32.totalorder %s235, 1
                  %s240 = sphi %s203, %s203
                  %s241 = sphi %s199, %s199
                $region98: #{gcs_transformer_forward.47} parent=87 // loop_header_branch
                  %238 = sbr.rel (%p236) target = $region102
                $region99: #{gcs_transformer_forward.47} parent=87 // loop_body
                  %v242 = vld [vmem:[%s240] sm:$0xf]
                  %243 = vst [vmem:[%s241] sm:$0xf] %v242
                  %v244 = vld [vmem:[%s240 + $0x8] sm:$0xf]
                  %245 = vst [vmem:[%s241 + $0x4] sm:$0xf] %v244
                $region100: #{gcs_transformer_forward.47} parent=87 // loop_footer
                  %s239 = sadd.s32 1, %s235
                $region101: #{gcs_transformer_forward.47} parent=87 // loop_footer_branch
                  %234 = sbr.rel target = $region97
                $region102: #{gcs_transformer_forward.47} parent=87 // loop_exit
                  _
              $region88: #{gcs_transformer_forward.47} parent=72 // pred_fallthru
                _
            $region73: #{gcs_transformer_forward.47} parent=68 // pred_fallthru
              _
            // Predicated region
            $region74: #{gcs_transformer_forward.47} parent=68 // pred_check
              _
            $region75: #{gcs_transformer_forward.47} parent=68 // pred_check_branch
              %209 = sbr.rel (0) target = $region77
            $region76: #{gcs_transformer_forward.47} parent=68 // pred_region
              loop: start=0, step=1, limit=1
              $region78: #{gcs_transformer_forward.47} parent=76 // loop_pre_header
                _
              $region79: #{gcs_transformer_forward.47} parent=76 // loop_header
                %s212 = sphi 0, %s216
                %p213 = scmp.ge.s32.totalorder %s212, 1
                %s217 = sphi %s203, %s203
                %s218 = sphi %s199, %s199
              $region80: #{gcs_transformer_forward.47} parent=76 // loop_header_branch
                %215 = sbr.rel (%p213) target = $region84
              $region81: #{gcs_transformer_forward.47} parent=76 // loop_body
                %v219 = vld [vmem:[%s217] sm:$0xf]
                %220 = vst [vmem:[%s218] sm:$0xf] %v219
                %v221 = vld [vmem:[%s217 + $0x8] sm:$0xf]
                %222 = vst [vmem:[%s218 + $0x4] sm:$0xf] %v221
              $region82: #{gcs_transformer_forward.47} parent=76 // loop_footer
                %s216 = sadd.s32 1, %s212
              $region83: #{gcs_transformer_forward.47} parent=76 // loop_footer_branch
                %211 = sbr.rel target = $region79
              $region84: #{gcs_transformer_forward.47} parent=76 // loop_exit
                _
            $region77: #{gcs_transformer_forward.47} parent=68 // pred_fallthru
              _
          $region69: #{gcs_transformer_forward.47} parent=64 // pred_fallthru
            _
          %246 = vnop
        $region65: #{gcs_transformer_forward.47} parent=15 // pred_fallthru
          _
      $region16: #{gcs_transformer_forward.47} parent=5 // pred_fallthru
        _
      %p247 = scmp.le.s32.totalorder 1, %s9
      %p248 = scmp.lt.s32.totalorder %s9, 3
      %p249 = pnand %p247, %p248
      %p250 = pneg %p249
      // Predicated region
      $region103: #{gcs_transformer_forward.47} parent=5 // pred_check
        _
      $region104: #{gcs_transformer_forward.47} parent=5 // pred_check_branch
        %252 = sbr.rel (%p249) target = $region106
      $region105: #{gcs_transformer_forward.47} parent=5 // pred_region
        %s253 = ssub.s32 %s9, 1
        %s254 = sand.u32 %s48, 1
        %s255 = sand.u32 %s48, 1
        %s256 = smul.addr %s255, 8
        %s257 = scalar_lea.vmem [#allocation2], %s256
        // Predicated region
        $region107: #{gcs_transformer_forward.47} parent=105 // pred_check
          %p258 = pneg %p61
        $region108: #{gcs_transformer_forward.47} parent=105 // pred_check_branch
          %260 = sbr.rel (%p258) target = $region110
        $region109: #{gcs_transformer_forward.47} parent=105 // pred_region
          _
        $region110: #{gcs_transformer_forward.47} parent=105 // pred_fallthru
          _
        %s261 = sand.u32 %s74, 1
        %s262 = sand.u32 %s74, 1
        %s263 = smul.addr %s262, 8
        %s264 = scalar_lea.vmem [#allocation3], %s263
        // Predicated region
        $region111: #{gcs_transformer_forward.47} parent=105 // pred_check
          %p265 = pneg %p87
        $region112: #{gcs_transformer_forward.47} parent=105 // pred_check_branch
          %267 = sbr.rel (%p265) target = $region114
        $region113: #{gcs_transformer_forward.47} parent=105 // pred_region
          _
        $region114: #{gcs_transformer_forward.47} parent=105 // pred_fallthru
          _
        %p268 = scmp.lt.s32.totalorder %s14, 1
        %s269 = scalar_select %p268, %s14, 1
        %s270 = smul.addr %s269, 2
        %s271 = smul.addr %s270, 4
        %s272 = scalar_lea.vmem %s0, %s271
        %p273 = pneg %p35
        %p274 = pneg %p32
        %s275 = sand.u32 %s48, 1
        %s276 = sand.u32 %s48, 1
        %s277 = smul.addr %s276, 8
        %s278 = scalar_lea.vmem [#allocation2], %s277
        %p279 = pneg %p61
        %p280 = pneg %p58
        %s281 = sand.u32 %s74, 1
        %s282 = sand.u32 %s74, 1
        %s283 = smul.addr %s282, 8
        %s284 = scalar_lea.vmem [#allocation3], %s283
        %p285 = pneg %p87
        %p286 = pneg %p84
        %p287 = pneg %p113
        %p288 = pneg %p110
        %p289 = scmp.lt.s32.totalorder %s14, 1
        %s290 = scalar_select %p289, %s14, 1
        %s291 = smul.addr %s290, 2
        %s292 = smul.addr %s291, 4
        %s293 = scalar_lea.vmem %s3, %s292
        %p294 = scmp.lt.s32.totalorder %s14, 1
        %s295 = scalar_select %p294, %s14, 1
        %s296 = smul.addr %s295, 2
        %s297 = smul.addr %s296, 4
        %s298 = scalar_lea.vmem %s0, %s297
        %p299 = scmp.lt.s32.totalorder %s14, 1
        %s300 = scalar_select %p299, %s14, 1
        %s301 = smul.addr %s300, 2
        %s302 = smul.addr %s301, 4
        %s303 = scalar_lea.vmem %s3, %s302
        %v305 = vld [vmem:[%s298] sm:$0xf]
        %v306 = vld [vmem:[%s298 + $0x4] sm:$0xf]
        %v307 = vld [vmem:[%s257] sm:$0xf]
        %v308 = vld [vmem:[%s257 + $0x4] sm:$0xf]
        %v309 = vld [vmem:[%s264] sm:$0xf]
        %v310 = vld [vmem:[%s264 + $0x4] sm:$0xf]
        %v311 = vlaneseq
        %v312 = vand.u32 %v311, 127
        %vm313 = vcmp.lt.s32.totalorder %v312, 6
        %v314 = vsel %vm313, 0.0, -1e+30
        %vm315 = vcmask 1043712
        %316 = vst.msk [vmem:[%s303] sm:$0xf] %vm315, 0
        %317 = vst.msk [vmem:[%s303 + $0x4] sm:$0xf] %vm315, 0
        %v320 = vunpack.c.l.b16 %v305
        %v321 = vunpack.c.l.b16 %v306
        %v322 = vpack.c.b16 %v321, %v320
        %v325 = vunpack.c.l.b16 %v307
        %v326 = vunpack.c.l.b16 %v308
        %v327 = vpack.c.b16 %v326, %v325
        %vm328 = vcmask 64512
        %v330 = vsel %vm328, %v322, 0
        %v333 = vsel %vm328, %v327, 0
        %335 = vmatprep.subr.bf16.mxu0 0
        %336 = vmatpush1.bf16.xpose.msra.mxu0 %v333
        %337 = vmatprep.subr.bf16.mxu0 0
        %338 = vmatpush1.bf16.xpose.msra.mxu0 0
        %339 = vmatprep.subr.bf16.mxu0 0
        %340 = vmatpush1.bf16.xpose.msra.mxu0 0
        %341 = vmatprep.subr.bf16.mxu0 0
        %342 = vmatpush1.bf16.xpose.msra.mxu0 0
        %343 = vmatprep.subr.bf16.mxu0 0
        %344 = vmatpush1.bf16.xpose.msra.mxu0 0
        %345 = vmatprep.subr.bf16.mxu0 0
        %346 = vmatpush1.bf16.xpose.msra.mxu0 0
        %347 = vmatprep.subr.bf16.mxu0 0
        %348 = vmatpush1.bf16.xpose.msra.mxu0 0
        %349 = vmatprep.subr.bf16.mxu0 0
        %350 = vmatpush1.bf16.xpose.msra.mxu0 0
        %351 = vmatprep.subr.bf16.mxu0 0
        %352 = vmatpush1.bf16.xpose.msra.mxu0 0
        %353 = vmatprep.subr.bf16.mxu0 0
        %354 = vmatpush1.bf16.xpose.msra.mxu0 0
        %355 = vmatprep.subr.bf16.mxu0 0
        %356 = vmatpush1.bf16.xpose.msra.mxu0 0
        %357 = vmatprep.subr.bf16.mxu0 0
        %358 = vmatpush1.bf16.xpose.msra.mxu0 0
        %359 = vmatprep.subr.bf16.mxu0 0
        %360 = vmatpush1.bf16.xpose.msra.mxu0 0
        %361 = vmatprep.subr.bf16.mxu0 0
        %362 = vmatpush1.bf16.xpose.msra.mxu0 0
        %363 = vmatprep.subr.bf16.mxu0 0
        %364 = vmatpush1.bf16.xpose.msra.mxu0 0
        %365 = vmatprep.subr.bf16.mxu0 0
        %366 = vmatpush1.bf16.xpose.msra.mxu0 0
        %367 = vmatprep.mubr.bf16.mxu0 0
        %368 = vmatmul.mubr.bf16.gmra.mrb[0].mxu0 %v330
        %v369 = vpop.f32.mrb[0].mxu0
        %v370 = vadd.f32 0.0, %v369
        %v371 = vpop.f32.mrb[0].mxu0
        %v372 = vpop.f32.mrb[0].mxu0
        %v373 = vadd.f32 0.0, %v372
        %v374 = vpop.f32.mrb[0].mxu0
        %375 = vdwg.mxu0
        %v376 = vmul.f32 %v370, 0.35355338
        %v377 = vmul.f32 %v373, 0.35355338
        %v378 = vadd.f32 %v376, %v314
        %v379 = vadd.f32 %v377, %v314
        %vm380 = vcmask 130048
        %v381 = vsel %vm380, %v378, -inf
        %382 = vmax.xlane.f32.xlu0 %v381
        %v383 = vpop.xlane.xlu0 %382
        %v384 = vsel %vm380, %v379, -inf
        %385 = vmax.xlane.f32.xlu0 %v384
        %v386 = vpop.xlane.xlu0 %385
        %v387 = vsub.f32 %v378, %v383
        %v388 = vsub.f32 %v379, %v386
        %v389 = vmul.f32 %v387, 1.442695
        %v390 = vpow.pop %v389
        %v391 = vmul.f32 %v388, 1.442695
        %v392 = vpow.pop %v391
        %v393 = vsel %vm380, %v390, 0.0
        %394 = vadd.xlane.f32.xlu0 %v393
        %v395 = vpop.xlane.xlu0 %394
        %v396 = vsel %vm380, %v392, 0.0
        %397 = vadd.xlane.f32.xlu0 %v396
        %v398 = vpop.xlane.xlu0 %397
        %v399 = vrcp.pop %v395
        %v400 = vrcp.pop %v398
        %v401 = vmul.f32 %v390, %v399
        %v402 = vmul.f32 %v392, %v400
        %v403 = vpack.c.bf16 %v402, %v401
        %v406 = vunpack.c.l.b16 %v309
        %v407 = vunpack.c.l.b16 %v310
        %v408 = vpack.c.b16 %v407, %v406
        %v411 = vsel %vm380, %v403, 0
        %413 = vmatprep.subr.bf16.mxu0 0
        %414 = vmatpush1.bf16.msra.mxu0 %v408
        %415 = vmatprep.subr.bf16.mxu0 0
        %416 = vmatpush1.bf16.msra.mxu0 0
        %417 = vmatprep.subr.bf16.mxu0 0
        %418 = vmatpush1.bf16.msra.mxu0 0
        %419 = vmatprep.subr.bf16.mxu0 0
        %420 = vmatpush1.bf16.msra.mxu0 0
        %421 = vmatprep.subr.bf16.mxu0 0
        %422 = vmatpush1.bf16.msra.mxu0 0
        %423 = vmatprep.subr.bf16.mxu0 0
        %424 = vmatpush1.bf16.msra.mxu0 0
        %425 = vmatprep.subr.bf16.mxu0 0
        %426 = vmatpush1.bf16.msra.mxu0 0
        %427 = vmatprep.subr.bf16.mxu0 0
        %428 = vmatpush1.bf16.msra.mxu0 0
        %429 = vmatprep.subr.bf16.mxu0 0
        %430 = vmatpush1.bf16.msra.mxu0 0
        %431 = vmatprep.subr.bf16.mxu0 0
        %432 = vmatpush1.bf16.msra.mxu0 0
        %433 = vmatprep.subr.bf16.mxu0 0
        %434 = vmatpush1.bf16.msra.mxu0 0
        %435 = vmatprep.subr.bf16.mxu0 0
        %436 = vmatpush1.bf16.msra.mxu0 0
        %437 = vmatprep.subr.bf16.mxu0 0
        %438 = vmatpush1.bf16.msra.mxu0 0
        %439 = vmatprep.subr.bf16.mxu0 0
        %440 = vmatpush1.bf16.msra.mxu0 0
        %441 = vmatprep.subr.bf16.mxu0 0
        %442 = vmatpush1.bf16.msra.mxu0 0
        %443 = vmatprep.subr.bf16.mxu0 0
        %444 = vmatpush1.bf16.msra.mxu0 0
        %445 = vmatprep.mubr.bf16.mxu0 0
        %446 = vmatmul.mubr.bf16.gmra.mrb[0].mxu0 %v411
        %v447 = vpop.f32.mrb[0].mxu0
        %v448 = vadd.f32 0.0, %v447
        %v449 = vpop.f32.mrb[0].mxu0
        %v450 = vpop.f32.mrb[0].mxu0
        %v451 = vadd.f32 0.0, %v450
        %v452 = vpop.f32.mrb[0].mxu0
        %453 = vdwg.mxu0
        %v454 = vpack.c.bf16 %v451, %v448
        %v456 = vunpack.c.l.b16 %v454
        %v457 = vunpack.c.h.b16 %v454
        %v458 = vpack.c.b16 %v456, %v456
        %v459 = vpack.c.b16 %v457, %v457
        %vm462 = vcmask 60416
        %463 = vst.msk [vmem:[%s303] sm:$0xf] %vm462, %v458
        %464 = vst.msk [vmem:[%s303 + $0x4] sm:$0xf] %vm462, %v459
        %465 = vrot.lane.b32.xlu0 %v322, 120
        %v466 = vpop.permute.xlu0 %465
        %467 = vrot.lane.b32.xlu0 %v327, 120
        %v468 = vpop.permute.xlu0 %467
        %v470 = vsel %vm328, %v466, 0
        %v473 = vsel %vm328, %v468, 0
        %475 = vmatprep.subr.bf16.mxu0 0
        %476 = vmatpush1.bf16.xpose.msra.mxu0 %v473
        %477 = vmatprep.subr.bf16.mxu0 0
        %478 = vmatpush1.bf16.xpose.msra.mxu0 0
        %479 = vmatprep.subr.bf16.mxu0 0
        %480 = vmatpush1.bf16.xpose.msra.mxu0 0
        %481 = vmatprep.subr.bf16.mxu0 0
        %482 = vmatpush1.bf16.xpose.msra.mxu0 0
        %483 = vmatprep.subr.bf16.mxu0 0
        %484 = vmatpush1.bf16.xpose.msra.mxu0 0
        %485 = vmatprep.subr.bf16.mxu0 0
        %486 = vmatpush1.bf16.xpose.msra.mxu0 0
        %487 = vmatprep.subr.bf16.mxu0 0
        %488 = vmatpush1.bf16.xpose.msra.mxu0 0
        %489 = vmatprep.subr.bf16.mxu0 0
        %490 = vmatpush1.bf16.xpose.msra.mxu0 0
        %491 = vmatprep.subr.bf16.mxu0 0
        %492 = vmatpush1.bf16.xpose.msra.mxu0 0
        %493 = vmatprep.subr.bf16.mxu0 0
        %494 = vmatpush1.bf16.xpose.msra.mxu0 0
        %495 = vmatprep.subr.bf16.mxu0 0
        %496 = vmatpush1.bf16.xpose.msra.mxu0 0
        %497 = vmatprep.subr.bf16.mxu0 0
        %498 = vmatpush1.bf16.xpose.msra.mxu0 0
        %499 = vmatprep.subr.bf16.mxu0 0
        %500 = vmatpush1.bf16.xpose.msra.mxu0 0
        %501 = vmatprep.subr.bf16.mxu0 0
        %502 = vmatpush1.bf16.xpose.msra.mxu0 0
        %503 = vmatprep.subr.bf16.mxu0 0
        %504 = vmatpush1.bf16.xpose.msra.mxu0 0
        %505 = vmatprep.subr.bf16.mxu0 0
        %506 = vmatpush1.bf16.xpose.msra.mxu0 0
        %507 = vmatprep.mubr.bf16.mxu0 0
        %508 = vmatmul.mubr.bf16.gmra.mrb[0].mxu0 %v470
        %v509 = vpop.f32.mrb[0].mxu0
        %v510 = vadd.f32 0.0, %v509
        %v511 = vpop.f32.mrb[0].mxu0
        %v512 = vpop.f32.mrb[0].mxu0
        %v513 = vadd.f32 0.0, %v512
        %v514 = vpop.f32.mrb[0].mxu0
        %515 = vdwg.mxu0
        %v516 = vmul.f32 %v510, 0.35355338
        %v517 = vmul.f32 %v513, 0.35355338
        %v518 = vadd.f32 %v516, %v314
        %v519 = vadd.f32 %v517, %v314
        %v520 = vsel %vm380, %v518, -inf
        %521 = vmax.xlane.f32.xlu0 %v520
        %v522 = vpop.xlane.xlu0 %521
        %v523 = vsel %vm380, %v519, -inf
        %524 = vmax.xlane.f32.xlu0 %v523
        %v525 = vpop.xlane.xlu0 %524
        %v526 = vsub.f32 %v518, %v522
        %v527 = vsub.f32 %v519, %v525
        %v528 = vmul.f32 %v526, 1.442695
        %v529 = vpow.pop %v528
        %v530 = vmul.f32 %v527, 1.442695
        %v531 = vpow.pop %v530
        %v532 = vsel %vm380, %v529, 0.0
        %533 = vadd.xlane.f32.xlu0 %v532
        %v534 = vpop.xlane.xlu0 %533
        %v535 = vsel %vm380, %v531, 0.0
        %536 = vadd.xlane.f32.xlu0 %v535
        %v537 = vpop.xlane.xlu0 %536
        %v538 = vrcp.pop %v534
        %v539 = vrcp.pop %v537
        %v540 = vmul.f32 %v529, %v538
        %v541 = vmul.f32 %v531, %v539
        %v542 = vpack.c.bf16 %v541, %v540
        %543 = vrot.lane.b32.xlu0 %v408, 120
        %v544 = vpop.permute.xlu0 %543
        %v547 = vsel %vm380, %v542, 0
        %549 = vmatprep.subr.bf16.mxu0 0
        %550 = vmatpush1.bf16.msra.mxu0 %v544
        %551 = vmatprep.subr.bf16.mxu0 0
        %552 = vmatpush1.bf16.msra.mxu0 0
        %553 = vmatprep.subr.bf16.mxu0 0
        %554 = vmatpush1.bf16.msra.mxu0 0
        %555 = vmatprep.subr.bf16.mxu0 0
        %556 = vmatpush1.bf16.msra.mxu0 0
        %557 = vmatprep.subr.bf16.mxu0 0
        %558 = vmatpush1.bf16.msra.mxu0 0
        %559 = vmatprep.subr.bf16.mxu0 0
        %560 = vmatpush1.bf16.msra.mxu0 0
        %561 = vmatprep.subr.bf16.mxu0 0
        %562 = vmatpush1.bf16.msra.mxu0 0
        %563 = vmatprep.subr.bf16.mxu0 0
        %564 = vmatpush1.bf16.msra.mxu0 0
        %565 = vmatprep.subr.bf16.mxu0 0
        %566 = vmatpush1.bf16.msra.mxu0 0
        %567 = vmatprep.subr.bf16.mxu0 0
        %568 = vmatpush1.bf16.msra.mxu0 0
        %569 = vmatprep.subr.bf16.mxu0 0
        %570 = vmatpush1.bf16.msra.mxu0 0
        %571 = vmatprep.subr.bf16.mxu0 0
        %572 = vmatpush1.bf16.msra.mxu0 0
        %573 = vmatprep.subr.bf16.mxu0 0
        %574 = vmatpush1.bf16.msra.mxu0 0
        %575 = vmatprep.subr.bf16.mxu0 0
        %576 = vmatpush1.bf16.msra.mxu0 0
        %577 = vmatprep.subr.bf16.mxu0 0
        %578 = vmatpush1.bf16.msra.mxu0 0
        %579 = vmatprep.subr.bf16.mxu0 0
        %580 = vmatpush1.bf16.msra.mxu0 0
        %581 = vmatprep.mubr.bf16.mxu0 0
        %582 = vmatmul.mubr.bf16.gmra.mrb[0].mxu0 %v547
        %v583 = vpop.f32.mrb[0].mxu0
        %v584 = vadd.f32 0.0, %v583
        %v585 = vpop.f32.mrb[0].mxu0
        %v586 = vpop.f32.mrb[0].mxu0
        %v587 = vadd.f32 0.0, %v586
        %v588 = vpop.f32.mrb[0].mxu0
        %589 = vdwg.mxu0
        %v590 = vpack.c.bf16 %v587, %v584
        %v592 = vunpack.c.l.b16 %v590
        %v593 = vunpack.c.h.b16 %v590
        %v594 = vpack.c.b16 %v592, %v592
        %v595 = vpack.c.b16 %v593, %v593
        %596 = vrot.lane.b32.xlu0 %v594, 8
        %v597 = vpop.permute.xlu0 %596
        %598 = vrot.lane.b32.xlu0 %v595, 8
        %v599 = vpop.permute.xlu0 %598
        %vm602 = vcmask 126016
        %603 = vst.msk [vmem:[%s303] sm:$0xf] %vm602, %v597
        %604 = vst.msk [vmem:[%s303 + $0x4] sm:$0xf] %vm602, %v599
        %605 = vrot.lane.b32.xlu0 %v322, 112
        %v606 = vpop.permute.xlu0 %605
        %607 = vrot.lane.b32.xlu0 %v327, 112
        %v608 = vpop.permute.xlu0 %607
        %v610 = vsel %vm328, %v606, 0
        %v613 = vsel %vm328, %v608, 0
        %615 = vmatprep.subr.bf16.mxu0 0
        %616 = vmatpush1.bf16.xpose.msra.mxu0 %v613
        %617 = vmatprep.subr.bf16.mxu0 0
        %618 = vmatpush1.bf16.xpose.msra.mxu0 0
        %619 = vmatprep.subr.bf16.mxu0 0
        %620 = vmatpush1.bf16.xpose.msra.mxu0 0
        %621 = vmatprep.subr.bf16.mxu0 0
        %622 = vmatpush1.bf16.xpose.msra.mxu0 0
        %623 = vmatprep.subr.bf16.mxu0 0
        %624 = vmatpush1.bf16.xpose.msra.mxu0 0
        %625 = vmatprep.subr.bf16.mxu0 0
        %626 = vmatpush1.bf16.xpose.msra.mxu0 0
        %627 = vmatprep.subr.bf16.mxu0 0
        %628 = vmatpush1.bf16.xpose.msra.mxu0 0
        %629 = vmatprep.subr.bf16.mxu0 0
        %630 = vmatpush1.bf16.xpose.msra.mxu0 0
        %631 = vmatprep.subr.bf16.mxu0 0
        %632 = vmatpush1.bf16.xpose.msra.mxu0 0
        %633 = vmatprep.subr.bf16.mxu0 0
        %634 = vmatpush1.bf16.xpose.msra.mxu0 0
        %635 = vmatprep.subr.bf16.mxu0 0
        %636 = vmatpush1.bf16.xpose.msra.mxu0 0
        %637 = vmatprep.subr.bf16.mxu0 0
        %638 = vmatpush1.bf16.xpose.msra.mxu0 0
        %639 = vmatprep.subr.bf16.mxu0 0
        %640 = vmatpush1.bf16.xpose.msra.mxu0 0
        %641 = vmatprep.subr.bf16.mxu0 0
        %642 = vmatpush1.bf16.xpose.msra.mxu0 0
        %643 = vmatprep.subr.bf16.mxu0 0
        %644 = vmatpush1.bf16.xpose.msra.mxu0 0
        %645 = vmatprep.subr.bf16.mxu0 0
        %646 = vmatpush1.bf16.xpose.msra.mxu0 0
        %647 = vmatprep.mubr.bf16.mxu0 0
        %648 = vmatmul.mubr.bf16.gmra.mrb[0].mxu0 %v610
        %v649 = vpop.f32.mrb[0].mxu0
        %v650 = vadd.f32 0.0, %v649
        %v651 = vpop.f32.mrb[0].mxu0
        %v652 = vpop.f32.mrb[0].mxu0
        %v653 = vadd.f32 0.0, %v652
        %v654 = vpop.f32.mrb[0].mxu0
        %655 = vdwg.mxu0
        %v656 = vmul.f32 %v650, 0.35355338
        %v657 = vmul.f32 %v653, 0.35355338
        %v658 = vadd.f32 %v656, %v314
        %v659 = vadd.f32 %v657, %v314
        %v660 = vsel %vm380, %v658, -inf
        %661 = vmax.xlane.f32.xlu0 %v660
        %v662 = vpop.xlane.xlu0 %661
        %v663 = vsel %vm380, %v659, -inf
        %664 = vmax.xlane.f32.xlu0 %v663
        %v665 = vpop.xlane.xlu0 %664
        %v666 = vsub.f32 %v658, %v662
        %v667 = vsub.f32 %v659, %v665
        %v668 = vmul.f32 %v666, 1.442695
        %v669 = vpow.pop %v668
        %v670 = vmul.f32 %v667, 1.442695
        %v671 = vpow.pop %v670
        %v672 = vsel %vm380, %v669, 0.0
        %673 = vadd.xlane.f32.xlu0 %v672
        %v674 = vpop.xlane.xlu0 %673
        %v675 = vsel %vm380, %v671, 0.0
        %676 = vadd.xlane.f32.xlu0 %v675
        %v677 = vpop.xlane.xlu0 %676
        %v678 = vrcp.pop %v674
        %v679 = vrcp.pop %v677
        %v680 = vmul.f32 %v669, %v678
        %v681 = vmul.f32 %v671, %v679
        %v682 = vpack.c.bf16 %v681, %v680
        %683 = vrot.lane.b32.xlu0 %v408, 112
        %v684 = vpop.permute.xlu0 %683
        %v687 = vsel %vm380, %v682, 0
        %689 = vmatprep.subr.bf16.mxu0 0
        %690 = vmatpush1.bf16.msra.mxu0 %v684
        %691 = vmatprep.subr.bf16.mxu0 0
        %692 = vmatpush1.bf16.msra.mxu0 0
        %693 = vmatprep.subr.bf16.mxu0 0
        %694 = vmatpush1.bf16.msra.mxu0 0
        %695 = vmatprep.subr.bf16.mxu0 0
        %696 = vmatpush1.bf16.msra.mxu0 0
        %697 = vmatprep.subr.bf16.mxu0 0
        %698 = vmatpush1.bf16.msra.mxu0 0
        %699 = vmatprep.subr.bf16.mxu0 0
        %700 = vmatpush1.bf16.msra.mxu0 0
        %701 = vmatprep.subr.bf16.mxu0 0
        %702 = vmatpush1.bf16.msra.mxu0 0
        %703 = vmatprep.subr.bf16.mxu0 0
        %704 = vmatpush1.bf16.msra.mxu0 0
        %705 = vmatprep.subr.bf16.mxu0 0
        %706 = vmatpush1.bf16.msra.mxu0 0
        %707 = vmatprep.subr.bf16.mxu0 0
        %708 = vmatpush1.bf16.msra.mxu0 0
        %709 = vmatprep.subr.bf16.mxu0 0
        %710 = vmatpush1.bf16.msra.mxu0 0
        %711 = vmatprep.subr.bf16.mxu0 0
        %712 = vmatpush1.bf16.msra.mxu0 0
        %713 = vmatprep.subr.bf16.mxu0 0
        %714 = vmatpush1.bf16.msra.mxu0 0
        %715 = vmatprep.subr.bf16.mxu0 0
        %716 = vmatpush1.bf16.msra.mxu0 0
        %717 = vmatprep.subr.bf16.mxu0 0
        %718 = vmatpush1.bf16.msra.mxu0 0
        %719 = vmatprep.subr.bf16.mxu0 0
        %720 = vmatpush1.bf16.msra.mxu0 0
        %721 = vmatprep.mubr.bf16.mxu0 0
        %722 = vmatmul.mubr.bf16.gmra.mrb[0].mxu0 %v687
        %v723 = vpop.f32.mrb[0].mxu0
        %v724 = vadd.f32 0.0, %v723
        %v725 = vpop.f32.mrb[0].mxu0
        %v726 = vpop.f32.mrb[0].mxu0
        %v727 = vadd.f32 0.0, %v726
        %v728 = vpop.f32.mrb[0].mxu0
        %729 = vdwg.mxu0
        %v730 = vpack.c.bf16 %v727, %v724
        %v732 = vunpack.c.l.b16 %v730
        %v733 = vunpack.c.h.b16 %v730
        %v734 = vpack.c.b16 %v732, %v732
        %v735 = vpack.c.b16 %v733, %v733
        %736 = vrot.lane.b32.xlu0 %v734, 16
        %v737 = vpop.permute.xlu0 %736
        %738 = vrot.lane.b32.xlu0 %v735, 16
        %v739 = vpop.permute.xlu0 %738
        %vm742 = vcmask 191616
        %743 = vst.msk [vmem:[%s303] sm:$0xf] %vm742, %v737
        %744 = vst.msk [vmem:[%s303 + $0x4] sm:$0xf] %vm742, %v739
        %745 = vrot.lane.b32.xlu0 %v322, 104
        %v746 = vpop.permute.xlu0 %745
        %747 = vrot.lane.b32.xlu0 %v327, 104
        %v748 = vpop.permute.xlu0 %747
        %v750 = vsel %vm328, %v746, 0
        %v753 = vsel %vm328, %v748, 0
        %755 = vmatprep.subr.bf16.mxu0 0
        %756 = vmatpush1.bf16.xpose.msra.mxu0 %v753
        %757 = vmatprep.subr.bf16.mxu0 0
        %758 = vmatpush1.bf16.xpose.msra.mxu0 0
        %759 = vmatprep.subr.bf16.mxu0 0
        %760 = vmatpush1.bf16.xpose.msra.mxu0 0
        %761 = vmatprep.subr.bf16.mxu0 0
        %762 = vmatpush1.bf16.xpose.msra.mxu0 0
        %763 = vmatprep.subr.bf16.mxu0 0
        %764 = vmatpush1.bf16.xpose.msra.mxu0 0
        %765 = vmatprep.subr.bf16.mxu0 0
        %766 = vmatpush1.bf16.xpose.msra.mxu0 0
        %767 = vmatprep.subr.bf16.mxu0 0
        %768 = vmatpush1.bf16.xpose.msra.mxu0 0
        %769 = vmatprep.subr.bf16.mxu0 0
        %770 = vmatpush1.bf16.xpose.msra.mxu0 0
        %771 = vmatprep.subr.bf16.mxu0 0
        %772 = vmatpush1.bf16.xpose.msra.mxu0 0
        %773 = vmatprep.subr.bf16.mxu0 0
        %774 = vmatpush1.bf16.xpose.msra.mxu0 0
        %775 = vmatprep.subr.bf16.mxu0 0
        %776 = vmatpush1.bf16.xpose.msra.mxu0 0
        %777 = vmatprep.subr.bf16.mxu0 0
        %778 = vmatpush1.bf16.xpose.msra.mxu0 0
        %779 = vmatprep.subr.bf16.mxu0 0
        %780 = vmatpush1.bf16.xpose.msra.mxu0 0
        %781 = vmatprep.subr.bf16.mxu0 0
        %782 = vmatpush1.bf16.xpose.msra.mxu0 0
        %783 = vmatprep.subr.bf16.mxu0 0
        %784 = vmatpush1.bf16.xpose.msra.mxu0 0
        %785 = vmatprep.subr.bf16.mxu0 0
        %786 = vmatpush1.bf16.xpose.msra.mxu0 0
        %787 = vmatprep.mubr.bf16.mxu0 0
        %788 = vmatmul.mubr.bf16.gmra.mrb[0].mxu0 %v750
        %v789 = vpop.f32.mrb[0].mxu0
        %v790 = vadd.f32 0.0, %v789
        %v791 = vpop.f32.mrb[0].mxu0
        %v792 = vpop.f32.mrb[0].mxu0
        %v793 = vadd.f32 0.0, %v792
        %v794 = vpop.f32.mrb[0].mxu0
        %795 = vdwg.mxu0
        %v796 = vmul.f32 %v790, 0.35355338
        %v797 = vmul.f32 %v793, 0.35355338
        %v798 = vadd.f32 %v796, %v314
        %v799 = vadd.f32 %v797, %v314
        %v800 = vsel %vm380, %v798, -inf
        %801 = vmax.xlane.f32.xlu0 %v800
        %v802 = vpop.xlane.xlu0 %801
        %v803 = vsel %vm380, %v799, -inf
        %804 = vmax.xlane.f32.xlu0 %v803
        %v805 = vpop.xlane.xlu0 %804
        %v806 = vsub.f32 %v798, %v802
        %v807 = vsub.f32 %v799, %v805
        %v808 = vmul.f32 %v806, 1.442695
        %v809 = vpow.pop %v808
        %v810 = vmul.f32 %v807, 1.442695
        %v811 = vpow.pop %v810
        %v812 = vsel %vm380, %v809, 0.0
        %813 = vadd.xlane.f32.xlu0 %v812
        %v814 = vpop.xlane.xlu0 %813
        %v815 = vsel %vm380, %v811, 0.0
        %816 = vadd.xlane.f32.xlu0 %v815
        %v817 = vpop.xlane.xlu0 %816
        %v818 = vrcp.pop %v814
        %v819 = vrcp.pop %v817
        %v820 = vmul.f32 %v809, %v818
        %v821 = vmul.f32 %v811, %v819
        %v822 = vpack.c.bf16 %v821, %v820
        %823 = vrot.lane.b32.xlu0 %v408, 104
        %v824 = vpop.permute.xlu0 %823
        %v827 = vsel %vm380, %v822, 0
        %829 = vmatprep.subr.bf16.mxu0 0
        %830 = vmatpush1.bf16.msra.mxu0 %v824
        %831 = vmatprep.subr.bf16.mxu0 0
        %832 = vmatpush1.bf16.msra.mxu0 0
        %833 = vmatprep.subr.bf16.mxu0 0
        %834 = vmatpush1.bf16.msra.mxu0 0
        %835 = vmatprep.subr.bf16.mxu0 0
        %836 = vmatpush1.bf16.msra.mxu0 0
        %837 = vmatprep.subr.bf16.mxu0 0
        %838 = vmatpush1.bf16.msra.mxu0 0
        %839 = vmatprep.subr.bf16.mxu0 0
        %840 = vmatpush1.bf16.msra.mxu0 0
        %841 = vmatprep.subr.bf16.mxu0 0
        %842 = vmatpush1.bf16.msra.mxu0 0
        %843 = vmatprep.subr.bf16.mxu0 0
        %844 = vmatpush1.bf16.msra.mxu0 0
        %845 = vmatprep.subr.bf16.mxu0 0
        %846 = vmatpush1.bf16.msra.mxu0 0
        %847 = vmatprep.subr.bf16.mxu0 0
        %848 = vmatpush1.bf16.msra.mxu0 0
        %849 = vmatprep.subr.bf16.mxu0 0
        %850 = vmatpush1.bf16.msra.mxu0 0
        %851 = vmatprep.subr.bf16.mxu0 0
        %852 = vmatpush1.bf16.msra.mxu0 0
        %853 = vmatprep.subr.bf16.mxu0 0
        %854 = vmatpush1.bf16.msra.mxu0 0
        %855 = vmatprep.subr.bf16.mxu0 0
        %856 = vmatpush1.bf16.msra.mxu0 0
        %857 = vmatprep.subr.bf16.mxu0 0
        %858 = vmatpush1.bf16.msra.mxu0 0
        %859 = vmatprep.subr.bf16.mxu0 0
        %860 = vmatpush1.bf16.msra.mxu0 0
        %861 = vmatprep.mubr.bf16.mxu0 0
        %862 = vmatmul.mubr.bf16.gmra.mrb[0].mxu0 %v827
        %v863 = vpop.f32.mrb[0].mxu0
        %v864 = vadd.f32 0.0, %v863
        %v865 = vpop.f32.mrb[0].mxu0
        %v866 = vpop.f32.mrb[0].mxu0
        %v867 = vadd.f32 0.0, %v866
        %v868 = vpop.f32.mrb[0].mxu0
        %869 = vdwg.mxu0
        %v870 = vpack.c.bf16 %v867, %v864
        %v872 = vunpack.c.l.b16 %v870
        %v873 = vunpack.c.h.b16 %v870
        %v874 = vpack.c.b16 %v872, %v872
        %v875 = vpack.c.b16 %v873, %v873
        %876 = vrot.lane.b32.xlu0 %v874, 24
        %v877 = vpop.permute.xlu0 %876
        %878 = vrot.lane.b32.xlu0 %v875, 24
        %v879 = vpop.permute.xlu0 %878
        %vm882 = vcmask 257216
        %883 = vst.msk [vmem:[%s303] sm:$0xf] %vm882, %v877
        %884 = vst.msk [vmem:[%s303 + $0x4] sm:$0xf] %vm882, %v879
        %p885 = scmp.lt.s32.totalorder %s14, 1
        %s886 = scalar_select %p885, %s14, 1
        %s887 = smul.addr %s886, 2
        %s888 = smul.addr %s887, 4
        %s889 = scalar_lea.vmem %s3, %s888
        // Predicated region
        $region115: #{gcs_transformer_forward.47} parent=105 // pred_check
          %p890 = pneg %p110
        $region116: #{gcs_transformer_forward.47} parent=105 // pred_check_branch
          %892 = sbr.rel (%p890) target = $region118
        $region117: #{gcs_transformer_forward.47} parent=105 // pred_region
          _
        $region118: #{gcs_transformer_forward.47} parent=105 // pred_fallthru
          _
      $region106: #{gcs_transformer_forward.47} parent=5 // pred_fallthru
        _
      %p893 = scmp.le.s32.totalorder 2, %s9
      // Predicated region
      $region119: #{gcs_transformer_forward.47} parent=5 // pred_check
        %p894 = pneg %p893
      $region120: #{gcs_transformer_forward.47} parent=5 // pred_check_branch
        %896 = sbr.rel (%p894) target = $region122
      $region121: #{gcs_transformer_forward.47} parent=5 // pred_region
        %s897 = ssub.s32 %s9, 2
        // Predicated region
        $region123: #{gcs_transformer_forward.47} parent=121 // pred_check
          %p898 = pneg %p116
        $region124: #{gcs_transformer_forward.47} parent=121 // pred_check_branch
          %900 = sbr.rel (%p898) target = $region126
        $region125: #{gcs_transformer_forward.47} parent=121 // pred_region
          %p901 = scmp.lt.s32.totalorder %s15, 1
          %s902 = scalar_select %p901, %s15, 1
          %s903 = smul.addr %s902, 2
          %s904 = smul.addr %s903, 4
          %s905 = scalar_lea.vmem %s3, %s904
        $region126: #{gcs_transformer_forward.47} parent=121 // pred_fallthru
          _
      $region122: #{gcs_transformer_forward.47} parent=5 // pred_fallthru
        _
    $region6: #{gcs_transformer_forward.47} parent=1 // loop_footer
      %s13 = sadd.s32 1, %s9
    $region7: #{gcs_transformer_forward.47} parent=1 // loop_footer_branch
      %8 = sbr.rel target = $region3
    $region8: #{gcs_transformer_forward.47} parent=1 // loop_exit
      _

// kernel: gcs_transformer_forward.61
$region0: #{gcs_transformer_forward.61}
  #allocation0 [shape = 'u32[]', space=smem, size = 0x4, offset = 0x4, fixed_abs, tag = 'smem constant byte address 0x4 - core index']
  #allocation1 [shape = 'u32[144,128]{1,0:T(1,128)}', space=vmem, size = 0x12000, scoped, tag = 'internal scratch']
  #allocation2 [shape = 'f32[32,128]{1,0:T(8,128)}', space=vmem, size = 0x4000, scoped, tag = 'scratch operand']
  %s0 = inlined_call_operand.vmem [shape: bf16[32,128], index: 0, kind: input, shape index: {}]
  %s1 = inlined_call_operand.vmem [shape: bf16[128,128], index: 1, kind: input, shape index: {}]
  %s2 = inlined_call_operand.vmem [shape: f32[1,128], index: 2, kind: input, shape index: {}]
  %s3 = inlined_call_operand.vmem [shape: f32[32,128], index: 3, kind: output, shape index: {}]
  %s4 = sld [smem:[#allocation0]]
  $region30: #{gcs_transformer_forward.61} parent=0
    _
  %s6 = ssub.s32 1, %s4
  %s7 = scalar_select 0, %s6, %s4
  // Predicated region
  $region2: #{gcs_transformer_forward.61} parent=0 // pred_check
    _
  $region3: #{gcs_transformer_forward.61} parent=0 // pred_check_branch
    %9 = sbr.rel (0) target = $region5
  $region4: #{gcs_transformer_forward.61} parent=0 // pred_region
    _
  $region5: #{gcs_transformer_forward.61} parent=0 // pred_fallthru
    _
  // Predicated region
  $region6: #{gcs_transformer_forward.61} parent=0 // pred_check
    _
  $region7: #{gcs_transformer_forward.61} parent=0 // pred_check_branch
    %11 = sbr.rel (0) target = $region9
  $region8: #{gcs_transformer_forward.61} parent=0 // pred_region
    _
  $region9: #{gcs_transformer_forward.61} parent=0 // pred_fallthru
    _
  // Predicated region
  $region10: #{gcs_transformer_forward.61} parent=0 // pred_check
    _
  $region11: #{gcs_transformer_forward.61} parent=0 // pred_check_branch
    %13 = sbr.rel (0) target = $region13
  $region12: #{gcs_transformer_forward.61} parent=0 // pred_region
    _
  $region13: #{gcs_transformer_forward.61} parent=0 // pred_fallthru
    _
  %p15 = scmp.eq.s32.totalorder 0, 0
  // Predicated region
  $region14: #{gcs_transformer_forward.61} parent=0 // pred_check
    %p16 = pneg %p15
  $region15: #{gcs_transformer_forward.61} parent=0 // pred_check_branch
    %18 = sbr.rel (%p16) target = $region17
  $region16: #{gcs_transformer_forward.61} parent=0 // pred_region
    %19 = vst [vmem:[#allocation2] sm:$0xff] 0.0
    %20 = vst [vmem:[#allocation2 + $0x8] sm:$0xff] 0.0
    %21 = vst [vmem:[#allocation2 + $0x10] sm:$0xff] 0.0
    %22 = vst [vmem:[#allocation2 + $0x18] sm:$0xff] 0.0
  $region17: #{gcs_transformer_forward.61} parent=0 // pred_fallthru
    _
  %v23 = vld [vmem:[#allocation2] sm:$0xff]
  %v24 = vld [vmem:[#allocation2 + $0x8] sm:$0xff]
  %v25 = vld [vmem:[#allocation2 + $0x10] sm:$0xff]
  %v26 = vld [vmem:[#allocation2 + $0x18] sm:$0xff]
  %v27 = vld [vmem:[%s0] sm:$0xf]
  %v28 = vld [vmem:[%s0 + $0x4] sm:$0xf]
  %v29 = vld [vmem:[%s0 + $0x8] sm:$0xf]
  %v30 = vld [vmem:[%s0 + $0xc] sm:$0xf]
  %v31 = vld [vmem:[%s1] sm:$0xf]
  %v32 = vld [vmem:[%s1 + $0x4] sm:$0xf]
  %v33 = vld [vmem:[%s1 + $0x8] sm:$0xf]
  %v34 = vld [vmem:[%s1 + $0xc] sm:$0xf]
  %v35 = vld [vmem:[%s1 + $0x10] sm:$0xf]
  %v36 = vld [vmem:[%s1 + $0x14] sm:$0xf]
  %v37 = vld [vmem:[%s1 + $0x18] sm:$0xf]
  %v38 = vld [vmem:[%s1 + $0x1c] sm:$0xf]
  %v39 = vld [vmem:[%s1 + $0x20] sm:$0xf]
  %v40 = vld [vmem:[%s1 + $0x24] sm:$0xf]
  %v41 = vld [vmem:[%s1 + $0x28] sm:$0xf]
  %v42 = vld [vmem:[%s1 + $0x2c] sm:$0xf]
  %v43 = vld [vmem:[%s1 + $0x30] sm:$0xf]
  %v44 = vld [vmem:[%s1 + $0x34] sm:$0xf]
  %v45 = vld [vmem:[%s1 + $0x38] sm:$0xf]
  %v46 = vld [vmem:[%s1 + $0x3c] sm:$0xf]
  %v51 = vunpack.c.l.b16 %v27
  %v52 = vunpack.c.l.b16 %v28
  %v53 = vunpack.c.l.b16 %v29
  %v54 = vunpack.c.l.b16 %v30
  %v55 = vpack.c.b16 %v52, %v51
  %v56 = vpack.c.b16 %v54, %v53
  %v75 = vunpack.c.l.b16 %v31
  %v76 = vunpack.c.l.b16 %v32
  %v77 = vunpack.c.l.b16 %v33
  %v78 = vunpack.c.l.b16 %v34
  %v79 = vunpack.c.l.b16 %v35
  %v80 = vunpack.c.l.b16 %v36
  %v81 = vunpack.c.l.b16 %v37
  %v82 = vunpack.c.l.b16 %v38
  %v83 = vunpack.c.l.b16 %v39
  %v84 = vunpack.c.l.b16 %v40
  %v85 = vunpack.c.l.b16 %v41
  %v86 = vunpack.c.l.b16 %v42
  %v87 = vunpack.c.l.b16 %v43
  %v88 = vunpack.c.l.b16 %v44
  %v89 = vunpack.c.l.b16 %v45
  %v90 = vunpack.c.l.b16 %v46
  %v91 = vpack.c.b16 %v76, %v75
  %v92 = vpack.c.b16 %v78, %v77
  %v93 = vpack.c.b16 %v80, %v79
  %v94 = vpack.c.b16 %v82, %v81
  %v95 = vpack.c.b16 %v84, %v83
  %v96 = vpack.c.b16 %v86, %v85
  %v97 = vpack.c.b16 %v88, %v87
  %v98 = vpack.c.b16 %v90, %v89
  %107 = vmatprep.subr.bf16.mxu0 0
  %108 = vmatpush1.bf16.msra.mxu0 %v91
  %109 = vmatprep.subr.bf16.mxu0 0
  %110 = vmatpush1.bf16.msra.mxu0 %v92
  %111 = vmatprep.subr.bf16.mxu0 0
  %112 = vmatpush1.bf16.msra.mxu0 %v93
  %113 = vmatprep.subr.bf16.mxu0 0
  %114 = vmatpush1.bf16.msra.mxu0 %v94
  %115 = vmatprep.subr.bf16.mxu0 0
  %116 = vmatpush1.bf16.msra.mxu0 %v95
  %117 = vmatprep.subr.bf16.mxu0 0
  %118 = vmatpush1.bf16.msra.mxu0 %v96
  %119 = vmatprep.subr.bf16.mxu0 0
  %120 = vmatpush1.bf16.msra.mxu0 %v97
  %121 = vmatprep.subr.bf16.mxu0 0
  %122 = vmatpush1.bf16.msra.mxu0 %v98
  %123 = vmatprep.subr.bf16.mxu0 0
  %124 = vmatpush1.bf16.msra.mxu0 0
  %125 = vmatprep.subr.bf16.mxu0 0
  %126 = vmatpush1.bf16.msra.mxu0 0
  %127 = vmatprep.subr.bf16.mxu0 0
  %128 = vmatpush1.bf16.msra.mxu0 0
  %129 = vmatprep.subr.bf16.mxu0 0
  %130 = vmatpush1.bf16.msra.mxu0 0
  %131 = vmatprep.subr.bf16.mxu0 0
  %132 = vmatpush1.bf16.msra.mxu0 0
  %133 = vmatprep.subr.bf16.mxu0 0
  %134 = vmatpush1.bf16.msra.mxu0 0
  %135 = vmatprep.subr.bf16.mxu0 0
  %136 = vmatpush1.bf16.msra.mxu0 0
  %137 = vmatprep.subr.bf16.mxu0 0
  %138 = vmatpush1.bf16.msra.mxu0 0
  %139 = vmatprep.mubr.bf16.mxu0 0
  %140 = vmatmul.mubr.bf16.gmra.mrb[0].mxu0 %v55
  %v141 = vpop.f32.mrb[0].mxu0
  %v142 = vadd.f32 0.0, %v141
  %v143 = vpop.f32.mrb[0].mxu0
  %v144 = vpop.f32.mrb[0].mxu0
  %v145 = vadd.f32 0.0, %v144
  %v146 = vpop.f32.mrb[0].mxu0
  %147 = vmatprep.mubr.bf16.mxu0 0
  %148 = vmatmul.mubr.bf16.gmra.mrb[0].mxu0 %v56
  %v149 = vpop.f32.mrb[0].mxu0
  %v150 = vadd.f32 0.0, %v149
  %v151 = vpop.f32.mrb[0].mxu0
  %v152 = vpop.f32.mrb[0].mxu0
  %v153 = vadd.f32 0.0, %v152
  %v154 = vpop.f32.mrb[0].mxu0
  %155 = vdwg.mxu0
  %v156 = vadd.f32 %v23, %v142
  %v157 = vadd.f32 %v24, %v145
  %v158 = vadd.f32 %v25, %v150
  %v159 = vadd.f32 %v26, %v153
  %160 = vst [vmem:[#allocation2] sm:$0xff] %v156
  %161 = vst [vmem:[#allocation2 + $0x8] sm:$0xff] %v157
  %162 = vst [vmem:[#allocation2 + $0x10] sm:$0xff] %v158
  %163 = vst [vmem:[#allocation2 + $0x18] sm:$0xff] %v159
  // Predicated region
  $region18: #{gcs_transformer_forward.61} parent=0 // pred_check
    %p164 = pneg %p15
  $region19: #{gcs_transformer_forward.61} parent=0 // pred_check_branch
    %166 = sbr.rel (%p164) target = $region21
  $region20: #{gcs_transformer_forward.61} parent=0 // pred_region
    %v167 = vld [vmem:[#allocation2] sm:$0xff]
    %v168 = vld [vmem:[#allocation2 + $0x8] sm:$0xff]
    %v169 = vld [vmem:[#allocation2 + $0x10] sm:$0xff]
    %v170 = vld [vmem:[#allocation2 + $0x18] sm:$0xff]
    %v171 = vld [vmem:[%s2] sm:$0x1]
    %v173 = vlaneseq
    %v174 = vshrl.u32 %v173, 7
    %v175 = vsub.s32 0, %v174
    %v176 = vrot.slane %v171, %v175
    %v178 = vadd.f32 %v167, %v176
    %v179 = vadd.f32 %v168, %v176
    %v180 = vadd.f32 %v169, %v176
    %v181 = vadd.f32 %v170, %v176
    %182 = vst [vmem:[%s3] sm:$0xff] %v178
    %183 = vst [vmem:[%s3 + $0x8] sm:$0xff] %v179
    %184 = vst [vmem:[%s3 + $0x10] sm:$0xff] %v180
    %185 = vst [vmem:[%s3 + $0x18] sm:$0xff] %v181
  $region21: #{gcs_transformer_forward.61} parent=0 // pred_fallthru
    _
  // Predicated region
  $region22: #{gcs_transformer_forward.61} parent=0 // pred_check
    _
  $region23: #{gcs_transformer_forward.61} parent=0 // pred_check_branch
    %187 = sbr.rel (0) target = $region25
  $region24: #{gcs_transformer_forward.61} parent=0 // pred_region
    _
  $region25: #{gcs_transformer_forward.61} parent=0 // pred_fallthru
    _
  // Predicated region
  $region26: #{gcs_transformer_forward.61} parent=0 // pred_check
    _
  $region27: #{gcs_transformer_forward.61} parent=0 // pred_check_branch
    %189 = sbr.rel (0) target = $region29
  $region28: #{gcs_transformer_forward.61} parent=0 // pred_region
    _
  $region29: #{gcs_transformer_forward.61} parent=0 // pred_fallthru
    _

</llo_original>
